<compile_context>
chip_gen: v6e
topology: v6e:2x2x1
jax: 0.10.0
libtpu: 0.0.40
codegen_flags: <defaults>
</compile_context>

<pallas_src>
import functools

import jax
import jax.numpy as jnp
from jax.experimental import pallas as pl
from jax.experimental.pallas import tpu as pltpu


# --------------------------------- kernel ------------------------------------

def _attention_kernel(x_ref, wqkv_ref, bqkv_ref, rh_ref, rw_ref, eh_ref, ew_ref,
                      wproj_ref, bproj_ref, o_ref, acc_ref, *,
                      H, W, head_dim, num_heads, scale, use_rel_pos):
    head = pl.program_id(1)

    @pl.when(head == 0)
    def _():
        acc_ref[...] = jnp.zeros_like(acc_ref)

    x = x_ref[0]                                             # (HW, dim)
    HW = H * W
    hd = head_dim

    # fused per-head q/k/v projection: (HW, dim) @ (dim, 3*hd)
    qkv = (jnp.dot(x, wqkv_ref[0], preferred_element_type=jnp.float32)
           + bqkv_ref[0])
    q = qkv[:, 0 * hd:1 * hd]
    k = qkv[:, 1 * hd:2 * hd]
    v = qkv[:, 2 * hd:3 * hd]

    # attention logits (HW, HW) -- lane-dense
    attn = jnp.einsum('qc,kc->qk', q * scale, k,
                      preferred_element_type=jnp.float32)

    if use_rel_pos:
        # decomposed relative position bias (uses the *unscaled* q)
        r_q = q.reshape(H, W, hd)                            # (H, W, hd)
        rel_h = jnp.einsum('hwc,hkc->hwk', r_q, rh_ref[...],
                           preferred_element_type=jnp.float32)      # (H, W, H)
        rel_w = jnp.sum(r_q[:, :, None, :] * rw_ref[...][None, :, :, :],
                        axis=-1)                                     # (H, W, W)
        # expand (HW, H)/(HW, W) to the full (HW, HW) key axis with 0/1
        # matrices (lane-dense MXU matmuls instead of 4-D reshapes).
        bias = (jnp.dot(rel_h.reshape(HW, H), eh_ref[...],
                        preferred_element_type=jnp.float32)
                + jnp.dot(rel_w.reshape(HW, W), ew_ref[...],
                          preferred_element_type=jnp.float32))
        attn = attn + bias

    # softmax over the key (lane) axis
    m = jnp.max(attn, axis=-1, keepdims=True)
    p = jnp.exp(attn - m)
    denom = jnp.sum(p, axis=-1, keepdims=True)
    p = p * pl.reciprocal(denom, approx=True)

    o_head = jnp.dot(p, v, preferred_element_type=jnp.float32)      # (HW, hd)

    # fuse the output projection into the head reduction
    acc_ref[...] += jnp.dot(o_head, wproj_ref[0],
                            preferred_element_type=jnp.float32)

    @pl.when(head == num_heads - 1)
    def _():
        o_ref[0] = (acc_ref[...] + bproj_ref[...]).astype(o_ref.dtype)


# --------------------- parameter-only glue (plain JAX) ------------------------

def _get_rel_pos(q_size, k_size, rel_pos):
    """JAX equivalent of get_rel_pos (parameter/shape only)."""
    max_rel_dist = int(2 * max(q_size, k_size) - 1)
    L = rel_pos.shape[0]
    if L != max_rel_dist:
        # F.interpolate(mode='linear', align_corners=False)
        pos = (jnp.arange(max_rel_dist, dtype=jnp.float32) + 0.5) * (L / max_rel_dist) - 0.5
        pos = jnp.clip(pos, 0.0, L - 1)
        lo = jnp.floor(pos).astype(jnp.int32)
        hi = jnp.minimum(lo + 1, L - 1)
        w = (pos - lo.astype(jnp.float32))[:, None]
        rel_pos_resized = rel_pos[lo] * (1.0 - w) + rel_pos[hi] * w
    else:
        rel_pos_resized = rel_pos
    q_coords = jnp.arange(q_size, dtype=jnp.float32)[:, None] * max(k_size / q_size, 1.0)
    k_coords = jnp.arange(k_size, dtype=jnp.float32)[None, :] * max(q_size / k_size, 1.0)
    rel_coords = q_coords - k_coords + (k_size - 1) * max(q_size / k_size, 1.0)
    return rel_pos_resized[rel_coords.astype(jnp.int32)]


# -------------------------------- wrapper -------------------------------------

def attention_forward(x, params, *, num_heads, use_rel_pos=True):
    B, H, W, dim = x.shape
    HW = H * W
    hd = dim // num_heads
    scale = hd ** -0.5

    w_qkv, b_qkv = params['w_qkv'], params['b_qkv']          # (3*dim, dim), (3*dim,)
    w_proj, b_proj = params['w_proj'], params['b_proj']      # (dim, dim),   (dim,)

    # per-head fused qkv weights (input-major, so the kernel does x @ w directly)
    wq = jnp.transpose(w_qkv[0 * dim:1 * dim].reshape(num_heads, hd, dim), (0, 2, 1))
    wk = jnp.transpose(w_qkv[1 * dim:2 * dim].reshape(num_heads, hd, dim), (0, 2, 1))
    wv = jnp.transpose(w_qkv[2 * dim:3 * dim].reshape(num_heads, hd, dim), (0, 2, 1))
    wqkv_h = jnp.concatenate([wq, wk, wv], axis=-1).astype(jnp.float32)   # (nh, dim, 3*hd)
    bqkv_h = jnp.concatenate(
        [b_qkv[0 * dim:1 * dim].reshape(num_heads, hd),
         b_qkv[1 * dim:2 * dim].reshape(num_heads, hd),
         b_qkv[2 * dim:3 * dim].reshape(num_heads, hd)],
        axis=-1).reshape(num_heads, 1, 3 * hd).astype(jnp.float32)

    # per-head slice of the output projection: (nh, hd, dim)
    wproj_h = jnp.transpose(w_proj, (1, 0)).reshape(num_heads, hd, dim).astype(jnp.float32)
    bproj = b_proj.reshape(1, dim).astype(jnp.float32)

    if use_rel_pos:
        Rh = _get_rel_pos(H, H, params['rel_pos_h']).astype(jnp.float32)  # (H, H, hd)
        Rw = _get_rel_pos(W, W, params['rel_pos_w']).astype(jnp.float32)  # (W, W, hd)
    else:
        Rh = jnp.zeros((H, H, hd), jnp.float32)
        Rw = jnp.zeros((W, W, hd), jnp.float32)

    # 0/1 expansion matrices for the key axis: repeat over kw / tile over kh
    cols = jnp.arange(HW, dtype=jnp.int32)
    Eh = (cols[None, :] // W == jnp.arange(H, dtype=jnp.int32)[:, None]).astype(jnp.float32)
    Ew = (cols[None, :] % W == jnp.arange(W, dtype=jnp.int32)[:, None]).astype(jnp.float32)

    x_flat = x.reshape(B, HW, dim).astype(jnp.float32)

    kernel = functools.partial(_attention_kernel, H=H, W=W, head_dim=hd,
                               num_heads=num_heads, scale=scale,
                               use_rel_pos=use_rel_pos)

    out = pl.pallas_call(
        kernel,
        out_shape=jax.ShapeDtypeStruct((B, HW, dim), jnp.float32),
        grid_spec=pltpu.PrefetchScalarGridSpec(
            num_scalar_prefetch=0,
            grid=(B, num_heads),
            in_specs=[
                pl.BlockSpec((1, HW, dim), lambda b, h: (b, 0, 0)),      # x
                pl.BlockSpec((1, dim, 3 * hd), lambda b, h: (h, 0, 0)),  # wqkv per head
                pl.BlockSpec((1, 1, 3 * hd), lambda b, h: (h, 0, 0)),    # bqkv per head
                pl.BlockSpec((H, H, hd), lambda b, h: (0, 0, 0)),        # Rh
                pl.BlockSpec((W, W, hd), lambda b, h: (0, 0, 0)),        # Rw
                pl.BlockSpec((H, HW), lambda b, h: (0, 0)),              # Eh
                pl.BlockSpec((W, HW), lambda b, h: (0, 0)),              # Ew
                pl.BlockSpec((1, hd, dim), lambda b, h: (h, 0, 0)),      # wproj per head
                pl.BlockSpec((1, dim), lambda b, h: (0, 0)),             # bproj
            ],
            out_specs=pl.BlockSpec((1, HW, dim), lambda b, h: (b, 0, 0)),
            scratch_shapes=[pltpu.VMEM((HW, dim), jnp.float32)],         # head accumulator
        ),
        compiler_params=pltpu.CompilerParams(
            dimension_semantics=("parallel", "arbitrary"),
            vmem_limit_bytes=32 * 1024 * 1024),
    )(x_flat, wqkv_h, bqkv_h, Rh, Rw, Eh, Ew, wproj_h, bproj)

    return out.reshape(B, H, W, dim)


# -------------------------- parameters & reference ----------------------------

def init_params(key, dim, num_heads, H, W):
    hd = dim // num_heads
    ks = jax.random.split(key, 6)
    s = dim ** -0.5
    return {
        'w_qkv': s * jax.random.normal(ks[0], (3 * dim, dim), jnp.float32),
        'b_qkv': 0.02 * jax.random.normal(ks[1], (3 * dim,), jnp.float32),
        'w_proj': s * jax.random.normal(ks[2], (dim, dim), jnp.float32),
        'b_proj': 0.02 * jax.random.normal(ks[3], (dim,), jnp.float32),
        'rel_pos_h': 0.1 * jax.random.normal(ks[4], (2 * H - 1, hd), jnp.float32),
        'rel_pos_w': 0.1 * jax.random.normal(ks[5], (2 * W - 1, hd), jnp.float32),
    }


def ref_forward(x, params, *, num_heads, use_rel_pos=True):
    """Pure-JAX mirror of the PyTorch Attention.forward, for a sanity check."""
    B, H, W, dim = x.shape
    hd = dim // num_heads
    scale = hd ** -0.5
    qkv = jnp.einsum('bhwc,oc->bhwo', x, params['w_qkv']) + params['b_qkv']
    qkv = qkv.reshape(B, H * W, 3, num_heads, hd)
    qkv = jnp.transpose(qkv, (2, 0, 3, 1, 4)).reshape(3, B * num_heads, H * W, hd)
    q, k, v = qkv[0], qkv[1], qkv[2]
    attn = jnp.einsum('bqc,bkc->bqk', q * scale, k)
    if use_rel_pos:
        Rh = _get_rel_pos(H, H, params['rel_pos_h'])
        Rw = _get_rel_pos(W, W, params['rel_pos_w'])
        r_q = q.reshape(B * num_heads, H, W, hd)
        rel_h = jnp.einsum('bhwc,hkc->bhwk', r_q, Rh)
        rel_w = jnp.einsum('bhwc,wkc->bhwk', r_q, Rw)
        attn = (attn.reshape(B * num_heads, H, W, H, W)
                + rel_h[:, :, :, :, None] + rel_w[:, :, :, None, :]
                ).reshape(B * num_heads, H * W, H * W)
    attn = jax.nn.softmax(attn, axis=-1)
    out = jnp.einsum('bqk,bkc->bqc', attn, v)
    out = out.reshape(B, num_heads, H, W, hd)
    out = jnp.transpose(out, (0, 2, 3, 1, 4)).reshape(B, H, W, dim)
    return jnp.einsum('bhwc,oc->bhwo', out, params['w_proj']) + params['b_proj']


if __name__ == "__main__":
    B, H, W, dim, num_heads = 2, 16, 16, 128, 8
    key = jax.random.PRNGKey(0)
    params = init_params(key, dim, num_heads, H, W)
    x = jax.random.normal(jax.random.fold_in(key, 1), (B, H, W, dim), jnp.float32)

    out = jax.block_until_ready(
        attention_forward(x, params, num_heads=num_heads, use_rel_pos=True))
    assert out.shape == (B, H, W, dim) and out.dtype == jnp.float32
    assert bool(jnp.all(jnp.isfinite(out)))

    ref = jax.block_until_ready(
        ref_forward(x, params, num_heads=num_heads, use_rel_pos=True))
    max_err = float(jnp.max(jnp.abs(out - ref)))
    assert max_err < 5e-2, f"mismatch vs reference: {max_err}"

    print("KERNEL_OK")
</pallas_src>

<mosaic_0001>
module attributes {stable_mosaic.version = 11 : i64} {
  func.func @_attention_kernel(%arg0: i32, %arg1: i32, %arg2: memref<1x256x128xf32, #tpu.memory_space<vmem>>, %arg3: memref<1x128x48xf32, #tpu.memory_space<vmem>>, %arg4: memref<1x1x48xf32, #tpu.memory_space<vmem>>, %arg5: memref<16x16x16xf32, #tpu.memory_space<vmem>>, %arg6: memref<16x16x16xf32, #tpu.memory_space<vmem>>, %arg7: memref<16x256xf32, #tpu.memory_space<vmem>>, %arg8: memref<16x256xf32, #tpu.memory_space<vmem>>, %arg9: memref<1x16x128xf32, #tpu.memory_space<vmem>>, %arg10: memref<1x128xf32, #tpu.memory_space<vmem>>, %arg11: memref<1x256x128xf32, #tpu.memory_space<vmem>>, %arg12: memref<256x128xf32, #tpu.memory_space<vmem>>) attributes {dimension_semantics = [#tpu.dimension_semantics<parallel>, #tpu.dimension_semantics<arbitrary>], iteration_bounds = array<i64: 2, 8>, scalar_prefetch = 0 : i64, scratch_operands = 1 : i64, tpu.core_type = #tpu.core_type<tc>, window_params = [{transform_indices = @transform_0, window_bounds = array<i64: 1, 256, 128>}, {transform_indices = @transform_1, window_bounds = array<i64: 1, 128, 48>}, {transform_indices = @transform_2, window_bounds = array<i64: 1, 1, 48>}, {pipeline_mode = #tpu.pipeline_mode<synchronous>, transform_indices = @transform_3, window_bounds = array<i64: 16, 16, 16>}, {pipeline_mode = #tpu.pipeline_mode<synchronous>, transform_indices = @transform_4, window_bounds = array<i64: 16, 16, 16>}, {pipeline_mode = #tpu.pipeline_mode<synchronous>, transform_indices = @transform_5, window_bounds = array<i64: 16, 256>}, {pipeline_mode = #tpu.pipeline_mode<synchronous>, transform_indices = @transform_6, window_bounds = array<i64: 16, 256>}, {transform_indices = @transform_7, window_bounds = array<i64: 1, 16, 128>}, {pipeline_mode = #tpu.pipeline_mode<synchronous>, transform_indices = @transform_8, window_bounds = array<i64: 1, 128>}, {transform_indices = @transform_9, window_bounds = array<i64: 1, 256, 128>}]} {
    %c0_i32 = arith.constant 0 : i32
    %0 = arith.cmpi eq, %arg1, %c0_i32 : i32
    %1 = arith.extui %0 : i1 to i32
    %c0_i32_0 = arith.constant 0 : i32
    %2 = arith.cmpi ne, %1, %c0_i32_0 : i32
    scf.if %2 {
      %cst_37 = arith.constant 0.000000e+00 : f32
      %56 = vector.broadcast %cst_37 : f32 to vector<256x128xf32>
      %c0_38 = arith.constant 0 : index
      %c0_39 = arith.constant 0 : index
      %57 = vector.load %arg12[%c0_38, %c0_39] : memref<256x128xf32, #tpu.memory_space<vmem>>, vector<256x128xf32>
      tpu.vector_store %arg12[%c0_38, %c0_39], %56 {strides = array<i32>} : memref<256x128xf32, #tpu.memory_space<vmem>>, vector<256x128xf32>,
    } else {
    }
    %c0 = arith.constant 0 : index
    %c0_1 = arith.constant 0 : index
    %c0_2 = arith.constant 0 : index
    %3 = vector.load %arg2[%c0, %c0_1, %c0_2] : memref<1x256x128xf32, #tpu.memory_space<vmem>>, vector<1x256x128xf32>
    %4 = vector.shape_cast %3 : vector<1x256x128xf32> to vector<256x128xf32>
    %c0_3 = arith.constant 0 : index
    %c0_4 = arith.constant 0 : index
    %c0_5 = arith.constant 0 : index
    %5 = vector.load %arg3[%c0_3, %c0_4, %c0_5] : memref<1x128x48xf32, #tpu.memory_space<vmem>>, vector<1x128x48xf32>
    %6 = vector.shape_cast %5 : vector<1x128x48xf32> to vector<128x48xf32>
    %cst = arith.constant dense<0.000000e+00> : vector<256x48xf32>
    %7 = tpu.matmul %4, %6, %cst {dimension_numbers = #tpu.dot_dimension_numbers<[1], [0], [0], [1], [0, 0, 1, 1], [], []>} : vector<256x128xf32>, vector<128x48xf32>, vector<256x48xf32> -> vector<256x48xf32>
    %c0_6 = arith.constant 0 : index
    %c0_7 = arith.constant 0 : index
    %c0_8 = arith.constant 0 : index
    %8 = vector.load %arg4[%c0_6, %c0_7, %c0_8] : memref<1x1x48xf32, #tpu.memory_space<vmem>>, vector<1x1x48xf32>
    %9 = vector.shape_cast %8 : vector<1x1x48xf32> to vector<1x48xf32>
    %10 = vector.broadcast %9 : vector<1x48xf32> to vector<256x48xf32>
    %11 = arith.addf %7, %10 : vector<256x48xf32>
    %12 = vector.extract_strided_slice %11 {offsets = [0, 0], sizes = [256, 16], strides = [1, 1]} : vector<256x48xf32> to vector<256x16xf32>
    %13 = vector.extract_strided_slice %11 {offsets = [0, 16], sizes = [256, 16], strides = [1, 1]} : vector<256x48xf32> to vector<256x16xf32>
    %14 = vector.extract_strided_slice %11 {offsets = [0, 32], sizes = [256, 16], strides = [1, 1]} : vector<256x48xf32> to vector<256x16xf32>
    %cst_9 = arith.constant 2.500000e-01 : f32
    %15 = vector.broadcast %cst_9 : f32 to vector<256x16xf32>
    %16 = arith.mulf %12, %15 : vector<256x16xf32>
    "tpu.trace_start"() <{level = 10 : i32, message = "qc,kc->qk"}> : () -> ()
    %cst_10 = arith.constant dense<0.000000e+00> : vector<256x256xf32>
    %17 = tpu.matmul %16, %13, %cst_10 {dimension_numbers = #tpu.dot_dimension_numbers<[1], [1], [0], [0], [0, 0, 1, 0], [], []>} : vector<256x16xf32>, vector<256x16xf32>, vector<256x256xf32> -> vector<256x256xf32>
    "tpu.trace_stop"() : () -> ()
    %18 = vector.shape_cast %12 : vector<256x16xf32> to vector<16x16x16xf32>
    %c0_11 = arith.constant 0 : index
    %c0_12 = arith.constant 0 : index
    %c0_13 = arith.constant 0 : index
    %19 = vector.load %arg5[%c0_11, %c0_12, %c0_13] : memref<16x16x16xf32, #tpu.memory_space<vmem>>, vector<16x16x16xf32>
    "tpu.trace_start"() <{level = 10 : i32, message = "hwc,hkc->hwk"}> : () -> ()
    %cst_14 = arith.constant dense<0.000000e+00> : vector<16x16x16xf32>
    %20 = tpu.matmul %18, %19, %cst_14 {dimension_numbers = #tpu.dot_dimension_numbers<[2], [2], [1], [1], [0, 0, 0, 1, 1, 1], [0], [0]>} : vector<16x16x16xf32>, vector<16x16x16xf32>, vector<16x16x16xf32> -> vector<16x16x16xf32>
    "tpu.trace_stop"() : () -> ()
    %21 = vector.shape_cast %18 : vector<16x16x16xf32> to vector<16x16x1x16xf32>
    %c0_15 = arith.constant 0 : index
    %c0_16 = arith.constant 0 : index
    %c0_17 = arith.constant 0 : index
    %22 = vector.load %arg6[%c0_15, %c0_16, %c0_17] : memref<16x16x16xf32, #tpu.memory_space<vmem>>, vector<16x16x16xf32>
    %23 = vector.shape_cast %22 : vector<16x16x16xf32> to vector<1x16x16x16xf32>
    %24 = vector.broadcast %21 : vector<16x16x1x16xf32> to vector<16x16x16x16xf32>
    %25 = vector.broadcast %23 : vector<1x16x16x16xf32> to vector<16x16x16x16xf32>
    %26 = arith.mulf %24, %25 : vector<16x16x16x16xf32>
    %cst_18 = arith.constant dense<0.000000e+00> : vector<16x16x16xf32>
    %27 = vector.multi_reduction <add>, %26, %cst_18 [3] : vector<16x16x16x16xf32> to vector<16x16x16xf32>
    %28 = vector.shape_cast %20 : vector<16x16x16xf32> to vector<256x16xf32>
    %c0_19 = arith.constant 0 : index
    %c0_20 = arith.constant 0 : index
    %29 = vector.load %arg7[%c0_19, %c0_20] : memref<16x256xf32, #tpu.memory_space<vmem>>, vector<16x256xf32>
    %cst_21 = arith.constant dense<0.000000e+00> : vector<256x256xf32>
    %30 = tpu.matmul %28, %29, %cst_21 {dimension_numbers = #tpu.dot_dimension_numbers<[1], [0], [0], [1], [0, 0, 1, 1], [], []>} : vector<256x16xf32>, vector<16x256xf32>, vector<256x256xf32> -> vector<256x256xf32>
    %31 = vector.shape_cast %27 : vector<16x16x16xf32> to vector<256x16xf32>
    %c0_22 = arith.constant 0 : index
    %c0_23 = arith.constant 0 : index
    %32 = vector.load %arg8[%c0_22, %c0_23] : memref<16x256xf32, #tpu.memory_space<vmem>>, vector<16x256xf32>
    %cst_24 = arith.constant dense<0.000000e+00> : vector<256x256xf32>
    %33 = tpu.matmul %31, %32, %cst_24 {dimension_numbers = #tpu.dot_dimension_numbers<[1], [0], [0], [1], [0, 0, 1, 1], [], []>} : vector<256x16xf32>, vector<16x256xf32>, vector<256x256xf32> -> vector<256x256xf32>
    %34 = arith.addf %30, %33 : vector<256x256xf32>
    %35 = arith.addf %17, %34 : vector<256x256xf32>
    %cst_25 = arith.constant dense<0xFF800000> : vector<256xf32>
    %36 = vector.multi_reduction <maximumf>, %35, %cst_25 [1] : vector<256x256xf32> to vector<256xf32>
    %37 = vector.shape_cast %36 : vector<256xf32> to vector<256x1xf32>
    %38 = vector.broadcast %37 : vector<256x1xf32> to vector<256x256xf32>
    %39 = arith.subf %35, %38 : vector<256x256xf32>
    %40 = math.exp %39 : vector<256x256xf32>
    %cst_26 = arith.constant dense<0.000000e+00> : vector<256xf32>
    %41 = vector.multi_reduction <add>, %40, %cst_26 [1] : vector<256x256xf32> to vector<256xf32>
    %42 = vector.shape_cast %41 : vector<256xf32> to vector<256x1xf32>
    %43 = tpu.reciprocal %42 {approx = true} : vector<256x1xf32> -> vector<256x1xf32>
    %44 = vector.broadcast %43 : vector<256x1xf32> to vector<256x256xf32>
    %45 = arith.mulf %40, %44 : vector<256x256xf32>
    %cst_27 = arith.constant dense<0.000000e+00> : vector<256x16xf32>
    %46 = tpu.matmul %45, %14, %cst_27 {dimension_numbers = #tpu.dot_dimension_numbers<[1], [0], [0], [1], [0, 0, 1, 1], [], []>} : vector<256x256xf32>, vector<256x16xf32>, vector<256x16xf32> -> vector<256x16xf32>
    %c0_28 = arith.constant 0 : index
    %c0_29 = arith.constant 0 : index
    %47 = vector.load %arg12[%c0_28, %c0_29] : memref<256x128xf32, #tpu.memory_space<vmem>>, vector<256x128xf32>
    %c0_30 = arith.constant 0 : index
    %c0_31 = arith.constant 0 : index
    %c0_32 = arith.constant 0 : index
    %48 = vector.load %arg9[%c0_30, %c0_31, %c0_32] : memref<1x16x128xf32, #tpu.memory_space<vmem>>, vector<1x16x128xf32>
    %49 = vector.shape_cast %48 : vector<1x16x128xf32> to vector<16x128xf32>
    %cst_33 = arith.constant dense<0.000000e+00> : vector<256x128xf32>
    %50 = tpu.matmul %46, %49, %cst_33 {dimension_numbers = #tpu.dot_dimension_numbers<[1], [0], [0], [1], [0, 0, 1, 1], [], []>} : vector<256x16xf32>, vector<16x128xf32>, vector<256x128xf32> -> vector<256x128xf32>
    %51 = arith.addf %47, %50 : vector<256x128xf32>
    %c0_34 = arith.constant 0 : index
    %c0_35 = arith.constant 0 : index
    %52 = vector.load %arg12[%c0_34, %c0_35] : memref<256x128xf32, #tpu.memory_space<vmem>>, vector<256x128xf32>
    tpu.vector_store %arg12[%c0_34, %c0_35], %51 {strides = array<i32>} : memref<256x128xf32, #tpu.memory_space<vmem>>, vector<256x128xf32>,
    %c7_i32 = arith.constant 7 : i32
    %53 = arith.cmpi eq, %arg1, %c7_i32 : i32
    %54 = arith.extui %53 : i1 to i32
    %c0_i32_36 = arith.constant 0 : i32
    %55 = arith.cmpi ne, %54, %c0_i32_36 : i32
    scf.if %55 {
      %c0_37 = arith.constant 0 : index
      %c0_38 = arith.constant 0 : index
      %56 = vector.load %arg12[%c0_37, %c0_38] : memref<256x128xf32, #tpu.memory_space<vmem>>, vector<256x128xf32>
      %c0_39 = arith.constant 0 : index
      %c0_40 = arith.constant 0 : index
      %57 = vector.load %arg10[%c0_39, %c0_40] : memref<1x128xf32, #tpu.memory_space<vmem>>, vector<1x128xf32>
      %58 = vector.broadcast %57 : vector<1x128xf32> to vector<256x128xf32>
      %59 = arith.addf %56, %58 : vector<256x128xf32>
      %c0_41 = arith.constant 0 : index
      %c0_42 = arith.constant 0 : index
      %c0_43 = arith.constant 0 : index
      %60 = vector.load %arg11[%c0_41, %c0_42, %c0_43] : memref<1x256x128xf32, #tpu.memory_space<vmem>>, vector<1x256x128xf32>
      %61 = vector.shape_cast %60 : vector<1x256x128xf32> to vector<256x128xf32>
      %62 = vector.shape_cast %59 : vector<256x128xf32> to vector<1x256x128xf32>
      tpu.vector_store %arg11[%c0_41, %c0_42, %c0_43], %62 {strides = array<i32>} : memref<1x256x128xf32, #tpu.memory_space<vmem>>, vector<1x256x128xf32>,
    } else {
    }
    return
  }
  func.func @transform_0(%arg0: i32, %arg1: i32) -> (i32, i32, i32) {
    %c0_i32 = arith.constant 0 : i32
    %c0_i32_0 = arith.constant 0 : i32
    %c0_i32_1 = arith.constant 0 : i32
    return %arg0, %c0_i32, %c0_i32_0 : i32, i32, i32
  }
  func.func @transform_1(%arg0: i32, %arg1: i32) -> (i32, i32, i32) {
    %c0_i32 = arith.constant 0 : i32
    %c0_i32_0 = arith.constant 0 : i32
    %c0_i32_1 = arith.constant 0 : i32
    return %arg1, %c0_i32, %c0_i32_0 : i32, i32, i32
  }
  func.func @transform_2(%arg0: i32, %arg1: i32) -> (i32, i32, i32) {
    %c0_i32 = arith.constant 0 : i32
    %c0_i32_0 = arith.constant 0 : i32
    %c0_i32_1 = arith.constant 0 : i32
    return %arg1, %c0_i32, %c0_i32_0 : i32, i32, i32
  }
  func.func @transform_3(%arg0: i32, %arg1: i32) -> (i32, i32, i32) {
    %c0_i32 = arith.constant 0 : i32
    %c0_i32_0 = arith.constant 0 : i32
    %c0_i32_1 = arith.constant 0 : i32
    %c0_i32_2 = arith.constant 0 : i32
    return %c0_i32, %c0_i32_0, %c0_i32_1 : i32, i32, i32
  }
  func.func @transform_4(%arg0: i32, %arg1: i32) -> (i32, i32, i32) {
    %c0_i32 = arith.constant 0 : i32
    %c0_i32_0 = arith.constant 0 : i32
    %c0_i32_1 = arith.constant 0 : i32
    %c0_i32_2 = arith.constant 0 : i32
    return %c0_i32, %c0_i32_0, %c0_i32_1 : i32, i32, i32
  }
  func.func @transform_5(%arg0: i32, %arg1: i32) -> (i32, i32) {
    %c0_i32 = arith.constant 0 : i32
    %c0_i32_0 = arith.constant 0 : i32
    %c0_i32_1 = arith.constant 0 : i32
    return %c0_i32, %c0_i32_0 : i32, i32
  }
  func.func @transform_6(%arg0: i32, %arg1: i32) -> (i32, i32) {
    %c0_i32 = arith.constant 0 : i32
    %c0_i32_0 = arith.constant 0 : i32
    %c0_i32_1 = arith.constant 0 : i32
    return %c0_i32, %c0_i32_0 : i32, i32
  }
  func.func @transform_7(%arg0: i32, %arg1: i32) -> (i32, i32, i32) {
    %c0_i32 = arith.constant 0 : i32
    %c0_i32_0 = arith.constant 0 : i32
    %c0_i32_1 = arith.constant 0 : i32
    return %arg1, %c0_i32, %c0_i32_0 : i32, i32, i32
  }
  func.func @transform_8(%arg0: i32, %arg1: i32) -> (i32, i32) {
    %c0_i32 = arith.constant 0 : i32
    %c0_i32_0 = arith.constant 0 : i32
    %c0_i32_1 = arith.constant 0 : i32
    return %c0_i32, %c0_i32_0 : i32, i32
  }
  func.func @transform_9(%arg0: i32, %arg1: i32) -> (i32, i32, i32) {
    %c0_i32 = arith.constant 0 : i32
    %c0_i32_0 = arith.constant 0 : i32
    %c0_i32_1 = arith.constant 0 : i32
    return %arg0, %c0_i32, %c0_i32_0 : i32, i32, i32
  }
}

</mosaic_0001>

<llo_original>
// kernel: tpu_custom_call.1
$region0: #{tpu_custom_call.1}
  #allocation0 [shape = 'u32[]', space=smem, size = 0x4, offset = 0x4, fixed_abs, tag = 'smem constant byte address 0x4 - core index']
  #allocation1 [shape = 'u32[144,128]{1,0:T(1,128)}', space=vmem, size = 0x12000, scoped, tag = 'internal scratch']
  #allocation2 [shape = 'f32[256,128]{1,0:T(8,128)}', space=vmem, size = 0x20000, scoped, tag = 'scratch operand']
  %s0 = inlined_call_operand.vmem [shape: f32[2,256,128], index: 0, kind: input, shape index: {}]
  %s1 = inlined_call_operand.vmem [shape: f32[8,128,48], index: 1, kind: input, shape index: {}]
  %s2 = inlined_call_operand.vmem [shape: f32[8,1,48], index: 2, kind: input, shape index: {}]
  %s3 = inlined_call_operand.vmem [shape: f32[16,16,16], index: 3, kind: input, shape index: {}]
  %s4 = inlined_call_operand.vmem [shape: f32[16,16,16], index: 4, kind: input, shape index: {}]
  %s5 = inlined_call_operand.vmem [shape: f32[16,256], index: 5, kind: input, shape index: {}]
  %s6 = inlined_call_operand.vmem [shape: f32[16,256], index: 6, kind: input, shape index: {}]
  %s7 = inlined_call_operand.vmem [shape: f32[8,16,128], index: 7, kind: input, shape index: {}]
  %s8 = inlined_call_operand.vmem [shape: f32[1,128], index: 8, kind: input, shape index: {}]
  %s9 = inlined_call_operand.hbm [shape: f32[2,256,128], index: 9, kind: output, shape index: {}]
  %s10 = sld [smem:[#allocation0]]
  $region77: #{tpu_custom_call.1} parent=0
    _
  %s12 = ssub.s32 1, %s10
  %s13 = scalar_select 0, %s12, %s10
  $region1: #{tpu_custom_call.1} parent=0
    #allocation3 [shape = 'u8[262144]{0}', space=vmem, size = 0x40000, scoped, tag = 'output window, operand 0']
    #allocation4 [shape = 's32[2]{0}', space=sflag, size = 0x8, scoped, tag = 'scoped memory for tpu_custom_call.1']
    %14 = vsyncpa [#allocation4], 0
    %s15 = scalar_lea.sflag [#allocation4], 1
    %16 = vsyncpa %s15, 0
    loop: start=0, step=1, limit=18
    $region2: #{tpu_custom_call.1} parent=1 // loop_pre_header
      _
    $region3: #{tpu_custom_call.1} parent=1 // loop_header
      %s18 = sphi 0, %s22
      %p19 = scmp.ge.s32.totalorder %s18, 18
      %s25 = sphi 0, %s37
      %s26 = sphi 0, %s33
      %s27 = sphi 0, %s25
      %s28 = sphi 0, %s26
      %s29 = sphi 0, %s27
      %s30 = sphi 0, %s28
      %s40 = sphi 0, %s42
      %s43 = sphi 0, %s40
      %s44 = sphi 0, %s43
      %s60 = sphi 0, %s44
      %s66 = sphi 0, %s68
      %s69 = sphi 0, %s66
      %s70 = sphi 0, %s69
      %s86 = sphi 0, %s70
      %s92 = sphi 0, %s94
      %s95 = sphi 0, %s92
      %s96 = sphi 0, %s95
      %s112 = sphi 0, %s96
      %s116 = sphi 0, %s116
      %s118 = sphi 0, %s116
      %s119 = sphi 0, %s118
      %s133 = sphi 0, %s119
      %s137 = sphi 0, %s137
      %s139 = sphi 0, %s137
      %s140 = sphi 0, %s139
      %s154 = sphi 0, %s140
      %s158 = sphi 0, %s158
      %s160 = sphi 0, %s158
      %s161 = sphi 0, %s160
      %s175 = sphi 0, %s161
      %s179 = sphi 0, %s179
      %s181 = sphi 0, %s179
      %s182 = sphi 0, %s181
      %s196 = sphi 0, %s182
      %s202 = sphi 0, %s204
      %s205 = sphi 0, %s202
      %s206 = sphi 0, %s205
      %s222 = sphi 0, %s206
      %s226 = sphi 0, %s226
      %s228 = sphi 0, %s226
      %s229 = sphi 0, %s228
      %s243 = sphi 0, %s229
      %s249 = sphi 0, %s251
      %s252 = sphi 0, %s249
      %s253 = sphi 0, %s252
      %s269 = sphi 0, %s253
    $region4: #{tpu_custom_call.1} parent=1 // loop_header_branch
      %21 = sbr.rel (%p19) target = $region8
    $region5: #{tpu_custom_call.1} parent=1 // loop_body
      %s23 = ssub.s32 %s18, 1
      %s24 = ssub.s32 %s18, 2
      %s31 = sadd.s32 1, %s26
      %p32 = scmp.ge.s32.totalorder %s31, 8
      %s33 = scalar_select %p32, 0, %s31
      %s34 = sadd.s32 1, %s25
      %s35 = scalar_select %p32, %s34, %s25
      %p36 = scmp.ge.s32.totalorder %s35, 2
      %s37 = scalar_select %p36, 0, %s35
      %s38 = ssub.s32 %s25, %s37
      %p39 = scmp.eq.s32.totalorder %s38, 0
      %s41 = sadd.s32 %s40, 1
      %s42 = scalar_select %p39, %s40, %s41
      %p45 = pneg %p39
      %p46 = scmp.eq.s32.totalorder %s18, 15
      %p47 = por %p45, %p46
      %p48 = scmp.ne.s32.totalorder %s40, %s43
      %p49 = scmp.eq.s32.totalorder %s18, 0
      %p50 = por %p48, %p49
      %p51 = scmp.ne.s32.totalorder %s40, %s43
      %p52 = scmp.eq.s32.totalorder %s23, 15
      %p53 = por %p51, %p52
      %p54 = scmp.ne.s32.totalorder %s43, %s44
      %p55 = scmp.eq.s32.totalorder %s23, 0
      %p56 = por %p54, %p55
      %p57 = scmp.ne.s32.totalorder %s43, %s44
      %p58 = scmp.eq.s32.totalorder %s24, 15
      %p59 = por %p57, %p58
      %p61 = scmp.ne.s32.totalorder %s44, %s60
      %p62 = scmp.eq.s32.totalorder %s24, 0
      %p63 = por %p61, %p62
      %s64 = ssub.s32 %s26, %s33
      %p65 = scmp.eq.s32.totalorder %s64, 0
      %s67 = sadd.s32 %s66, 1
      %s68 = scalar_select %p65, %s66, %s67
      %p71 = pneg %p65
      %p72 = scmp.eq.s32.totalorder %s18, 15
      %p73 = por %p71, %p72
      %p74 = scmp.ne.s32.totalorder %s66, %s69
      %p75 = scmp.eq.s32.totalorder %s18, 0
      %p76 = por %p74, %p75
      %p77 = scmp.ne.s32.totalorder %s66, %s69
      %p78 = scmp.eq.s32.totalorder %s23, 15
      %p79 = por %p77, %p78
      %p80 = scmp.ne.s32.totalorder %s69, %s70
      %p81 = scmp.eq.s32.totalorder %s23, 0
      %p82 = por %p80, %p81
      %p83 = scmp.ne.s32.totalorder %s69, %s70
      %p84 = scmp.eq.s32.totalorder %s24, 15
      %p85 = por %p83, %p84
      %p87 = scmp.ne.s32.totalorder %s70, %s86
      %p88 = scmp.eq.s32.totalorder %s24, 0
      %p89 = por %p87, %p88
      %s90 = ssub.s32 %s26, %s33
      %p91 = scmp.eq.s32.totalorder %s90, 0
      %s93 = sadd.s32 %s92, 1
      %s94 = scalar_select %p91, %s92, %s93
      %p97 = pneg %p91
      %p98 = scmp.eq.s32.totalorder %s18, 15
      %p99 = por %p97, %p98
      %p100 = scmp.ne.s32.totalorder %s92, %s95
      %p101 = scmp.eq.s32.totalorder %s18, 0
      %p102 = por %p100, %p101
      %p103 = scmp.ne.s32.totalorder %s92, %s95
      %p104 = scmp.eq.s32.totalorder %s23, 15
      %p105 = por %p103, %p104
      %p106 = scmp.ne.s32.totalorder %s95, %s96
      %p107 = scmp.eq.s32.totalorder %s23, 0
      %p108 = por %p106, %p107
      %p109 = scmp.ne.s32.totalorder %s95, %s96
      %p110 = scmp.eq.s32.totalorder %s24, 15
      %p111 = por %p109, %p110
      %p113 = scmp.ne.s32.totalorder %s96, %s112
      %p114 = scmp.eq.s32.totalorder %s24, 0
      %p115 = por %p113, %p114
      %s117 = sadd.s32 %s116, 1
      %p120 = scmp.eq.s32.totalorder %s18, 15
      %p121 = scmp.ne.s32.totalorder %s116, %s118
      %p122 = scmp.eq.s32.totalorder %s18, 0
      %p123 = por %p121, %p122
      %p124 = scmp.ne.s32.totalorder %s116, %s118
      %p125 = scmp.eq.s32.totalorder %s23, 15
      %p126 = por %p124, %p125
      %p127 = scmp.ne.s32.totalorder %s118, %s119
      %p128 = scmp.eq.s32.totalorder %s23, 0
      %p129 = por %p127, %p128
      %p130 = scmp.ne.s32.totalorder %s118, %s119
      %p131 = scmp.eq.s32.totalorder %s24, 15
      %p132 = por %p130, %p131
      %p134 = scmp.ne.s32.totalorder %s119, %s133
      %p135 = scmp.eq.s32.totalorder %s24, 0
      %p136 = por %p134, %p135
      %s138 = sadd.s32 %s137, 1
      %p141 = scmp.eq.s32.totalorder %s18, 15
      %p142 = scmp.ne.s32.totalorder %s137, %s139
      %p143 = scmp.eq.s32.totalorder %s18, 0
      %p144 = por %p142, %p143
      %p145 = scmp.ne.s32.totalorder %s137, %s139
      %p146 = scmp.eq.s32.totalorder %s23, 15
      %p147 = por %p145, %p146
      %p148 = scmp.ne.s32.totalorder %s139, %s140
      %p149 = scmp.eq.s32.totalorder %s23, 0
      %p150 = por %p148, %p149
      %p151 = scmp.ne.s32.totalorder %s139, %s140
      %p152 = scmp.eq.s32.totalorder %s24, 15
      %p153 = por %p151, %p152
      %p155 = scmp.ne.s32.totalorder %s140, %s154
      %p156 = scmp.eq.s32.totalorder %s24, 0
      %p157 = por %p155, %p156
      %s159 = sadd.s32 %s158, 1
      %p162 = scmp.eq.s32.totalorder %s18, 15
      %p163 = scmp.ne.s32.totalorder %s158, %s160
      %p164 = scmp.eq.s32.totalorder %s18, 0
      %p165 = por %p163, %p164
      %p166 = scmp.ne.s32.totalorder %s158, %s160
      %p167 = scmp.eq.s32.totalorder %s23, 15
      %p168 = por %p166, %p167
      %p169 = scmp.ne.s32.totalorder %s160, %s161
      %p170 = scmp.eq.s32.totalorder %s23, 0
      %p171 = por %p169, %p170
      %p172 = scmp.ne.s32.totalorder %s160, %s161
      %p173 = scmp.eq.s32.totalorder %s24, 15
      %p174 = por %p172, %p173
      %p176 = scmp.ne.s32.totalorder %s161, %s175
      %p177 = scmp.eq.s32.totalorder %s24, 0
      %p178 = por %p176, %p177
      %s180 = sadd.s32 %s179, 1
      %p183 = scmp.eq.s32.totalorder %s18, 15
      %p184 = scmp.ne.s32.totalorder %s179, %s181
      %p185 = scmp.eq.s32.totalorder %s18, 0
      %p186 = por %p184, %p185
      %p187 = scmp.ne.s32.totalorder %s179, %s181
      %p188 = scmp.eq.s32.totalorder %s23, 15
      %p189 = por %p187, %p188
      %p190 = scmp.ne.s32.totalorder %s181, %s182
      %p191 = scmp.eq.s32.totalorder %s23, 0
      %p192 = por %p190, %p191
      %p193 = scmp.ne.s32.totalorder %s181, %s182
      %p194 = scmp.eq.s32.totalorder %s24, 15
      %p195 = por %p193, %p194
      %p197 = scmp.ne.s32.totalorder %s182, %s196
      %p198 = scmp.eq.s32.totalorder %s24, 0
      %p199 = por %p197, %p198
      %s200 = ssub.s32 %s26, %s33
      %p201 = scmp.eq.s32.totalorder %s200, 0
      %s203 = sadd.s32 %s202, 1
      %s204 = scalar_select %p201, %s202, %s203
      %p207 = pneg %p201
      %p208 = scmp.eq.s32.totalorder %s18, 15
      %p209 = por %p207, %p208
      %p210 = scmp.ne.s32.totalorder %s202, %s205
      %p211 = scmp.eq.s32.totalorder %s18, 0
      %p212 = por %p210, %p211
      %p213 = scmp.ne.s32.totalorder %s202, %s205
      %p214 = scmp.eq.s32.totalorder %s23, 15
      %p215 = por %p213, %p214
      %p216 = scmp.ne.s32.totalorder %s205, %s206
      %p217 = scmp.eq.s32.totalorder %s23, 0
      %p218 = por %p216, %p217
      %p219 = scmp.ne.s32.totalorder %s205, %s206
      %p220 = scmp.eq.s32.totalorder %s24, 15
      %p221 = por %p219, %p220
      %p223 = scmp.ne.s32.totalorder %s206, %s222
      %p224 = scmp.eq.s32.totalorder %s24, 0
      %p225 = por %p223, %p224
      %s227 = sadd.s32 %s226, 1
      %p230 = scmp.eq.s32.totalorder %s18, 15
      %p231 = scmp.ne.s32.totalorder %s226, %s228
      %p232 = scmp.eq.s32.totalorder %s18, 0
      %p233 = por %p231, %p232
      %p234 = scmp.ne.s32.totalorder %s226, %s228
      %p235 = scmp.eq.s32.totalorder %s23, 15
      %p236 = por %p234, %p235
      %p237 = scmp.ne.s32.totalorder %s228, %s229
      %p238 = scmp.eq.s32.totalorder %s23, 0
      %p239 = por %p237, %p238
      %p240 = scmp.ne.s32.totalorder %s228, %s229
      %p241 = scmp.eq.s32.totalorder %s24, 15
      %p242 = por %p240, %p241
      %p244 = scmp.ne.s32.totalorder %s229, %s243
      %p245 = scmp.eq.s32.totalorder %s24, 0
      %p246 = por %p244, %p245
      %s247 = ssub.s32 %s25, %s37
      %p248 = scmp.eq.s32.totalorder %s247, 0
      %s250 = sadd.s32 %s249, 1
      %s251 = scalar_select %p248, %s249, %s250
      %p254 = pneg %p248
      %p255 = scmp.eq.s32.totalorder %s18, 15
      %p256 = por %p254, %p255
      %p257 = scmp.ne.s32.totalorder %s249, %s252
      %p258 = scmp.eq.s32.totalorder %s18, 0
      %p259 = por %p257, %p258
      %p260 = scmp.ne.s32.totalorder %s249, %s252
      %p261 = scmp.eq.s32.totalorder %s23, 15
      %p262 = por %p260, %p261
      %p263 = scmp.ne.s32.totalorder %s252, %s253
      %p264 = scmp.eq.s32.totalorder %s23, 0
      %p265 = por %p263, %p264
      %p266 = scmp.ne.s32.totalorder %s252, %s253
      %p267 = scmp.eq.s32.totalorder %s24, 15
      %p268 = por %p266, %p267
      %p270 = scmp.ne.s32.totalorder %s253, %s269
      %p271 = scmp.eq.s32.totalorder %s24, 0
      %p272 = por %p270, %p271
      %p273 = scmp.le.s32.totalorder 1, %s18
      %p274 = scmp.lt.s32.totalorder %s18, 17
      %p275 = pnand %p273, %p274
      %p276 = pneg %p275
      // Predicated region
      $region9: #{tpu_custom_call.1} parent=5 // pred_check
        _
      $region10: #{tpu_custom_call.1} parent=5 // pred_check_branch
        %278 = sbr.rel (%p275) target = $region12
      $region11: #{tpu_custom_call.1} parent=5 // pred_region
        %s279 = ssub.s32 %s18, 1
        // Predicated region
        $region13: #{tpu_custom_call.1} parent=11 // pred_check
          %p280 = pneg %p129
        $region14: #{tpu_custom_call.1} parent=11 // pred_check_branch
          %282 = sbr.rel (%p280) target = $region16
        $region15: #{tpu_custom_call.1} parent=11 // pred_region
          _
        $region16: #{tpu_custom_call.1} parent=11 // pred_fallthru
          _
        // Predicated region
        $region17: #{tpu_custom_call.1} parent=11 // pred_check
          %p283 = pneg %p150
        $region18: #{tpu_custom_call.1} parent=11 // pred_check_branch
          %285 = sbr.rel (%p283) target = $region20
        $region19: #{tpu_custom_call.1} parent=11 // pred_region
          _
        $region20: #{tpu_custom_call.1} parent=11 // pred_fallthru
          _
        // Predicated region
        $region21: #{tpu_custom_call.1} parent=11 // pred_check
          %p286 = pneg %p171
        $region22: #{tpu_custom_call.1} parent=11 // pred_check_branch
          %288 = sbr.rel (%p286) target = $region24
        $region23: #{tpu_custom_call.1} parent=11 // pred_region
          _
        $region24: #{tpu_custom_call.1} parent=11 // pred_fallthru
          _
        // Predicated region
        $region25: #{tpu_custom_call.1} parent=11 // pred_check
          %p289 = pneg %p192
        $region26: #{tpu_custom_call.1} parent=11 // pred_check_branch
          %291 = sbr.rel (%p289) target = $region28
        $region27: #{tpu_custom_call.1} parent=11 // pred_region
          _
        $region28: #{tpu_custom_call.1} parent=11 // pred_fallthru
          _
        // Predicated region
        $region29: #{tpu_custom_call.1} parent=11 // pred_check
          %p292 = pneg %p239
        $region30: #{tpu_custom_call.1} parent=11 // pred_check_branch
          %294 = sbr.rel (%p292) target = $region32
        $region31: #{tpu_custom_call.1} parent=11 // pred_region
          _
        $region32: #{tpu_custom_call.1} parent=11 // pred_fallthru
          _
      $region12: #{tpu_custom_call.1} parent=5 // pred_fallthru
        _
      %p295 = scmp.lt.s32.totalorder %s18, 16
      // Predicated region
      $region33: #{tpu_custom_call.1} parent=5 // pred_check
        %p296 = pneg %p295
      $region34: #{tpu_custom_call.1} parent=5 // pred_check_branch
        %298 = sbr.rel (%p296) target = $region36
      $region35: #{tpu_custom_call.1} parent=5 // pred_region
        // Predicated region
        $region37: #{tpu_custom_call.1} parent=35 // pred_check
          %p299 = pneg %p50
        $region38: #{tpu_custom_call.1} parent=35 // pred_check_branch
          %301 = sbr.rel (%p299) target = $region40
        $region39: #{tpu_custom_call.1} parent=35 // pred_region
          %p302 = scmp.lt.s32.totalorder %s25, 1
          %s303 = scalar_select %p302, %s25, 1
          %s304 = smul.addr %s303, 32
          %s305 = smul.addr %s304, 8
          %s306 = scalar_lea.vmem %s0, %s305
        $region40: #{tpu_custom_call.1} parent=35 // pred_fallthru
          _
        // Predicated region
        $region41: #{tpu_custom_call.1} parent=35 // pred_check
          %p307 = pneg %p76
        $region42: #{tpu_custom_call.1} parent=35 // pred_check_branch
          %309 = sbr.rel (%p307) target = $region44
        $region43: #{tpu_custom_call.1} parent=35 // pred_region
          %p310 = scmp.lt.s32.totalorder %s26, 7
          %s311 = scalar_select %p310, %s26, 7
          %s312 = smul.addr %s311, 16
          %s313 = smul.addr %s312, 8
          %s314 = scalar_lea.vmem %s1, %s313
        $region44: #{tpu_custom_call.1} parent=35 // pred_fallthru
          _
        // Predicated region
        $region45: #{tpu_custom_call.1} parent=35 // pred_check
          %p315 = pneg %p102
        $region46: #{tpu_custom_call.1} parent=35 // pred_check_branch
          %317 = sbr.rel (%p315) target = $region48
        $region47: #{tpu_custom_call.1} parent=35 // pred_region
          %p318 = scmp.lt.s32.totalorder %s26, 7
          %s319 = scalar_select %p318, %s26, 7
          %s320 = scalar_lea.vmem %s2, %s319
        $region48: #{tpu_custom_call.1} parent=35 // pred_fallthru
          _
        // Predicated region
        $region49: #{tpu_custom_call.1} parent=35 // pred_check
          %p321 = pneg %p212
        $region50: #{tpu_custom_call.1} parent=35 // pred_check_branch
          %323 = sbr.rel (%p321) target = $region52
        $region51: #{tpu_custom_call.1} parent=35 // pred_region
          %p324 = scmp.lt.s32.totalorder %s26, 7
          %s325 = scalar_select %p324, %s26, 7
          %s326 = smul.addr %s325, 2
          %s327 = smul.addr %s326, 8
          %s328 = scalar_lea.vmem %s7, %s327
        $region52: #{tpu_custom_call.1} parent=35 // pred_fallthru
          _
      $region36: #{tpu_custom_call.1} parent=5 // pred_fallthru
        _
      %p329 = scmp.le.s32.totalorder 1, %s18
      %p330 = scmp.lt.s32.totalorder %s18, 17
      %p331 = pnand %p329, %p330
      %p332 = pneg %p331
      // Predicated region
      $region53: #{tpu_custom_call.1} parent=5 // pred_check
        _
      $region54: #{tpu_custom_call.1} parent=5 // pred_check_branch
        %334 = sbr.rel (%p331) target = $region56
      $region55: #{tpu_custom_call.1} parent=5 // pred_region
        %s335 = ssub.s32 %s18, 1
        %p336 = scmp.lt.s32.totalorder %s27, 1
        %s337 = scalar_select %p336, %s27, 1
        %s338 = smul.addr %s337, 32
        %s339 = smul.addr %s338, 8
        %s340 = scalar_lea.vmem %s0, %s339
        %p341 = pneg %p56
        %p342 = pneg %p53
        %p343 = scmp.lt.s32.totalorder %s28, 7
        %s344 = scalar_select %p343, %s28, 7
        %s345 = smul.addr %s344, 16
        %s346 = smul.addr %s345, 8
        %s347 = scalar_lea.vmem %s1, %s346
        %p348 = pneg %p82
        %p349 = pneg %p79
        %p350 = scmp.lt.s32.totalorder %s28, 7
        %s351 = scalar_select %p350, %s28, 7
        %s352 = scalar_lea.vmem %s2, %s351
        %p353 = pneg %p108
        %p354 = pneg %p105
        %p355 = pneg %p129
        %p356 = pneg %p126
        %p357 = pneg %p150
        %p358 = pneg %p147
        %p359 = pneg %p171
        %p360 = pneg %p168
        %p361 = pneg %p192
        %p362 = pneg %p189
        %p363 = scmp.lt.s32.totalorder %s28, 7
        %s364 = scalar_select %p363, %s28, 7
        %s365 = smul.addr %s364, 2
        %s366 = smul.addr %s365, 8
        %s367 = scalar_lea.vmem %s7, %s366
        %p368 = pneg %p218
        %p369 = pneg %p215
        %p370 = pneg %p239
        %p371 = pneg %p236
        %p372 = pneg %p265
        %p373 = pneg %p262
        %s374 = sand.u32 %s252, 1
        %s375 = scalar_lea.sflag [#allocation4], %s374
        %s376 = sand.u32 %s252, 1
        %s377 = smul.addr %s376, 256
        %s378 = scalar_lea.vmem [#allocation3], %s377
        %p379 = scmp.lt.s32.totalorder %s27, 1
        %s380 = scalar_select %p379, %s27, 1
        %s381 = smul.addr %s380, 32
        %s382 = smul.addr %s381, 8
        %s383 = scalar_lea.vmem %s0, %s382
        %p384 = scmp.lt.s32.totalorder %s28, 7
        %s385 = scalar_select %p384, %s28, 7
        %s386 = smul.addr %s385, 16
        %s387 = smul.addr %s386, 8
        %s388 = scalar_lea.vmem %s1, %s387
        %p389 = scmp.lt.s32.totalorder %s28, 7
        %s390 = scalar_select %p389, %s28, 7
        %s391 = scalar_lea.vmem %s2, %s390
        %p392 = scmp.lt.s32.totalorder %s28, 7
        %s393 = scalar_select %p392, %s28, 7
        %s394 = smul.addr %s393, 2
        %s395 = smul.addr %s394, 8
        %s396 = scalar_lea.vmem %s7, %s395
        %p397 = scmp.eq.s32.totalorder %s28, 0
        // Predicated region
        $region57: #{tpu_custom_call.1} parent=55 // pred_check
          %p398 = pneg %p397
        $region58: #{tpu_custom_call.1} parent=55 // pred_check_branch
          %400 = sbr.rel (%p398) target = $region60
        $region59: #{tpu_custom_call.1} parent=55 // pred_region
          %401 = vst [vmem:[#allocation2] sm:$0xff] 0.0
          %402 = vst [vmem:[#allocation2 + $0x8] sm:$0xff] 0.0
          %403 = vst [vmem:[#allocation2 + $0x10] sm:$0xff] 0.0
          %404 = vst [vmem:[#allocation2 + $0x18] sm:$0xff] 0.0
          %405 = vst [vmem:[#allocation2 + $0x20] sm:$0xff] 0.0
          %406 = vst [vmem:[#allocation2 + $0x28] sm:$0xff] 0.0
          %407 = vst [vmem:[#allocation2 + $0x30] sm:$0xff] 0.0
          %408 = vst [vmem:[#allocation2 + $0x38] sm:$0xff] 0.0
          %409 = vst [vmem:[#allocation2 + $0x40] sm:$0xff] 0.0
          %410 = vst [vmem:[#allocation2 + $0x48] sm:$0xff] 0.0
          %411 = vst [vmem:[#allocation2 + $0x50] sm:$0xff] 0.0
          %412 = vst [vmem:[#allocation2 + $0x58] sm:$0xff] 0.0
          %413 = vst [vmem:[#allocation2 + $0x60] sm:$0xff] 0.0
          %414 = vst [vmem:[#allocation2 + $0x68] sm:$0xff] 0.0
          %415 = vst [vmem:[#allocation2 + $0x70] sm:$0xff] 0.0
          %416 = vst [vmem:[#allocation2 + $0x78] sm:$0xff] 0.0
          %417 = vst [vmem:[#allocation2 + $0x80] sm:$0xff] 0.0
          %418 = vst [vmem:[#allocation2 + $0x88] sm:$0xff] 0.0
          %419 = vst [vmem:[#allocation2 + $0x90] sm:$0xff] 0.0
          %420 = vst [vmem:[#allocation2 + $0x98] sm:$0xff] 0.0
          %421 = vst [vmem:[#allocation2 + $0xa0] sm:$0xff] 0.0
          %422 = vst [vmem:[#allocation2 + $0xa8] sm:$0xff] 0.0
          %423 = vst [vmem:[#allocation2 + $0xb0] sm:$0xff] 0.0
          %424 = vst [vmem:[#allocation2 + $0xb8] sm:$0xff] 0.0
          %425 = vst [vmem:[#allocation2 + $0xc0] sm:$0xff] 0.0
          %426 = vst [vmem:[#allocation2 + $0xc8] sm:$0xff] 0.0
          %427 = vst [vmem:[#allocation2 + $0xd0] sm:$0xff] 0.0
          %428 = vst [vmem:[#allocation2 + $0xd8] sm:$0xff] 0.0
          %429 = vst [vmem:[#allocation2 + $0xe0] sm:$0xff] 0.0
          %430 = vst [vmem:[#allocation2 + $0xe8] sm:$0xff] 0.0
          %431 = vst [vmem:[#allocation2 + $0xf0] sm:$0xff] 0.0
          %432 = vst [vmem:[#allocation2 + $0xf8] sm:$0xff] 0.0
        $region60: #{tpu_custom_call.1} parent=55 // pred_fallthru
          _
        %v433 = vld [vmem:[%s383] sm:$0xff]
        %v434 = vld [vmem:[%s383 + $0x8] sm:$0xff]
        %v435 = vld [vmem:[%s383 + $0x10] sm:$0xff]
        %v436 = vld [vmem:[%s383 + $0x18] sm:$0xff]
        %v437 = vld [vmem:[%s383 + $0x20] sm:$0xff]
        %v438 = vld [vmem:[%s383 + $0x28] sm:$0xff]
        %v439 = vld [vmem:[%s383 + $0x30] sm:$0xff]
        %v440 = vld [vmem:[%s383 + $0x38] sm:$0xff]
        %v441 = vld [vmem:[%s383 + $0x40] sm:$0xff]
        %v442 = vld [vmem:[%s383 + $0x48] sm:$0xff]
        %v443 = vld [vmem:[%s383 + $0x50] sm:$0xff]
        %v444 = vld [vmem:[%s383 + $0x58] sm:$0xff]
        %v445 = vld [vmem:[%s383 + $0x60] sm:$0xff]
        %v446 = vld [vmem:[%s383 + $0x68] sm:$0xff]
        %v447 = vld [vmem:[%s383 + $0x70] sm:$0xff]
        %v448 = vld [vmem:[%s383 + $0x78] sm:$0xff]
        %v449 = vld [vmem:[%s383 + $0x80] sm:$0xff]
        %v450 = vld [vmem:[%s383 + $0x88] sm:$0xff]
        %v451 = vld [vmem:[%s383 + $0x90] sm:$0xff]
        %v452 = vld [vmem:[%s383 + $0x98] sm:$0xff]
        %v453 = vld [vmem:[%s383 + $0xa0] sm:$0xff]
        %v454 = vld [vmem:[%s383 + $0xa8] sm:$0xff]
        %v455 = vld [vmem:[%s383 + $0xb0] sm:$0xff]
        %v456 = vld [vmem:[%s383 + $0xb8] sm:$0xff]
        %v457 = vld [vmem:[%s383 + $0xc0] sm:$0xff]
        %v458 = vld [vmem:[%s383 + $0xc8] sm:$0xff]
        %v459 = vld [vmem:[%s383 + $0xd0] sm:$0xff]
        %v460 = vld [vmem:[%s383 + $0xd8] sm:$0xff]
        %v461 = vld [vmem:[%s383 + $0xe0] sm:$0xff]
        %v462 = vld [vmem:[%s383 + $0xe8] sm:$0xff]
        %v463 = vld [vmem:[%s383 + $0xf0] sm:$0xff]
        %v464 = vld [vmem:[%s383 + $0xf8] sm:$0xff]
        %v465 = vld [vmem:[%s388] sm:$0xff]
        %v466 = vld [vmem:[%s388 + $0x8] sm:$0xff]
        %v467 = vld [vmem:[%s388 + $0x10] sm:$0xff]
        %v468 = vld [vmem:[%s388 + $0x18] sm:$0xff]
        %v469 = vld [vmem:[%s388 + $0x20] sm:$0xff]
        %v470 = vld [vmem:[%s388 + $0x28] sm:$0xff]
        %v471 = vld [vmem:[%s388 + $0x30] sm:$0xff]
        %v472 = vld [vmem:[%s388 + $0x38] sm:$0xff]
        %v473 = vld [vmem:[%s388 + $0x40] sm:$0xff]
        %v474 = vld [vmem:[%s388 + $0x48] sm:$0xff]
        %v475 = vld [vmem:[%s388 + $0x50] sm:$0xff]
        %v476 = vld [vmem:[%s388 + $0x58] sm:$0xff]
        %v477 = vld [vmem:[%s388 + $0x60] sm:$0xff]
        %v478 = vld [vmem:[%s388 + $0x68] sm:$0xff]
        %v479 = vld [vmem:[%s388 + $0x70] sm:$0xff]
        %v480 = vld [vmem:[%s388 + $0x78] sm:$0xff]
        %v481 = vld [vmem:[%s391] sm:$0x1]
        %v483 = vlaneseq
        %v484 = vshrl.u32 %v483, 7
        %v485 = vsub.s32 0, %v484
        %v486 = vrot.slane %v481, %v485
        %488 = vmatprep.subr.mxu0 0.0
        %489 = vmatpush1.msra.mxu0 %v480
        %490 = vmatprep.subr.mxu0 0.0
        %491 = vmatpush1.msra.mxu0 %v479
        %492 = vmatprep.subr.mxu0 0.0
        %493 = vmatpush1.msra.mxu0 %v478
        %494 = vmatprep.subr.mxu0 0.0
        %495 = vmatpush1.msra.mxu0 %v477
        %496 = vmatprep.subr.mxu0 0.0
        %497 = vmatpush1.msra.mxu0 %v476
        %498 = vmatprep.subr.mxu0 0.0
        %499 = vmatpush1.msra.mxu0 %v475
        %500 = vmatprep.subr.mxu0 0.0
        %501 = vmatpush1.msra.mxu0 %v474
        %502 = vmatprep.subr.mxu0 0.0
        %503 = vmatpush1.msra.mxu0 %v473
        %504 = vmatprep.subr.mxu0 0.0
        %505 = vmatpush1.msra.mxu0 %v472
        %506 = vmatprep.subr.mxu0 0.0
        %507 = vmatpush1.msra.mxu0 %v471
        %508 = vmatprep.subr.mxu0 0.0
        %509 = vmatpush1.msra.mxu0 %v470
        %510 = vmatprep.subr.mxu0 0.0
        %511 = vmatpush1.msra.mxu0 %v469
        %512 = vmatprep.subr.mxu0 0.0
        %513 = vmatpush1.msra.mxu0 %v468
        %514 = vmatprep.subr.mxu0 0.0
        %515 = vmatpush1.msra.mxu0 %v467
        %516 = vmatprep.subr.mxu0 0.0
        %517 = vmatpush1.msra.mxu0 %v466
        %518 = vmatprep.subr.mxu0 0.0
        %519 = vmatpush1.msra.mxu0 %v465
        %520 = vmatprep.subr.mxu0 0.0
        %521 = vmatpush2.msra.mxu0 0.0
        %522 = vmatprep.subr.mxu0 0.0
        %523 = vmatpush2.msra.mxu0 0.0
        %524 = vmatprep.subr.mxu0 0.0
        %525 = vmatpush2.msra.mxu0 0.0
        %526 = vmatprep.subr.mxu0 0.0
        %527 = vmatpush2.msra.mxu0 0.0
        %528 = vmatprep.subr.mxu0 0.0
        %529 = vmatpush2.msra.mxu0 0.0
        %530 = vmatprep.subr.mxu0 0.0
        %531 = vmatpush2.msra.mxu0 0.0
        %532 = vmatprep.subr.mxu0 0.0
        %533 = vmatpush2.msra.mxu0 0.0
        %534 = vmatprep.subr.mxu0 0.0
        %535 = vmatpush2.msra.mxu0 0.0
        %536 = vmatprep.subr.mxu0 0.0
        %537 = vmatpush2.msra.mxu0 0.0
        %538 = vmatprep.subr.mxu0 0.0
        %539 = vmatpush2.msra.mxu0 0.0
        %540 = vmatprep.subr.mxu0 0.0
        %541 = vmatpush2.msra.mxu0 0.0
        %542 = vmatprep.subr.mxu0 0.0
        %543 = vmatpush2.msra.mxu0 0.0
        %544 = vmatprep.subr.mxu0 0.0
        %545 = vmatpush2.msra.mxu0 0.0
        %546 = vmatprep.subr.mxu0 0.0
        %547 = vmatpush2.msra.mxu0 0.0
        %548 = vmatprep.subr.mxu0 0.0
        %549 = vmatpush2.msra.mxu0 0.0
        %550 = vmatprep.subr.mxu0 0.0
        %551 = vmatpush2.msra.mxu0 0.0
        %552 = vmatprep.mubr.f32.mxu0 0.0
        %553 = vmatmul.mubr.f32.gmra.mxu0 %v433
        %v554 = vpop.f32.mrf.mxu0
        %v555 = vadd.f32 %v486, %v554
        %v556 = vpop.f32.mrf.mxu0
        %557 = vmatprep.mubr.f32.mxu0 0.0
        %558 = vmatmul.mubr.f32.gmra.mxu0 %v434
        %v559 = vpop.f32.mrf.mxu0
        %v560 = vadd.f32 %v486, %v559
        %v561 = vpop.f32.mrf.mxu0
        %562 = vmatprep.mubr.f32.mxu0 0.0
        %563 = vmatmul.mubr.f32.gmra.mxu0 %v435
        %v564 = vpop.f32.mrf.mxu0
        %v565 = vadd.f32 %v486, %v564
        %v566 = vpop.f32.mrf.mxu0
        %567 = vmatprep.mubr.f32.mxu0 0.0
        %568 = vmatmul.mubr.f32.gmra.mxu0 %v436
        %v569 = vpop.f32.mrf.mxu0
        %v570 = vadd.f32 %v486, %v569
        %v571 = vpop.f32.mrf.mxu0
        %572 = vmatprep.mubr.f32.mxu0 0.0
        %573 = vmatmul.mubr.f32.gmra.mxu0 %v437
        %v574 = vpop.f32.mrf.mxu0
        %v575 = vadd.f32 %v486, %v574
        %v576 = vpop.f32.mrf.mxu0
        %577 = vmatprep.mubr.f32.mxu0 0.0
        %578 = vmatmul.mubr.f32.gmra.mxu0 %v438
        %v579 = vpop.f32.mrf.mxu0
        %v580 = vadd.f32 %v486, %v579
        %v581 = vpop.f32.mrf.mxu0
        %582 = vmatprep.mubr.f32.mxu0 0.0
        %583 = vmatmul.mubr.f32.gmra.mxu0 %v439
        %v584 = vpop.f32.mrf.mxu0
        %v585 = vadd.f32 %v486, %v584
        %v586 = vpop.f32.mrf.mxu0
        %587 = vmatprep.mubr.f32.mxu0 0.0
        %588 = vmatmul.mubr.f32.gmra.mxu0 %v440
        %v589 = vpop.f32.mrf.mxu0
        %v590 = vadd.f32 %v486, %v589
        %v591 = vpop.f32.mrf.mxu0
        %592 = vmatprep.mubr.f32.mxu0 0.0
        %593 = vmatmul.mubr.f32.gmra.mxu0 %v441
        %v594 = vpop.f32.mrf.mxu0
        %v595 = vadd.f32 %v486, %v594
        %v596 = vpop.f32.mrf.mxu0
        %597 = vmatprep.mubr.f32.mxu0 0.0
        %598 = vmatmul.mubr.f32.gmra.mxu0 %v442
        %v599 = vpop.f32.mrf.mxu0
        %v600 = vadd.f32 %v486, %v599
        %v601 = vpop.f32.mrf.mxu0
        %602 = vmatprep.mubr.f32.mxu0 0.0
        %603 = vmatmul.mubr.f32.gmra.mxu0 %v443
        %v604 = vpop.f32.mrf.mxu0
        %v605 = vadd.f32 %v486, %v604
        %v606 = vpop.f32.mrf.mxu0
        %607 = vmatprep.mubr.f32.mxu0 0.0
        %608 = vmatmul.mubr.f32.gmra.mxu0 %v444
        %v609 = vpop.f32.mrf.mxu0
        %v610 = vadd.f32 %v486, %v609
        %v611 = vpop.f32.mrf.mxu0
        %612 = vmatprep.mubr.f32.mxu0 0.0
        %613 = vmatmul.mubr.f32.gmra.mxu0 %v445
        %v614 = vpop.f32.mrf.mxu0
        %v615 = vadd.f32 %v486, %v614
        %v616 = vpop.f32.mrf.mxu0
        %617 = vmatprep.mubr.f32.mxu0 0.0
        %618 = vmatmul.mubr.f32.gmra.mxu0 %v446
        %v619 = vpop.f32.mrf.mxu0
        %v620 = vadd.f32 %v486, %v619
        %v621 = vpop.f32.mrf.mxu0
        %622 = vmatprep.mubr.f32.mxu0 0.0
        %623 = vmatmul.mubr.f32.gmra.mxu0 %v447
        %v624 = vpop.f32.mrf.mxu0
        %v625 = vadd.f32 %v486, %v624
        %v626 = vpop.f32.mrf.mxu0
        %627 = vmatprep.mubr.f32.mxu0 0.0
        %628 = vmatmul.mubr.f32.gmra.mxu0 %v448
        %v629 = vpop.f32.mrf.mxu0
        %v630 = vadd.f32 %v486, %v629
        %v631 = vpop.f32.mrf.mxu0
        %632 = vmatprep.mubr.f32.mxu0 0.0
        %633 = vmatmul.mubr.f32.gmra.mxu0 %v449
        %v634 = vpop.f32.mrf.mxu0
        %v635 = vadd.f32 %v486, %v634
        %v636 = vpop.f32.mrf.mxu0
        %637 = vmatprep.mubr.f32.mxu0 0.0
        %638 = vmatmul.mubr.f32.gmra.mxu0 %v450
        %v639 = vpop.f32.mrf.mxu0
        %v640 = vadd.f32 %v486, %v639
        %v641 = vpop.f32.mrf.mxu0
        %642 = vmatprep.mubr.f32.mxu0 0.0
        %643 = vmatmul.mubr.f32.gmra.mxu0 %v451
        %v644 = vpop.f32.mrf.mxu0
        %v645 = vadd.f32 %v486, %v644
        %v646 = vpop.f32.mrf.mxu0
        %647 = vmatprep.mubr.f32.mxu0 0.0
        %648 = vmatmul.mubr.f32.gmra.mxu0 %v452
        %v649 = vpop.f32.mrf.mxu0
        %v650 = vadd.f32 %v486, %v649
        %v651 = vpop.f32.mrf.mxu0
        %652 = vmatprep.mubr.f32.mxu0 0.0
        %653 = vmatmul.mubr.f32.gmra.mxu0 %v453
        %v654 = vpop.f32.mrf.mxu0
        %v655 = vadd.f32 %v486, %v654
        %v656 = vpop.f32.mrf.mxu0
        %657 = vmatprep.mubr.f32.mxu0 0.0
        %658 = vmatmul.mubr.f32.gmra.mxu0 %v454
        %v659 = vpop.f32.mrf.mxu0
        %v660 = vadd.f32 %v486, %v659
        %v661 = vpop.f32.mrf.mxu0
        %662 = vmatprep.mubr.f32.mxu0 0.0
        %663 = vmatmul.mubr.f32.gmra.mxu0 %v455
        %v664 = vpop.f32.mrf.mxu0
        %v665 = vadd.f32 %v486, %v664
        %v666 = vpop.f32.mrf.mxu0
        %667 = vmatprep.mubr.f32.mxu0 0.0
        %668 = vmatmul.mubr.f32.gmra.mxu0 %v456
        %v669 = vpop.f32.mrf.mxu0
        %v670 = vadd.f32 %v486, %v669
        %v671 = vpop.f32.mrf.mxu0
        %672 = vmatprep.mubr.f32.mxu0 0.0
        %673 = vmatmul.mubr.f32.gmra.mxu0 %v457
        %v674 = vpop.f32.mrf.mxu0
        %v675 = vadd.f32 %v486, %v674
        %v676 = vpop.f32.mrf.mxu0
        %677 = vmatprep.mubr.f32.mxu0 0.0
        %678 = vmatmul.mubr.f32.gmra.mxu0 %v458
        %v679 = vpop.f32.mrf.mxu0
        %v680 = vadd.f32 %v486, %v679
        %v681 = vpop.f32.mrf.mxu0
        %682 = vmatprep.mubr.f32.mxu0 0.0
        %683 = vmatmul.mubr.f32.gmra.mxu0 %v459
        %v684 = vpop.f32.mrf.mxu0
        %v685 = vadd.f32 %v486, %v684
        %v686 = vpop.f32.mrf.mxu0
        %687 = vmatprep.mubr.f32.mxu0 0.0
        %688 = vmatmul.mubr.f32.gmra.mxu0 %v460
        %v689 = vpop.f32.mrf.mxu0
        %v690 = vadd.f32 %v486, %v689
        %v691 = vpop.f32.mrf.mxu0
        %692 = vmatprep.mubr.f32.mxu0 0.0
        %693 = vmatmul.mubr.f32.gmra.mxu0 %v461
        %v694 = vpop.f32.mrf.mxu0
        %v695 = vadd.f32 %v486, %v694
        %v696 = vpop.f32.mrf.mxu0
        %697 = vmatprep.mubr.f32.mxu0 0.0
        %698 = vmatmul.mubr.f32.gmra.mxu0 %v462
        %v699 = vpop.f32.mrf.mxu0
        %v700 = vadd.f32 %v486, %v699
        %v701 = vpop.f32.mrf.mxu0
        %702 = vmatprep.mubr.f32.mxu0 0.0
        %703 = vmatmul.mubr.f32.gmra.mxu0 %v463
        %v704 = vpop.f32.mrf.mxu0
        %v705 = vadd.f32 %v486, %v704
        %v706 = vpop.f32.mrf.mxu0
        %707 = vmatprep.mubr.f32.mxu0 0.0
        %708 = vmatmul.mubr.f32.gmra.mxu0 %v464
        %v709 = vpop.f32.mrf.mxu0
        %v710 = vadd.f32 %v486, %v709
        %v711 = vpop.f32.mrf.mxu0
        %712 = vdwg.mxu0
        %v713 = vmul.f32 %v555, 0.25
        %v714 = vmul.f32 %v560, 0.25
        %v715 = vmul.f32 %v565, 0.25
        %v716 = vmul.f32 %v570, 0.25
        %v717 = vmul.f32 %v575, 0.25
        %v718 = vmul.f32 %v580, 0.25
        %v719 = vmul.f32 %v585, 0.25
        %v720 = vmul.f32 %v590, 0.25
        %v721 = vmul.f32 %v595, 0.25
        %v722 = vmul.f32 %v600, 0.25
        %v723 = vmul.f32 %v605, 0.25
        %v724 = vmul.f32 %v610, 0.25
        %v725 = vmul.f32 %v615, 0.25
        %v726 = vmul.f32 %v620, 0.25
        %v727 = vmul.f32 %v625, 0.25
        %v728 = vmul.f32 %v630, 0.25
        %v729 = vmul.f32 %v635, 0.25
        %v730 = vmul.f32 %v640, 0.25
        %v731 = vmul.f32 %v645, 0.25
        %v732 = vmul.f32 %v650, 0.25
        %v733 = vmul.f32 %v655, 0.25
        %v734 = vmul.f32 %v660, 0.25
        %v735 = vmul.f32 %v665, 0.25
        %v736 = vmul.f32 %v670, 0.25
        %v737 = vmul.f32 %v675, 0.25
        %v738 = vmul.f32 %v680, 0.25
        %v739 = vmul.f32 %v685, 0.25
        %v740 = vmul.f32 %v690, 0.25
        %v741 = vmul.f32 %v695, 0.25
        %v742 = vmul.f32 %v700, 0.25
        %v743 = vmul.f32 %v705, 0.25
        %v744 = vmul.f32 %v710, 0.25
        %v745 = vld [vmem:[%s3] sm:$0xff]
        %v746 = vld [vmem:[%s3 + $0x8] sm:$0xff]
        %v747 = vld [vmem:[%s3 + $0x10] sm:$0xff]
        %v748 = vld [vmem:[%s3 + $0x18] sm:$0xff]
        %v749 = vld [vmem:[%s3 + $0x20] sm:$0xff]
        %v750 = vld [vmem:[%s3 + $0x28] sm:$0xff]
        %v751 = vld [vmem:[%s3 + $0x30] sm:$0xff]
        %v752 = vld [vmem:[%s3 + $0x38] sm:$0xff]
        %v753 = vld [vmem:[%s3 + $0x40] sm:$0xff]
        %v754 = vld [vmem:[%s3 + $0x48] sm:$0xff]
        %v755 = vld [vmem:[%s3 + $0x50] sm:$0xff]
        %v756 = vld [vmem:[%s3 + $0x58] sm:$0xff]
        %v757 = vld [vmem:[%s3 + $0x60] sm:$0xff]
        %v758 = vld [vmem:[%s3 + $0x68] sm:$0xff]
        %v759 = vld [vmem:[%s3 + $0x70] sm:$0xff]
        %v760 = vld [vmem:[%s3 + $0x78] sm:$0xff]
        %v761 = vld [vmem:[%s3 + $0x80] sm:$0xff]
        %v762 = vld [vmem:[%s3 + $0x88] sm:$0xff]
        %v763 = vld [vmem:[%s3 + $0x90] sm:$0xff]
        %v764 = vld [vmem:[%s3 + $0x98] sm:$0xff]
        %v765 = vld [vmem:[%s3 + $0xa0] sm:$0xff]
        %v766 = vld [vmem:[%s3 + $0xa8] sm:$0xff]
        %v767 = vld [vmem:[%s3 + $0xb0] sm:$0xff]
        %v768 = vld [vmem:[%s3 + $0xb8] sm:$0xff]
        %v769 = vld [vmem:[%s3 + $0xc0] sm:$0xff]
        %v770 = vld [vmem:[%s3 + $0xc8] sm:$0xff]
        %v771 = vld [vmem:[%s3 + $0xd0] sm:$0xff]
        %v772 = vld [vmem:[%s3 + $0xd8] sm:$0xff]
        %v773 = vld [vmem:[%s3 + $0xe0] sm:$0xff]
        %v774 = vld [vmem:[%s3 + $0xe8] sm:$0xff]
        %v775 = vld [vmem:[%s3 + $0xf0] sm:$0xff]
        %v776 = vld [vmem:[%s3 + $0xf8] sm:$0xff]
        %vm777 = vcmask 130048
        %v779 = vsel %vm777, %v555, 0
        %v782 = vsel %vm777, %v560, 0
        %v785 = vsel %vm777, %v745, 0
        %v788 = vsel %vm777, %v746, 0
        %790 = vmatprep.subr.mxu0 0.0
        %791 = vmatpush1.xpose.msra.mxu0 0.0
        %792 = vmatprep.subr.mxu0 0.0
        %793 = vmatpush1.xpose.msra.mxu0 0.0
        %794 = vmatprep.subr.mxu0 0.0
        %795 = vmatpush1.xpose.msra.mxu0 0.0
        %796 = vmatprep.subr.mxu0 0.0
        %797 = vmatpush1.xpose.msra.mxu0 0.0
        %798 = vmatprep.subr.mxu0 0.0
        %799 = vmatpush1.xpose.msra.mxu0 0.0
        %800 = vmatprep.subr.mxu0 0.0
        %801 = vmatpush1.xpose.msra.mxu0 0.0
        %802 = vmatprep.subr.mxu0 0.0
        %803 = vmatpush1.xpose.msra.mxu0 0.0
        %804 = vmatprep.subr.mxu0 0.0
        %805 = vmatpush1.xpose.msra.mxu0 0.0
        %806 = vmatprep.subr.mxu0 0.0
        %807 = vmatpush1.xpose.msra.mxu0 0.0
        %808 = vmatprep.subr.mxu0 0.0
        %809 = vmatpush1.xpose.msra.mxu0 0.0
        %810 = vmatprep.subr.mxu0 0.0
        %811 = vmatpush1.xpose.msra.mxu0 0.0
        %812 = vmatprep.subr.mxu0 0.0
        %813 = vmatpush1.xpose.msra.mxu0 0.0
        %814 = vmatprep.subr.mxu0 0.0
        %815 = vmatpush1.xpose.msra.mxu0 0.0
        %816 = vmatprep.subr.mxu0 0.0
        %817 = vmatpush1.xpose.msra.mxu0 0.0
        %818 = vmatprep.subr.mxu0 0.0
        %819 = vmatpush1.xpose.msra.mxu0 %v788
        %820 = vmatprep.subr.mxu0 0.0
        %821 = vmatpush1.xpose.msra.mxu0 %v785
        %822 = vmatprep.subr.mxu0 0.0
        %823 = vmatpush2.xpose.msra.mxu0 0.0
        %824 = vmatprep.subr.mxu0 0.0
        %825 = vmatpush2.xpose.msra.mxu0 0.0
        %826 = vmatprep.subr.mxu0 0.0
        %827 = vmatpush2.xpose.msra.mxu0 0.0
        %828 = vmatprep.subr.mxu0 0.0
        %829 = vmatpush2.xpose.msra.mxu0 0.0
        %830 = vmatprep.subr.mxu0 0.0
        %831 = vmatpush2.xpose.msra.mxu0 0.0
        %832 = vmatprep.subr.mxu0 0.0
        %833 = vmatpush2.xpose.msra.mxu0 0.0
        %834 = vmatprep.subr.mxu0 0.0
        %835 = vmatpush2.xpose.msra.mxu0 0.0
        %836 = vmatprep.subr.mxu0 0.0
        %837 = vmatpush2.xpose.msra.mxu0 0.0
        %838 = vmatprep.subr.mxu0 0.0
        %839 = vmatpush2.xpose.msra.mxu0 0.0
        %840 = vmatprep.subr.mxu0 0.0
        %841 = vmatpush2.xpose.msra.mxu0 0.0
        %842 = vmatprep.subr.mxu0 0.0
        %843 = vmatpush2.xpose.msra.mxu0 0.0
        %844 = vmatprep.subr.mxu0 0.0
        %845 = vmatpush2.xpose.msra.mxu0 0.0
        %846 = vmatprep.subr.mxu0 0.0
        %847 = vmatpush2.xpose.msra.mxu0 0.0
        %848 = vmatprep.subr.mxu0 0.0
        %849 = vmatpush2.xpose.msra.mxu0 0.0
        %850 = vmatprep.subr.mxu0 0.0
        %851 = vmatpush2.xpose.msra.mxu0 0.0
        %852 = vmatprep.subr.mxu0 0.0
        %853 = vmatpush2.xpose.msra.mxu0 0.0
        %854 = vmatprep.mubr.f32.mxu0 0.0
        %855 = vmatmul.mubr.f32.gmra.mxu0 %v779
        %v856 = vpop.f32.mrf.mxu0
        %v857 = vadd.f32 0.0, %v856
        %v858 = vpop.f32.mrf.mxu0
        %859 = vmatprep.mubr.f32.mxu0 0.0
        %860 = vmatmul.mubr.f32.gmra.mxu0 %v782
        %v861 = vpop.f32.mrf.mxu0
        %v862 = vadd.f32 0.0, %v861
        %v863 = vpop.f32.mrf.mxu0
        %864 = vdwg.mxu0
        %v866 = vsel %vm777, %v565, 0
        %v869 = vsel %vm777, %v570, 0
        %v872 = vsel %vm777, %v747, 0
        %v875 = vsel %vm777, %v748, 0
        %877 = vmatprep.subr.mxu0 0.0
        %878 = vmatpush1.xpose.msra.mxu0 0.0
        %879 = vmatprep.subr.mxu0 0.0
        %880 = vmatpush1.xpose.msra.mxu0 0.0
        %881 = vmatprep.subr.mxu0 0.0
        %882 = vmatpush1.xpose.msra.mxu0 0.0
        %883 = vmatprep.subr.mxu0 0.0
        %884 = vmatpush1.xpose.msra.mxu0 0.0
        %885 = vmatprep.subr.mxu0 0.0
        %886 = vmatpush1.xpose.msra.mxu0 0.0
        %887 = vmatprep.subr.mxu0 0.0
        %888 = vmatpush1.xpose.msra.mxu0 0.0
        %889 = vmatprep.subr.mxu0 0.0
        %890 = vmatpush1.xpose.msra.mxu0 0.0
        %891 = vmatprep.subr.mxu0 0.0
        %892 = vmatpush1.xpose.msra.mxu0 0.0
        %893 = vmatprep.subr.mxu0 0.0
        %894 = vmatpush1.xpose.msra.mxu0 0.0
        %895 = vmatprep.subr.mxu0 0.0
        %896 = vmatpush1.xpose.msra.mxu0 0.0
        %897 = vmatprep.subr.mxu0 0.0
        %898 = vmatpush1.xpose.msra.mxu0 0.0
        %899 = vmatprep.subr.mxu0 0.0
        %900 = vmatpush1.xpose.msra.mxu0 0.0
        %901 = vmatprep.subr.mxu0 0.0
        %902 = vmatpush1.xpose.msra.mxu0 0.0
        %903 = vmatprep.subr.mxu0 0.0
        %904 = vmatpush1.xpose.msra.mxu0 0.0
        %905 = vmatprep.subr.mxu0 0.0
        %906 = vmatpush1.xpose.msra.mxu0 %v875
        %907 = vmatprep.subr.mxu0 0.0
        %908 = vmatpush1.xpose.msra.mxu0 %v872
        %909 = vmatprep.subr.mxu0 0.0
        %910 = vmatpush2.xpose.msra.mxu0 0.0
        %911 = vmatprep.subr.mxu0 0.0
        %912 = vmatpush2.xpose.msra.mxu0 0.0
        %913 = vmatprep.subr.mxu0 0.0
        %914 = vmatpush2.xpose.msra.mxu0 0.0
        %915 = vmatprep.subr.mxu0 0.0
        %916 = vmatpush2.xpose.msra.mxu0 0.0
        %917 = vmatprep.subr.mxu0 0.0
        %918 = vmatpush2.xpose.msra.mxu0 0.0
        %919 = vmatprep.subr.mxu0 0.0
        %920 = vmatpush2.xpose.msra.mxu0 0.0
        %921 = vmatprep.subr.mxu0 0.0
        %922 = vmatpush2.xpose.msra.mxu0 0.0
        %923 = vmatprep.subr.mxu0 0.0
        %924 = vmatpush2.xpose.msra.mxu0 0.0
        %925 = vmatprep.subr.mxu0 0.0
        %926 = vmatpush2.xpose.msra.mxu0 0.0
        %927 = vmatprep.subr.mxu0 0.0
        %928 = vmatpush2.xpose.msra.mxu0 0.0
        %929 = vmatprep.subr.mxu0 0.0
        %930 = vmatpush2.xpose.msra.mxu0 0.0
        %931 = vmatprep.subr.mxu0 0.0
        %932 = vmatpush2.xpose.msra.mxu0 0.0
        %933 = vmatprep.subr.mxu0 0.0
        %934 = vmatpush2.xpose.msra.mxu0 0.0
        %935 = vmatprep.subr.mxu0 0.0
        %936 = vmatpush2.xpose.msra.mxu0 0.0
        %937 = vmatprep.subr.mxu0 0.0
        %938 = vmatpush2.xpose.msra.mxu0 0.0
        %939 = vmatprep.subr.mxu0 0.0
        %940 = vmatpush2.xpose.msra.mxu0 0.0
        %941 = vmatprep.mubr.f32.mxu0 0.0
        %942 = vmatmul.mubr.f32.gmra.mxu0 %v866
        %v943 = vpop.f32.mrf.mxu0
        %v944 = vadd.f32 0.0, %v943
        %v945 = vpop.f32.mrf.mxu0
        %946 = vmatprep.mubr.f32.mxu0 0.0
        %947 = vmatmul.mubr.f32.gmra.mxu0 %v869
        %v948 = vpop.f32.mrf.mxu0
        %v949 = vadd.f32 0.0, %v948
        %v950 = vpop.f32.mrf.mxu0
        %951 = vdwg.mxu0
        %v953 = vsel %vm777, %v575, 0
        %v956 = vsel %vm777, %v580, 0
        %v959 = vsel %vm777, %v749, 0
        %v962 = vsel %vm777, %v750, 0
        %964 = vmatprep.subr.mxu0 0.0
        %965 = vmatpush1.xpose.msra.mxu0 0.0
        %966 = vmatprep.subr.mxu0 0.0
        %967 = vmatpush1.xpose.msra.mxu0 0.0
        %968 = vmatprep.subr.mxu0 0.0
        %969 = vmatpush1.xpose.msra.mxu0 0.0
        %970 = vmatprep.subr.mxu0 0.0
        %971 = vmatpush1.xpose.msra.mxu0 0.0
        %972 = vmatprep.subr.mxu0 0.0
        %973 = vmatpush1.xpose.msra.mxu0 0.0
        %974 = vmatprep.subr.mxu0 0.0
        %975 = vmatpush1.xpose.msra.mxu0 0.0
        %976 = vmatprep.subr.mxu0 0.0
        %977 = vmatpush1.xpose.msra.mxu0 0.0
        %978 = vmatprep.subr.mxu0 0.0
        %979 = vmatpush1.xpose.msra.mxu0 0.0
        %980 = vmatprep.subr.mxu0 0.0
        %981 = vmatpush1.xpose.msra.mxu0 0.0
        %982 = vmatprep.subr.mxu0 0.0
        %983 = vmatpush1.xpose.msra.mxu0 0.0
        %984 = vmatprep.subr.mxu0 0.0
        %985 = vmatpush1.xpose.msra.mxu0 0.0
        %986 = vmatprep.subr.mxu0 0.0
        %987 = vmatpush1.xpose.msra.mxu0 0.0
        %988 = vmatprep.subr.mxu0 0.0
        %989 = vmatpush1.xpose.msra.mxu0 0.0
        %990 = vmatprep.subr.mxu0 0.0
        %991 = vmatpush1.xpose.msra.mxu0 0.0
        %992 = vmatprep.subr.mxu0 0.0
        %993 = vmatpush1.xpose.msra.mxu0 %v962
        %994 = vmatprep.subr.mxu0 0.0
        %995 = vmatpush1.xpose.msra.mxu0 %v959
        %996 = vmatprep.subr.mxu0 0.0
        %997 = vmatpush2.xpose.msra.mxu0 0.0
        %998 = vmatprep.subr.mxu0 0.0
        %999 = vmatpush2.xpose.msra.mxu0 0.0
        %1000 = vmatprep.subr.mxu0 0.0
        %1001 = vmatpush2.xpose.msra.mxu0 0.0
        %1002 = vmatprep.subr.mxu0 0.0
        %1003 = vmatpush2.xpose.msra.mxu0 0.0
        %1004 = vmatprep.subr.mxu0 0.0
        %1005 = vmatpush2.xpose.msra.mxu0 0.0
        %1006 = vmatprep.subr.mxu0 0.0
        %1007 = vmatpush2.xpose.msra.mxu0 0.0
        %1008 = vmatprep.subr.mxu0 0.0
        %1009 = vmatpush2.xpose.msra.mxu0 0.0
        %1010 = vmatprep.subr.mxu0 0.0
        %1011 = vmatpush2.xpose.msra.mxu0 0.0
        %1012 = vmatprep.subr.mxu0 0.0
        %1013 = vmatpush2.xpose.msra.mxu0 0.0
        %1014 = vmatprep.subr.mxu0 0.0
        %1015 = vmatpush2.xpose.msra.mxu0 0.0
        %1016 = vmatprep.subr.mxu0 0.0
        %1017 = vmatpush2.xpose.msra.mxu0 0.0
        %1018 = vmatprep.subr.mxu0 0.0
        %1019 = vmatpush2.xpose.msra.mxu0 0.0
        %1020 = vmatprep.subr.mxu0 0.0
        %1021 = vmatpush2.xpose.msra.mxu0 0.0
        %1022 = vmatprep.subr.mxu0 0.0
        %1023 = vmatpush2.xpose.msra.mxu0 0.0
        %1024 = vmatprep.subr.mxu0 0.0
        %1025 = vmatpush2.xpose.msra.mxu0 0.0
        %1026 = vmatprep.subr.mxu0 0.0
        %1027 = vmatpush2.xpose.msra.mxu0 0.0
        %1028 = vmatprep.mubr.f32.mxu0 0.0
        %1029 = vmatmul.mubr.f32.gmra.mxu0 %v953
        %v1030 = vpop.f32.mrf.mxu0
        %v1031 = vadd.f32 0.0, %v1030
        %v1032 = vpop.f32.mrf.mxu0
        %1033 = vmatprep.mubr.f32.mxu0 0.0
        %1034 = vmatmul.mubr.f32.gmra.mxu0 %v956
        %v1035 = vpop.f32.mrf.mxu0
        %v1036 = vadd.f32 0.0, %v1035
        %v1037 = vpop.f32.mrf.mxu0
        %1038 = vdwg.mxu0
        %v1040 = vsel %vm777, %v585, 0
        %v1043 = vsel %vm777, %v590, 0
        %v1046 = vsel %vm777, %v751, 0
        %v1049 = vsel %vm777, %v752, 0
        %1051 = vmatprep.subr.mxu0 0.0
        %1052 = vmatpush1.xpose.msra.mxu0 0.0
        %1053 = vmatprep.subr.mxu0 0.0
        %1054 = vmatpush1.xpose.msra.mxu0 0.0
        %1055 = vmatprep.subr.mxu0 0.0
        %1056 = vmatpush1.xpose.msra.mxu0 0.0
        %1057 = vmatprep.subr.mxu0 0.0
        %1058 = vmatpush1.xpose.msra.mxu0 0.0
        %1059 = vmatprep.subr.mxu0 0.0
        %1060 = vmatpush1.xpose.msra.mxu0 0.0
        %1061 = vmatprep.subr.mxu0 0.0
        %1062 = vmatpush1.xpose.msra.mxu0 0.0
        %1063 = vmatprep.subr.mxu0 0.0
        %1064 = vmatpush1.xpose.msra.mxu0 0.0
        %1065 = vmatprep.subr.mxu0 0.0
        %1066 = vmatpush1.xpose.msra.mxu0 0.0
        %1067 = vmatprep.subr.mxu0 0.0
        %1068 = vmatpush1.xpose.msra.mxu0 0.0
        %1069 = vmatprep.subr.mxu0 0.0
        %1070 = vmatpush1.xpose.msra.mxu0 0.0
        %1071 = vmatprep.subr.mxu0 0.0
        %1072 = vmatpush1.xpose.msra.mxu0 0.0
        %1073 = vmatprep.subr.mxu0 0.0
        %1074 = vmatpush1.xpose.msra.mxu0 0.0
        %1075 = vmatprep.subr.mxu0 0.0
        %1076 = vmatpush1.xpose.msra.mxu0 0.0
        %1077 = vmatprep.subr.mxu0 0.0
        %1078 = vmatpush1.xpose.msra.mxu0 0.0
        %1079 = vmatprep.subr.mxu0 0.0
        %1080 = vmatpush1.xpose.msra.mxu0 %v1049
        %1081 = vmatprep.subr.mxu0 0.0
        %1082 = vmatpush1.xpose.msra.mxu0 %v1046
        %1083 = vmatprep.subr.mxu0 0.0
        %1084 = vmatpush2.xpose.msra.mxu0 0.0
        %1085 = vmatprep.subr.mxu0 0.0
        %1086 = vmatpush2.xpose.msra.mxu0 0.0
        %1087 = vmatprep.subr.mxu0 0.0
        %1088 = vmatpush2.xpose.msra.mxu0 0.0
        %1089 = vmatprep.subr.mxu0 0.0
        %1090 = vmatpush2.xpose.msra.mxu0 0.0
        %1091 = vmatprep.subr.mxu0 0.0
        %1092 = vmatpush2.xpose.msra.mxu0 0.0
        %1093 = vmatprep.subr.mxu0 0.0
        %1094 = vmatpush2.xpose.msra.mxu0 0.0
        %1095 = vmatprep.subr.mxu0 0.0
        %1096 = vmatpush2.xpose.msra.mxu0 0.0
        %1097 = vmatprep.subr.mxu0 0.0
        %1098 = vmatpush2.xpose.msra.mxu0 0.0
        %1099 = vmatprep.subr.mxu0 0.0
        %1100 = vmatpush2.xpose.msra.mxu0 0.0
        %1101 = vmatprep.subr.mxu0 0.0
        %1102 = vmatpush2.xpose.msra.mxu0 0.0
        %1103 = vmatprep.subr.mxu0 0.0
        %1104 = vmatpush2.xpose.msra.mxu0 0.0
        %1105 = vmatprep.subr.mxu0 0.0
        %1106 = vmatpush2.xpose.msra.mxu0 0.0
        %1107 = vmatprep.subr.mxu0 0.0
        %1108 = vmatpush2.xpose.msra.mxu0 0.0
        %1109 = vmatprep.subr.mxu0 0.0
        %1110 = vmatpush2.xpose.msra.mxu0 0.0
        %1111 = vmatprep.subr.mxu0 0.0
        %1112 = vmatpush2.xpose.msra.mxu0 0.0
        %1113 = vmatprep.subr.mxu0 0.0
        %1114 = vmatpush2.xpose.msra.mxu0 0.0
        %1115 = vmatprep.mubr.f32.mxu0 0.0
        %1116 = vmatmul.mubr.f32.gmra.mxu0 %v1040
        %v1117 = vpop.f32.mrf.mxu0
        %v1118 = vadd.f32 0.0, %v1117
        %v1119 = vpop.f32.mrf.mxu0
        %1120 = vmatprep.mubr.f32.mxu0 0.0
        %1121 = vmatmul.mubr.f32.gmra.mxu0 %v1043
        %v1122 = vpop.f32.mrf.mxu0
        %v1123 = vadd.f32 0.0, %v1122
        %v1124 = vpop.f32.mrf.mxu0
        %1125 = vdwg.mxu0
        %v1127 = vsel %vm777, %v595, 0
        %v1130 = vsel %vm777, %v600, 0
        %v1133 = vsel %vm777, %v753, 0
        %v1136 = vsel %vm777, %v754, 0
        %1138 = vmatprep.subr.mxu0 0.0
        %1139 = vmatpush1.xpose.msra.mxu0 0.0
        %1140 = vmatprep.subr.mxu0 0.0
        %1141 = vmatpush1.xpose.msra.mxu0 0.0
        %1142 = vmatprep.subr.mxu0 0.0
        %1143 = vmatpush1.xpose.msra.mxu0 0.0
        %1144 = vmatprep.subr.mxu0 0.0
        %1145 = vmatpush1.xpose.msra.mxu0 0.0
        %1146 = vmatprep.subr.mxu0 0.0
        %1147 = vmatpush1.xpose.msra.mxu0 0.0
        %1148 = vmatprep.subr.mxu0 0.0
        %1149 = vmatpush1.xpose.msra.mxu0 0.0
        %1150 = vmatprep.subr.mxu0 0.0
        %1151 = vmatpush1.xpose.msra.mxu0 0.0
        %1152 = vmatprep.subr.mxu0 0.0
        %1153 = vmatpush1.xpose.msra.mxu0 0.0
        %1154 = vmatprep.subr.mxu0 0.0
        %1155 = vmatpush1.xpose.msra.mxu0 0.0
        %1156 = vmatprep.subr.mxu0 0.0
        %1157 = vmatpush1.xpose.msra.mxu0 0.0
        %1158 = vmatprep.subr.mxu0 0.0
        %1159 = vmatpush1.xpose.msra.mxu0 0.0
        %1160 = vmatprep.subr.mxu0 0.0
        %1161 = vmatpush1.xpose.msra.mxu0 0.0
        %1162 = vmatprep.subr.mxu0 0.0
        %1163 = vmatpush1.xpose.msra.mxu0 0.0
        %1164 = vmatprep.subr.mxu0 0.0
        %1165 = vmatpush1.xpose.msra.mxu0 0.0
        %1166 = vmatprep.subr.mxu0 0.0
        %1167 = vmatpush1.xpose.msra.mxu0 %v1136
        %1168 = vmatprep.subr.mxu0 0.0
        %1169 = vmatpush1.xpose.msra.mxu0 %v1133
        %1170 = vmatprep.subr.mxu0 0.0
        %1171 = vmatpush2.xpose.msra.mxu0 0.0
        %1172 = vmatprep.subr.mxu0 0.0
        %1173 = vmatpush2.xpose.msra.mxu0 0.0
        %1174 = vmatprep.subr.mxu0 0.0
        %1175 = vmatpush2.xpose.msra.mxu0 0.0
        %1176 = vmatprep.subr.mxu0 0.0
        %1177 = vmatpush2.xpose.msra.mxu0 0.0
        %1178 = vmatprep.subr.mxu0 0.0
        %1179 = vmatpush2.xpose.msra.mxu0 0.0
        %1180 = vmatprep.subr.mxu0 0.0
        %1181 = vmatpush2.xpose.msra.mxu0 0.0
        %1182 = vmatprep.subr.mxu0 0.0
        %1183 = vmatpush2.xpose.msra.mxu0 0.0
        %1184 = vmatprep.subr.mxu0 0.0
        %1185 = vmatpush2.xpose.msra.mxu0 0.0
        %1186 = vmatprep.subr.mxu0 0.0
        %1187 = vmatpush2.xpose.msra.mxu0 0.0
        %1188 = vmatprep.subr.mxu0 0.0
        %1189 = vmatpush2.xpose.msra.mxu0 0.0
        %1190 = vmatprep.subr.mxu0 0.0
        %1191 = vmatpush2.xpose.msra.mxu0 0.0
        %1192 = vmatprep.subr.mxu0 0.0
        %1193 = vmatpush2.xpose.msra.mxu0 0.0
        %1194 = vmatprep.subr.mxu0 0.0
        %1195 = vmatpush2.xpose.msra.mxu0 0.0
        %1196 = vmatprep.subr.mxu0 0.0
        %1197 = vmatpush2.xpose.msra.mxu0 0.0
        %1198 = vmatprep.subr.mxu0 0.0
        %1199 = vmatpush2.xpose.msra.mxu0 0.0
        %1200 = vmatprep.subr.mxu0 0.0
        %1201 = vmatpush2.xpose.msra.mxu0 0.0
        %1202 = vmatprep.mubr.f32.mxu0 0.0
        %1203 = vmatmul.mubr.f32.gmra.mxu0 %v1127
        %v1204 = vpop.f32.mrf.mxu0
        %v1205 = vadd.f32 0.0, %v1204
        %v1206 = vpop.f32.mrf.mxu0
        %1207 = vmatprep.mubr.f32.mxu0 0.0
        %1208 = vmatmul.mubr.f32.gmra.mxu0 %v1130
        %v1209 = vpop.f32.mrf.mxu0
        %v1210 = vadd.f32 0.0, %v1209
        %v1211 = vpop.f32.mrf.mxu0
        %1212 = vdwg.mxu0
        %v1214 = vsel %vm777, %v605, 0
        %v1217 = vsel %vm777, %v610, 0
        %v1220 = vsel %vm777, %v755, 0
        %v1223 = vsel %vm777, %v756, 0
        %1225 = vmatprep.subr.mxu0 0.0
        %1226 = vmatpush1.xpose.msra.mxu0 0.0
        %1227 = vmatprep.subr.mxu0 0.0
        %1228 = vmatpush1.xpose.msra.mxu0 0.0
        %1229 = vmatprep.subr.mxu0 0.0
        %1230 = vmatpush1.xpose.msra.mxu0 0.0
        %1231 = vmatprep.subr.mxu0 0.0
        %1232 = vmatpush1.xpose.msra.mxu0 0.0
        %1233 = vmatprep.subr.mxu0 0.0
        %1234 = vmatpush1.xpose.msra.mxu0 0.0
        %1235 = vmatprep.subr.mxu0 0.0
        %1236 = vmatpush1.xpose.msra.mxu0 0.0
        %1237 = vmatprep.subr.mxu0 0.0
        %1238 = vmatpush1.xpose.msra.mxu0 0.0
        %1239 = vmatprep.subr.mxu0 0.0
        %1240 = vmatpush1.xpose.msra.mxu0 0.0
        %1241 = vmatprep.subr.mxu0 0.0
        %1242 = vmatpush1.xpose.msra.mxu0 0.0
        %1243 = vmatprep.subr.mxu0 0.0
        %1244 = vmatpush1.xpose.msra.mxu0 0.0
        %1245 = vmatprep.subr.mxu0 0.0
        %1246 = vmatpush1.xpose.msra.mxu0 0.0
        %1247 = vmatprep.subr.mxu0 0.0
        %1248 = vmatpush1.xpose.msra.mxu0 0.0
        %1249 = vmatprep.subr.mxu0 0.0
        %1250 = vmatpush1.xpose.msra.mxu0 0.0
        %1251 = vmatprep.subr.mxu0 0.0
        %1252 = vmatpush1.xpose.msra.mxu0 0.0
        %1253 = vmatprep.subr.mxu0 0.0
        %1254 = vmatpush1.xpose.msra.mxu0 %v1223
        %1255 = vmatprep.subr.mxu0 0.0
        %1256 = vmatpush1.xpose.msra.mxu0 %v1220
        %1257 = vmatprep.subr.mxu0 0.0
        %1258 = vmatpush2.xpose.msra.mxu0 0.0
        %1259 = vmatprep.subr.mxu0 0.0
        %1260 = vmatpush2.xpose.msra.mxu0 0.0
        %1261 = vmatprep.subr.mxu0 0.0
        %1262 = vmatpush2.xpose.msra.mxu0 0.0
        %1263 = vmatprep.subr.mxu0 0.0
        %1264 = vmatpush2.xpose.msra.mxu0 0.0
        %1265 = vmatprep.subr.mxu0 0.0
        %1266 = vmatpush2.xpose.msra.mxu0 0.0
        %1267 = vmatprep.subr.mxu0 0.0
        %1268 = vmatpush2.xpose.msra.mxu0 0.0
        %1269 = vmatprep.subr.mxu0 0.0
        %1270 = vmatpush2.xpose.msra.mxu0 0.0
        %1271 = vmatprep.subr.mxu0 0.0
        %1272 = vmatpush2.xpose.msra.mxu0 0.0
        %1273 = vmatprep.subr.mxu0 0.0
        %1274 = vmatpush2.xpose.msra.mxu0 0.0
        %1275 = vmatprep.subr.mxu0 0.0
        %1276 = vmatpush2.xpose.msra.mxu0 0.0
        %1277 = vmatprep.subr.mxu0 0.0
        %1278 = vmatpush2.xpose.msra.mxu0 0.0
        %1279 = vmatprep.subr.mxu0 0.0
        %1280 = vmatpush2.xpose.msra.mxu0 0.0
        %1281 = vmatprep.subr.mxu0 0.0
        %1282 = vmatpush2.xpose.msra.mxu0 0.0
        %1283 = vmatprep.subr.mxu0 0.0
        %1284 = vmatpush2.xpose.msra.mxu0 0.0
        %1285 = vmatprep.subr.mxu0 0.0
        %1286 = vmatpush2.xpose.msra.mxu0 0.0
        %1287 = vmatprep.subr.mxu0 0.0
        %1288 = vmatpush2.xpose.msra.mxu0 0.0
        %1289 = vmatprep.mubr.f32.mxu0 0.0
        %1290 = vmatmul.mubr.f32.gmra.mxu0 %v1214
        %v1291 = vpop.f32.mrf.mxu0
        %v1292 = vadd.f32 0.0, %v1291
        %v1293 = vpop.f32.mrf.mxu0
        %1294 = vmatprep.mubr.f32.mxu0 0.0
        %1295 = vmatmul.mubr.f32.gmra.mxu0 %v1217
        %v1296 = vpop.f32.mrf.mxu0
        %v1297 = vadd.f32 0.0, %v1296
        %v1298 = vpop.f32.mrf.mxu0
        %1299 = vdwg.mxu0
        %v1301 = vsel %vm777, %v615, 0
        %v1304 = vsel %vm777, %v620, 0
        %v1307 = vsel %vm777, %v757, 0
        %v1310 = vsel %vm777, %v758, 0
        %1312 = vmatprep.subr.mxu0 0.0
        %1313 = vmatpush1.xpose.msra.mxu0 0.0
        %1314 = vmatprep.subr.mxu0 0.0
        %1315 = vmatpush1.xpose.msra.mxu0 0.0
        %1316 = vmatprep.subr.mxu0 0.0
        %1317 = vmatpush1.xpose.msra.mxu0 0.0
        %1318 = vmatprep.subr.mxu0 0.0
        %1319 = vmatpush1.xpose.msra.mxu0 0.0
        %1320 = vmatprep.subr.mxu0 0.0
        %1321 = vmatpush1.xpose.msra.mxu0 0.0
        %1322 = vmatprep.subr.mxu0 0.0
        %1323 = vmatpush1.xpose.msra.mxu0 0.0
        %1324 = vmatprep.subr.mxu0 0.0
        %1325 = vmatpush1.xpose.msra.mxu0 0.0
        %1326 = vmatprep.subr.mxu0 0.0
        %1327 = vmatpush1.xpose.msra.mxu0 0.0
        %1328 = vmatprep.subr.mxu0 0.0
        %1329 = vmatpush1.xpose.msra.mxu0 0.0
        %1330 = vmatprep.subr.mxu0 0.0
        %1331 = vmatpush1.xpose.msra.mxu0 0.0
        %1332 = vmatprep.subr.mxu0 0.0
        %1333 = vmatpush1.xpose.msra.mxu0 0.0
        %1334 = vmatprep.subr.mxu0 0.0
        %1335 = vmatpush1.xpose.msra.mxu0 0.0
        %1336 = vmatprep.subr.mxu0 0.0
        %1337 = vmatpush1.xpose.msra.mxu0 0.0
        %1338 = vmatprep.subr.mxu0 0.0
        %1339 = vmatpush1.xpose.msra.mxu0 0.0
        %1340 = vmatprep.subr.mxu0 0.0
        %1341 = vmatpush1.xpose.msra.mxu0 %v1310
        %1342 = vmatprep.subr.mxu0 0.0
        %1343 = vmatpush1.xpose.msra.mxu0 %v1307
        %1344 = vmatprep.subr.mxu0 0.0
        %1345 = vmatpush2.xpose.msra.mxu0 0.0
        %1346 = vmatprep.subr.mxu0 0.0
        %1347 = vmatpush2.xpose.msra.mxu0 0.0
        %1348 = vmatprep.subr.mxu0 0.0
        %1349 = vmatpush2.xpose.msra.mxu0 0.0
        %1350 = vmatprep.subr.mxu0 0.0
        %1351 = vmatpush2.xpose.msra.mxu0 0.0
        %1352 = vmatprep.subr.mxu0 0.0
        %1353 = vmatpush2.xpose.msra.mxu0 0.0
        %1354 = vmatprep.subr.mxu0 0.0
        %1355 = vmatpush2.xpose.msra.mxu0 0.0
        %1356 = vmatprep.subr.mxu0 0.0
        %1357 = vmatpush2.xpose.msra.mxu0 0.0
        %1358 = vmatprep.subr.mxu0 0.0
        %1359 = vmatpush2.xpose.msra.mxu0 0.0
        %1360 = vmatprep.subr.mxu0 0.0
        %1361 = vmatpush2.xpose.msra.mxu0 0.0
        %1362 = vmatprep.subr.mxu0 0.0
        %1363 = vmatpush2.xpose.msra.mxu0 0.0
        %1364 = vmatprep.subr.mxu0 0.0
        %1365 = vmatpush2.xpose.msra.mxu0 0.0
        %1366 = vmatprep.subr.mxu0 0.0
        %1367 = vmatpush2.xpose.msra.mxu0 0.0
        %1368 = vmatprep.subr.mxu0 0.0
        %1369 = vmatpush2.xpose.msra.mxu0 0.0
        %1370 = vmatprep.subr.mxu0 0.0
        %1371 = vmatpush2.xpose.msra.mxu0 0.0
        %1372 = vmatprep.subr.mxu0 0.0
        %1373 = vmatpush2.xpose.msra.mxu0 0.0
        %1374 = vmatprep.subr.mxu0 0.0
        %1375 = vmatpush2.xpose.msra.mxu0 0.0
        %1376 = vmatprep.mubr.f32.mxu0 0.0
        %1377 = vmatmul.mubr.f32.gmra.mxu0 %v1301
        %v1378 = vpop.f32.mrf.mxu0
        %v1379 = vadd.f32 0.0, %v1378
        %v1380 = vpop.f32.mrf.mxu0
        %1381 = vmatprep.mubr.f32.mxu0 0.0
        %1382 = vmatmul.mubr.f32.gmra.mxu0 %v1304
        %v1383 = vpop.f32.mrf.mxu0
        %v1384 = vadd.f32 0.0, %v1383
        %v1385 = vpop.f32.mrf.mxu0
        %1386 = vdwg.mxu0
        %v1388 = vsel %vm777, %v625, 0
        %v1391 = vsel %vm777, %v630, 0
        %v1394 = vsel %vm777, %v759, 0
        %v1397 = vsel %vm777, %v760, 0
        %1399 = vmatprep.subr.mxu0 0.0
        %1400 = vmatpush1.xpose.msra.mxu0 0.0
        %1401 = vmatprep.subr.mxu0 0.0
        %1402 = vmatpush1.xpose.msra.mxu0 0.0
        %1403 = vmatprep.subr.mxu0 0.0
        %1404 = vmatpush1.xpose.msra.mxu0 0.0
        %1405 = vmatprep.subr.mxu0 0.0
        %1406 = vmatpush1.xpose.msra.mxu0 0.0
        %1407 = vmatprep.subr.mxu0 0.0
        %1408 = vmatpush1.xpose.msra.mxu0 0.0
        %1409 = vmatprep.subr.mxu0 0.0
        %1410 = vmatpush1.xpose.msra.mxu0 0.0
        %1411 = vmatprep.subr.mxu0 0.0
        %1412 = vmatpush1.xpose.msra.mxu0 0.0
        %1413 = vmatprep.subr.mxu0 0.0
        %1414 = vmatpush1.xpose.msra.mxu0 0.0
        %1415 = vmatprep.subr.mxu0 0.0
        %1416 = vmatpush1.xpose.msra.mxu0 0.0
        %1417 = vmatprep.subr.mxu0 0.0
        %1418 = vmatpush1.xpose.msra.mxu0 0.0
        %1419 = vmatprep.subr.mxu0 0.0
        %1420 = vmatpush1.xpose.msra.mxu0 0.0
        %1421 = vmatprep.subr.mxu0 0.0
        %1422 = vmatpush1.xpose.msra.mxu0 0.0
        %1423 = vmatprep.subr.mxu0 0.0
        %1424 = vmatpush1.xpose.msra.mxu0 0.0
        %1425 = vmatprep.subr.mxu0 0.0
        %1426 = vmatpush1.xpose.msra.mxu0 0.0
        %1427 = vmatprep.subr.mxu0 0.0
        %1428 = vmatpush1.xpose.msra.mxu0 %v1397
        %1429 = vmatprep.subr.mxu0 0.0
        %1430 = vmatpush1.xpose.msra.mxu0 %v1394
        %1431 = vmatprep.subr.mxu0 0.0
        %1432 = vmatpush2.xpose.msra.mxu0 0.0
        %1433 = vmatprep.subr.mxu0 0.0
        %1434 = vmatpush2.xpose.msra.mxu0 0.0
        %1435 = vmatprep.subr.mxu0 0.0
        %1436 = vmatpush2.xpose.msra.mxu0 0.0
        %1437 = vmatprep.subr.mxu0 0.0
        %1438 = vmatpush2.xpose.msra.mxu0 0.0
        %1439 = vmatprep.subr.mxu0 0.0
        %1440 = vmatpush2.xpose.msra.mxu0 0.0
        %1441 = vmatprep.subr.mxu0 0.0
        %1442 = vmatpush2.xpose.msra.mxu0 0.0
        %1443 = vmatprep.subr.mxu0 0.0
        %1444 = vmatpush2.xpose.msra.mxu0 0.0
        %1445 = vmatprep.subr.mxu0 0.0
        %1446 = vmatpush2.xpose.msra.mxu0 0.0
        %1447 = vmatprep.subr.mxu0 0.0
        %1448 = vmatpush2.xpose.msra.mxu0 0.0
        %1449 = vmatprep.subr.mxu0 0.0
        %1450 = vmatpush2.xpose.msra.mxu0 0.0
        %1451 = vmatprep.subr.mxu0 0.0
        %1452 = vmatpush2.xpose.msra.mxu0 0.0
        %1453 = vmatprep.subr.mxu0 0.0
        %1454 = vmatpush2.xpose.msra.mxu0 0.0
        %1455 = vmatprep.subr.mxu0 0.0
        %1456 = vmatpush2.xpose.msra.mxu0 0.0
        %1457 = vmatprep.subr.mxu0 0.0
        %1458 = vmatpush2.xpose.msra.mxu0 0.0
        %1459 = vmatprep.subr.mxu0 0.0
        %1460 = vmatpush2.xpose.msra.mxu0 0.0
        %1461 = vmatprep.subr.mxu0 0.0
        %1462 = vmatpush2.xpose.msra.mxu0 0.0
        %1463 = vmatprep.mubr.f32.mxu0 0.0
        %1464 = vmatmul.mubr.f32.gmra.mxu0 %v1388
        %v1465 = vpop.f32.mrf.mxu0
        %v1466 = vadd.f32 0.0, %v1465
        %v1467 = vpop.f32.mrf.mxu0
        %1468 = vmatprep.mubr.f32.mxu0 0.0
        %1469 = vmatmul.mubr.f32.gmra.mxu0 %v1391
        %v1470 = vpop.f32.mrf.mxu0
        %v1471 = vadd.f32 0.0, %v1470
        %v1472 = vpop.f32.mrf.mxu0
        %1473 = vdwg.mxu0
        %v1475 = vsel %vm777, %v635, 0
        %v1478 = vsel %vm777, %v640, 0
        %v1481 = vsel %vm777, %v761, 0
        %v1484 = vsel %vm777, %v762, 0
        %1486 = vmatprep.subr.mxu0 0.0
        %1487 = vmatpush1.xpose.msra.mxu0 0.0
        %1488 = vmatprep.subr.mxu0 0.0
        %1489 = vmatpush1.xpose.msra.mxu0 0.0
        %1490 = vmatprep.subr.mxu0 0.0
        %1491 = vmatpush1.xpose.msra.mxu0 0.0
        %1492 = vmatprep.subr.mxu0 0.0
        %1493 = vmatpush1.xpose.msra.mxu0 0.0
        %1494 = vmatprep.subr.mxu0 0.0
        %1495 = vmatpush1.xpose.msra.mxu0 0.0
        %1496 = vmatprep.subr.mxu0 0.0
        %1497 = vmatpush1.xpose.msra.mxu0 0.0
        %1498 = vmatprep.subr.mxu0 0.0
        %1499 = vmatpush1.xpose.msra.mxu0 0.0
        %1500 = vmatprep.subr.mxu0 0.0
        %1501 = vmatpush1.xpose.msra.mxu0 0.0
        %1502 = vmatprep.subr.mxu0 0.0
        %1503 = vmatpush1.xpose.msra.mxu0 0.0
        %1504 = vmatprep.subr.mxu0 0.0
        %1505 = vmatpush1.xpose.msra.mxu0 0.0
        %1506 = vmatprep.subr.mxu0 0.0
        %1507 = vmatpush1.xpose.msra.mxu0 0.0
        %1508 = vmatprep.subr.mxu0 0.0
        %1509 = vmatpush1.xpose.msra.mxu0 0.0
        %1510 = vmatprep.subr.mxu0 0.0
        %1511 = vmatpush1.xpose.msra.mxu0 0.0
        %1512 = vmatprep.subr.mxu0 0.0
        %1513 = vmatpush1.xpose.msra.mxu0 0.0
        %1514 = vmatprep.subr.mxu0 0.0
        %1515 = vmatpush1.xpose.msra.mxu0 %v1484
        %1516 = vmatprep.subr.mxu0 0.0
        %1517 = vmatpush1.xpose.msra.mxu0 %v1481
        %1518 = vmatprep.subr.mxu0 0.0
        %1519 = vmatpush2.xpose.msra.mxu0 0.0
        %1520 = vmatprep.subr.mxu0 0.0
        %1521 = vmatpush2.xpose.msra.mxu0 0.0
        %1522 = vmatprep.subr.mxu0 0.0
        %1523 = vmatpush2.xpose.msra.mxu0 0.0
        %1524 = vmatprep.subr.mxu0 0.0
        %1525 = vmatpush2.xpose.msra.mxu0 0.0
        %1526 = vmatprep.subr.mxu0 0.0
        %1527 = vmatpush2.xpose.msra.mxu0 0.0
        %1528 = vmatprep.subr.mxu0 0.0
        %1529 = vmatpush2.xpose.msra.mxu0 0.0
        %1530 = vmatprep.subr.mxu0 0.0
        %1531 = vmatpush2.xpose.msra.mxu0 0.0
        %1532 = vmatprep.subr.mxu0 0.0
        %1533 = vmatpush2.xpose.msra.mxu0 0.0
        %1534 = vmatprep.subr.mxu0 0.0
        %1535 = vmatpush2.xpose.msra.mxu0 0.0
        %1536 = vmatprep.subr.mxu0 0.0
        %1537 = vmatpush2.xpose.msra.mxu0 0.0
        %1538 = vmatprep.subr.mxu0 0.0
        %1539 = vmatpush2.xpose.msra.mxu0 0.0
        %1540 = vmatprep.subr.mxu0 0.0
        %1541 = vmatpush2.xpose.msra.mxu0 0.0
        %1542 = vmatprep.subr.mxu0 0.0
        %1543 = vmatpush2.xpose.msra.mxu0 0.0
        %1544 = vmatprep.subr.mxu0 0.0
        %1545 = vmatpush2.xpose.msra.mxu0 0.0
        %1546 = vmatprep.subr.mxu0 0.0
        %1547 = vmatpush2.xpose.msra.mxu0 0.0
        %1548 = vmatprep.subr.mxu0 0.0
        %1549 = vmatpush2.xpose.msra.mxu0 0.0
        %1550 = vmatprep.mubr.f32.mxu0 0.0
        %1551 = vmatmul.mubr.f32.gmra.mxu0 %v1475
        %v1552 = vpop.f32.mrf.mxu0
        %v1553 = vadd.f32 0.0, %v1552
        %v1554 = vpop.f32.mrf.mxu0
        %1555 = vmatprep.mubr.f32.mxu0 0.0
        %1556 = vmatmul.mubr.f32.gmra.mxu0 %v1478
        %v1557 = vpop.f32.mrf.mxu0
        %v1558 = vadd.f32 0.0, %v1557
        %v1559 = vpop.f32.mrf.mxu0
        %1560 = vdwg.mxu0
        %v1562 = vsel %vm777, %v645, 0
        %v1565 = vsel %vm777, %v650, 0
        %v1568 = vsel %vm777, %v763, 0
        %v1571 = vsel %vm777, %v764, 0
        %1573 = vmatprep.subr.mxu0 0.0
        %1574 = vmatpush1.xpose.msra.mxu0 0.0
        %1575 = vmatprep.subr.mxu0 0.0
        %1576 = vmatpush1.xpose.msra.mxu0 0.0
        %1577 = vmatprep.subr.mxu0 0.0
        %1578 = vmatpush1.xpose.msra.mxu0 0.0
        %1579 = vmatprep.subr.mxu0 0.0
        %1580 = vmatpush1.xpose.msra.mxu0 0.0
        %1581 = vmatprep.subr.mxu0 0.0
        %1582 = vmatpush1.xpose.msra.mxu0 0.0
        %1583 = vmatprep.subr.mxu0 0.0
        %1584 = vmatpush1.xpose.msra.mxu0 0.0
        %1585 = vmatprep.subr.mxu0 0.0
        %1586 = vmatpush1.xpose.msra.mxu0 0.0
        %1587 = vmatprep.subr.mxu0 0.0
        %1588 = vmatpush1.xpose.msra.mxu0 0.0
        %1589 = vmatprep.subr.mxu0 0.0
        %1590 = vmatpush1.xpose.msra.mxu0 0.0
        %1591 = vmatprep.subr.mxu0 0.0
        %1592 = vmatpush1.xpose.msra.mxu0 0.0
        %1593 = vmatprep.subr.mxu0 0.0
        %1594 = vmatpush1.xpose.msra.mxu0 0.0
        %1595 = vmatprep.subr.mxu0 0.0
        %1596 = vmatpush1.xpose.msra.mxu0 0.0
        %1597 = vmatprep.subr.mxu0 0.0
        %1598 = vmatpush1.xpose.msra.mxu0 0.0
        %1599 = vmatprep.subr.mxu0 0.0
        %1600 = vmatpush1.xpose.msra.mxu0 0.0
        %1601 = vmatprep.subr.mxu0 0.0
        %1602 = vmatpush1.xpose.msra.mxu0 %v1571
        %1603 = vmatprep.subr.mxu0 0.0
        %1604 = vmatpush1.xpose.msra.mxu0 %v1568
        %1605 = vmatprep.subr.mxu0 0.0
        %1606 = vmatpush2.xpose.msra.mxu0 0.0
        %1607 = vmatprep.subr.mxu0 0.0
        %1608 = vmatpush2.xpose.msra.mxu0 0.0
        %1609 = vmatprep.subr.mxu0 0.0
        %1610 = vmatpush2.xpose.msra.mxu0 0.0
        %1611 = vmatprep.subr.mxu0 0.0
        %1612 = vmatpush2.xpose.msra.mxu0 0.0
        %1613 = vmatprep.subr.mxu0 0.0
        %1614 = vmatpush2.xpose.msra.mxu0 0.0
        %1615 = vmatprep.subr.mxu0 0.0
        %1616 = vmatpush2.xpose.msra.mxu0 0.0
        %1617 = vmatprep.subr.mxu0 0.0
        %1618 = vmatpush2.xpose.msra.mxu0 0.0
        %1619 = vmatprep.subr.mxu0 0.0
        %1620 = vmatpush2.xpose.msra.mxu0 0.0
        %1621 = vmatprep.subr.mxu0 0.0
        %1622 = vmatpush2.xpose.msra.mxu0 0.0
        %1623 = vmatprep.subr.mxu0 0.0
        %1624 = vmatpush2.xpose.msra.mxu0 0.0
        %1625 = vmatprep.subr.mxu0 0.0
        %1626 = vmatpush2.xpose.msra.mxu0 0.0
        %1627 = vmatprep.subr.mxu0 0.0
        %1628 = vmatpush2.xpose.msra.mxu0 0.0
        %1629 = vmatprep.subr.mxu0 0.0
        %1630 = vmatpush2.xpose.msra.mxu0 0.0
        %1631 = vmatprep.subr.mxu0 0.0
        %1632 = vmatpush2.xpose.msra.mxu0 0.0
        %1633 = vmatprep.subr.mxu0 0.0
        %1634 = vmatpush2.xpose.msra.mxu0 0.0
        %1635 = vmatprep.subr.mxu0 0.0
        %1636 = vmatpush2.xpose.msra.mxu0 0.0
        %1637 = vmatprep.mubr.f32.mxu0 0.0
        %1638 = vmatmul.mubr.f32.gmra.mxu0 %v1562
        %v1639 = vpop.f32.mrf.mxu0
        %v1640 = vadd.f32 0.0, %v1639
        %v1641 = vpop.f32.mrf.mxu0
        %1642 = vmatprep.mubr.f32.mxu0 0.0
        %1643 = vmatmul.mubr.f32.gmra.mxu0 %v1565
        %v1644 = vpop.f32.mrf.mxu0
        %v1645 = vadd.f32 0.0, %v1644
        %v1646 = vpop.f32.mrf.mxu0
        %1647 = vdwg.mxu0
        %v1649 = vsel %vm777, %v655, 0
        %v1652 = vsel %vm777, %v660, 0
        %v1655 = vsel %vm777, %v765, 0
        %v1658 = vsel %vm777, %v766, 0
        %1660 = vmatprep.subr.mxu0 0.0
        %1661 = vmatpush1.xpose.msra.mxu0 0.0
        %1662 = vmatprep.subr.mxu0 0.0
        %1663 = vmatpush1.xpose.msra.mxu0 0.0
        %1664 = vmatprep.subr.mxu0 0.0
        %1665 = vmatpush1.xpose.msra.mxu0 0.0
        %1666 = vmatprep.subr.mxu0 0.0
        %1667 = vmatpush1.xpose.msra.mxu0 0.0
        %1668 = vmatprep.subr.mxu0 0.0
        %1669 = vmatpush1.xpose.msra.mxu0 0.0
        %1670 = vmatprep.subr.mxu0 0.0
        %1671 = vmatpush1.xpose.msra.mxu0 0.0
        %1672 = vmatprep.subr.mxu0 0.0
        %1673 = vmatpush1.xpose.msra.mxu0 0.0
        %1674 = vmatprep.subr.mxu0 0.0
        %1675 = vmatpush1.xpose.msra.mxu0 0.0
        %1676 = vmatprep.subr.mxu0 0.0
        %1677 = vmatpush1.xpose.msra.mxu0 0.0
        %1678 = vmatprep.subr.mxu0 0.0
        %1679 = vmatpush1.xpose.msra.mxu0 0.0
        %1680 = vmatprep.subr.mxu0 0.0
        %1681 = vmatpush1.xpose.msra.mxu0 0.0
        %1682 = vmatprep.subr.mxu0 0.0
        %1683 = vmatpush1.xpose.msra.mxu0 0.0
        %1684 = vmatprep.subr.mxu0 0.0
        %1685 = vmatpush1.xpose.msra.mxu0 0.0
        %1686 = vmatprep.subr.mxu0 0.0
        %1687 = vmatpush1.xpose.msra.mxu0 0.0
        %1688 = vmatprep.subr.mxu0 0.0
        %1689 = vmatpush1.xpose.msra.mxu0 %v1658
        %1690 = vmatprep.subr.mxu0 0.0
        %1691 = vmatpush1.xpose.msra.mxu0 %v1655
        %1692 = vmatprep.subr.mxu0 0.0
        %1693 = vmatpush2.xpose.msra.mxu0 0.0
        %1694 = vmatprep.subr.mxu0 0.0
        %1695 = vmatpush2.xpose.msra.mxu0 0.0
        %1696 = vmatprep.subr.mxu0 0.0
        %1697 = vmatpush2.xpose.msra.mxu0 0.0
        %1698 = vmatprep.subr.mxu0 0.0
        %1699 = vmatpush2.xpose.msra.mxu0 0.0
        %1700 = vmatprep.subr.mxu0 0.0
        %1701 = vmatpush2.xpose.msra.mxu0 0.0
        %1702 = vmatprep.subr.mxu0 0.0
        %1703 = vmatpush2.xpose.msra.mxu0 0.0
        %1704 = vmatprep.subr.mxu0 0.0
        %1705 = vmatpush2.xpose.msra.mxu0 0.0
        %1706 = vmatprep.subr.mxu0 0.0
        %1707 = vmatpush2.xpose.msra.mxu0 0.0
        %1708 = vmatprep.subr.mxu0 0.0
        %1709 = vmatpush2.xpose.msra.mxu0 0.0
        %1710 = vmatprep.subr.mxu0 0.0
        %1711 = vmatpush2.xpose.msra.mxu0 0.0
        %1712 = vmatprep.subr.mxu0 0.0
        %1713 = vmatpush2.xpose.msra.mxu0 0.0
        %1714 = vmatprep.subr.mxu0 0.0
        %1715 = vmatpush2.xpose.msra.mxu0 0.0
        %1716 = vmatprep.subr.mxu0 0.0
        %1717 = vmatpush2.xpose.msra.mxu0 0.0
        %1718 = vmatprep.subr.mxu0 0.0
        %1719 = vmatpush2.xpose.msra.mxu0 0.0
        %1720 = vmatprep.subr.mxu0 0.0
        %1721 = vmatpush2.xpose.msra.mxu0 0.0
        %1722 = vmatprep.subr.mxu0 0.0
        %1723 = vmatpush2.xpose.msra.mxu0 0.0
        %1724 = vmatprep.mubr.f32.mxu0 0.0
        %1725 = vmatmul.mubr.f32.gmra.mxu0 %v1649
        %v1726 = vpop.f32.mrf.mxu0
        %v1727 = vadd.f32 0.0, %v1726
        %v1728 = vpop.f32.mrf.mxu0
        %1729 = vmatprep.mubr.f32.mxu0 0.0
        %1730 = vmatmul.mubr.f32.gmra.mxu0 %v1652
        %v1731 = vpop.f32.mrf.mxu0
        %v1732 = vadd.f32 0.0, %v1731
        %v1733 = vpop.f32.mrf.mxu0
        %1734 = vdwg.mxu0
        %v1736 = vsel %vm777, %v665, 0
        %v1739 = vsel %vm777, %v670, 0
        %v1742 = vsel %vm777, %v767, 0
        %v1745 = vsel %vm777, %v768, 0
        %1747 = vmatprep.subr.mxu0 0.0
        %1748 = vmatpush1.xpose.msra.mxu0 0.0
        %1749 = vmatprep.subr.mxu0 0.0
        %1750 = vmatpush1.xpose.msra.mxu0 0.0
        %1751 = vmatprep.subr.mxu0 0.0
        %1752 = vmatpush1.xpose.msra.mxu0 0.0
        %1753 = vmatprep.subr.mxu0 0.0
        %1754 = vmatpush1.xpose.msra.mxu0 0.0
        %1755 = vmatprep.subr.mxu0 0.0
        %1756 = vmatpush1.xpose.msra.mxu0 0.0
        %1757 = vmatprep.subr.mxu0 0.0
        %1758 = vmatpush1.xpose.msra.mxu0 0.0
        %1759 = vmatprep.subr.mxu0 0.0
        %1760 = vmatpush1.xpose.msra.mxu0 0.0
        %1761 = vmatprep.subr.mxu0 0.0
        %1762 = vmatpush1.xpose.msra.mxu0 0.0
        %1763 = vmatprep.subr.mxu0 0.0
        %1764 = vmatpush1.xpose.msra.mxu0 0.0
        %1765 = vmatprep.subr.mxu0 0.0
        %1766 = vmatpush1.xpose.msra.mxu0 0.0
        %1767 = vmatprep.subr.mxu0 0.0
        %1768 = vmatpush1.xpose.msra.mxu0 0.0
        %1769 = vmatprep.subr.mxu0 0.0
        %1770 = vmatpush1.xpose.msra.mxu0 0.0
        %1771 = vmatprep.subr.mxu0 0.0
        %1772 = vmatpush1.xpose.msra.mxu0 0.0
        %1773 = vmatprep.subr.mxu0 0.0
        %1774 = vmatpush1.xpose.msra.mxu0 0.0
        %1775 = vmatprep.subr.mxu0 0.0
        %1776 = vmatpush1.xpose.msra.mxu0 %v1745
        %1777 = vmatprep.subr.mxu0 0.0
        %1778 = vmatpush1.xpose.msra.mxu0 %v1742
        %1779 = vmatprep.subr.mxu0 0.0
        %1780 = vmatpush2.xpose.msra.mxu0 0.0
        %1781 = vmatprep.subr.mxu0 0.0
        %1782 = vmatpush2.xpose.msra.mxu0 0.0
        %1783 = vmatprep.subr.mxu0 0.0
        %1784 = vmatpush2.xpose.msra.mxu0 0.0
        %1785 = vmatprep.subr.mxu0 0.0
        %1786 = vmatpush2.xpose.msra.mxu0 0.0
        %1787 = vmatprep.subr.mxu0 0.0
        %1788 = vmatpush2.xpose.msra.mxu0 0.0
        %1789 = vmatprep.subr.mxu0 0.0
        %1790 = vmatpush2.xpose.msra.mxu0 0.0
        %1791 = vmatprep.subr.mxu0 0.0
        %1792 = vmatpush2.xpose.msra.mxu0 0.0
        %1793 = vmatprep.subr.mxu0 0.0
        %1794 = vmatpush2.xpose.msra.mxu0 0.0
        %1795 = vmatprep.subr.mxu0 0.0
        %1796 = vmatpush2.xpose.msra.mxu0 0.0
        %1797 = vmatprep.subr.mxu0 0.0
        %1798 = vmatpush2.xpose.msra.mxu0 0.0
        %1799 = vmatprep.subr.mxu0 0.0
        %1800 = vmatpush2.xpose.msra.mxu0 0.0
        %1801 = vmatprep.subr.mxu0 0.0
        %1802 = vmatpush2.xpose.msra.mxu0 0.0
        %1803 = vmatprep.subr.mxu0 0.0
        %1804 = vmatpush2.xpose.msra.mxu0 0.0
        %1805 = vmatprep.subr.mxu0 0.0
        %1806 = vmatpush2.xpose.msra.mxu0 0.0
        %1807 = vmatprep.subr.mxu0 0.0
        %1808 = vmatpush2.xpose.msra.mxu0 0.0
        %1809 = vmatprep.subr.mxu0 0.0
        %1810 = vmatpush2.xpose.msra.mxu0 0.0
        %1811 = vmatprep.mubr.f32.mxu0 0.0
        %1812 = vmatmul.mubr.f32.gmra.mxu0 %v1736
        %v1813 = vpop.f32.mrf.mxu0
        %v1814 = vadd.f32 0.0, %v1813
        %v1815 = vpop.f32.mrf.mxu0
        %1816 = vmatprep.mubr.f32.mxu0 0.0
        %1817 = vmatmul.mubr.f32.gmra.mxu0 %v1739
        %v1818 = vpop.f32.mrf.mxu0
        %v1819 = vadd.f32 0.0, %v1818
        %v1820 = vpop.f32.mrf.mxu0
        %1821 = vdwg.mxu0
        %v1823 = vsel %vm777, %v675, 0
        %v1826 = vsel %vm777, %v680, 0
        %v1829 = vsel %vm777, %v769, 0
        %v1832 = vsel %vm777, %v770, 0
        %1834 = vmatprep.subr.mxu0 0.0
        %1835 = vmatpush1.xpose.msra.mxu0 0.0
        %1836 = vmatprep.subr.mxu0 0.0
        %1837 = vmatpush1.xpose.msra.mxu0 0.0
        %1838 = vmatprep.subr.mxu0 0.0
        %1839 = vmatpush1.xpose.msra.mxu0 0.0
        %1840 = vmatprep.subr.mxu0 0.0
        %1841 = vmatpush1.xpose.msra.mxu0 0.0
        %1842 = vmatprep.subr.mxu0 0.0
        %1843 = vmatpush1.xpose.msra.mxu0 0.0
        %1844 = vmatprep.subr.mxu0 0.0
        %1845 = vmatpush1.xpose.msra.mxu0 0.0
        %1846 = vmatprep.subr.mxu0 0.0
        %1847 = vmatpush1.xpose.msra.mxu0 0.0
        %1848 = vmatprep.subr.mxu0 0.0
        %1849 = vmatpush1.xpose.msra.mxu0 0.0
        %1850 = vmatprep.subr.mxu0 0.0
        %1851 = vmatpush1.xpose.msra.mxu0 0.0
        %1852 = vmatprep.subr.mxu0 0.0
        %1853 = vmatpush1.xpose.msra.mxu0 0.0
        %1854 = vmatprep.subr.mxu0 0.0
        %1855 = vmatpush1.xpose.msra.mxu0 0.0
        %1856 = vmatprep.subr.mxu0 0.0
        %1857 = vmatpush1.xpose.msra.mxu0 0.0
        %1858 = vmatprep.subr.mxu0 0.0
        %1859 = vmatpush1.xpose.msra.mxu0 0.0
        %1860 = vmatprep.subr.mxu0 0.0
        %1861 = vmatpush1.xpose.msra.mxu0 0.0
        %1862 = vmatprep.subr.mxu0 0.0
        %1863 = vmatpush1.xpose.msra.mxu0 %v1832
        %1864 = vmatprep.subr.mxu0 0.0
        %1865 = vmatpush1.xpose.msra.mxu0 %v1829
        %1866 = vmatprep.subr.mxu0 0.0
        %1867 = vmatpush2.xpose.msra.mxu0 0.0
        %1868 = vmatprep.subr.mxu0 0.0
        %1869 = vmatpush2.xpose.msra.mxu0 0.0
        %1870 = vmatprep.subr.mxu0 0.0
        %1871 = vmatpush2.xpose.msra.mxu0 0.0
        %1872 = vmatprep.subr.mxu0 0.0
        %1873 = vmatpush2.xpose.msra.mxu0 0.0
        %1874 = vmatprep.subr.mxu0 0.0
        %1875 = vmatpush2.xpose.msra.mxu0 0.0
        %1876 = vmatprep.subr.mxu0 0.0
        %1877 = vmatpush2.xpose.msra.mxu0 0.0
        %1878 = vmatprep.subr.mxu0 0.0
        %1879 = vmatpush2.xpose.msra.mxu0 0.0
        %1880 = vmatprep.subr.mxu0 0.0
        %1881 = vmatpush2.xpose.msra.mxu0 0.0
        %1882 = vmatprep.subr.mxu0 0.0
        %1883 = vmatpush2.xpose.msra.mxu0 0.0
        %1884 = vmatprep.subr.mxu0 0.0
        %1885 = vmatpush2.xpose.msra.mxu0 0.0
        %1886 = vmatprep.subr.mxu0 0.0
        %1887 = vmatpush2.xpose.msra.mxu0 0.0
        %1888 = vmatprep.subr.mxu0 0.0
        %1889 = vmatpush2.xpose.msra.mxu0 0.0
        %1890 = vmatprep.subr.mxu0 0.0
        %1891 = vmatpush2.xpose.msra.mxu0 0.0
        %1892 = vmatprep.subr.mxu0 0.0
        %1893 = vmatpush2.xpose.msra.mxu0 0.0
        %1894 = vmatprep.subr.mxu0 0.0
        %1895 = vmatpush2.xpose.msra.mxu0 0.0
        %1896 = vmatprep.subr.mxu0 0.0
        %1897 = vmatpush2.xpose.msra.mxu0 0.0
        %1898 = vmatprep.mubr.f32.mxu0 0.0
        %1899 = vmatmul.mubr.f32.gmra.mxu0 %v1823
        %v1900 = vpop.f32.mrf.mxu0
        %v1901 = vadd.f32 0.0, %v1900
        %v1902 = vpop.f32.mrf.mxu0
        %1903 = vmatprep.mubr.f32.mxu0 0.0
        %1904 = vmatmul.mubr.f32.gmra.mxu0 %v1826
        %v1905 = vpop.f32.mrf.mxu0
        %v1906 = vadd.f32 0.0, %v1905
        %v1907 = vpop.f32.mrf.mxu0
        %1908 = vdwg.mxu0
        %v1910 = vsel %vm777, %v685, 0
        %v1913 = vsel %vm777, %v690, 0
        %v1916 = vsel %vm777, %v771, 0
        %v1919 = vsel %vm777, %v772, 0
        %1921 = vmatprep.subr.mxu0 0.0
        %1922 = vmatpush1.xpose.msra.mxu0 0.0
        %1923 = vmatprep.subr.mxu0 0.0
        %1924 = vmatpush1.xpose.msra.mxu0 0.0
        %1925 = vmatprep.subr.mxu0 0.0
        %1926 = vmatpush1.xpose.msra.mxu0 0.0
        %1927 = vmatprep.subr.mxu0 0.0
        %1928 = vmatpush1.xpose.msra.mxu0 0.0
        %1929 = vmatprep.subr.mxu0 0.0
        %1930 = vmatpush1.xpose.msra.mxu0 0.0
        %1931 = vmatprep.subr.mxu0 0.0
        %1932 = vmatpush1.xpose.msra.mxu0 0.0
        %1933 = vmatprep.subr.mxu0 0.0
        %1934 = vmatpush1.xpose.msra.mxu0 0.0
        %1935 = vmatprep.subr.mxu0 0.0
        %1936 = vmatpush1.xpose.msra.mxu0 0.0
        %1937 = vmatprep.subr.mxu0 0.0
        %1938 = vmatpush1.xpose.msra.mxu0 0.0
        %1939 = vmatprep.subr.mxu0 0.0
        %1940 = vmatpush1.xpose.msra.mxu0 0.0
        %1941 = vmatprep.subr.mxu0 0.0
        %1942 = vmatpush1.xpose.msra.mxu0 0.0
        %1943 = vmatprep.subr.mxu0 0.0
        %1944 = vmatpush1.xpose.msra.mxu0 0.0
        %1945 = vmatprep.subr.mxu0 0.0
        %1946 = vmatpush1.xpose.msra.mxu0 0.0
        %1947 = vmatprep.subr.mxu0 0.0
        %1948 = vmatpush1.xpose.msra.mxu0 0.0
        %1949 = vmatprep.subr.mxu0 0.0
        %1950 = vmatpush1.xpose.msra.mxu0 %v1919
        %1951 = vmatprep.subr.mxu0 0.0
        %1952 = vmatpush1.xpose.msra.mxu0 %v1916
        %1953 = vmatprep.subr.mxu0 0.0
        %1954 = vmatpush2.xpose.msra.mxu0 0.0
        %1955 = vmatprep.subr.mxu0 0.0
        %1956 = vmatpush2.xpose.msra.mxu0 0.0
        %1957 = vmatprep.subr.mxu0 0.0
        %1958 = vmatpush2.xpose.msra.mxu0 0.0
        %1959 = vmatprep.subr.mxu0 0.0
        %1960 = vmatpush2.xpose.msra.mxu0 0.0
        %1961 = vmatprep.subr.mxu0 0.0
        %1962 = vmatpush2.xpose.msra.mxu0 0.0
        %1963 = vmatprep.subr.mxu0 0.0
        %1964 = vmatpush2.xpose.msra.mxu0 0.0
        %1965 = vmatprep.subr.mxu0 0.0
        %1966 = vmatpush2.xpose.msra.mxu0 0.0
        %1967 = vmatprep.subr.mxu0 0.0
        %1968 = vmatpush2.xpose.msra.mxu0 0.0
        %1969 = vmatprep.subr.mxu0 0.0
        %1970 = vmatpush2.xpose.msra.mxu0 0.0
        %1971 = vmatprep.subr.mxu0 0.0
        %1972 = vmatpush2.xpose.msra.mxu0 0.0
        %1973 = vmatprep.subr.mxu0 0.0
        %1974 = vmatpush2.xpose.msra.mxu0 0.0
        %1975 = vmatprep.subr.mxu0 0.0
        %1976 = vmatpush2.xpose.msra.mxu0 0.0
        %1977 = vmatprep.subr.mxu0 0.0
        %1978 = vmatpush2.xpose.msra.mxu0 0.0
        %1979 = vmatprep.subr.mxu0 0.0
        %1980 = vmatpush2.xpose.msra.mxu0 0.0
        %1981 = vmatprep.subr.mxu0 0.0
        %1982 = vmatpush2.xpose.msra.mxu0 0.0
        %1983 = vmatprep.subr.mxu0 0.0
        %1984 = vmatpush2.xpose.msra.mxu0 0.0
        %1985 = vmatprep.mubr.f32.mxu0 0.0
        %1986 = vmatmul.mubr.f32.gmra.mxu0 %v1910
        %v1987 = vpop.f32.mrf.mxu0
        %v1988 = vadd.f32 0.0, %v1987
        %v1989 = vpop.f32.mrf.mxu0
        %1990 = vmatprep.mubr.f32.mxu0 0.0
        %1991 = vmatmul.mubr.f32.gmra.mxu0 %v1913
        %v1992 = vpop.f32.mrf.mxu0
        %v1993 = vadd.f32 0.0, %v1992
        %v1994 = vpop.f32.mrf.mxu0
        %1995 = vdwg.mxu0
        %v1997 = vsel %vm777, %v695, 0
        %v2000 = vsel %vm777, %v700, 0
        %v2003 = vsel %vm777, %v773, 0
        %v2006 = vsel %vm777, %v774, 0
        %2008 = vmatprep.subr.mxu0 0.0
        %2009 = vmatpush1.xpose.msra.mxu0 0.0
        %2010 = vmatprep.subr.mxu0 0.0
        %2011 = vmatpush1.xpose.msra.mxu0 0.0
        %2012 = vmatprep.subr.mxu0 0.0
        %2013 = vmatpush1.xpose.msra.mxu0 0.0
        %2014 = vmatprep.subr.mxu0 0.0
        %2015 = vmatpush1.xpose.msra.mxu0 0.0
        %2016 = vmatprep.subr.mxu0 0.0
        %2017 = vmatpush1.xpose.msra.mxu0 0.0
        %2018 = vmatprep.subr.mxu0 0.0
        %2019 = vmatpush1.xpose.msra.mxu0 0.0
        %2020 = vmatprep.subr.mxu0 0.0
        %2021 = vmatpush1.xpose.msra.mxu0 0.0
        %2022 = vmatprep.subr.mxu0 0.0
        %2023 = vmatpush1.xpose.msra.mxu0 0.0
        %2024 = vmatprep.subr.mxu0 0.0
        %2025 = vmatpush1.xpose.msra.mxu0 0.0
        %2026 = vmatprep.subr.mxu0 0.0
        %2027 = vmatpush1.xpose.msra.mxu0 0.0
        %2028 = vmatprep.subr.mxu0 0.0
        %2029 = vmatpush1.xpose.msra.mxu0 0.0
        %2030 = vmatprep.subr.mxu0 0.0
        %2031 = vmatpush1.xpose.msra.mxu0 0.0
        %2032 = vmatprep.subr.mxu0 0.0
        %2033 = vmatpush1.xpose.msra.mxu0 0.0
        %2034 = vmatprep.subr.mxu0 0.0
        %2035 = vmatpush1.xpose.msra.mxu0 0.0
        %2036 = vmatprep.subr.mxu0 0.0
        %2037 = vmatpush1.xpose.msra.mxu0 %v2006
        %2038 = vmatprep.subr.mxu0 0.0
        %2039 = vmatpush1.xpose.msra.mxu0 %v2003
        %2040 = vmatprep.subr.mxu0 0.0
        %2041 = vmatpush2.xpose.msra.mxu0 0.0
        %2042 = vmatprep.subr.mxu0 0.0
        %2043 = vmatpush2.xpose.msra.mxu0 0.0
        %2044 = vmatprep.subr.mxu0 0.0
        %2045 = vmatpush2.xpose.msra.mxu0 0.0
        %2046 = vmatprep.subr.mxu0 0.0
        %2047 = vmatpush2.xpose.msra.mxu0 0.0
        %2048 = vmatprep.subr.mxu0 0.0
        %2049 = vmatpush2.xpose.msra.mxu0 0.0
        %2050 = vmatprep.subr.mxu0 0.0
        %2051 = vmatpush2.xpose.msra.mxu0 0.0
        %2052 = vmatprep.subr.mxu0 0.0
        %2053 = vmatpush2.xpose.msra.mxu0 0.0
        %2054 = vmatprep.subr.mxu0 0.0
        %2055 = vmatpush2.xpose.msra.mxu0 0.0
        %2056 = vmatprep.subr.mxu0 0.0
        %2057 = vmatpush2.xpose.msra.mxu0 0.0
        %2058 = vmatprep.subr.mxu0 0.0
        %2059 = vmatpush2.xpose.msra.mxu0 0.0
        %2060 = vmatprep.subr.mxu0 0.0
        %2061 = vmatpush2.xpose.msra.mxu0 0.0
        %2062 = vmatprep.subr.mxu0 0.0
        %2063 = vmatpush2.xpose.msra.mxu0 0.0
        %2064 = vmatprep.subr.mxu0 0.0
        %2065 = vmatpush2.xpose.msra.mxu0 0.0
        %2066 = vmatprep.subr.mxu0 0.0
        %2067 = vmatpush2.xpose.msra.mxu0 0.0
        %2068 = vmatprep.subr.mxu0 0.0
        %2069 = vmatpush2.xpose.msra.mxu0 0.0
        %2070 = vmatprep.subr.mxu0 0.0
        %2071 = vmatpush2.xpose.msra.mxu0 0.0
        %2072 = vmatprep.mubr.f32.mxu0 0.0
        %2073 = vmatmul.mubr.f32.gmra.mxu0 %v1997
        %v2074 = vpop.f32.mrf.mxu0
        %v2075 = vadd.f32 0.0, %v2074
        %v2076 = vpop.f32.mrf.mxu0
        %2077 = vmatprep.mubr.f32.mxu0 0.0
        %2078 = vmatmul.mubr.f32.gmra.mxu0 %v2000
        %v2079 = vpop.f32.mrf.mxu0
        %v2080 = vadd.f32 0.0, %v2079
        %v2081 = vpop.f32.mrf.mxu0
        %2082 = vdwg.mxu0
        %v2084 = vsel %vm777, %v705, 0
        %v2087 = vsel %vm777, %v710, 0
        %v2090 = vsel %vm777, %v775, 0
        %v2093 = vsel %vm777, %v776, 0
        %2095 = vmatprep.subr.mxu0 0.0
        %2096 = vmatpush1.xpose.msra.mxu0 0.0
        %2097 = vmatprep.subr.mxu0 0.0
        %2098 = vmatpush1.xpose.msra.mxu0 0.0
        %2099 = vmatprep.subr.mxu0 0.0
        %2100 = vmatpush1.xpose.msra.mxu0 0.0
        %2101 = vmatprep.subr.mxu0 0.0
        %2102 = vmatpush1.xpose.msra.mxu0 0.0
        %2103 = vmatprep.subr.mxu0 0.0
        %2104 = vmatpush1.xpose.msra.mxu0 0.0
        %2105 = vmatprep.subr.mxu0 0.0
        %2106 = vmatpush1.xpose.msra.mxu0 0.0
        %2107 = vmatprep.subr.mxu0 0.0
        %2108 = vmatpush1.xpose.msra.mxu0 0.0
        %2109 = vmatprep.subr.mxu0 0.0
        %2110 = vmatpush1.xpose.msra.mxu0 0.0
        %2111 = vmatprep.subr.mxu0 0.0
        %2112 = vmatpush1.xpose.msra.mxu0 0.0
        %2113 = vmatprep.subr.mxu0 0.0
        %2114 = vmatpush1.xpose.msra.mxu0 0.0
        %2115 = vmatprep.subr.mxu0 0.0
        %2116 = vmatpush1.xpose.msra.mxu0 0.0
        %2117 = vmatprep.subr.mxu0 0.0
        %2118 = vmatpush1.xpose.msra.mxu0 0.0
        %2119 = vmatprep.subr.mxu0 0.0
        %2120 = vmatpush1.xpose.msra.mxu0 0.0
        %2121 = vmatprep.subr.mxu0 0.0
        %2122 = vmatpush1.xpose.msra.mxu0 0.0
        %2123 = vmatprep.subr.mxu0 0.0
        %2124 = vmatpush1.xpose.msra.mxu0 %v2093
        %2125 = vmatprep.subr.mxu0 0.0
        %2126 = vmatpush1.xpose.msra.mxu0 %v2090
        %2127 = vmatprep.subr.mxu0 0.0
        %2128 = vmatpush2.xpose.msra.mxu0 0.0
        %2129 = vmatprep.subr.mxu0 0.0
        %2130 = vmatpush2.xpose.msra.mxu0 0.0
        %2131 = vmatprep.subr.mxu0 0.0
        %2132 = vmatpush2.xpose.msra.mxu0 0.0
        %2133 = vmatprep.subr.mxu0 0.0
        %2134 = vmatpush2.xpose.msra.mxu0 0.0
        %2135 = vmatprep.subr.mxu0 0.0
        %2136 = vmatpush2.xpose.msra.mxu0 0.0
        %2137 = vmatprep.subr.mxu0 0.0
        %2138 = vmatpush2.xpose.msra.mxu0 0.0
        %2139 = vmatprep.subr.mxu0 0.0
        %2140 = vmatpush2.xpose.msra.mxu0 0.0
        %2141 = vmatprep.subr.mxu0 0.0
        %2142 = vmatpush2.xpose.msra.mxu0 0.0
        %2143 = vmatprep.subr.mxu0 0.0
        %2144 = vmatpush2.xpose.msra.mxu0 0.0
        %2145 = vmatprep.subr.mxu0 0.0
        %2146 = vmatpush2.xpose.msra.mxu0 0.0
        %2147 = vmatprep.subr.mxu0 0.0
        %2148 = vmatpush2.xpose.msra.mxu0 0.0
        %2149 = vmatprep.subr.mxu0 0.0
        %2150 = vmatpush2.xpose.msra.mxu0 0.0
        %2151 = vmatprep.subr.mxu0 0.0
        %2152 = vmatpush2.xpose.msra.mxu0 0.0
        %2153 = vmatprep.subr.mxu0 0.0
        %2154 = vmatpush2.xpose.msra.mxu0 0.0
        %2155 = vmatprep.subr.mxu0 0.0
        %2156 = vmatpush2.xpose.msra.mxu0 0.0
        %2157 = vmatprep.subr.mxu0 0.0
        %2158 = vmatpush2.xpose.msra.mxu0 0.0
        %2159 = vmatprep.mubr.f32.mxu0 0.0
        %2160 = vmatmul.mubr.f32.gmra.mxu0 %v2084
        %v2161 = vpop.f32.mrf.mxu0
        %v2162 = vadd.f32 0.0, %v2161
        %v2163 = vpop.f32.mrf.mxu0
        %2164 = vmatprep.mubr.f32.mxu0 0.0
        %2165 = vmatmul.mubr.f32.gmra.mxu0 %v2087
        %v2166 = vpop.f32.mrf.mxu0
        %v2167 = vadd.f32 0.0, %v2166
        %v2168 = vpop.f32.mrf.mxu0
        %2169 = vdwg.mxu0
        %v2170 = vcombine.high %v555, %v555
        %v2172 = vunpack.c.l.s4 1966171168
        %v2173 = vunpack.c.0.s8 %v2172
        %v2174 = vlaneseq
        %v2175 = vshrl.u32 %v2174, 7
        %v2176 = vsub.s32 %v2173, %v2175
        %v2177 = vrot.slane %v555, %v2176
        %v2179 = vunpack.c.l.s4 1966171168
        %v2180 = vunpack.c.0.s8 %v2179
        %v2181 = vlaneseq
        %v2182 = vshrl.u32 %v2181, 7
        %v2183 = vsub.s32 %v2180, %v2182
        %v2184 = vrot.slane %v2170, %v2183
        %v2185 = vcombine.high %v2177, %v2177
        %v2186 = vcombine.high %v2184, %v2184
        %v2188 = vunpack.c.l.s4 1966171168
        %v2189 = vunpack.c.0.s8 %v2188
        %v2190 = vlaneseq
        %v2191 = vshrl.u32 %v2190, 7
        %v2192 = vsub.s32 %v2189, %v2191
        %v2193 = vrot.slane %v2177, %v2192
        %v2195 = vunpack.c.l.s4 1966171168
        %v2196 = vunpack.c.0.s8 %v2195
        %v2197 = vlaneseq
        %v2198 = vshrl.u32 %v2197, 7
        %v2199 = vsub.s32 %v2196, %v2198
        %v2200 = vrot.slane %v2184, %v2199
        %v2202 = vunpack.c.l.s4 1966171168
        %v2203 = vunpack.c.0.s8 %v2202
        %v2204 = vlaneseq
        %v2205 = vshrl.u32 %v2204, 7
        %v2206 = vsub.s32 %v2203, %v2205
        %v2207 = vrot.slane %v2185, %v2206
        %v2209 = vunpack.c.l.s4 1966171168
        %v2210 = vunpack.c.0.s8 %v2209
        %v2211 = vlaneseq
        %v2212 = vshrl.u32 %v2211, 7
        %v2213 = vsub.s32 %v2210, %v2212
        %v2214 = vrot.slane %v2186, %v2213
        %v2215 = vcombine.high %v2193, %v2193
        %v2216 = vcombine.high %v2200, %v2200
        %v2217 = vcombine.high %v2207, %v2207
        %v2218 = vcombine.high %v2214, %v2214
        %v2219 = vcombine.high %v560, %v560
        %v2221 = vunpack.c.l.s4 1966171168
        %v2222 = vunpack.c.0.s8 %v2221
        %v2223 = vlaneseq
        %v2224 = vshrl.u32 %v2223, 7
        %v2225 = vsub.s32 %v2222, %v2224
        %v2226 = vrot.slane %v560, %v2225
        %v2228 = vunpack.c.l.s4 1966171168
        %v2229 = vunpack.c.0.s8 %v2228
        %v2230 = vlaneseq
        %v2231 = vshrl.u32 %v2230, 7
        %v2232 = vsub.s32 %v2229, %v2231
        %v2233 = vrot.slane %v2219, %v2232
        %v2234 = vcombine.high %v2226, %v2226
        %v2235 = vcombine.high %v2233, %v2233
        %v2237 = vunpack.c.l.s4 1966171168
        %v2238 = vunpack.c.0.s8 %v2237
        %v2239 = vlaneseq
        %v2240 = vshrl.u32 %v2239, 7
        %v2241 = vsub.s32 %v2238, %v2240
        %v2242 = vrot.slane %v2226, %v2241
        %v2244 = vunpack.c.l.s4 1966171168
        %v2245 = vunpack.c.0.s8 %v2244
        %v2246 = vlaneseq
        %v2247 = vshrl.u32 %v2246, 7
        %v2248 = vsub.s32 %v2245, %v2247
        %v2249 = vrot.slane %v2233, %v2248
        %v2251 = vunpack.c.l.s4 1966171168
        %v2252 = vunpack.c.0.s8 %v2251
        %v2253 = vlaneseq
        %v2254 = vshrl.u32 %v2253, 7
        %v2255 = vsub.s32 %v2252, %v2254
        %v2256 = vrot.slane %v2234, %v2255
        %v2258 = vunpack.c.l.s4 1966171168
        %v2259 = vunpack.c.0.s8 %v2258
        %v2260 = vlaneseq
        %v2261 = vshrl.u32 %v2260, 7
        %v2262 = vsub.s32 %v2259, %v2261
        %v2263 = vrot.slane %v2235, %v2262
        %v2264 = vcombine.high %v2242, %v2242
        %v2265 = vcombine.high %v2249, %v2249
        %v2266 = vcombine.high %v2256, %v2256
        %v2267 = vcombine.high %v2263, %v2263
        %v2268 = vcombine.high %v565, %v565
        %v2270 = vunpack.c.l.s4 1966171168
        %v2271 = vunpack.c.0.s8 %v2270
        %v2272 = vlaneseq
        %v2273 = vshrl.u32 %v2272, 7
        %v2274 = vsub.s32 %v2271, %v2273
        %v2275 = vrot.slane %v565, %v2274
        %v2277 = vunpack.c.l.s4 1966171168
        %v2278 = vunpack.c.0.s8 %v2277
        %v2279 = vlaneseq
        %v2280 = vshrl.u32 %v2279, 7
        %v2281 = vsub.s32 %v2278, %v2280
        %v2282 = vrot.slane %v2268, %v2281
        %v2283 = vcombine.high %v2275, %v2275
        %v2284 = vcombine.high %v2282, %v2282
        %v2286 = vunpack.c.l.s4 1966171168
        %v2287 = vunpack.c.0.s8 %v2286
        %v2288 = vlaneseq
        %v2289 = vshrl.u32 %v2288, 7
        %v2290 = vsub.s32 %v2287, %v2289
        %v2291 = vrot.slane %v2275, %v2290
        %v2293 = vunpack.c.l.s4 1966171168
        %v2294 = vunpack.c.0.s8 %v2293
        %v2295 = vlaneseq
        %v2296 = vshrl.u32 %v2295, 7
        %v2297 = vsub.s32 %v2294, %v2296
        %v2298 = vrot.slane %v2282, %v2297
        %v2300 = vunpack.c.l.s4 1966171168
        %v2301 = vunpack.c.0.s8 %v2300
        %v2302 = vlaneseq
        %v2303 = vshrl.u32 %v2302, 7
        %v2304 = vsub.s32 %v2301, %v2303
        %v2305 = vrot.slane %v2283, %v2304
        %v2307 = vunpack.c.l.s4 1966171168
        %v2308 = vunpack.c.0.s8 %v2307
        %v2309 = vlaneseq
        %v2310 = vshrl.u32 %v2309, 7
        %v2311 = vsub.s32 %v2308, %v2310
        %v2312 = vrot.slane %v2284, %v2311
        %v2313 = vcombine.high %v2291, %v2291
        %v2314 = vcombine.high %v2298, %v2298
        %v2315 = vcombine.high %v2305, %v2305
        %v2316 = vcombine.high %v2312, %v2312
        %v2317 = vcombine.high %v570, %v570
        %v2319 = vunpack.c.l.s4 1966171168
        %v2320 = vunpack.c.0.s8 %v2319
        %v2321 = vlaneseq
        %v2322 = vshrl.u32 %v2321, 7
        %v2323 = vsub.s32 %v2320, %v2322
        %v2324 = vrot.slane %v570, %v2323
        %v2326 = vunpack.c.l.s4 1966171168
        %v2327 = vunpack.c.0.s8 %v2326
        %v2328 = vlaneseq
        %v2329 = vshrl.u32 %v2328, 7
        %v2330 = vsub.s32 %v2327, %v2329
        %v2331 = vrot.slane %v2317, %v2330
        %v2332 = vcombine.high %v2324, %v2324
        %v2333 = vcombine.high %v2331, %v2331
        %v2335 = vunpack.c.l.s4 1966171168
        %v2336 = vunpack.c.0.s8 %v2335
        %v2337 = vlaneseq
        %v2338 = vshrl.u32 %v2337, 7
        %v2339 = vsub.s32 %v2336, %v2338
        %v2340 = vrot.slane %v2324, %v2339
        %v2342 = vunpack.c.l.s4 1966171168
        %v2343 = vunpack.c.0.s8 %v2342
        %v2344 = vlaneseq
        %v2345 = vshrl.u32 %v2344, 7
        %v2346 = vsub.s32 %v2343, %v2345
        %v2347 = vrot.slane %v2331, %v2346
        %v2349 = vunpack.c.l.s4 1966171168
        %v2350 = vunpack.c.0.s8 %v2349
        %v2351 = vlaneseq
        %v2352 = vshrl.u32 %v2351, 7
        %v2353 = vsub.s32 %v2350, %v2352
        %v2354 = vrot.slane %v2332, %v2353
        %v2356 = vunpack.c.l.s4 1966171168
        %v2357 = vunpack.c.0.s8 %v2356
        %v2358 = vlaneseq
        %v2359 = vshrl.u32 %v2358, 7
        %v2360 = vsub.s32 %v2357, %v2359
        %v2361 = vrot.slane %v2333, %v2360
        %v2362 = vcombine.high %v2340, %v2340
        %v2363 = vcombine.high %v2347, %v2347
        %v2364 = vcombine.high %v2354, %v2354
        %v2365 = vcombine.high %v2361, %v2361
        %v2366 = vcombine.high %v575, %v575
        %v2368 = vunpack.c.l.s4 1966171168
        %v2369 = vunpack.c.0.s8 %v2368
        %v2370 = vlaneseq
        %v2371 = vshrl.u32 %v2370, 7
        %v2372 = vsub.s32 %v2369, %v2371
        %v2373 = vrot.slane %v575, %v2372
        %v2375 = vunpack.c.l.s4 1966171168
        %v2376 = vunpack.c.0.s8 %v2375
        %v2377 = vlaneseq
        %v2378 = vshrl.u32 %v2377, 7
        %v2379 = vsub.s32 %v2376, %v2378
        %v2380 = vrot.slane %v2366, %v2379
        %v2381 = vcombine.high %v2373, %v2373
        %v2382 = vcombine.high %v2380, %v2380
        %v2384 = vunpack.c.l.s4 1966171168
        %v2385 = vunpack.c.0.s8 %v2384
        %v2386 = vlaneseq
        %v2387 = vshrl.u32 %v2386, 7
        %v2388 = vsub.s32 %v2385, %v2387
        %v2389 = vrot.slane %v2373, %v2388
        %v2391 = vunpack.c.l.s4 1966171168
        %v2392 = vunpack.c.0.s8 %v2391
        %v2393 = vlaneseq
        %v2394 = vshrl.u32 %v2393, 7
        %v2395 = vsub.s32 %v2392, %v2394
        %v2396 = vrot.slane %v2380, %v2395
        %v2398 = vunpack.c.l.s4 1966171168
        %v2399 = vunpack.c.0.s8 %v2398
        %v2400 = vlaneseq
        %v2401 = vshrl.u32 %v2400, 7
        %v2402 = vsub.s32 %v2399, %v2401
        %v2403 = vrot.slane %v2381, %v2402
        %v2405 = vunpack.c.l.s4 1966171168
        %v2406 = vunpack.c.0.s8 %v2405
        %v2407 = vlaneseq
        %v2408 = vshrl.u32 %v2407, 7
        %v2409 = vsub.s32 %v2406, %v2408
        %v2410 = vrot.slane %v2382, %v2409
        %v2411 = vcombine.high %v2389, %v2389
        %v2412 = vcombine.high %v2396, %v2396
        %v2413 = vcombine.high %v2403, %v2403
        %v2414 = vcombine.high %v2410, %v2410
        %v2415 = vcombine.high %v580, %v580
        %v2417 = vunpack.c.l.s4 1966171168
        %v2418 = vunpack.c.0.s8 %v2417
        %v2419 = vlaneseq
        %v2420 = vshrl.u32 %v2419, 7
        %v2421 = vsub.s32 %v2418, %v2420
        %v2422 = vrot.slane %v580, %v2421
        %v2424 = vunpack.c.l.s4 1966171168
        %v2425 = vunpack.c.0.s8 %v2424
        %v2426 = vlaneseq
        %v2427 = vshrl.u32 %v2426, 7
        %v2428 = vsub.s32 %v2425, %v2427
        %v2429 = vrot.slane %v2415, %v2428
        %v2430 = vcombine.high %v2422, %v2422
        %v2431 = vcombine.high %v2429, %v2429
        %v2433 = vunpack.c.l.s4 1966171168
        %v2434 = vunpack.c.0.s8 %v2433
        %v2435 = vlaneseq
        %v2436 = vshrl.u32 %v2435, 7
        %v2437 = vsub.s32 %v2434, %v2436
        %v2438 = vrot.slane %v2422, %v2437
        %v2440 = vunpack.c.l.s4 1966171168
        %v2441 = vunpack.c.0.s8 %v2440
        %v2442 = vlaneseq
        %v2443 = vshrl.u32 %v2442, 7
        %v2444 = vsub.s32 %v2441, %v2443
        %v2445 = vrot.slane %v2429, %v2444
        %v2447 = vunpack.c.l.s4 1966171168
        %v2448 = vunpack.c.0.s8 %v2447
        %v2449 = vlaneseq
        %v2450 = vshrl.u32 %v2449, 7
        %v2451 = vsub.s32 %v2448, %v2450
        %v2452 = vrot.slane %v2430, %v2451
        %v2454 = vunpack.c.l.s4 1966171168
        %v2455 = vunpack.c.0.s8 %v2454
        %v2456 = vlaneseq
        %v2457 = vshrl.u32 %v2456, 7
        %v2458 = vsub.s32 %v2455, %v2457
        %v2459 = vrot.slane %v2431, %v2458
        %v2460 = vcombine.high %v2438, %v2438
        %v2461 = vcombine.high %v2445, %v2445
        %v2462 = vcombine.high %v2452, %v2452
        %v2463 = vcombine.high %v2459, %v2459
        %v2464 = vcombine.high %v585, %v585
        %v2466 = vunpack.c.l.s4 1966171168
        %v2467 = vunpack.c.0.s8 %v2466
        %v2468 = vlaneseq
        %v2469 = vshrl.u32 %v2468, 7
        %v2470 = vsub.s32 %v2467, %v2469
        %v2471 = vrot.slane %v585, %v2470
        %v2473 = vunpack.c.l.s4 1966171168
        %v2474 = vunpack.c.0.s8 %v2473
        %v2475 = vlaneseq
        %v2476 = vshrl.u32 %v2475, 7
        %v2477 = vsub.s32 %v2474, %v2476
        %v2478 = vrot.slane %v2464, %v2477
        %v2479 = vcombine.high %v2471, %v2471
        %v2480 = vcombine.high %v2478, %v2478
        %v2482 = vunpack.c.l.s4 1966171168
        %v2483 = vunpack.c.0.s8 %v2482
        %v2484 = vlaneseq
        %v2485 = vshrl.u32 %v2484, 7
        %v2486 = vsub.s32 %v2483, %v2485
        %v2487 = vrot.slane %v2471, %v2486
        %v2489 = vunpack.c.l.s4 1966171168
        %v2490 = vunpack.c.0.s8 %v2489
        %v2491 = vlaneseq
        %v2492 = vshrl.u32 %v2491, 7
        %v2493 = vsub.s32 %v2490, %v2492
        %v2494 = vrot.slane %v2478, %v2493
        %v2496 = vunpack.c.l.s4 1966171168
        %v2497 = vunpack.c.0.s8 %v2496
        %v2498 = vlaneseq
        %v2499 = vshrl.u32 %v2498, 7
        %v2500 = vsub.s32 %v2497, %v2499
        %v2501 = vrot.slane %v2479, %v2500
        %v2503 = vunpack.c.l.s4 1966171168
        %v2504 = vunpack.c.0.s8 %v2503
        %v2505 = vlaneseq
        %v2506 = vshrl.u32 %v2505, 7
        %v2507 = vsub.s32 %v2504, %v2506
        %v2508 = vrot.slane %v2480, %v2507
        %v2509 = vcombine.high %v2487, %v2487
        %v2510 = vcombine.high %v2494, %v2494
        %v2511 = vcombine.high %v2501, %v2501
        %v2512 = vcombine.high %v2508, %v2508
        %v2513 = vcombine.high %v590, %v590
        %v2515 = vunpack.c.l.s4 1966171168
        %v2516 = vunpack.c.0.s8 %v2515
        %v2517 = vlaneseq
        %v2518 = vshrl.u32 %v2517, 7
        %v2519 = vsub.s32 %v2516, %v2518
        %v2520 = vrot.slane %v590, %v2519
        %v2522 = vunpack.c.l.s4 1966171168
        %v2523 = vunpack.c.0.s8 %v2522
        %v2524 = vlaneseq
        %v2525 = vshrl.u32 %v2524, 7
        %v2526 = vsub.s32 %v2523, %v2525
        %v2527 = vrot.slane %v2513, %v2526
        %v2528 = vcombine.high %v2520, %v2520
        %v2529 = vcombine.high %v2527, %v2527
        %v2531 = vunpack.c.l.s4 1966171168
        %v2532 = vunpack.c.0.s8 %v2531
        %v2533 = vlaneseq
        %v2534 = vshrl.u32 %v2533, 7
        %v2535 = vsub.s32 %v2532, %v2534
        %v2536 = vrot.slane %v2520, %v2535
        %v2538 = vunpack.c.l.s4 1966171168
        %v2539 = vunpack.c.0.s8 %v2538
        %v2540 = vlaneseq
        %v2541 = vshrl.u32 %v2540, 7
        %v2542 = vsub.s32 %v2539, %v2541
        %v2543 = vrot.slane %v2527, %v2542
        %v2545 = vunpack.c.l.s4 1966171168
        %v2546 = vunpack.c.0.s8 %v2545
        %v2547 = vlaneseq
        %v2548 = vshrl.u32 %v2547, 7
        %v2549 = vsub.s32 %v2546, %v2548
        %v2550 = vrot.slane %v2528, %v2549
        %v2552 = vunpack.c.l.s4 1966171168
        %v2553 = vunpack.c.0.s8 %v2552
        %v2554 = vlaneseq
        %v2555 = vshrl.u32 %v2554, 7
        %v2556 = vsub.s32 %v2553, %v2555
        %v2557 = vrot.slane %v2529, %v2556
        %v2558 = vcombine.high %v2536, %v2536
        %v2559 = vcombine.high %v2543, %v2543
        %v2560 = vcombine.high %v2550, %v2550
        %v2561 = vcombine.high %v2557, %v2557
        %v2562 = vcombine.high %v595, %v595
        %v2564 = vunpack.c.l.s4 1966171168
        %v2565 = vunpack.c.0.s8 %v2564
        %v2566 = vlaneseq
        %v2567 = vshrl.u32 %v2566, 7
        %v2568 = vsub.s32 %v2565, %v2567
        %v2569 = vrot.slane %v595, %v2568
        %v2571 = vunpack.c.l.s4 1966171168
        %v2572 = vunpack.c.0.s8 %v2571
        %v2573 = vlaneseq
        %v2574 = vshrl.u32 %v2573, 7
        %v2575 = vsub.s32 %v2572, %v2574
        %v2576 = vrot.slane %v2562, %v2575
        %v2577 = vcombine.high %v2569, %v2569
        %v2578 = vcombine.high %v2576, %v2576
        %v2580 = vunpack.c.l.s4 1966171168
        %v2581 = vunpack.c.0.s8 %v2580
        %v2582 = vlaneseq
        %v2583 = vshrl.u32 %v2582, 7
        %v2584 = vsub.s32 %v2581, %v2583
        %v2585 = vrot.slane %v2569, %v2584
        %v2587 = vunpack.c.l.s4 1966171168
        %v2588 = vunpack.c.0.s8 %v2587
        %v2589 = vlaneseq
        %v2590 = vshrl.u32 %v2589, 7
        %v2591 = vsub.s32 %v2588, %v2590
        %v2592 = vrot.slane %v2576, %v2591
        %v2594 = vunpack.c.l.s4 1966171168
        %v2595 = vunpack.c.0.s8 %v2594
        %v2596 = vlaneseq
        %v2597 = vshrl.u32 %v2596, 7
        %v2598 = vsub.s32 %v2595, %v2597
        %v2599 = vrot.slane %v2577, %v2598
        %v2601 = vunpack.c.l.s4 1966171168
        %v2602 = vunpack.c.0.s8 %v2601
        %v2603 = vlaneseq
        %v2604 = vshrl.u32 %v2603, 7
        %v2605 = vsub.s32 %v2602, %v2604
        %v2606 = vrot.slane %v2578, %v2605
        %v2607 = vcombine.high %v2585, %v2585
        %v2608 = vcombine.high %v2592, %v2592
        %v2609 = vcombine.high %v2599, %v2599
        %v2610 = vcombine.high %v2606, %v2606
        %v2611 = vcombine.high %v600, %v600
        %v2613 = vunpack.c.l.s4 1966171168
        %v2614 = vunpack.c.0.s8 %v2613
        %v2615 = vlaneseq
        %v2616 = vshrl.u32 %v2615, 7
        %v2617 = vsub.s32 %v2614, %v2616
        %v2618 = vrot.slane %v600, %v2617
        %v2620 = vunpack.c.l.s4 1966171168
        %v2621 = vunpack.c.0.s8 %v2620
        %v2622 = vlaneseq
        %v2623 = vshrl.u32 %v2622, 7
        %v2624 = vsub.s32 %v2621, %v2623
        %v2625 = vrot.slane %v2611, %v2624
        %v2626 = vcombine.high %v2618, %v2618
        %v2627 = vcombine.high %v2625, %v2625
        %v2629 = vunpack.c.l.s4 1966171168
        %v2630 = vunpack.c.0.s8 %v2629
        %v2631 = vlaneseq
        %v2632 = vshrl.u32 %v2631, 7
        %v2633 = vsub.s32 %v2630, %v2632
        %v2634 = vrot.slane %v2618, %v2633
        %v2636 = vunpack.c.l.s4 1966171168
        %v2637 = vunpack.c.0.s8 %v2636
        %v2638 = vlaneseq
        %v2639 = vshrl.u32 %v2638, 7
        %v2640 = vsub.s32 %v2637, %v2639
        %v2641 = vrot.slane %v2625, %v2640
        %v2643 = vunpack.c.l.s4 1966171168
        %v2644 = vunpack.c.0.s8 %v2643
        %v2645 = vlaneseq
        %v2646 = vshrl.u32 %v2645, 7
        %v2647 = vsub.s32 %v2644, %v2646
        %v2648 = vrot.slane %v2626, %v2647
        %v2650 = vunpack.c.l.s4 1966171168
        %v2651 = vunpack.c.0.s8 %v2650
        %v2652 = vlaneseq
        %v2653 = vshrl.u32 %v2652, 7
        %v2654 = vsub.s32 %v2651, %v2653
        %v2655 = vrot.slane %v2627, %v2654
        %v2656 = vcombine.high %v2634, %v2634
        %v2657 = vcombine.high %v2641, %v2641
        %v2658 = vcombine.high %v2648, %v2648
        %v2659 = vcombine.high %v2655, %v2655
        %v2660 = vcombine.high %v605, %v605
        %v2662 = vunpack.c.l.s4 1966171168
        %v2663 = vunpack.c.0.s8 %v2662
        %v2664 = vlaneseq
        %v2665 = vshrl.u32 %v2664, 7
        %v2666 = vsub.s32 %v2663, %v2665
        %v2667 = vrot.slane %v605, %v2666
        %v2669 = vunpack.c.l.s4 1966171168
        %v2670 = vunpack.c.0.s8 %v2669
        %v2671 = vlaneseq
        %v2672 = vshrl.u32 %v2671, 7
        %v2673 = vsub.s32 %v2670, %v2672
        %v2674 = vrot.slane %v2660, %v2673
        %v2675 = vcombine.high %v2667, %v2667
        %v2676 = vcombine.high %v2674, %v2674
        %v2678 = vunpack.c.l.s4 1966171168
        %v2679 = vunpack.c.0.s8 %v2678
        %v2680 = vlaneseq
        %v2681 = vshrl.u32 %v2680, 7
        %v2682 = vsub.s32 %v2679, %v2681
        %v2683 = vrot.slane %v2667, %v2682
        %v2685 = vunpack.c.l.s4 1966171168
        %v2686 = vunpack.c.0.s8 %v2685
        %v2687 = vlaneseq
        %v2688 = vshrl.u32 %v2687, 7
        %v2689 = vsub.s32 %v2686, %v2688
        %v2690 = vrot.slane %v2674, %v2689
        %v2692 = vunpack.c.l.s4 1966171168
        %v2693 = vunpack.c.0.s8 %v2692
        %v2694 = vlaneseq
        %v2695 = vshrl.u32 %v2694, 7
        %v2696 = vsub.s32 %v2693, %v2695
        %v2697 = vrot.slane %v2675, %v2696
        %v2699 = vunpack.c.l.s4 1966171168
        %v2700 = vunpack.c.0.s8 %v2699
        %v2701 = vlaneseq
        %v2702 = vshrl.u32 %v2701, 7
        %v2703 = vsub.s32 %v2700, %v2702
        %v2704 = vrot.slane %v2676, %v2703
        %v2705 = vcombine.high %v2683, %v2683
        %v2706 = vcombine.high %v2690, %v2690
        %v2707 = vcombine.high %v2697, %v2697
        %v2708 = vcombine.high %v2704, %v2704
        %v2709 = vcombine.high %v610, %v610
        %v2711 = vunpack.c.l.s4 1966171168
        %v2712 = vunpack.c.0.s8 %v2711
        %v2713 = vlaneseq
        %v2714 = vshrl.u32 %v2713, 7
        %v2715 = vsub.s32 %v2712, %v2714
        %v2716 = vrot.slane %v610, %v2715
        %v2718 = vunpack.c.l.s4 1966171168
        %v2719 = vunpack.c.0.s8 %v2718
        %v2720 = vlaneseq
        %v2721 = vshrl.u32 %v2720, 7
        %v2722 = vsub.s32 %v2719, %v2721
        %v2723 = vrot.slane %v2709, %v2722
        %v2724 = vcombine.high %v2716, %v2716
        %v2725 = vcombine.high %v2723, %v2723
        %v2727 = vunpack.c.l.s4 1966171168
        %v2728 = vunpack.c.0.s8 %v2727
        %v2729 = vlaneseq
        %v2730 = vshrl.u32 %v2729, 7
        %v2731 = vsub.s32 %v2728, %v2730
        %v2732 = vrot.slane %v2716, %v2731
        %v2734 = vunpack.c.l.s4 1966171168
        %v2735 = vunpack.c.0.s8 %v2734
        %v2736 = vlaneseq
        %v2737 = vshrl.u32 %v2736, 7
        %v2738 = vsub.s32 %v2735, %v2737
        %v2739 = vrot.slane %v2723, %v2738
        %v2741 = vunpack.c.l.s4 1966171168
        %v2742 = vunpack.c.0.s8 %v2741
        %v2743 = vlaneseq
        %v2744 = vshrl.u32 %v2743, 7
        %v2745 = vsub.s32 %v2742, %v2744
        %v2746 = vrot.slane %v2724, %v2745
        %v2748 = vunpack.c.l.s4 1966171168
        %v2749 = vunpack.c.0.s8 %v2748
        %v2750 = vlaneseq
        %v2751 = vshrl.u32 %v2750, 7
        %v2752 = vsub.s32 %v2749, %v2751
        %v2753 = vrot.slane %v2725, %v2752
        %v2754 = vcombine.high %v2732, %v2732
        %v2755 = vcombine.high %v2739, %v2739
        %v2756 = vcombine.high %v2746, %v2746
        %v2757 = vcombine.high %v2753, %v2753
        %v2758 = vcombine.high %v615, %v615
        %v2760 = vunpack.c.l.s4 1966171168
        %v2761 = vunpack.c.0.s8 %v2760
        %v2762 = vlaneseq
        %v2763 = vshrl.u32 %v2762, 7
        %v2764 = vsub.s32 %v2761, %v2763
        %v2765 = vrot.slane %v615, %v2764
        %v2767 = vunpack.c.l.s4 1966171168
        %v2768 = vunpack.c.0.s8 %v2767
        %v2769 = vlaneseq
        %v2770 = vshrl.u32 %v2769, 7
        %v2771 = vsub.s32 %v2768, %v2770
        %v2772 = vrot.slane %v2758, %v2771
        %v2773 = vcombine.high %v2765, %v2765
        %v2774 = vcombine.high %v2772, %v2772
        %v2776 = vunpack.c.l.s4 1966171168
        %v2777 = vunpack.c.0.s8 %v2776
        %v2778 = vlaneseq
        %v2779 = vshrl.u32 %v2778, 7
        %v2780 = vsub.s32 %v2777, %v2779
        %v2781 = vrot.slane %v2765, %v2780
        %v2783 = vunpack.c.l.s4 1966171168
        %v2784 = vunpack.c.0.s8 %v2783
        %v2785 = vlaneseq
        %v2786 = vshrl.u32 %v2785, 7
        %v2787 = vsub.s32 %v2784, %v2786
        %v2788 = vrot.slane %v2772, %v2787
        %v2790 = vunpack.c.l.s4 1966171168
        %v2791 = vunpack.c.0.s8 %v2790
        %v2792 = vlaneseq
        %v2793 = vshrl.u32 %v2792, 7
        %v2794 = vsub.s32 %v2791, %v2793
        %v2795 = vrot.slane %v2773, %v2794
        %v2797 = vunpack.c.l.s4 1966171168
        %v2798 = vunpack.c.0.s8 %v2797
        %v2799 = vlaneseq
        %v2800 = vshrl.u32 %v2799, 7
        %v2801 = vsub.s32 %v2798, %v2800
        %v2802 = vrot.slane %v2774, %v2801
        %v2803 = vcombine.high %v2781, %v2781
        %v2804 = vcombine.high %v2788, %v2788
        %v2805 = vcombine.high %v2795, %v2795
        %v2806 = vcombine.high %v2802, %v2802
        %v2807 = vcombine.high %v620, %v620
        %v2809 = vunpack.c.l.s4 1966171168
        %v2810 = vunpack.c.0.s8 %v2809
        %v2811 = vlaneseq
        %v2812 = vshrl.u32 %v2811, 7
        %v2813 = vsub.s32 %v2810, %v2812
        %v2814 = vrot.slane %v620, %v2813
        %v2816 = vunpack.c.l.s4 1966171168
        %v2817 = vunpack.c.0.s8 %v2816
        %v2818 = vlaneseq
        %v2819 = vshrl.u32 %v2818, 7
        %v2820 = vsub.s32 %v2817, %v2819
        %v2821 = vrot.slane %v2807, %v2820
        %v2822 = vcombine.high %v2814, %v2814
        %v2823 = vcombine.high %v2821, %v2821
        %v2825 = vunpack.c.l.s4 1966171168
        %v2826 = vunpack.c.0.s8 %v2825
        %v2827 = vlaneseq
        %v2828 = vshrl.u32 %v2827, 7
        %v2829 = vsub.s32 %v2826, %v2828
        %v2830 = vrot.slane %v2814, %v2829
        %v2832 = vunpack.c.l.s4 1966171168
        %v2833 = vunpack.c.0.s8 %v2832
        %v2834 = vlaneseq
        %v2835 = vshrl.u32 %v2834, 7
        %v2836 = vsub.s32 %v2833, %v2835
        %v2837 = vrot.slane %v2821, %v2836
        %v2839 = vunpack.c.l.s4 1966171168
        %v2840 = vunpack.c.0.s8 %v2839
        %v2841 = vlaneseq
        %v2842 = vshrl.u32 %v2841, 7
        %v2843 = vsub.s32 %v2840, %v2842
        %v2844 = vrot.slane %v2822, %v2843
        %v2846 = vunpack.c.l.s4 1966171168
        %v2847 = vunpack.c.0.s8 %v2846
        %v2848 = vlaneseq
        %v2849 = vshrl.u32 %v2848, 7
        %v2850 = vsub.s32 %v2847, %v2849
        %v2851 = vrot.slane %v2823, %v2850
        %v2852 = vcombine.high %v2830, %v2830
        %v2853 = vcombine.high %v2837, %v2837
        %v2854 = vcombine.high %v2844, %v2844
        %v2855 = vcombine.high %v2851, %v2851
        %v2856 = vcombine.high %v625, %v625
        %v2858 = vunpack.c.l.s4 1966171168
        %v2859 = vunpack.c.0.s8 %v2858
        %v2860 = vlaneseq
        %v2861 = vshrl.u32 %v2860, 7
        %v2862 = vsub.s32 %v2859, %v2861
        %v2863 = vrot.slane %v625, %v2862
        %v2865 = vunpack.c.l.s4 1966171168
        %v2866 = vunpack.c.0.s8 %v2865
        %v2867 = vlaneseq
        %v2868 = vshrl.u32 %v2867, 7
        %v2869 = vsub.s32 %v2866, %v2868
        %v2870 = vrot.slane %v2856, %v2869
        %v2871 = vcombine.high %v2863, %v2863
        %v2872 = vcombine.high %v2870, %v2870
        %v2874 = vunpack.c.l.s4 1966171168
        %v2875 = vunpack.c.0.s8 %v2874
        %v2876 = vlaneseq
        %v2877 = vshrl.u32 %v2876, 7
        %v2878 = vsub.s32 %v2875, %v2877
        %v2879 = vrot.slane %v2863, %v2878
        %v2881 = vunpack.c.l.s4 1966171168
        %v2882 = vunpack.c.0.s8 %v2881
        %v2883 = vlaneseq
        %v2884 = vshrl.u32 %v2883, 7
        %v2885 = vsub.s32 %v2882, %v2884
        %v2886 = vrot.slane %v2870, %v2885
        %v2888 = vunpack.c.l.s4 1966171168
        %v2889 = vunpack.c.0.s8 %v2888
        %v2890 = vlaneseq
        %v2891 = vshrl.u32 %v2890, 7
        %v2892 = vsub.s32 %v2889, %v2891
        %v2893 = vrot.slane %v2871, %v2892
        %v2895 = vunpack.c.l.s4 1966171168
        %v2896 = vunpack.c.0.s8 %v2895
        %v2897 = vlaneseq
        %v2898 = vshrl.u32 %v2897, 7
        %v2899 = vsub.s32 %v2896, %v2898
        %v2900 = vrot.slane %v2872, %v2899
        %v2901 = vcombine.high %v2879, %v2879
        %v2902 = vcombine.high %v2886, %v2886
        %v2903 = vcombine.high %v2893, %v2893
        %v2904 = vcombine.high %v2900, %v2900
        %v2905 = vcombine.high %v630, %v630
        %v2907 = vunpack.c.l.s4 1966171168
        %v2908 = vunpack.c.0.s8 %v2907
        %v2909 = vlaneseq
        %v2910 = vshrl.u32 %v2909, 7
        %v2911 = vsub.s32 %v2908, %v2910
        %v2912 = vrot.slane %v630, %v2911
        %v2914 = vunpack.c.l.s4 1966171168
        %v2915 = vunpack.c.0.s8 %v2914
        %v2916 = vlaneseq
        %v2917 = vshrl.u32 %v2916, 7
        %v2918 = vsub.s32 %v2915, %v2917
        %v2919 = vrot.slane %v2905, %v2918
        %v2920 = vcombine.high %v2912, %v2912
        %v2921 = vcombine.high %v2919, %v2919
        %v2923 = vunpack.c.l.s4 1966171168
        %v2924 = vunpack.c.0.s8 %v2923
        %v2925 = vlaneseq
        %v2926 = vshrl.u32 %v2925, 7
        %v2927 = vsub.s32 %v2924, %v2926
        %v2928 = vrot.slane %v2912, %v2927
        %v2930 = vunpack.c.l.s4 1966171168
        %v2931 = vunpack.c.0.s8 %v2930
        %v2932 = vlaneseq
        %v2933 = vshrl.u32 %v2932, 7
        %v2934 = vsub.s32 %v2931, %v2933
        %v2935 = vrot.slane %v2919, %v2934
        %v2937 = vunpack.c.l.s4 1966171168
        %v2938 = vunpack.c.0.s8 %v2937
        %v2939 = vlaneseq
        %v2940 = vshrl.u32 %v2939, 7
        %v2941 = vsub.s32 %v2938, %v2940
        %v2942 = vrot.slane %v2920, %v2941
        %v2944 = vunpack.c.l.s4 1966171168
        %v2945 = vunpack.c.0.s8 %v2944
        %v2946 = vlaneseq
        %v2947 = vshrl.u32 %v2946, 7
        %v2948 = vsub.s32 %v2945, %v2947
        %v2949 = vrot.slane %v2921, %v2948
        %v2950 = vcombine.high %v2928, %v2928
        %v2951 = vcombine.high %v2935, %v2935
        %v2952 = vcombine.high %v2942, %v2942
        %v2953 = vcombine.high %v2949, %v2949
        %v2954 = vcombine.high %v635, %v635
        %v2956 = vunpack.c.l.s4 1966171168
        %v2957 = vunpack.c.0.s8 %v2956
        %v2958 = vlaneseq
        %v2959 = vshrl.u32 %v2958, 7
        %v2960 = vsub.s32 %v2957, %v2959
        %v2961 = vrot.slane %v635, %v2960
        %v2963 = vunpack.c.l.s4 1966171168
        %v2964 = vunpack.c.0.s8 %v2963
        %v2965 = vlaneseq
        %v2966 = vshrl.u32 %v2965, 7
        %v2967 = vsub.s32 %v2964, %v2966
        %v2968 = vrot.slane %v2954, %v2967
        %v2969 = vcombine.high %v2961, %v2961
        %v2970 = vcombine.high %v2968, %v2968
        %v2972 = vunpack.c.l.s4 1966171168
        %v2973 = vunpack.c.0.s8 %v2972
        %v2974 = vlaneseq
        %v2975 = vshrl.u32 %v2974, 7
        %v2976 = vsub.s32 %v2973, %v2975
        %v2977 = vrot.slane %v2961, %v2976
        %v2979 = vunpack.c.l.s4 1966171168
        %v2980 = vunpack.c.0.s8 %v2979
        %v2981 = vlaneseq
        %v2982 = vshrl.u32 %v2981, 7
        %v2983 = vsub.s32 %v2980, %v2982
        %v2984 = vrot.slane %v2968, %v2983
        %v2986 = vunpack.c.l.s4 1966171168
        %v2987 = vunpack.c.0.s8 %v2986
        %v2988 = vlaneseq
        %v2989 = vshrl.u32 %v2988, 7
        %v2990 = vsub.s32 %v2987, %v2989
        %v2991 = vrot.slane %v2969, %v2990
        %v2993 = vunpack.c.l.s4 1966171168
        %v2994 = vunpack.c.0.s8 %v2993
        %v2995 = vlaneseq
        %v2996 = vshrl.u32 %v2995, 7
        %v2997 = vsub.s32 %v2994, %v2996
        %v2998 = vrot.slane %v2970, %v2997
        %v2999 = vcombine.high %v2977, %v2977
        %v3000 = vcombine.high %v2984, %v2984
        %v3001 = vcombine.high %v2991, %v2991
        %v3002 = vcombine.high %v2998, %v2998
        %v3003 = vcombine.high %v640, %v640
        %v3005 = vunpack.c.l.s4 1966171168
        %v3006 = vunpack.c.0.s8 %v3005
        %v3007 = vlaneseq
        %v3008 = vshrl.u32 %v3007, 7
        %v3009 = vsub.s32 %v3006, %v3008
        %v3010 = vrot.slane %v640, %v3009
        %v3012 = vunpack.c.l.s4 1966171168
        %v3013 = vunpack.c.0.s8 %v3012
        %v3014 = vlaneseq
        %v3015 = vshrl.u32 %v3014, 7
        %v3016 = vsub.s32 %v3013, %v3015
        %v3017 = vrot.slane %v3003, %v3016
        %v3018 = vcombine.high %v3010, %v3010
        %v3019 = vcombine.high %v3017, %v3017
        %v3021 = vunpack.c.l.s4 1966171168
        %v3022 = vunpack.c.0.s8 %v3021
        %v3023 = vlaneseq
        %v3024 = vshrl.u32 %v3023, 7
        %v3025 = vsub.s32 %v3022, %v3024
        %v3026 = vrot.slane %v3010, %v3025
        %v3028 = vunpack.c.l.s4 1966171168
        %v3029 = vunpack.c.0.s8 %v3028
        %v3030 = vlaneseq
        %v3031 = vshrl.u32 %v3030, 7
        %v3032 = vsub.s32 %v3029, %v3031
        %v3033 = vrot.slane %v3017, %v3032
        %v3035 = vunpack.c.l.s4 1966171168
        %v3036 = vunpack.c.0.s8 %v3035
        %v3037 = vlaneseq
        %v3038 = vshrl.u32 %v3037, 7
        %v3039 = vsub.s32 %v3036, %v3038
        %v3040 = vrot.slane %v3018, %v3039
        %v3042 = vunpack.c.l.s4 1966171168
        %v3043 = vunpack.c.0.s8 %v3042
        %v3044 = vlaneseq
        %v3045 = vshrl.u32 %v3044, 7
        %v3046 = vsub.s32 %v3043, %v3045
        %v3047 = vrot.slane %v3019, %v3046
        %v3048 = vcombine.high %v3026, %v3026
        %v3049 = vcombine.high %v3033, %v3033
        %v3050 = vcombine.high %v3040, %v3040
        %v3051 = vcombine.high %v3047, %v3047
        %v3052 = vcombine.high %v645, %v645
        %v3054 = vunpack.c.l.s4 1966171168
        %v3055 = vunpack.c.0.s8 %v3054
        %v3056 = vlaneseq
        %v3057 = vshrl.u32 %v3056, 7
        %v3058 = vsub.s32 %v3055, %v3057
        %v3059 = vrot.slane %v645, %v3058
        %v3061 = vunpack.c.l.s4 1966171168
        %v3062 = vunpack.c.0.s8 %v3061
        %v3063 = vlaneseq
        %v3064 = vshrl.u32 %v3063, 7
        %v3065 = vsub.s32 %v3062, %v3064
        %v3066 = vrot.slane %v3052, %v3065
        %v3067 = vcombine.high %v3059, %v3059
        %v3068 = vcombine.high %v3066, %v3066
        %v3070 = vunpack.c.l.s4 1966171168
        %v3071 = vunpack.c.0.s8 %v3070
        %v3072 = vlaneseq
        %v3073 = vshrl.u32 %v3072, 7
        %v3074 = vsub.s32 %v3071, %v3073
        %v3075 = vrot.slane %v3059, %v3074
        %v3077 = vunpack.c.l.s4 1966171168
        %v3078 = vunpack.c.0.s8 %v3077
        %v3079 = vlaneseq
        %v3080 = vshrl.u32 %v3079, 7
        %v3081 = vsub.s32 %v3078, %v3080
        %v3082 = vrot.slane %v3066, %v3081
        %v3084 = vunpack.c.l.s4 1966171168
        %v3085 = vunpack.c.0.s8 %v3084
        %v3086 = vlaneseq
        %v3087 = vshrl.u32 %v3086, 7
        %v3088 = vsub.s32 %v3085, %v3087
        %v3089 = vrot.slane %v3067, %v3088
        %v3091 = vunpack.c.l.s4 1966171168
        %v3092 = vunpack.c.0.s8 %v3091
        %v3093 = vlaneseq
        %v3094 = vshrl.u32 %v3093, 7
        %v3095 = vsub.s32 %v3092, %v3094
        %v3096 = vrot.slane %v3068, %v3095
        %v3097 = vcombine.high %v3075, %v3075
        %v3098 = vcombine.high %v3082, %v3082
        %v3099 = vcombine.high %v3089, %v3089
        %v3100 = vcombine.high %v3096, %v3096
        %v3101 = vcombine.high %v650, %v650
        %v3103 = vunpack.c.l.s4 1966171168
        %v3104 = vunpack.c.0.s8 %v3103
        %v3105 = vlaneseq
        %v3106 = vshrl.u32 %v3105, 7
        %v3107 = vsub.s32 %v3104, %v3106
        %v3108 = vrot.slane %v650, %v3107
        %v3110 = vunpack.c.l.s4 1966171168
        %v3111 = vunpack.c.0.s8 %v3110
        %v3112 = vlaneseq
        %v3113 = vshrl.u32 %v3112, 7
        %v3114 = vsub.s32 %v3111, %v3113
        %v3115 = vrot.slane %v3101, %v3114
        %v3116 = vcombine.high %v3108, %v3108
        %v3117 = vcombine.high %v3115, %v3115
        %v3119 = vunpack.c.l.s4 1966171168
        %v3120 = vunpack.c.0.s8 %v3119
        %v3121 = vlaneseq
        %v3122 = vshrl.u32 %v3121, 7
        %v3123 = vsub.s32 %v3120, %v3122
        %v3124 = vrot.slane %v3108, %v3123
        %v3126 = vunpack.c.l.s4 1966171168
        %v3127 = vunpack.c.0.s8 %v3126
        %v3128 = vlaneseq
        %v3129 = vshrl.u32 %v3128, 7
        %v3130 = vsub.s32 %v3127, %v3129
        %v3131 = vrot.slane %v3115, %v3130
        %v3133 = vunpack.c.l.s4 1966171168
        %v3134 = vunpack.c.0.s8 %v3133
        %v3135 = vlaneseq
        %v3136 = vshrl.u32 %v3135, 7
        %v3137 = vsub.s32 %v3134, %v3136
        %v3138 = vrot.slane %v3116, %v3137
        %v3140 = vunpack.c.l.s4 1966171168
        %v3141 = vunpack.c.0.s8 %v3140
        %v3142 = vlaneseq
        %v3143 = vshrl.u32 %v3142, 7
        %v3144 = vsub.s32 %v3141, %v3143
        %v3145 = vrot.slane %v3117, %v3144
        %v3146 = vcombine.high %v3124, %v3124
        %v3147 = vcombine.high %v3131, %v3131
        %v3148 = vcombine.high %v3138, %v3138
        %v3149 = vcombine.high %v3145, %v3145
        %v3150 = vcombine.high %v655, %v655
        %v3152 = vunpack.c.l.s4 1966171168
        %v3153 = vunpack.c.0.s8 %v3152
        %v3154 = vlaneseq
        %v3155 = vshrl.u32 %v3154, 7
        %v3156 = vsub.s32 %v3153, %v3155
        %v3157 = vrot.slane %v655, %v3156
        %v3159 = vunpack.c.l.s4 1966171168
        %v3160 = vunpack.c.0.s8 %v3159
        %v3161 = vlaneseq
        %v3162 = vshrl.u32 %v3161, 7
        %v3163 = vsub.s32 %v3160, %v3162
        %v3164 = vrot.slane %v3150, %v3163
        %v3165 = vcombine.high %v3157, %v3157
        %v3166 = vcombine.high %v3164, %v3164
        %v3168 = vunpack.c.l.s4 1966171168
        %v3169 = vunpack.c.0.s8 %v3168
        %v3170 = vlaneseq
        %v3171 = vshrl.u32 %v3170, 7
        %v3172 = vsub.s32 %v3169, %v3171
        %v3173 = vrot.slane %v3157, %v3172
        %v3175 = vunpack.c.l.s4 1966171168
        %v3176 = vunpack.c.0.s8 %v3175
        %v3177 = vlaneseq
        %v3178 = vshrl.u32 %v3177, 7
        %v3179 = vsub.s32 %v3176, %v3178
        %v3180 = vrot.slane %v3164, %v3179
        %v3182 = vunpack.c.l.s4 1966171168
        %v3183 = vunpack.c.0.s8 %v3182
        %v3184 = vlaneseq
        %v3185 = vshrl.u32 %v3184, 7
        %v3186 = vsub.s32 %v3183, %v3185
        %v3187 = vrot.slane %v3165, %v3186
        %v3189 = vunpack.c.l.s4 1966171168
        %v3190 = vunpack.c.0.s8 %v3189
        %v3191 = vlaneseq
        %v3192 = vshrl.u32 %v3191, 7
        %v3193 = vsub.s32 %v3190, %v3192
        %v3194 = vrot.slane %v3166, %v3193
        %v3195 = vcombine.high %v3173, %v3173
        %v3196 = vcombine.high %v3180, %v3180
        %v3197 = vcombine.high %v3187, %v3187
        %v3198 = vcombine.high %v3194, %v3194
        %v3199 = vcombine.high %v660, %v660
        %v3201 = vunpack.c.l.s4 1966171168
        %v3202 = vunpack.c.0.s8 %v3201
        %v3203 = vlaneseq
        %v3204 = vshrl.u32 %v3203, 7
        %v3205 = vsub.s32 %v3202, %v3204
        %v3206 = vrot.slane %v660, %v3205
        %v3208 = vunpack.c.l.s4 1966171168
        %v3209 = vunpack.c.0.s8 %v3208
        %v3210 = vlaneseq
        %v3211 = vshrl.u32 %v3210, 7
        %v3212 = vsub.s32 %v3209, %v3211
        %v3213 = vrot.slane %v3199, %v3212
        %v3214 = vcombine.high %v3206, %v3206
        %v3215 = vcombine.high %v3213, %v3213
        %v3217 = vunpack.c.l.s4 1966171168
        %v3218 = vunpack.c.0.s8 %v3217
        %v3219 = vlaneseq
        %v3220 = vshrl.u32 %v3219, 7
        %v3221 = vsub.s32 %v3218, %v3220
        %v3222 = vrot.slane %v3206, %v3221
        %v3224 = vunpack.c.l.s4 1966171168
        %v3225 = vunpack.c.0.s8 %v3224
        %v3226 = vlaneseq
        %v3227 = vshrl.u32 %v3226, 7
        %v3228 = vsub.s32 %v3225, %v3227
        %v3229 = vrot.slane %v3213, %v3228
        %v3231 = vunpack.c.l.s4 1966171168
        %v3232 = vunpack.c.0.s8 %v3231
        %v3233 = vlaneseq
        %v3234 = vshrl.u32 %v3233, 7
        %v3235 = vsub.s32 %v3232, %v3234
        %v3236 = vrot.slane %v3214, %v3235
        %v3238 = vunpack.c.l.s4 1966171168
        %v3239 = vunpack.c.0.s8 %v3238
        %v3240 = vlaneseq
        %v3241 = vshrl.u32 %v3240, 7
        %v3242 = vsub.s32 %v3239, %v3241
        %v3243 = vrot.slane %v3215, %v3242
        %v3244 = vcombine.high %v3222, %v3222
        %v3245 = vcombine.high %v3229, %v3229
        %v3246 = vcombine.high %v3236, %v3236
        %v3247 = vcombine.high %v3243, %v3243
        %v3248 = vcombine.high %v665, %v665
        %v3250 = vunpack.c.l.s4 1966171168
        %v3251 = vunpack.c.0.s8 %v3250
        %v3252 = vlaneseq
        %v3253 = vshrl.u32 %v3252, 7
        %v3254 = vsub.s32 %v3251, %v3253
        %v3255 = vrot.slane %v665, %v3254
        %v3257 = vunpack.c.l.s4 1966171168
        %v3258 = vunpack.c.0.s8 %v3257
        %v3259 = vlaneseq
        %v3260 = vshrl.u32 %v3259, 7
        %v3261 = vsub.s32 %v3258, %v3260
        %v3262 = vrot.slane %v3248, %v3261
        %v3263 = vcombine.high %v3255, %v3255
        %v3264 = vcombine.high %v3262, %v3262
        %v3266 = vunpack.c.l.s4 1966171168
        %v3267 = vunpack.c.0.s8 %v3266
        %v3268 = vlaneseq
        %v3269 = vshrl.u32 %v3268, 7
        %v3270 = vsub.s32 %v3267, %v3269
        %v3271 = vrot.slane %v3255, %v3270
        %v3273 = vunpack.c.l.s4 1966171168
        %v3274 = vunpack.c.0.s8 %v3273
        %v3275 = vlaneseq
        %v3276 = vshrl.u32 %v3275, 7
        %v3277 = vsub.s32 %v3274, %v3276
        %v3278 = vrot.slane %v3262, %v3277
        %v3280 = vunpack.c.l.s4 1966171168
        %v3281 = vunpack.c.0.s8 %v3280
        %v3282 = vlaneseq
        %v3283 = vshrl.u32 %v3282, 7
        %v3284 = vsub.s32 %v3281, %v3283
        %v3285 = vrot.slane %v3263, %v3284
        %v3287 = vunpack.c.l.s4 1966171168
        %v3288 = vunpack.c.0.s8 %v3287
        %v3289 = vlaneseq
        %v3290 = vshrl.u32 %v3289, 7
        %v3291 = vsub.s32 %v3288, %v3290
        %v3292 = vrot.slane %v3264, %v3291
        %v3293 = vcombine.high %v3271, %v3271
        %v3294 = vcombine.high %v3278, %v3278
        %v3295 = vcombine.high %v3285, %v3285
        %v3296 = vcombine.high %v3292, %v3292
        %v3297 = vcombine.high %v670, %v670
        %v3299 = vunpack.c.l.s4 1966171168
        %v3300 = vunpack.c.0.s8 %v3299
        %v3301 = vlaneseq
        %v3302 = vshrl.u32 %v3301, 7
        %v3303 = vsub.s32 %v3300, %v3302
        %v3304 = vrot.slane %v670, %v3303
        %v3306 = vunpack.c.l.s4 1966171168
        %v3307 = vunpack.c.0.s8 %v3306
        %v3308 = vlaneseq
        %v3309 = vshrl.u32 %v3308, 7
        %v3310 = vsub.s32 %v3307, %v3309
        %v3311 = vrot.slane %v3297, %v3310
        %v3312 = vcombine.high %v3304, %v3304
        %v3313 = vcombine.high %v3311, %v3311
        %v3315 = vunpack.c.l.s4 1966171168
        %v3316 = vunpack.c.0.s8 %v3315
        %v3317 = vlaneseq
        %v3318 = vshrl.u32 %v3317, 7
        %v3319 = vsub.s32 %v3316, %v3318
        %v3320 = vrot.slane %v3304, %v3319
        %v3322 = vunpack.c.l.s4 1966171168
        %v3323 = vunpack.c.0.s8 %v3322
        %v3324 = vlaneseq
        %v3325 = vshrl.u32 %v3324, 7
        %v3326 = vsub.s32 %v3323, %v3325
        %v3327 = vrot.slane %v3311, %v3326
        %v3329 = vunpack.c.l.s4 1966171168
        %v3330 = vunpack.c.0.s8 %v3329
        %v3331 = vlaneseq
        %v3332 = vshrl.u32 %v3331, 7
        %v3333 = vsub.s32 %v3330, %v3332
        %v3334 = vrot.slane %v3312, %v3333
        %v3336 = vunpack.c.l.s4 1966171168
        %v3337 = vunpack.c.0.s8 %v3336
        %v3338 = vlaneseq
        %v3339 = vshrl.u32 %v3338, 7
        %v3340 = vsub.s32 %v3337, %v3339
        %v3341 = vrot.slane %v3313, %v3340
        %v3342 = vcombine.high %v3320, %v3320
        %v3343 = vcombine.high %v3327, %v3327
        %v3344 = vcombine.high %v3334, %v3334
        %v3345 = vcombine.high %v3341, %v3341
        %v3346 = vcombine.high %v675, %v675
        %v3348 = vunpack.c.l.s4 1966171168
        %v3349 = vunpack.c.0.s8 %v3348
        %v3350 = vlaneseq
        %v3351 = vshrl.u32 %v3350, 7
        %v3352 = vsub.s32 %v3349, %v3351
        %v3353 = vrot.slane %v675, %v3352
        %v3355 = vunpack.c.l.s4 1966171168
        %v3356 = vunpack.c.0.s8 %v3355
        %v3357 = vlaneseq
        %v3358 = vshrl.u32 %v3357, 7
        %v3359 = vsub.s32 %v3356, %v3358
        %v3360 = vrot.slane %v3346, %v3359
        %v3361 = vcombine.high %v3353, %v3353
        %v3362 = vcombine.high %v3360, %v3360
        %v3364 = vunpack.c.l.s4 1966171168
        %v3365 = vunpack.c.0.s8 %v3364
        %v3366 = vlaneseq
        %v3367 = vshrl.u32 %v3366, 7
        %v3368 = vsub.s32 %v3365, %v3367
        %v3369 = vrot.slane %v3353, %v3368
        %v3371 = vunpack.c.l.s4 1966171168
        %v3372 = vunpack.c.0.s8 %v3371
        %v3373 = vlaneseq
        %v3374 = vshrl.u32 %v3373, 7
        %v3375 = vsub.s32 %v3372, %v3374
        %v3376 = vrot.slane %v3360, %v3375
        %v3378 = vunpack.c.l.s4 1966171168
        %v3379 = vunpack.c.0.s8 %v3378
        %v3380 = vlaneseq
        %v3381 = vshrl.u32 %v3380, 7
        %v3382 = vsub.s32 %v3379, %v3381
        %v3383 = vrot.slane %v3361, %v3382
        %v3385 = vunpack.c.l.s4 1966171168
        %v3386 = vunpack.c.0.s8 %v3385
        %v3387 = vlaneseq
        %v3388 = vshrl.u32 %v3387, 7
        %v3389 = vsub.s32 %v3386, %v3388
        %v3390 = vrot.slane %v3362, %v3389
        %v3391 = vcombine.high %v3369, %v3369
        %v3392 = vcombine.high %v3376, %v3376
        %v3393 = vcombine.high %v3383, %v3383
        %v3394 = vcombine.high %v3390, %v3390
        %v3395 = vcombine.high %v680, %v680
        %v3397 = vunpack.c.l.s4 1966171168
        %v3398 = vunpack.c.0.s8 %v3397
        %v3399 = vlaneseq
        %v3400 = vshrl.u32 %v3399, 7
        %v3401 = vsub.s32 %v3398, %v3400
        %v3402 = vrot.slane %v680, %v3401
        %v3404 = vunpack.c.l.s4 1966171168
        %v3405 = vunpack.c.0.s8 %v3404
        %v3406 = vlaneseq
        %v3407 = vshrl.u32 %v3406, 7
        %v3408 = vsub.s32 %v3405, %v3407
        %v3409 = vrot.slane %v3395, %v3408
        %v3410 = vcombine.high %v3402, %v3402
        %v3411 = vcombine.high %v3409, %v3409
        %v3413 = vunpack.c.l.s4 1966171168
        %v3414 = vunpack.c.0.s8 %v3413
        %v3415 = vlaneseq
        %v3416 = vshrl.u32 %v3415, 7
        %v3417 = vsub.s32 %v3414, %v3416
        %v3418 = vrot.slane %v3402, %v3417
        %v3420 = vunpack.c.l.s4 1966171168
        %v3421 = vunpack.c.0.s8 %v3420
        %v3422 = vlaneseq
        %v3423 = vshrl.u32 %v3422, 7
        %v3424 = vsub.s32 %v3421, %v3423
        %v3425 = vrot.slane %v3409, %v3424
        %v3427 = vunpack.c.l.s4 1966171168
        %v3428 = vunpack.c.0.s8 %v3427
        %v3429 = vlaneseq
        %v3430 = vshrl.u32 %v3429, 7
        %v3431 = vsub.s32 %v3428, %v3430
        %v3432 = vrot.slane %v3410, %v3431
        %v3434 = vunpack.c.l.s4 1966171168
        %v3435 = vunpack.c.0.s8 %v3434
        %v3436 = vlaneseq
        %v3437 = vshrl.u32 %v3436, 7
        %v3438 = vsub.s32 %v3435, %v3437
        %v3439 = vrot.slane %v3411, %v3438
        %v3440 = vcombine.high %v3418, %v3418
        %v3441 = vcombine.high %v3425, %v3425
        %v3442 = vcombine.high %v3432, %v3432
        %v3443 = vcombine.high %v3439, %v3439
        %v3444 = vcombine.high %v685, %v685
        %v3446 = vunpack.c.l.s4 1966171168
        %v3447 = vunpack.c.0.s8 %v3446
        %v3448 = vlaneseq
        %v3449 = vshrl.u32 %v3448, 7
        %v3450 = vsub.s32 %v3447, %v3449
        %v3451 = vrot.slane %v685, %v3450
        %v3453 = vunpack.c.l.s4 1966171168
        %v3454 = vunpack.c.0.s8 %v3453
        %v3455 = vlaneseq
        %v3456 = vshrl.u32 %v3455, 7
        %v3457 = vsub.s32 %v3454, %v3456
        %v3458 = vrot.slane %v3444, %v3457
        %v3459 = vcombine.high %v3451, %v3451
        %v3460 = vcombine.high %v3458, %v3458
        %v3462 = vunpack.c.l.s4 1966171168
        %v3463 = vunpack.c.0.s8 %v3462
        %v3464 = vlaneseq
        %v3465 = vshrl.u32 %v3464, 7
        %v3466 = vsub.s32 %v3463, %v3465
        %v3467 = vrot.slane %v3451, %v3466
        %v3469 = vunpack.c.l.s4 1966171168
        %v3470 = vunpack.c.0.s8 %v3469
        %v3471 = vlaneseq
        %v3472 = vshrl.u32 %v3471, 7
        %v3473 = vsub.s32 %v3470, %v3472
        %v3474 = vrot.slane %v3458, %v3473
        %v3476 = vunpack.c.l.s4 1966171168
        %v3477 = vunpack.c.0.s8 %v3476
        %v3478 = vlaneseq
        %v3479 = vshrl.u32 %v3478, 7
        %v3480 = vsub.s32 %v3477, %v3479
        %v3481 = vrot.slane %v3459, %v3480
        %v3483 = vunpack.c.l.s4 1966171168
        %v3484 = vunpack.c.0.s8 %v3483
        %v3485 = vlaneseq
        %v3486 = vshrl.u32 %v3485, 7
        %v3487 = vsub.s32 %v3484, %v3486
        %v3488 = vrot.slane %v3460, %v3487
        %v3489 = vcombine.high %v3467, %v3467
        %v3490 = vcombine.high %v3474, %v3474
        %v3491 = vcombine.high %v3481, %v3481
        %v3492 = vcombine.high %v3488, %v3488
        %v3493 = vcombine.high %v690, %v690
        %v3495 = vunpack.c.l.s4 1966171168
        %v3496 = vunpack.c.0.s8 %v3495
        %v3497 = vlaneseq
        %v3498 = vshrl.u32 %v3497, 7
        %v3499 = vsub.s32 %v3496, %v3498
        %v3500 = vrot.slane %v690, %v3499
        %v3502 = vunpack.c.l.s4 1966171168
        %v3503 = vunpack.c.0.s8 %v3502
        %v3504 = vlaneseq
        %v3505 = vshrl.u32 %v3504, 7
        %v3506 = vsub.s32 %v3503, %v3505
        %v3507 = vrot.slane %v3493, %v3506
        %v3508 = vcombine.high %v3500, %v3500
        %v3509 = vcombine.high %v3507, %v3507
        %v3511 = vunpack.c.l.s4 1966171168
        %v3512 = vunpack.c.0.s8 %v3511
        %v3513 = vlaneseq
        %v3514 = vshrl.u32 %v3513, 7
        %v3515 = vsub.s32 %v3512, %v3514
        %v3516 = vrot.slane %v3500, %v3515
        %v3518 = vunpack.c.l.s4 1966171168
        %v3519 = vunpack.c.0.s8 %v3518
        %v3520 = vlaneseq
        %v3521 = vshrl.u32 %v3520, 7
        %v3522 = vsub.s32 %v3519, %v3521
        %v3523 = vrot.slane %v3507, %v3522
        %v3525 = vunpack.c.l.s4 1966171168
        %v3526 = vunpack.c.0.s8 %v3525
        %v3527 = vlaneseq
        %v3528 = vshrl.u32 %v3527, 7
        %v3529 = vsub.s32 %v3526, %v3528
        %v3530 = vrot.slane %v3508, %v3529
        %v3532 = vunpack.c.l.s4 1966171168
        %v3533 = vunpack.c.0.s8 %v3532
        %v3534 = vlaneseq
        %v3535 = vshrl.u32 %v3534, 7
        %v3536 = vsub.s32 %v3533, %v3535
        %v3537 = vrot.slane %v3509, %v3536
        %v3538 = vcombine.high %v3516, %v3516
        %v3539 = vcombine.high %v3523, %v3523
        %v3540 = vcombine.high %v3530, %v3530
        %v3541 = vcombine.high %v3537, %v3537
        %v3542 = vcombine.high %v695, %v695
        %v3544 = vunpack.c.l.s4 1966171168
        %v3545 = vunpack.c.0.s8 %v3544
        %v3546 = vlaneseq
        %v3547 = vshrl.u32 %v3546, 7
        %v3548 = vsub.s32 %v3545, %v3547
        %v3549 = vrot.slane %v695, %v3548
        %v3551 = vunpack.c.l.s4 1966171168
        %v3552 = vunpack.c.0.s8 %v3551
        %v3553 = vlaneseq
        %v3554 = vshrl.u32 %v3553, 7
        %v3555 = vsub.s32 %v3552, %v3554
        %v3556 = vrot.slane %v3542, %v3555
        %v3557 = vcombine.high %v3549, %v3549
        %v3558 = vcombine.high %v3556, %v3556
        %v3560 = vunpack.c.l.s4 1966171168
        %v3561 = vunpack.c.0.s8 %v3560
        %v3562 = vlaneseq
        %v3563 = vshrl.u32 %v3562, 7
        %v3564 = vsub.s32 %v3561, %v3563
        %v3565 = vrot.slane %v3549, %v3564
        %v3567 = vunpack.c.l.s4 1966171168
        %v3568 = vunpack.c.0.s8 %v3567
        %v3569 = vlaneseq
        %v3570 = vshrl.u32 %v3569, 7
        %v3571 = vsub.s32 %v3568, %v3570
        %v3572 = vrot.slane %v3556, %v3571
        %v3574 = vunpack.c.l.s4 1966171168
        %v3575 = vunpack.c.0.s8 %v3574
        %v3576 = vlaneseq
        %v3577 = vshrl.u32 %v3576, 7
        %v3578 = vsub.s32 %v3575, %v3577
        %v3579 = vrot.slane %v3557, %v3578
        %v3581 = vunpack.c.l.s4 1966171168
        %v3582 = vunpack.c.0.s8 %v3581
        %v3583 = vlaneseq
        %v3584 = vshrl.u32 %v3583, 7
        %v3585 = vsub.s32 %v3582, %v3584
        %v3586 = vrot.slane %v3558, %v3585
        %v3587 = vcombine.high %v3565, %v3565
        %v3588 = vcombine.high %v3572, %v3572
        %v3589 = vcombine.high %v3579, %v3579
        %v3590 = vcombine.high %v3586, %v3586
        %v3591 = vcombine.high %v700, %v700
        %v3593 = vunpack.c.l.s4 1966171168
        %v3594 = vunpack.c.0.s8 %v3593
        %v3595 = vlaneseq
        %v3596 = vshrl.u32 %v3595, 7
        %v3597 = vsub.s32 %v3594, %v3596
        %v3598 = vrot.slane %v700, %v3597
        %v3600 = vunpack.c.l.s4 1966171168
        %v3601 = vunpack.c.0.s8 %v3600
        %v3602 = vlaneseq
        %v3603 = vshrl.u32 %v3602, 7
        %v3604 = vsub.s32 %v3601, %v3603
        %v3605 = vrot.slane %v3591, %v3604
        %v3606 = vcombine.high %v3598, %v3598
        %v3607 = vcombine.high %v3605, %v3605
        %v3609 = vunpack.c.l.s4 1966171168
        %v3610 = vunpack.c.0.s8 %v3609
        %v3611 = vlaneseq
        %v3612 = vshrl.u32 %v3611, 7
        %v3613 = vsub.s32 %v3610, %v3612
        %v3614 = vrot.slane %v3598, %v3613
        %v3616 = vunpack.c.l.s4 1966171168
        %v3617 = vunpack.c.0.s8 %v3616
        %v3618 = vlaneseq
        %v3619 = vshrl.u32 %v3618, 7
        %v3620 = vsub.s32 %v3617, %v3619
        %v3621 = vrot.slane %v3605, %v3620
        %v3623 = vunpack.c.l.s4 1966171168
        %v3624 = vunpack.c.0.s8 %v3623
        %v3625 = vlaneseq
        %v3626 = vshrl.u32 %v3625, 7
        %v3627 = vsub.s32 %v3624, %v3626
        %v3628 = vrot.slane %v3606, %v3627
        %v3630 = vunpack.c.l.s4 1966171168
        %v3631 = vunpack.c.0.s8 %v3630
        %v3632 = vlaneseq
        %v3633 = vshrl.u32 %v3632, 7
        %v3634 = vsub.s32 %v3631, %v3633
        %v3635 = vrot.slane %v3607, %v3634
        %v3636 = vcombine.high %v3614, %v3614
        %v3637 = vcombine.high %v3621, %v3621
        %v3638 = vcombine.high %v3628, %v3628
        %v3639 = vcombine.high %v3635, %v3635
        %v3640 = vcombine.high %v705, %v705
        %v3642 = vunpack.c.l.s4 1966171168
        %v3643 = vunpack.c.0.s8 %v3642
        %v3644 = vlaneseq
        %v3645 = vshrl.u32 %v3644, 7
        %v3646 = vsub.s32 %v3643, %v3645
        %v3647 = vrot.slane %v705, %v3646
        %v3649 = vunpack.c.l.s4 1966171168
        %v3650 = vunpack.c.0.s8 %v3649
        %v3651 = vlaneseq
        %v3652 = vshrl.u32 %v3651, 7
        %v3653 = vsub.s32 %v3650, %v3652
        %v3654 = vrot.slane %v3640, %v3653
        %v3655 = vcombine.high %v3647, %v3647
        %v3656 = vcombine.high %v3654, %v3654
        %v3658 = vunpack.c.l.s4 1966171168
        %v3659 = vunpack.c.0.s8 %v3658
        %v3660 = vlaneseq
        %v3661 = vshrl.u32 %v3660, 7
        %v3662 = vsub.s32 %v3659, %v3661
        %v3663 = vrot.slane %v3647, %v3662
        %v3665 = vunpack.c.l.s4 1966171168
        %v3666 = vunpack.c.0.s8 %v3665
        %v3667 = vlaneseq
        %v3668 = vshrl.u32 %v3667, 7
        %v3669 = vsub.s32 %v3666, %v3668
        %v3670 = vrot.slane %v3654, %v3669
        %v3672 = vunpack.c.l.s4 1966171168
        %v3673 = vunpack.c.0.s8 %v3672
        %v3674 = vlaneseq
        %v3675 = vshrl.u32 %v3674, 7
        %v3676 = vsub.s32 %v3673, %v3675
        %v3677 = vrot.slane %v3655, %v3676
        %v3679 = vunpack.c.l.s4 1966171168
        %v3680 = vunpack.c.0.s8 %v3679
        %v3681 = vlaneseq
        %v3682 = vshrl.u32 %v3681, 7
        %v3683 = vsub.s32 %v3680, %v3682
        %v3684 = vrot.slane %v3656, %v3683
        %v3685 = vcombine.high %v3663, %v3663
        %v3686 = vcombine.high %v3670, %v3670
        %v3687 = vcombine.high %v3677, %v3677
        %v3688 = vcombine.high %v3684, %v3684
        %v3689 = vcombine.high %v710, %v710
        %v3691 = vunpack.c.l.s4 1966171168
        %v3692 = vunpack.c.0.s8 %v3691
        %v3693 = vlaneseq
        %v3694 = vshrl.u32 %v3693, 7
        %v3695 = vsub.s32 %v3692, %v3694
        %v3696 = vrot.slane %v710, %v3695
        %v3698 = vunpack.c.l.s4 1966171168
        %v3699 = vunpack.c.0.s8 %v3698
        %v3700 = vlaneseq
        %v3701 = vshrl.u32 %v3700, 7
        %v3702 = vsub.s32 %v3699, %v3701
        %v3703 = vrot.slane %v3689, %v3702
        %v3704 = vcombine.high %v3696, %v3696
        %v3705 = vcombine.high %v3703, %v3703
        %v3707 = vunpack.c.l.s4 1966171168
        %v3708 = vunpack.c.0.s8 %v3707
        %v3709 = vlaneseq
        %v3710 = vshrl.u32 %v3709, 7
        %v3711 = vsub.s32 %v3708, %v3710
        %v3712 = vrot.slane %v3696, %v3711
        %v3714 = vunpack.c.l.s4 1966171168
        %v3715 = vunpack.c.0.s8 %v3714
        %v3716 = vlaneseq
        %v3717 = vshrl.u32 %v3716, 7
        %v3718 = vsub.s32 %v3715, %v3717
        %v3719 = vrot.slane %v3703, %v3718
        %v3721 = vunpack.c.l.s4 1966171168
        %v3722 = vunpack.c.0.s8 %v3721
        %v3723 = vlaneseq
        %v3724 = vshrl.u32 %v3723, 7
        %v3725 = vsub.s32 %v3722, %v3724
        %v3726 = vrot.slane %v3704, %v3725
        %v3728 = vunpack.c.l.s4 1966171168
        %v3729 = vunpack.c.0.s8 %v3728
        %v3730 = vlaneseq
        %v3731 = vshrl.u32 %v3730, 7
        %v3732 = vsub.s32 %v3729, %v3731
        %v3733 = vrot.slane %v3705, %v3732
        %v3734 = vcombine.high %v3712, %v3712
        %v3735 = vcombine.high %v3719, %v3719
        %v3736 = vcombine.high %v3726, %v3726
        %v3737 = vcombine.high %v3733, %v3733
        %v3738 = vld [vmem:[%s4] sm:$0xff]
        %v3739 = vld [vmem:[%s4 + $0x8] sm:$0xff]
        %v3740 = vld [vmem:[%s4 + $0x10] sm:$0xff]
        %v3741 = vld [vmem:[%s4 + $0x18] sm:$0xff]
        %v3742 = vld [vmem:[%s4 + $0x20] sm:$0xff]
        %v3743 = vld [vmem:[%s4 + $0x28] sm:$0xff]
        %v3744 = vld [vmem:[%s4 + $0x30] sm:$0xff]
        %v3745 = vld [vmem:[%s4 + $0x38] sm:$0xff]
        %v3746 = vld [vmem:[%s4 + $0x40] sm:$0xff]
        %v3747 = vld [vmem:[%s4 + $0x48] sm:$0xff]
        %v3748 = vld [vmem:[%s4 + $0x50] sm:$0xff]
        %v3749 = vld [vmem:[%s4 + $0x58] sm:$0xff]
        %v3750 = vld [vmem:[%s4 + $0x60] sm:$0xff]
        %v3751 = vld [vmem:[%s4 + $0x68] sm:$0xff]
        %v3752 = vld [vmem:[%s4 + $0x70] sm:$0xff]
        %v3753 = vld [vmem:[%s4 + $0x78] sm:$0xff]
        %v3754 = vld [vmem:[%s4 + $0x80] sm:$0xff]
        %v3755 = vld [vmem:[%s4 + $0x88] sm:$0xff]
        %v3756 = vld [vmem:[%s4 + $0x90] sm:$0xff]
        %v3757 = vld [vmem:[%s4 + $0x98] sm:$0xff]
        %v3758 = vld [vmem:[%s4 + $0xa0] sm:$0xff]
        %v3759 = vld [vmem:[%s4 + $0xa8] sm:$0xff]
        %v3760 = vld [vmem:[%s4 + $0xb0] sm:$0xff]
        %v3761 = vld [vmem:[%s4 + $0xb8] sm:$0xff]
        %v3762 = vld [vmem:[%s4 + $0xc0] sm:$0xff]
        %v3763 = vld [vmem:[%s4 + $0xc8] sm:$0xff]
        %v3764 = vld [vmem:[%s4 + $0xd0] sm:$0xff]
        %v3765 = vld [vmem:[%s4 + $0xd8] sm:$0xff]
        %v3766 = vld [vmem:[%s4 + $0xe0] sm:$0xff]
        %v3767 = vld [vmem:[%s4 + $0xe8] sm:$0xff]
        %v3768 = vld [vmem:[%s4 + $0xf0] sm:$0xff]
        %v3769 = vld [vmem:[%s4 + $0xf8] sm:$0xff]
        %v3770 = vlaneseq
        %v3771 = vshrl.u32 %v3770, 7
        %v3772 = vsub.s32 0, %v3771
        %v3773 = vrot.slane %v2193, %v3772
        %v3774 = vlaneseq
        %v3775 = vshrl.u32 %v3774, 7
        %v3776 = vsub.s32 0, %v3775
        %v3777 = vrot.slane %v2207, %v3776
        %v3778 = vlaneseq
        %v3779 = vshrl.u32 %v3778, 7
        %v3780 = vsub.s32 0, %v3779
        %v3781 = vrot.slane %v2215, %v3780
        %v3782 = vlaneseq
        %v3783 = vshrl.u32 %v3782, 7
        %v3784 = vsub.s32 0, %v3783
        %v3785 = vrot.slane %v2217, %v3784
        %v3786 = vlaneseq
        %v3787 = vshrl.u32 %v3786, 7
        %v3788 = vsub.s32 0, %v3787
        %v3789 = vrot.slane %v2200, %v3788
        %v3790 = vlaneseq
        %v3791 = vshrl.u32 %v3790, 7
        %v3792 = vsub.s32 0, %v3791
        %v3793 = vrot.slane %v2214, %v3792
        %v3794 = vlaneseq
        %v3795 = vshrl.u32 %v3794, 7
        %v3796 = vsub.s32 0, %v3795
        %v3797 = vrot.slane %v2216, %v3796
        %v3798 = vlaneseq
        %v3799 = vshrl.u32 %v3798, 7
        %v3800 = vsub.s32 0, %v3799
        %v3801 = vrot.slane %v2218, %v3800
        %v3802 = vlaneseq
        %v3803 = vshrl.u32 %v3802, 7
        %v3804 = vsub.s32 0, %v3803
        %v3805 = vrot.slane %v2242, %v3804
        %v3806 = vlaneseq
        %v3807 = vshrl.u32 %v3806, 7
        %v3808 = vsub.s32 0, %v3807
        %v3809 = vrot.slane %v2256, %v3808
        %v3810 = vlaneseq
        %v3811 = vshrl.u32 %v3810, 7
        %v3812 = vsub.s32 0, %v3811
        %v3813 = vrot.slane %v2264, %v3812
        %v3814 = vlaneseq
        %v3815 = vshrl.u32 %v3814, 7
        %v3816 = vsub.s32 0, %v3815
        %v3817 = vrot.slane %v2266, %v3816
        %v3818 = vlaneseq
        %v3819 = vshrl.u32 %v3818, 7
        %v3820 = vsub.s32 0, %v3819
        %v3821 = vrot.slane %v2249, %v3820
        %v3822 = vlaneseq
        %v3823 = vshrl.u32 %v3822, 7
        %v3824 = vsub.s32 0, %v3823
        %v3825 = vrot.slane %v2263, %v3824
        %v3826 = vlaneseq
        %v3827 = vshrl.u32 %v3826, 7
        %v3828 = vsub.s32 0, %v3827
        %v3829 = vrot.slane %v2265, %v3828
        %v3830 = vlaneseq
        %v3831 = vshrl.u32 %v3830, 7
        %v3832 = vsub.s32 0, %v3831
        %v3833 = vrot.slane %v2267, %v3832
        %v3834 = vlaneseq
        %v3835 = vshrl.u32 %v3834, 7
        %v3836 = vsub.s32 0, %v3835
        %v3837 = vrot.slane %v2291, %v3836
        %v3838 = vlaneseq
        %v3839 = vshrl.u32 %v3838, 7
        %v3840 = vsub.s32 0, %v3839
        %v3841 = vrot.slane %v2305, %v3840
        %v3842 = vlaneseq
        %v3843 = vshrl.u32 %v3842, 7
        %v3844 = vsub.s32 0, %v3843
        %v3845 = vrot.slane %v2313, %v3844
        %v3846 = vlaneseq
        %v3847 = vshrl.u32 %v3846, 7
        %v3848 = vsub.s32 0, %v3847
        %v3849 = vrot.slane %v2315, %v3848
        %v3850 = vlaneseq
        %v3851 = vshrl.u32 %v3850, 7
        %v3852 = vsub.s32 0, %v3851
        %v3853 = vrot.slane %v2298, %v3852
        %v3854 = vlaneseq
        %v3855 = vshrl.u32 %v3854, 7
        %v3856 = vsub.s32 0, %v3855
        %v3857 = vrot.slane %v2312, %v3856
        %v3858 = vlaneseq
        %v3859 = vshrl.u32 %v3858, 7
        %v3860 = vsub.s32 0, %v3859
        %v3861 = vrot.slane %v2314, %v3860
        %v3862 = vlaneseq
        %v3863 = vshrl.u32 %v3862, 7
        %v3864 = vsub.s32 0, %v3863
        %v3865 = vrot.slane %v2316, %v3864
        %v3866 = vlaneseq
        %v3867 = vshrl.u32 %v3866, 7
        %v3868 = vsub.s32 0, %v3867
        %v3869 = vrot.slane %v2340, %v3868
        %v3870 = vlaneseq
        %v3871 = vshrl.u32 %v3870, 7
        %v3872 = vsub.s32 0, %v3871
        %v3873 = vrot.slane %v2354, %v3872
        %v3874 = vlaneseq
        %v3875 = vshrl.u32 %v3874, 7
        %v3876 = vsub.s32 0, %v3875
        %v3877 = vrot.slane %v2362, %v3876
        %v3878 = vlaneseq
        %v3879 = vshrl.u32 %v3878, 7
        %v3880 = vsub.s32 0, %v3879
        %v3881 = vrot.slane %v2364, %v3880
        %v3882 = vlaneseq
        %v3883 = vshrl.u32 %v3882, 7
        %v3884 = vsub.s32 0, %v3883
        %v3885 = vrot.slane %v2347, %v3884
        %v3886 = vlaneseq
        %v3887 = vshrl.u32 %v3886, 7
        %v3888 = vsub.s32 0, %v3887
        %v3889 = vrot.slane %v2361, %v3888
        %v3890 = vlaneseq
        %v3891 = vshrl.u32 %v3890, 7
        %v3892 = vsub.s32 0, %v3891
        %v3893 = vrot.slane %v2363, %v3892
        %v3894 = vlaneseq
        %v3895 = vshrl.u32 %v3894, 7
        %v3896 = vsub.s32 0, %v3895
        %v3897 = vrot.slane %v2365, %v3896
        %v3898 = vlaneseq
        %v3899 = vshrl.u32 %v3898, 7
        %v3900 = vsub.s32 0, %v3899
        %v3901 = vrot.slane %v2389, %v3900
        %v3902 = vlaneseq
        %v3903 = vshrl.u32 %v3902, 7
        %v3904 = vsub.s32 0, %v3903
        %v3905 = vrot.slane %v2403, %v3904
        %v3906 = vlaneseq
        %v3907 = vshrl.u32 %v3906, 7
        %v3908 = vsub.s32 0, %v3907
        %v3909 = vrot.slane %v2411, %v3908
        %v3910 = vlaneseq
        %v3911 = vshrl.u32 %v3910, 7
        %v3912 = vsub.s32 0, %v3911
        %v3913 = vrot.slane %v2413, %v3912
        %v3914 = vlaneseq
        %v3915 = vshrl.u32 %v3914, 7
        %v3916 = vsub.s32 0, %v3915
        %v3917 = vrot.slane %v2396, %v3916
        %v3918 = vlaneseq
        %v3919 = vshrl.u32 %v3918, 7
        %v3920 = vsub.s32 0, %v3919
        %v3921 = vrot.slane %v2410, %v3920
        %v3922 = vlaneseq
        %v3923 = vshrl.u32 %v3922, 7
        %v3924 = vsub.s32 0, %v3923
        %v3925 = vrot.slane %v2412, %v3924
        %v3926 = vlaneseq
        %v3927 = vshrl.u32 %v3926, 7
        %v3928 = vsub.s32 0, %v3927
        %v3929 = vrot.slane %v2414, %v3928
        %v3930 = vlaneseq
        %v3931 = vshrl.u32 %v3930, 7
        %v3932 = vsub.s32 0, %v3931
        %v3933 = vrot.slane %v2438, %v3932
        %v3934 = vlaneseq
        %v3935 = vshrl.u32 %v3934, 7
        %v3936 = vsub.s32 0, %v3935
        %v3937 = vrot.slane %v2452, %v3936
        %v3938 = vlaneseq
        %v3939 = vshrl.u32 %v3938, 7
        %v3940 = vsub.s32 0, %v3939
        %v3941 = vrot.slane %v2460, %v3940
        %v3942 = vlaneseq
        %v3943 = vshrl.u32 %v3942, 7
        %v3944 = vsub.s32 0, %v3943
        %v3945 = vrot.slane %v2462, %v3944
        %v3946 = vlaneseq
        %v3947 = vshrl.u32 %v3946, 7
        %v3948 = vsub.s32 0, %v3947
        %v3949 = vrot.slane %v2445, %v3948
        %v3950 = vlaneseq
        %v3951 = vshrl.u32 %v3950, 7
        %v3952 = vsub.s32 0, %v3951
        %v3953 = vrot.slane %v2459, %v3952
        %v3954 = vlaneseq
        %v3955 = vshrl.u32 %v3954, 7
        %v3956 = vsub.s32 0, %v3955
        %v3957 = vrot.slane %v2461, %v3956
        %v3958 = vlaneseq
        %v3959 = vshrl.u32 %v3958, 7
        %v3960 = vsub.s32 0, %v3959
        %v3961 = vrot.slane %v2463, %v3960
        %v3962 = vlaneseq
        %v3963 = vshrl.u32 %v3962, 7
        %v3964 = vsub.s32 0, %v3963
        %v3965 = vrot.slane %v2487, %v3964
        %v3966 = vlaneseq
        %v3967 = vshrl.u32 %v3966, 7
        %v3968 = vsub.s32 0, %v3967
        %v3969 = vrot.slane %v2501, %v3968
        %v3970 = vlaneseq
        %v3971 = vshrl.u32 %v3970, 7
        %v3972 = vsub.s32 0, %v3971
        %v3973 = vrot.slane %v2509, %v3972
        %v3974 = vlaneseq
        %v3975 = vshrl.u32 %v3974, 7
        %v3976 = vsub.s32 0, %v3975
        %v3977 = vrot.slane %v2511, %v3976
        %v3978 = vlaneseq
        %v3979 = vshrl.u32 %v3978, 7
        %v3980 = vsub.s32 0, %v3979
        %v3981 = vrot.slane %v2494, %v3980
        %v3982 = vlaneseq
        %v3983 = vshrl.u32 %v3982, 7
        %v3984 = vsub.s32 0, %v3983
        %v3985 = vrot.slane %v2508, %v3984
        %v3986 = vlaneseq
        %v3987 = vshrl.u32 %v3986, 7
        %v3988 = vsub.s32 0, %v3987
        %v3989 = vrot.slane %v2510, %v3988
        %v3990 = vlaneseq
        %v3991 = vshrl.u32 %v3990, 7
        %v3992 = vsub.s32 0, %v3991
        %v3993 = vrot.slane %v2512, %v3992
        %v3994 = vlaneseq
        %v3995 = vshrl.u32 %v3994, 7
        %v3996 = vsub.s32 0, %v3995
        %v3997 = vrot.slane %v2536, %v3996
        %v3998 = vlaneseq
        %v3999 = vshrl.u32 %v3998, 7
        %v4000 = vsub.s32 0, %v3999
        %v4001 = vrot.slane %v2550, %v4000
        %v4002 = vlaneseq
        %v4003 = vshrl.u32 %v4002, 7
        %v4004 = vsub.s32 0, %v4003
        %v4005 = vrot.slane %v2558, %v4004
        %v4006 = vlaneseq
        %v4007 = vshrl.u32 %v4006, 7
        %v4008 = vsub.s32 0, %v4007
        %v4009 = vrot.slane %v2560, %v4008
        %v4010 = vlaneseq
        %v4011 = vshrl.u32 %v4010, 7
        %v4012 = vsub.s32 0, %v4011
        %v4013 = vrot.slane %v2543, %v4012
        %v4014 = vlaneseq
        %v4015 = vshrl.u32 %v4014, 7
        %v4016 = vsub.s32 0, %v4015
        %v4017 = vrot.slane %v2557, %v4016
        %v4018 = vlaneseq
        %v4019 = vshrl.u32 %v4018, 7
        %v4020 = vsub.s32 0, %v4019
        %v4021 = vrot.slane %v2559, %v4020
        %v4022 = vlaneseq
        %v4023 = vshrl.u32 %v4022, 7
        %v4024 = vsub.s32 0, %v4023
        %v4025 = vrot.slane %v2561, %v4024
        %v4026 = vlaneseq
        %v4027 = vshrl.u32 %v4026, 7
        %v4028 = vsub.s32 0, %v4027
        %v4029 = vrot.slane %v2585, %v4028
        %v4030 = vlaneseq
        %v4031 = vshrl.u32 %v4030, 7
        %v4032 = vsub.s32 0, %v4031
        %v4033 = vrot.slane %v2599, %v4032
        %v4034 = vlaneseq
        %v4035 = vshrl.u32 %v4034, 7
        %v4036 = vsub.s32 0, %v4035
        %v4037 = vrot.slane %v2607, %v4036
        %v4038 = vlaneseq
        %v4039 = vshrl.u32 %v4038, 7
        %v4040 = vsub.s32 0, %v4039
        %v4041 = vrot.slane %v2609, %v4040
        %v4042 = vlaneseq
        %v4043 = vshrl.u32 %v4042, 7
        %v4044 = vsub.s32 0, %v4043
        %v4045 = vrot.slane %v2592, %v4044
        %v4046 = vlaneseq
        %v4047 = vshrl.u32 %v4046, 7
        %v4048 = vsub.s32 0, %v4047
        %v4049 = vrot.slane %v2606, %v4048
        %v4050 = vlaneseq
        %v4051 = vshrl.u32 %v4050, 7
        %v4052 = vsub.s32 0, %v4051
        %v4053 = vrot.slane %v2608, %v4052
        %v4054 = vlaneseq
        %v4055 = vshrl.u32 %v4054, 7
        %v4056 = vsub.s32 0, %v4055
        %v4057 = vrot.slane %v2610, %v4056
        %v4058 = vlaneseq
        %v4059 = vshrl.u32 %v4058, 7
        %v4060 = vsub.s32 0, %v4059
        %v4061 = vrot.slane %v2634, %v4060
        %v4062 = vlaneseq
        %v4063 = vshrl.u32 %v4062, 7
        %v4064 = vsub.s32 0, %v4063
        %v4065 = vrot.slane %v2648, %v4064
        %v4066 = vlaneseq
        %v4067 = vshrl.u32 %v4066, 7
        %v4068 = vsub.s32 0, %v4067
        %v4069 = vrot.slane %v2656, %v4068
        %v4070 = vlaneseq
        %v4071 = vshrl.u32 %v4070, 7
        %v4072 = vsub.s32 0, %v4071
        %v4073 = vrot.slane %v2658, %v4072
        %v4074 = vlaneseq
        %v4075 = vshrl.u32 %v4074, 7
        %v4076 = vsub.s32 0, %v4075
        %v4077 = vrot.slane %v2641, %v4076
        %v4078 = vlaneseq
        %v4079 = vshrl.u32 %v4078, 7
        %v4080 = vsub.s32 0, %v4079
        %v4081 = vrot.slane %v2655, %v4080
        %v4082 = vlaneseq
        %v4083 = vshrl.u32 %v4082, 7
        %v4084 = vsub.s32 0, %v4083
        %v4085 = vrot.slane %v2657, %v4084
        %v4086 = vlaneseq
        %v4087 = vshrl.u32 %v4086, 7
        %v4088 = vsub.s32 0, %v4087
        %v4089 = vrot.slane %v2659, %v4088
        %v4090 = vlaneseq
        %v4091 = vshrl.u32 %v4090, 7
        %v4092 = vsub.s32 0, %v4091
        %v4093 = vrot.slane %v2683, %v4092
        %v4094 = vlaneseq
        %v4095 = vshrl.u32 %v4094, 7
        %v4096 = vsub.s32 0, %v4095
        %v4097 = vrot.slane %v2697, %v4096
        %v4098 = vlaneseq
        %v4099 = vshrl.u32 %v4098, 7
        %v4100 = vsub.s32 0, %v4099
        %v4101 = vrot.slane %v2705, %v4100
        %v4102 = vlaneseq
        %v4103 = vshrl.u32 %v4102, 7
        %v4104 = vsub.s32 0, %v4103
        %v4105 = vrot.slane %v2707, %v4104
        %v4106 = vlaneseq
        %v4107 = vshrl.u32 %v4106, 7
        %v4108 = vsub.s32 0, %v4107
        %v4109 = vrot.slane %v2690, %v4108
        %v4110 = vlaneseq
        %v4111 = vshrl.u32 %v4110, 7
        %v4112 = vsub.s32 0, %v4111
        %v4113 = vrot.slane %v2704, %v4112
        %v4114 = vlaneseq
        %v4115 = vshrl.u32 %v4114, 7
        %v4116 = vsub.s32 0, %v4115
        %v4117 = vrot.slane %v2706, %v4116
        %v4118 = vlaneseq
        %v4119 = vshrl.u32 %v4118, 7
        %v4120 = vsub.s32 0, %v4119
        %v4121 = vrot.slane %v2708, %v4120
        %v4122 = vlaneseq
        %v4123 = vshrl.u32 %v4122, 7
        %v4124 = vsub.s32 0, %v4123
        %v4125 = vrot.slane %v2732, %v4124
        %v4126 = vlaneseq
        %v4127 = vshrl.u32 %v4126, 7
        %v4128 = vsub.s32 0, %v4127
        %v4129 = vrot.slane %v2746, %v4128
        %v4130 = vlaneseq
        %v4131 = vshrl.u32 %v4130, 7
        %v4132 = vsub.s32 0, %v4131
        %v4133 = vrot.slane %v2754, %v4132
        %v4134 = vlaneseq
        %v4135 = vshrl.u32 %v4134, 7
        %v4136 = vsub.s32 0, %v4135
        %v4137 = vrot.slane %v2756, %v4136
        %v4138 = vlaneseq
        %v4139 = vshrl.u32 %v4138, 7
        %v4140 = vsub.s32 0, %v4139
        %v4141 = vrot.slane %v2739, %v4140
        %v4142 = vlaneseq
        %v4143 = vshrl.u32 %v4142, 7
        %v4144 = vsub.s32 0, %v4143
        %v4145 = vrot.slane %v2753, %v4144
        %v4146 = vlaneseq
        %v4147 = vshrl.u32 %v4146, 7
        %v4148 = vsub.s32 0, %v4147
        %v4149 = vrot.slane %v2755, %v4148
        %v4150 = vlaneseq
        %v4151 = vshrl.u32 %v4150, 7
        %v4152 = vsub.s32 0, %v4151
        %v4153 = vrot.slane %v2757, %v4152
        %v4154 = vlaneseq
        %v4155 = vshrl.u32 %v4154, 7
        %v4156 = vsub.s32 0, %v4155
        %v4157 = vrot.slane %v2781, %v4156
        %v4158 = vlaneseq
        %v4159 = vshrl.u32 %v4158, 7
        %v4160 = vsub.s32 0, %v4159
        %v4161 = vrot.slane %v2795, %v4160
        %v4162 = vlaneseq
        %v4163 = vshrl.u32 %v4162, 7
        %v4164 = vsub.s32 0, %v4163
        %v4165 = vrot.slane %v2803, %v4164
        %v4166 = vlaneseq
        %v4167 = vshrl.u32 %v4166, 7
        %v4168 = vsub.s32 0, %v4167
        %v4169 = vrot.slane %v2805, %v4168
        %v4170 = vlaneseq
        %v4171 = vshrl.u32 %v4170, 7
        %v4172 = vsub.s32 0, %v4171
        %v4173 = vrot.slane %v2788, %v4172
        %v4174 = vlaneseq
        %v4175 = vshrl.u32 %v4174, 7
        %v4176 = vsub.s32 0, %v4175
        %v4177 = vrot.slane %v2802, %v4176
        %v4178 = vlaneseq
        %v4179 = vshrl.u32 %v4178, 7
        %v4180 = vsub.s32 0, %v4179
        %v4181 = vrot.slane %v2804, %v4180
        %v4182 = vlaneseq
        %v4183 = vshrl.u32 %v4182, 7
        %v4184 = vsub.s32 0, %v4183
        %v4185 = vrot.slane %v2806, %v4184
        %v4186 = vlaneseq
        %v4187 = vshrl.u32 %v4186, 7
        %v4188 = vsub.s32 0, %v4187
        %v4189 = vrot.slane %v2830, %v4188
        %v4190 = vlaneseq
        %v4191 = vshrl.u32 %v4190, 7
        %v4192 = vsub.s32 0, %v4191
        %v4193 = vrot.slane %v2844, %v4192
        %v4194 = vlaneseq
        %v4195 = vshrl.u32 %v4194, 7
        %v4196 = vsub.s32 0, %v4195
        %v4197 = vrot.slane %v2852, %v4196
        %v4198 = vlaneseq
        %v4199 = vshrl.u32 %v4198, 7
        %v4200 = vsub.s32 0, %v4199
        %v4201 = vrot.slane %v2854, %v4200
        %v4202 = vlaneseq
        %v4203 = vshrl.u32 %v4202, 7
        %v4204 = vsub.s32 0, %v4203
        %v4205 = vrot.slane %v2837, %v4204
        %v4206 = vlaneseq
        %v4207 = vshrl.u32 %v4206, 7
        %v4208 = vsub.s32 0, %v4207
        %v4209 = vrot.slane %v2851, %v4208
        %v4210 = vlaneseq
        %v4211 = vshrl.u32 %v4210, 7
        %v4212 = vsub.s32 0, %v4211
        %v4213 = vrot.slane %v2853, %v4212
        %v4214 = vlaneseq
        %v4215 = vshrl.u32 %v4214, 7
        %v4216 = vsub.s32 0, %v4215
        %v4217 = vrot.slane %v2855, %v4216
        %v4218 = vlaneseq
        %v4219 = vshrl.u32 %v4218, 7
        %v4220 = vsub.s32 0, %v4219
        %v4221 = vrot.slane %v2879, %v4220
        %v4222 = vlaneseq
        %v4223 = vshrl.u32 %v4222, 7
        %v4224 = vsub.s32 0, %v4223
        %v4225 = vrot.slane %v2893, %v4224
        %v4226 = vlaneseq
        %v4227 = vshrl.u32 %v4226, 7
        %v4228 = vsub.s32 0, %v4227
        %v4229 = vrot.slane %v2901, %v4228
        %v4230 = vlaneseq
        %v4231 = vshrl.u32 %v4230, 7
        %v4232 = vsub.s32 0, %v4231
        %v4233 = vrot.slane %v2903, %v4232
        %v4234 = vlaneseq
        %v4235 = vshrl.u32 %v4234, 7
        %v4236 = vsub.s32 0, %v4235
        %v4237 = vrot.slane %v2886, %v4236
        %v4238 = vlaneseq
        %v4239 = vshrl.u32 %v4238, 7
        %v4240 = vsub.s32 0, %v4239
        %v4241 = vrot.slane %v2900, %v4240
        %v4242 = vlaneseq
        %v4243 = vshrl.u32 %v4242, 7
        %v4244 = vsub.s32 0, %v4243
        %v4245 = vrot.slane %v2902, %v4244
        %v4246 = vlaneseq
        %v4247 = vshrl.u32 %v4246, 7
        %v4248 = vsub.s32 0, %v4247
        %v4249 = vrot.slane %v2904, %v4248
        %v4250 = vlaneseq
        %v4251 = vshrl.u32 %v4250, 7
        %v4252 = vsub.s32 0, %v4251
        %v4253 = vrot.slane %v2928, %v4252
        %v4254 = vlaneseq
        %v4255 = vshrl.u32 %v4254, 7
        %v4256 = vsub.s32 0, %v4255
        %v4257 = vrot.slane %v2942, %v4256
        %v4258 = vlaneseq
        %v4259 = vshrl.u32 %v4258, 7
        %v4260 = vsub.s32 0, %v4259
        %v4261 = vrot.slane %v2950, %v4260
        %v4262 = vlaneseq
        %v4263 = vshrl.u32 %v4262, 7
        %v4264 = vsub.s32 0, %v4263
        %v4265 = vrot.slane %v2952, %v4264
        %v4266 = vlaneseq
        %v4267 = vshrl.u32 %v4266, 7
        %v4268 = vsub.s32 0, %v4267
        %v4269 = vrot.slane %v2935, %v4268
        %v4270 = vlaneseq
        %v4271 = vshrl.u32 %v4270, 7
        %v4272 = vsub.s32 0, %v4271
        %v4273 = vrot.slane %v2949, %v4272
        %v4274 = vlaneseq
        %v4275 = vshrl.u32 %v4274, 7
        %v4276 = vsub.s32 0, %v4275
        %v4277 = vrot.slane %v2951, %v4276
        %v4278 = vlaneseq
        %v4279 = vshrl.u32 %v4278, 7
        %v4280 = vsub.s32 0, %v4279
        %v4281 = vrot.slane %v2953, %v4280
        %v4282 = vlaneseq
        %v4283 = vshrl.u32 %v4282, 7
        %v4284 = vsub.s32 0, %v4283
        %v4285 = vrot.slane %v2977, %v4284
        %v4286 = vlaneseq
        %v4287 = vshrl.u32 %v4286, 7
        %v4288 = vsub.s32 0, %v4287
        %v4289 = vrot.slane %v2991, %v4288
        %v4290 = vlaneseq
        %v4291 = vshrl.u32 %v4290, 7
        %v4292 = vsub.s32 0, %v4291
        %v4293 = vrot.slane %v2999, %v4292
        %v4294 = vlaneseq
        %v4295 = vshrl.u32 %v4294, 7
        %v4296 = vsub.s32 0, %v4295
        %v4297 = vrot.slane %v3001, %v4296
        %v4298 = vlaneseq
        %v4299 = vshrl.u32 %v4298, 7
        %v4300 = vsub.s32 0, %v4299
        %v4301 = vrot.slane %v2984, %v4300
        %v4302 = vlaneseq
        %v4303 = vshrl.u32 %v4302, 7
        %v4304 = vsub.s32 0, %v4303
        %v4305 = vrot.slane %v2998, %v4304
        %v4306 = vlaneseq
        %v4307 = vshrl.u32 %v4306, 7
        %v4308 = vsub.s32 0, %v4307
        %v4309 = vrot.slane %v3000, %v4308
        %v4310 = vlaneseq
        %v4311 = vshrl.u32 %v4310, 7
        %v4312 = vsub.s32 0, %v4311
        %v4313 = vrot.slane %v3002, %v4312
        %v4314 = vlaneseq
        %v4315 = vshrl.u32 %v4314, 7
        %v4316 = vsub.s32 0, %v4315
        %v4317 = vrot.slane %v3026, %v4316
        %v4318 = vlaneseq
        %v4319 = vshrl.u32 %v4318, 7
        %v4320 = vsub.s32 0, %v4319
        %v4321 = vrot.slane %v3040, %v4320
        %v4322 = vlaneseq
        %v4323 = vshrl.u32 %v4322, 7
        %v4324 = vsub.s32 0, %v4323
        %v4325 = vrot.slane %v3048, %v4324
        %v4326 = vlaneseq
        %v4327 = vshrl.u32 %v4326, 7
        %v4328 = vsub.s32 0, %v4327
        %v4329 = vrot.slane %v3050, %v4328
        %v4330 = vlaneseq
        %v4331 = vshrl.u32 %v4330, 7
        %v4332 = vsub.s32 0, %v4331
        %v4333 = vrot.slane %v3033, %v4332
        %v4334 = vlaneseq
        %v4335 = vshrl.u32 %v4334, 7
        %v4336 = vsub.s32 0, %v4335
        %v4337 = vrot.slane %v3047, %v4336
        %v4338 = vlaneseq
        %v4339 = vshrl.u32 %v4338, 7
        %v4340 = vsub.s32 0, %v4339
        %v4341 = vrot.slane %v3049, %v4340
        %v4342 = vlaneseq
        %v4343 = vshrl.u32 %v4342, 7
        %v4344 = vsub.s32 0, %v4343
        %v4345 = vrot.slane %v3051, %v4344
        %v4346 = vlaneseq
        %v4347 = vshrl.u32 %v4346, 7
        %v4348 = vsub.s32 0, %v4347
        %v4349 = vrot.slane %v3075, %v4348
        %v4350 = vlaneseq
        %v4351 = vshrl.u32 %v4350, 7
        %v4352 = vsub.s32 0, %v4351
        %v4353 = vrot.slane %v3089, %v4352
        %v4354 = vlaneseq
        %v4355 = vshrl.u32 %v4354, 7
        %v4356 = vsub.s32 0, %v4355
        %v4357 = vrot.slane %v3097, %v4356
        %v4358 = vlaneseq
        %v4359 = vshrl.u32 %v4358, 7
        %v4360 = vsub.s32 0, %v4359
        %v4361 = vrot.slane %v3099, %v4360
        %v4362 = vlaneseq
        %v4363 = vshrl.u32 %v4362, 7
        %v4364 = vsub.s32 0, %v4363
        %v4365 = vrot.slane %v3082, %v4364
        %v4366 = vlaneseq
        %v4367 = vshrl.u32 %v4366, 7
        %v4368 = vsub.s32 0, %v4367
        %v4369 = vrot.slane %v3096, %v4368
        %v4370 = vlaneseq
        %v4371 = vshrl.u32 %v4370, 7
        %v4372 = vsub.s32 0, %v4371
        %v4373 = vrot.slane %v3098, %v4372
        %v4374 = vlaneseq
        %v4375 = vshrl.u32 %v4374, 7
        %v4376 = vsub.s32 0, %v4375
        %v4377 = vrot.slane %v3100, %v4376
        %v4378 = vlaneseq
        %v4379 = vshrl.u32 %v4378, 7
        %v4380 = vsub.s32 0, %v4379
        %v4381 = vrot.slane %v3124, %v4380
        %v4382 = vlaneseq
        %v4383 = vshrl.u32 %v4382, 7
        %v4384 = vsub.s32 0, %v4383
        %v4385 = vrot.slane %v3138, %v4384
        %v4386 = vlaneseq
        %v4387 = vshrl.u32 %v4386, 7
        %v4388 = vsub.s32 0, %v4387
        %v4389 = vrot.slane %v3146, %v4388
        %v4390 = vlaneseq
        %v4391 = vshrl.u32 %v4390, 7
        %v4392 = vsub.s32 0, %v4391
        %v4393 = vrot.slane %v3148, %v4392
        %v4394 = vlaneseq
        %v4395 = vshrl.u32 %v4394, 7
        %v4396 = vsub.s32 0, %v4395
        %v4397 = vrot.slane %v3131, %v4396
        %v4398 = vlaneseq
        %v4399 = vshrl.u32 %v4398, 7
        %v4400 = vsub.s32 0, %v4399
        %v4401 = vrot.slane %v3145, %v4400
        %v4402 = vlaneseq
        %v4403 = vshrl.u32 %v4402, 7
        %v4404 = vsub.s32 0, %v4403
        %v4405 = vrot.slane %v3147, %v4404
        %v4406 = vlaneseq
        %v4407 = vshrl.u32 %v4406, 7
        %v4408 = vsub.s32 0, %v4407
        %v4409 = vrot.slane %v3149, %v4408
        %v4410 = vlaneseq
        %v4411 = vshrl.u32 %v4410, 7
        %v4412 = vsub.s32 0, %v4411
        %v4413 = vrot.slane %v3173, %v4412
        %v4414 = vlaneseq
        %v4415 = vshrl.u32 %v4414, 7
        %v4416 = vsub.s32 0, %v4415
        %v4417 = vrot.slane %v3187, %v4416
        %v4418 = vlaneseq
        %v4419 = vshrl.u32 %v4418, 7
        %v4420 = vsub.s32 0, %v4419
        %v4421 = vrot.slane %v3195, %v4420
        %v4422 = vlaneseq
        %v4423 = vshrl.u32 %v4422, 7
        %v4424 = vsub.s32 0, %v4423
        %v4425 = vrot.slane %v3197, %v4424
        %v4426 = vlaneseq
        %v4427 = vshrl.u32 %v4426, 7
        %v4428 = vsub.s32 0, %v4427
        %v4429 = vrot.slane %v3180, %v4428
        %v4430 = vlaneseq
        %v4431 = vshrl.u32 %v4430, 7
        %v4432 = vsub.s32 0, %v4431
        %v4433 = vrot.slane %v3194, %v4432
        %v4434 = vlaneseq
        %v4435 = vshrl.u32 %v4434, 7
        %v4436 = vsub.s32 0, %v4435
        %v4437 = vrot.slane %v3196, %v4436
        %v4438 = vlaneseq
        %v4439 = vshrl.u32 %v4438, 7
        %v4440 = vsub.s32 0, %v4439
        %v4441 = vrot.slane %v3198, %v4440
        %v4442 = vlaneseq
        %v4443 = vshrl.u32 %v4442, 7
        %v4444 = vsub.s32 0, %v4443
        %v4445 = vrot.slane %v3222, %v4444
        %v4446 = vlaneseq
        %v4447 = vshrl.u32 %v4446, 7
        %v4448 = vsub.s32 0, %v4447
        %v4449 = vrot.slane %v3236, %v4448
        %v4450 = vlaneseq
        %v4451 = vshrl.u32 %v4450, 7
        %v4452 = vsub.s32 0, %v4451
        %v4453 = vrot.slane %v3244, %v4452
        %v4454 = vlaneseq
        %v4455 = vshrl.u32 %v4454, 7
        %v4456 = vsub.s32 0, %v4455
        %v4457 = vrot.slane %v3246, %v4456
        %v4458 = vlaneseq
        %v4459 = vshrl.u32 %v4458, 7
        %v4460 = vsub.s32 0, %v4459
        %v4461 = vrot.slane %v3229, %v4460
        %v4462 = vlaneseq
        %v4463 = vshrl.u32 %v4462, 7
        %v4464 = vsub.s32 0, %v4463
        %v4465 = vrot.slane %v3243, %v4464
        %v4466 = vlaneseq
        %v4467 = vshrl.u32 %v4466, 7
        %v4468 = vsub.s32 0, %v4467
        %v4469 = vrot.slane %v3245, %v4468
        %v4470 = vlaneseq
        %v4471 = vshrl.u32 %v4470, 7
        %v4472 = vsub.s32 0, %v4471
        %v4473 = vrot.slane %v3247, %v4472
        %v4474 = vlaneseq
        %v4475 = vshrl.u32 %v4474, 7
        %v4476 = vsub.s32 0, %v4475
        %v4477 = vrot.slane %v3271, %v4476
        %v4478 = vlaneseq
        %v4479 = vshrl.u32 %v4478, 7
        %v4480 = vsub.s32 0, %v4479
        %v4481 = vrot.slane %v3285, %v4480
        %v4482 = vlaneseq
        %v4483 = vshrl.u32 %v4482, 7
        %v4484 = vsub.s32 0, %v4483
        %v4485 = vrot.slane %v3293, %v4484
        %v4486 = vlaneseq
        %v4487 = vshrl.u32 %v4486, 7
        %v4488 = vsub.s32 0, %v4487
        %v4489 = vrot.slane %v3295, %v4488
        %v4490 = vlaneseq
        %v4491 = vshrl.u32 %v4490, 7
        %v4492 = vsub.s32 0, %v4491
        %v4493 = vrot.slane %v3278, %v4492
        %v4494 = vlaneseq
        %v4495 = vshrl.u32 %v4494, 7
        %v4496 = vsub.s32 0, %v4495
        %v4497 = vrot.slane %v3292, %v4496
        %v4498 = vlaneseq
        %v4499 = vshrl.u32 %v4498, 7
        %v4500 = vsub.s32 0, %v4499
        %v4501 = vrot.slane %v3294, %v4500
        %v4502 = vlaneseq
        %v4503 = vshrl.u32 %v4502, 7
        %v4504 = vsub.s32 0, %v4503
        %v4505 = vrot.slane %v3296, %v4504
        %v4506 = vlaneseq
        %v4507 = vshrl.u32 %v4506, 7
        %v4508 = vsub.s32 0, %v4507
        %v4509 = vrot.slane %v3320, %v4508
        %v4510 = vlaneseq
        %v4511 = vshrl.u32 %v4510, 7
        %v4512 = vsub.s32 0, %v4511
        %v4513 = vrot.slane %v3334, %v4512
        %v4514 = vlaneseq
        %v4515 = vshrl.u32 %v4514, 7
        %v4516 = vsub.s32 0, %v4515
        %v4517 = vrot.slane %v3342, %v4516
        %v4518 = vlaneseq
        %v4519 = vshrl.u32 %v4518, 7
        %v4520 = vsub.s32 0, %v4519
        %v4521 = vrot.slane %v3344, %v4520
        %v4522 = vlaneseq
        %v4523 = vshrl.u32 %v4522, 7
        %v4524 = vsub.s32 0, %v4523
        %v4525 = vrot.slane %v3327, %v4524
        %v4526 = vlaneseq
        %v4527 = vshrl.u32 %v4526, 7
        %v4528 = vsub.s32 0, %v4527
        %v4529 = vrot.slane %v3341, %v4528
        %v4530 = vlaneseq
        %v4531 = vshrl.u32 %v4530, 7
        %v4532 = vsub.s32 0, %v4531
        %v4533 = vrot.slane %v3343, %v4532
        %v4534 = vlaneseq
        %v4535 = vshrl.u32 %v4534, 7
        %v4536 = vsub.s32 0, %v4535
        %v4537 = vrot.slane %v3345, %v4536
        %v4538 = vlaneseq
        %v4539 = vshrl.u32 %v4538, 7
        %v4540 = vsub.s32 0, %v4539
        %v4541 = vrot.slane %v3369, %v4540
        %v4542 = vlaneseq
        %v4543 = vshrl.u32 %v4542, 7
        %v4544 = vsub.s32 0, %v4543
        %v4545 = vrot.slane %v3383, %v4544
        %v4546 = vlaneseq
        %v4547 = vshrl.u32 %v4546, 7
        %v4548 = vsub.s32 0, %v4547
        %v4549 = vrot.slane %v3391, %v4548
        %v4550 = vlaneseq
        %v4551 = vshrl.u32 %v4550, 7
        %v4552 = vsub.s32 0, %v4551
        %v4553 = vrot.slane %v3393, %v4552
        %v4554 = vlaneseq
        %v4555 = vshrl.u32 %v4554, 7
        %v4556 = vsub.s32 0, %v4555
        %v4557 = vrot.slane %v3376, %v4556
        %v4558 = vlaneseq
        %v4559 = vshrl.u32 %v4558, 7
        %v4560 = vsub.s32 0, %v4559
        %v4561 = vrot.slane %v3390, %v4560
        %v4562 = vlaneseq
        %v4563 = vshrl.u32 %v4562, 7
        %v4564 = vsub.s32 0, %v4563
        %v4565 = vrot.slane %v3392, %v4564
        %v4566 = vlaneseq
        %v4567 = vshrl.u32 %v4566, 7
        %v4568 = vsub.s32 0, %v4567
        %v4569 = vrot.slane %v3394, %v4568
        %v4570 = vlaneseq
        %v4571 = vshrl.u32 %v4570, 7
        %v4572 = vsub.s32 0, %v4571
        %v4573 = vrot.slane %v3418, %v4572
        %v4574 = vlaneseq
        %v4575 = vshrl.u32 %v4574, 7
        %v4576 = vsub.s32 0, %v4575
        %v4577 = vrot.slane %v3432, %v4576
        %v4578 = vlaneseq
        %v4579 = vshrl.u32 %v4578, 7
        %v4580 = vsub.s32 0, %v4579
        %v4581 = vrot.slane %v3440, %v4580
        %v4582 = vlaneseq
        %v4583 = vshrl.u32 %v4582, 7
        %v4584 = vsub.s32 0, %v4583
        %v4585 = vrot.slane %v3442, %v4584
        %v4586 = vlaneseq
        %v4587 = vshrl.u32 %v4586, 7
        %v4588 = vsub.s32 0, %v4587
        %v4589 = vrot.slane %v3425, %v4588
        %v4590 = vlaneseq
        %v4591 = vshrl.u32 %v4590, 7
        %v4592 = vsub.s32 0, %v4591
        %v4593 = vrot.slane %v3439, %v4592
        %v4594 = vlaneseq
        %v4595 = vshrl.u32 %v4594, 7
        %v4596 = vsub.s32 0, %v4595
        %v4597 = vrot.slane %v3441, %v4596
        %v4598 = vlaneseq
        %v4599 = vshrl.u32 %v4598, 7
        %v4600 = vsub.s32 0, %v4599
        %v4601 = vrot.slane %v3443, %v4600
        %v4602 = vlaneseq
        %v4603 = vshrl.u32 %v4602, 7
        %v4604 = vsub.s32 0, %v4603
        %v4605 = vrot.slane %v3467, %v4604
        %v4606 = vlaneseq
        %v4607 = vshrl.u32 %v4606, 7
        %v4608 = vsub.s32 0, %v4607
        %v4609 = vrot.slane %v3481, %v4608
        %v4610 = vlaneseq
        %v4611 = vshrl.u32 %v4610, 7
        %v4612 = vsub.s32 0, %v4611
        %v4613 = vrot.slane %v3489, %v4612
        %v4614 = vlaneseq
        %v4615 = vshrl.u32 %v4614, 7
        %v4616 = vsub.s32 0, %v4615
        %v4617 = vrot.slane %v3491, %v4616
        %v4618 = vlaneseq
        %v4619 = vshrl.u32 %v4618, 7
        %v4620 = vsub.s32 0, %v4619
        %v4621 = vrot.slane %v3474, %v4620
        %v4622 = vlaneseq
        %v4623 = vshrl.u32 %v4622, 7
        %v4624 = vsub.s32 0, %v4623
        %v4625 = vrot.slane %v3488, %v4624
        %v4626 = vlaneseq
        %v4627 = vshrl.u32 %v4626, 7
        %v4628 = vsub.s32 0, %v4627
        %v4629 = vrot.slane %v3490, %v4628
        %v4630 = vlaneseq
        %v4631 = vshrl.u32 %v4630, 7
        %v4632 = vsub.s32 0, %v4631
        %v4633 = vrot.slane %v3492, %v4632
        %v4634 = vlaneseq
        %v4635 = vshrl.u32 %v4634, 7
        %v4636 = vsub.s32 0, %v4635
        %v4637 = vrot.slane %v3516, %v4636
        %v4638 = vlaneseq
        %v4639 = vshrl.u32 %v4638, 7
        %v4640 = vsub.s32 0, %v4639
        %v4641 = vrot.slane %v3530, %v4640
        %v4642 = vlaneseq
        %v4643 = vshrl.u32 %v4642, 7
        %v4644 = vsub.s32 0, %v4643
        %v4645 = vrot.slane %v3538, %v4644
        %v4646 = vlaneseq
        %v4647 = vshrl.u32 %v4646, 7
        %v4648 = vsub.s32 0, %v4647
        %v4649 = vrot.slane %v3540, %v4648
        %v4650 = vlaneseq
        %v4651 = vshrl.u32 %v4650, 7
        %v4652 = vsub.s32 0, %v4651
        %v4653 = vrot.slane %v3523, %v4652
        %v4654 = vlaneseq
        %v4655 = vshrl.u32 %v4654, 7
        %v4656 = vsub.s32 0, %v4655
        %v4657 = vrot.slane %v3537, %v4656
        %v4658 = vlaneseq
        %v4659 = vshrl.u32 %v4658, 7
        %v4660 = vsub.s32 0, %v4659
        %v4661 = vrot.slane %v3539, %v4660
        %v4662 = vlaneseq
        %v4663 = vshrl.u32 %v4662, 7
        %v4664 = vsub.s32 0, %v4663
        %v4665 = vrot.slane %v3541, %v4664
        %v4666 = vlaneseq
        %v4667 = vshrl.u32 %v4666, 7
        %v4668 = vsub.s32 0, %v4667
        %v4669 = vrot.slane %v3565, %v4668
        %v4670 = vlaneseq
        %v4671 = vshrl.u32 %v4670, 7
        %v4672 = vsub.s32 0, %v4671
        %v4673 = vrot.slane %v3579, %v4672
        %v4674 = vlaneseq
        %v4675 = vshrl.u32 %v4674, 7
        %v4676 = vsub.s32 0, %v4675
        %v4677 = vrot.slane %v3587, %v4676
        %v4678 = vlaneseq
        %v4679 = vshrl.u32 %v4678, 7
        %v4680 = vsub.s32 0, %v4679
        %v4681 = vrot.slane %v3589, %v4680
        %v4682 = vlaneseq
        %v4683 = vshrl.u32 %v4682, 7
        %v4684 = vsub.s32 0, %v4683
        %v4685 = vrot.slane %v3572, %v4684
        %v4686 = vlaneseq
        %v4687 = vshrl.u32 %v4686, 7
        %v4688 = vsub.s32 0, %v4687
        %v4689 = vrot.slane %v3586, %v4688
        %v4690 = vlaneseq
        %v4691 = vshrl.u32 %v4690, 7
        %v4692 = vsub.s32 0, %v4691
        %v4693 = vrot.slane %v3588, %v4692
        %v4694 = vlaneseq
        %v4695 = vshrl.u32 %v4694, 7
        %v4696 = vsub.s32 0, %v4695
        %v4697 = vrot.slane %v3590, %v4696
        %v4698 = vlaneseq
        %v4699 = vshrl.u32 %v4698, 7
        %v4700 = vsub.s32 0, %v4699
        %v4701 = vrot.slane %v3614, %v4700
        %v4702 = vlaneseq
        %v4703 = vshrl.u32 %v4702, 7
        %v4704 = vsub.s32 0, %v4703
        %v4705 = vrot.slane %v3628, %v4704
        %v4706 = vlaneseq
        %v4707 = vshrl.u32 %v4706, 7
        %v4708 = vsub.s32 0, %v4707
        %v4709 = vrot.slane %v3636, %v4708
        %v4710 = vlaneseq
        %v4711 = vshrl.u32 %v4710, 7
        %v4712 = vsub.s32 0, %v4711
        %v4713 = vrot.slane %v3638, %v4712
        %v4714 = vlaneseq
        %v4715 = vshrl.u32 %v4714, 7
        %v4716 = vsub.s32 0, %v4715
        %v4717 = vrot.slane %v3621, %v4716
        %v4718 = vlaneseq
        %v4719 = vshrl.u32 %v4718, 7
        %v4720 = vsub.s32 0, %v4719
        %v4721 = vrot.slane %v3635, %v4720
        %v4722 = vlaneseq
        %v4723 = vshrl.u32 %v4722, 7
        %v4724 = vsub.s32 0, %v4723
        %v4725 = vrot.slane %v3637, %v4724
        %v4726 = vlaneseq
        %v4727 = vshrl.u32 %v4726, 7
        %v4728 = vsub.s32 0, %v4727
        %v4729 = vrot.slane %v3639, %v4728
        %v4730 = vlaneseq
        %v4731 = vshrl.u32 %v4730, 7
        %v4732 = vsub.s32 0, %v4731
        %v4733 = vrot.slane %v3663, %v4732
        %v4734 = vlaneseq
        %v4735 = vshrl.u32 %v4734, 7
        %v4736 = vsub.s32 0, %v4735
        %v4737 = vrot.slane %v3677, %v4736
        %v4738 = vlaneseq
        %v4739 = vshrl.u32 %v4738, 7
        %v4740 = vsub.s32 0, %v4739
        %v4741 = vrot.slane %v3685, %v4740
        %v4742 = vlaneseq
        %v4743 = vshrl.u32 %v4742, 7
        %v4744 = vsub.s32 0, %v4743
        %v4745 = vrot.slane %v3687, %v4744
        %v4746 = vlaneseq
        %v4747 = vshrl.u32 %v4746, 7
        %v4748 = vsub.s32 0, %v4747
        %v4749 = vrot.slane %v3670, %v4748
        %v4750 = vlaneseq
        %v4751 = vshrl.u32 %v4750, 7
        %v4752 = vsub.s32 0, %v4751
        %v4753 = vrot.slane %v3684, %v4752
        %v4754 = vlaneseq
        %v4755 = vshrl.u32 %v4754, 7
        %v4756 = vsub.s32 0, %v4755
        %v4757 = vrot.slane %v3686, %v4756
        %v4758 = vlaneseq
        %v4759 = vshrl.u32 %v4758, 7
        %v4760 = vsub.s32 0, %v4759
        %v4761 = vrot.slane %v3688, %v4760
        %v4762 = vlaneseq
        %v4763 = vshrl.u32 %v4762, 7
        %v4764 = vsub.s32 0, %v4763
        %v4765 = vrot.slane %v3712, %v4764
        %v4766 = vlaneseq
        %v4767 = vshrl.u32 %v4766, 7
        %v4768 = vsub.s32 0, %v4767
        %v4769 = vrot.slane %v3726, %v4768
        %v4770 = vlaneseq
        %v4771 = vshrl.u32 %v4770, 7
        %v4772 = vsub.s32 0, %v4771
        %v4773 = vrot.slane %v3734, %v4772
        %v4774 = vlaneseq
        %v4775 = vshrl.u32 %v4774, 7
        %v4776 = vsub.s32 0, %v4775
        %v4777 = vrot.slane %v3736, %v4776
        %v4778 = vlaneseq
        %v4779 = vshrl.u32 %v4778, 7
        %v4780 = vsub.s32 0, %v4779
        %v4781 = vrot.slane %v3719, %v4780
        %v4782 = vlaneseq
        %v4783 = vshrl.u32 %v4782, 7
        %v4784 = vsub.s32 0, %v4783
        %v4785 = vrot.slane %v3733, %v4784
        %v4786 = vlaneseq
        %v4787 = vshrl.u32 %v4786, 7
        %v4788 = vsub.s32 0, %v4787
        %v4789 = vrot.slane %v3735, %v4788
        %v4790 = vlaneseq
        %v4791 = vshrl.u32 %v4790, 7
        %v4792 = vsub.s32 0, %v4791
        %v4793 = vrot.slane %v3737, %v4792
        %v5050 = vmul.f32 %v3773, %v3738
        %v5051 = vmul.f32 %v3773, %v3739
        %v5052 = vmul.f32 %v3777, %v3740
        %v5053 = vmul.f32 %v3777, %v3741
        %v5054 = vmul.f32 %v3781, %v3742
        %v5055 = vmul.f32 %v3781, %v3743
        %v5056 = vmul.f32 %v3785, %v3744
        %v5057 = vmul.f32 %v3785, %v3745
        %v5058 = vmul.f32 %v3789, %v3746
        %v5059 = vmul.f32 %v3789, %v3747
        %v5060 = vmul.f32 %v3793, %v3748
        %v5061 = vmul.f32 %v3793, %v3749
        %v5062 = vmul.f32 %v3797, %v3750
        %v5063 = vmul.f32 %v3797, %v3751
        %v5064 = vmul.f32 %v3801, %v3752
        %v5065 = vmul.f32 %v3801, %v3753
        %v5066 = vmul.f32 %v3805, %v3754
        %v5067 = vmul.f32 %v3805, %v3755
        %v5068 = vmul.f32 %v3809, %v3756
        %v5069 = vmul.f32 %v3809, %v3757
        %v5070 = vmul.f32 %v3813, %v3758
        %v5071 = vmul.f32 %v3813, %v3759
        %v5072 = vmul.f32 %v3817, %v3760
        %v5073 = vmul.f32 %v3817, %v3761
        %v5074 = vmul.f32 %v3821, %v3762
        %v5075 = vmul.f32 %v3821, %v3763
        %v5076 = vmul.f32 %v3825, %v3764
        %v5077 = vmul.f32 %v3825, %v3765
        %v5078 = vmul.f32 %v3829, %v3766
        %v5079 = vmul.f32 %v3829, %v3767
        %v5080 = vmul.f32 %v3833, %v3768
        %v5081 = vmul.f32 %v3833, %v3769
        %v5082 = vmul.f32 %v3837, %v3738
        %v5083 = vmul.f32 %v3837, %v3739
        %v5084 = vmul.f32 %v3841, %v3740
        %v5085 = vmul.f32 %v3841, %v3741
        %v5086 = vmul.f32 %v3845, %v3742
        %v5087 = vmul.f32 %v3845, %v3743
        %v5088 = vmul.f32 %v3849, %v3744
        %v5089 = vmul.f32 %v3849, %v3745
        %v5090 = vmul.f32 %v3853, %v3746
        %v5091 = vmul.f32 %v3853, %v3747
        %v5092 = vmul.f32 %v3857, %v3748
        %v5093 = vmul.f32 %v3857, %v3749
        %v5094 = vmul.f32 %v3861, %v3750
        %v5095 = vmul.f32 %v3861, %v3751
        %v5096 = vmul.f32 %v3865, %v3752
        %v5097 = vmul.f32 %v3865, %v3753
        %v5098 = vmul.f32 %v3869, %v3754
        %v5099 = vmul.f32 %v3869, %v3755
        %v5100 = vmul.f32 %v3873, %v3756
        %v5101 = vmul.f32 %v3873, %v3757
        %v5102 = vmul.f32 %v3877, %v3758
        %v5103 = vmul.f32 %v3877, %v3759
        %v5104 = vmul.f32 %v3881, %v3760
        %v5105 = vmul.f32 %v3881, %v3761
        %v5106 = vmul.f32 %v3885, %v3762
        %v5107 = vmul.f32 %v3885, %v3763
        %v5108 = vmul.f32 %v3889, %v3764
        %v5109 = vmul.f32 %v3889, %v3765
        %v5110 = vmul.f32 %v3893, %v3766
        %v5111 = vmul.f32 %v3893, %v3767
        %v5112 = vmul.f32 %v3897, %v3768
        %v5113 = vmul.f32 %v3897, %v3769
        %v5114 = vmul.f32 %v3901, %v3738
        %v5115 = vmul.f32 %v3901, %v3739
        %v5116 = vmul.f32 %v3905, %v3740
        %v5117 = vmul.f32 %v3905, %v3741
        %v5118 = vmul.f32 %v3909, %v3742
        %v5119 = vmul.f32 %v3909, %v3743
        %v5120 = vmul.f32 %v3913, %v3744
        %v5121 = vmul.f32 %v3913, %v3745
        %v5122 = vmul.f32 %v3917, %v3746
        %v5123 = vmul.f32 %v3917, %v3747
        %v5124 = vmul.f32 %v3921, %v3748
        %v5125 = vmul.f32 %v3921, %v3749
        %v5126 = vmul.f32 %v3925, %v3750
        %v5127 = vmul.f32 %v3925, %v3751
        %v5128 = vmul.f32 %v3929, %v3752
        %v5129 = vmul.f32 %v3929, %v3753
        %v5130 = vmul.f32 %v3933, %v3754
        %v5131 = vmul.f32 %v3933, %v3755
        %v5132 = vmul.f32 %v3937, %v3756
        %v5133 = vmul.f32 %v3937, %v3757
        %v5134 = vmul.f32 %v3941, %v3758
        %v5135 = vmul.f32 %v3941, %v3759
        %v5136 = vmul.f32 %v3945, %v3760
        %v5137 = vmul.f32 %v3945, %v3761
        %v5138 = vmul.f32 %v3949, %v3762
        %v5139 = vmul.f32 %v3949, %v3763
        %v5140 = vmul.f32 %v3953, %v3764
        %v5141 = vmul.f32 %v3953, %v3765
        %v5142 = vmul.f32 %v3957, %v3766
        %v5143 = vmul.f32 %v3957, %v3767
        %v5144 = vmul.f32 %v3961, %v3768
        %v5145 = vmul.f32 %v3961, %v3769
        %v5146 = vmul.f32 %v3965, %v3738
        %v5147 = vmul.f32 %v3965, %v3739
        %v5148 = vmul.f32 %v3969, %v3740
        %v5149 = vmul.f32 %v3969, %v3741
        %v5150 = vmul.f32 %v3973, %v3742
        %v5151 = vmul.f32 %v3973, %v3743
        %v5152 = vmul.f32 %v3977, %v3744
        %v5153 = vmul.f32 %v3977, %v3745
        %v5154 = vmul.f32 %v3981, %v3746
        %v5155 = vmul.f32 %v3981, %v3747
        %v5156 = vmul.f32 %v3985, %v3748
        %v5157 = vmul.f32 %v3985, %v3749
        %v5158 = vmul.f32 %v3989, %v3750
        %v5159 = vmul.f32 %v3989, %v3751
        %v5160 = vmul.f32 %v3993, %v3752
        %v5161 = vmul.f32 %v3993, %v3753
        %v5162 = vmul.f32 %v3997, %v3754
        %v5163 = vmul.f32 %v3997, %v3755
        %v5164 = vmul.f32 %v4001, %v3756
        %v5165 = vmul.f32 %v4001, %v3757
        %v5166 = vmul.f32 %v4005, %v3758
        %v5167 = vmul.f32 %v4005, %v3759
        %v5168 = vmul.f32 %v4009, %v3760
        %v5169 = vmul.f32 %v4009, %v3761
        %v5170 = vmul.f32 %v4013, %v3762
        %v5171 = vmul.f32 %v4013, %v3763
        %v5172 = vmul.f32 %v4017, %v3764
        %v5173 = vmul.f32 %v4017, %v3765
        %v5174 = vmul.f32 %v4021, %v3766
        %v5175 = vmul.f32 %v4021, %v3767
        %v5176 = vmul.f32 %v4025, %v3768
        %v5177 = vmul.f32 %v4025, %v3769
        %v5178 = vmul.f32 %v4029, %v3738
        %v5179 = vmul.f32 %v4029, %v3739
        %v5180 = vmul.f32 %v4033, %v3740
        %v5181 = vmul.f32 %v4033, %v3741
        %v5182 = vmul.f32 %v4037, %v3742
        %v5183 = vmul.f32 %v4037, %v3743
        %v5184 = vmul.f32 %v4041, %v3744
        %v5185 = vmul.f32 %v4041, %v3745
        %v5186 = vmul.f32 %v4045, %v3746
        %v5187 = vmul.f32 %v4045, %v3747
        %v5188 = vmul.f32 %v4049, %v3748
        %v5189 = vmul.f32 %v4049, %v3749
        %v5190 = vmul.f32 %v4053, %v3750
        %v5191 = vmul.f32 %v4053, %v3751
        %v5192 = vmul.f32 %v4057, %v3752
        %v5193 = vmul.f32 %v4057, %v3753
        %v5194 = vmul.f32 %v4061, %v3754
        %v5195 = vmul.f32 %v4061, %v3755
        %v5196 = vmul.f32 %v4065, %v3756
        %v5197 = vmul.f32 %v4065, %v3757
        %v5198 = vmul.f32 %v4069, %v3758
        %v5199 = vmul.f32 %v4069, %v3759
        %v5200 = vmul.f32 %v4073, %v3760
        %v5201 = vmul.f32 %v4073, %v3761
        %v5202 = vmul.f32 %v4077, %v3762
        %v5203 = vmul.f32 %v4077, %v3763
        %v5204 = vmul.f32 %v4081, %v3764
        %v5205 = vmul.f32 %v4081, %v3765
        %v5206 = vmul.f32 %v4085, %v3766
        %v5207 = vmul.f32 %v4085, %v3767
        %v5208 = vmul.f32 %v4089, %v3768
        %v5209 = vmul.f32 %v4089, %v3769
        %v5210 = vmul.f32 %v4093, %v3738
        %v5211 = vmul.f32 %v4093, %v3739
        %v5212 = vmul.f32 %v4097, %v3740
        %v5213 = vmul.f32 %v4097, %v3741
        %v5214 = vmul.f32 %v4101, %v3742
        %v5215 = vmul.f32 %v4101, %v3743
        %v5216 = vmul.f32 %v4105, %v3744
        %v5217 = vmul.f32 %v4105, %v3745
        %v5218 = vmul.f32 %v4109, %v3746
        %v5219 = vmul.f32 %v4109, %v3747
        %v5220 = vmul.f32 %v4113, %v3748
        %v5221 = vmul.f32 %v4113, %v3749
        %v5222 = vmul.f32 %v4117, %v3750
        %v5223 = vmul.f32 %v4117, %v3751
        %v5224 = vmul.f32 %v4121, %v3752
        %v5225 = vmul.f32 %v4121, %v3753
        %v5226 = vmul.f32 %v4125, %v3754
        %v5227 = vmul.f32 %v4125, %v3755
        %v5228 = vmul.f32 %v4129, %v3756
        %v5229 = vmul.f32 %v4129, %v3757
        %v5230 = vmul.f32 %v4133, %v3758
        %v5231 = vmul.f32 %v4133, %v3759
        %v5232 = vmul.f32 %v4137, %v3760
        %v5233 = vmul.f32 %v4137, %v3761
        %v5234 = vmul.f32 %v4141, %v3762
        %v5235 = vmul.f32 %v4141, %v3763
        %v5236 = vmul.f32 %v4145, %v3764
        %v5237 = vmul.f32 %v4145, %v3765
        %v5238 = vmul.f32 %v4149, %v3766
        %v5239 = vmul.f32 %v4149, %v3767
        %v5240 = vmul.f32 %v4153, %v3768
        %v5241 = vmul.f32 %v4153, %v3769
        %v5242 = vmul.f32 %v4157, %v3738
        %v5243 = vmul.f32 %v4157, %v3739
        %v5244 = vmul.f32 %v4161, %v3740
        %v5245 = vmul.f32 %v4161, %v3741
        %v5246 = vmul.f32 %v4165, %v3742
        %v5247 = vmul.f32 %v4165, %v3743
        %v5248 = vmul.f32 %v4169, %v3744
        %v5249 = vmul.f32 %v4169, %v3745
        %v5250 = vmul.f32 %v4173, %v3746
        %v5251 = vmul.f32 %v4173, %v3747
        %v5252 = vmul.f32 %v4177, %v3748
        %v5253 = vmul.f32 %v4177, %v3749
        %v5254 = vmul.f32 %v4181, %v3750
        %v5255 = vmul.f32 %v4181, %v3751
        %v5256 = vmul.f32 %v4185, %v3752
        %v5257 = vmul.f32 %v4185, %v3753
        %v5258 = vmul.f32 %v4189, %v3754
        %v5259 = vmul.f32 %v4189, %v3755
        %v5260 = vmul.f32 %v4193, %v3756
        %v5261 = vmul.f32 %v4193, %v3757
        %v5262 = vmul.f32 %v4197, %v3758
        %v5263 = vmul.f32 %v4197, %v3759
        %v5264 = vmul.f32 %v4201, %v3760
        %v5265 = vmul.f32 %v4201, %v3761
        %v5266 = vmul.f32 %v4205, %v3762
        %v5267 = vmul.f32 %v4205, %v3763
        %v5268 = vmul.f32 %v4209, %v3764
        %v5269 = vmul.f32 %v4209, %v3765
        %v5270 = vmul.f32 %v4213, %v3766
        %v5271 = vmul.f32 %v4213, %v3767
        %v5272 = vmul.f32 %v4217, %v3768
        %v5273 = vmul.f32 %v4217, %v3769
        %v5274 = vmul.f32 %v4221, %v3738
        %v5275 = vmul.f32 %v4221, %v3739
        %v5276 = vmul.f32 %v4225, %v3740
        %v5277 = vmul.f32 %v4225, %v3741
        %v5278 = vmul.f32 %v4229, %v3742
        %v5279 = vmul.f32 %v4229, %v3743
        %v5280 = vmul.f32 %v4233, %v3744
        %v5281 = vmul.f32 %v4233, %v3745
        %v5282 = vmul.f32 %v4237, %v3746
        %v5283 = vmul.f32 %v4237, %v3747
        %v5284 = vmul.f32 %v4241, %v3748
        %v5285 = vmul.f32 %v4241, %v3749
        %v5286 = vmul.f32 %v4245, %v3750
        %v5287 = vmul.f32 %v4245, %v3751
        %v5288 = vmul.f32 %v4249, %v3752
        %v5289 = vmul.f32 %v4249, %v3753
        %v5290 = vmul.f32 %v4253, %v3754
        %v5291 = vmul.f32 %v4253, %v3755
        %v5292 = vmul.f32 %v4257, %v3756
        %v5293 = vmul.f32 %v4257, %v3757
        %v5294 = vmul.f32 %v4261, %v3758
        %v5295 = vmul.f32 %v4261, %v3759
        %v5296 = vmul.f32 %v4265, %v3760
        %v5297 = vmul.f32 %v4265, %v3761
        %v5298 = vmul.f32 %v4269, %v3762
        %v5299 = vmul.f32 %v4269, %v3763
        %v5300 = vmul.f32 %v4273, %v3764
        %v5301 = vmul.f32 %v4273, %v3765
        %v5302 = vmul.f32 %v4277, %v3766
        %v5303 = vmul.f32 %v4277, %v3767
        %v5304 = vmul.f32 %v4281, %v3768
        %v5305 = vmul.f32 %v4281, %v3769
        %v5306 = vmul.f32 %v4285, %v3738
        %v5307 = vmul.f32 %v4285, %v3739
        %v5308 = vmul.f32 %v4289, %v3740
        %v5309 = vmul.f32 %v4289, %v3741
        %v5310 = vmul.f32 %v4293, %v3742
        %v5311 = vmul.f32 %v4293, %v3743
        %v5312 = vmul.f32 %v4297, %v3744
        %v5313 = vmul.f32 %v4297, %v3745
        %v5314 = vmul.f32 %v4301, %v3746
        %v5315 = vmul.f32 %v4301, %v3747
        %v5316 = vmul.f32 %v4305, %v3748
        %v5317 = vmul.f32 %v4305, %v3749
        %v5318 = vmul.f32 %v4309, %v3750
        %v5319 = vmul.f32 %v4309, %v3751
        %v5320 = vmul.f32 %v4313, %v3752
        %v5321 = vmul.f32 %v4313, %v3753
        %v5322 = vmul.f32 %v4317, %v3754
        %v5323 = vmul.f32 %v4317, %v3755
        %v5324 = vmul.f32 %v4321, %v3756
        %v5325 = vmul.f32 %v4321, %v3757
        %v5326 = vmul.f32 %v4325, %v3758
        %v5327 = vmul.f32 %v4325, %v3759
        %v5328 = vmul.f32 %v4329, %v3760
        %v5329 = vmul.f32 %v4329, %v3761
        %v5330 = vmul.f32 %v4333, %v3762
        %v5331 = vmul.f32 %v4333, %v3763
        %v5332 = vmul.f32 %v4337, %v3764
        %v5333 = vmul.f32 %v4337, %v3765
        %v5334 = vmul.f32 %v4341, %v3766
        %v5335 = vmul.f32 %v4341, %v3767
        %v5336 = vmul.f32 %v4345, %v3768
        %v5337 = vmul.f32 %v4345, %v3769
        %v5338 = vmul.f32 %v4349, %v3738
        %v5339 = vmul.f32 %v4349, %v3739
        %v5340 = vmul.f32 %v4353, %v3740
        %v5341 = vmul.f32 %v4353, %v3741
        %v5342 = vmul.f32 %v4357, %v3742
        %v5343 = vmul.f32 %v4357, %v3743
        %v5344 = vmul.f32 %v4361, %v3744
        %v5345 = vmul.f32 %v4361, %v3745
        %v5346 = vmul.f32 %v4365, %v3746
        %v5347 = vmul.f32 %v4365, %v3747
        %v5348 = vmul.f32 %v4369, %v3748
        %v5349 = vmul.f32 %v4369, %v3749
        %v5350 = vmul.f32 %v4373, %v3750
        %v5351 = vmul.f32 %v4373, %v3751
        %v5352 = vmul.f32 %v4377, %v3752
        %v5353 = vmul.f32 %v4377, %v3753
        %v5354 = vmul.f32 %v4381, %v3754
        %v5355 = vmul.f32 %v4381, %v3755
        %v5356 = vmul.f32 %v4385, %v3756
        %v5357 = vmul.f32 %v4385, %v3757
        %v5358 = vmul.f32 %v4389, %v3758
        %v5359 = vmul.f32 %v4389, %v3759
        %v5360 = vmul.f32 %v4393, %v3760
        %v5361 = vmul.f32 %v4393, %v3761
        %v5362 = vmul.f32 %v4397, %v3762
        %v5363 = vmul.f32 %v4397, %v3763
        %v5364 = vmul.f32 %v4401, %v3764
        %v5365 = vmul.f32 %v4401, %v3765
        %v5366 = vmul.f32 %v4405, %v3766
        %v5367 = vmul.f32 %v4405, %v3767
        %v5368 = vmul.f32 %v4409, %v3768
        %v5369 = vmul.f32 %v4409, %v3769
        %v5370 = vmul.f32 %v4413, %v3738
        %v5371 = vmul.f32 %v4413, %v3739
        %v5372 = vmul.f32 %v4417, %v3740
        %v5373 = vmul.f32 %v4417, %v3741
        %v5374 = vmul.f32 %v4421, %v3742
        %v5375 = vmul.f32 %v4421, %v3743
        %v5376 = vmul.f32 %v4425, %v3744
        %v5377 = vmul.f32 %v4425, %v3745
        %v5378 = vmul.f32 %v4429, %v3746
        %v5379 = vmul.f32 %v4429, %v3747
        %v5380 = vmul.f32 %v4433, %v3748
        %v5381 = vmul.f32 %v4433, %v3749
        %v5382 = vmul.f32 %v4437, %v3750
        %v5383 = vmul.f32 %v4437, %v3751
        %v5384 = vmul.f32 %v4441, %v3752
        %v5385 = vmul.f32 %v4441, %v3753
        %v5386 = vmul.f32 %v4445, %v3754
        %v5387 = vmul.f32 %v4445, %v3755
        %v5388 = vmul.f32 %v4449, %v3756
        %v5389 = vmul.f32 %v4449, %v3757
        %v5390 = vmul.f32 %v4453, %v3758
        %v5391 = vmul.f32 %v4453, %v3759
        %v5392 = vmul.f32 %v4457, %v3760
        %v5393 = vmul.f32 %v4457, %v3761
        %v5394 = vmul.f32 %v4461, %v3762
        %v5395 = vmul.f32 %v4461, %v3763
        %v5396 = vmul.f32 %v4465, %v3764
        %v5397 = vmul.f32 %v4465, %v3765
        %v5398 = vmul.f32 %v4469, %v3766
        %v5399 = vmul.f32 %v4469, %v3767
        %v5400 = vmul.f32 %v4473, %v3768
        %v5401 = vmul.f32 %v4473, %v3769
        %v5402 = vmul.f32 %v4477, %v3738
        %v5403 = vmul.f32 %v4477, %v3739
        %v5404 = vmul.f32 %v4481, %v3740
        %v5405 = vmul.f32 %v4481, %v3741
        %v5406 = vmul.f32 %v4485, %v3742
        %v5407 = vmul.f32 %v4485, %v3743
        %v5408 = vmul.f32 %v4489, %v3744
        %v5409 = vmul.f32 %v4489, %v3745
        %v5410 = vmul.f32 %v4493, %v3746
        %v5411 = vmul.f32 %v4493, %v3747
        %v5412 = vmul.f32 %v4497, %v3748
        %v5413 = vmul.f32 %v4497, %v3749
        %v5414 = vmul.f32 %v4501, %v3750
        %v5415 = vmul.f32 %v4501, %v3751
        %v5416 = vmul.f32 %v4505, %v3752
        %v5417 = vmul.f32 %v4505, %v3753
        %v5418 = vmul.f32 %v4509, %v3754
        %v5419 = vmul.f32 %v4509, %v3755
        %v5420 = vmul.f32 %v4513, %v3756
        %v5421 = vmul.f32 %v4513, %v3757
        %v5422 = vmul.f32 %v4517, %v3758
        %v5423 = vmul.f32 %v4517, %v3759
        %v5424 = vmul.f32 %v4521, %v3760
        %v5425 = vmul.f32 %v4521, %v3761
        %v5426 = vmul.f32 %v4525, %v3762
        %v5427 = vmul.f32 %v4525, %v3763
        %v5428 = vmul.f32 %v4529, %v3764
        %v5429 = vmul.f32 %v4529, %v3765
        %v5430 = vmul.f32 %v4533, %v3766
        %v5431 = vmul.f32 %v4533, %v3767
        %v5432 = vmul.f32 %v4537, %v3768
        %v5433 = vmul.f32 %v4537, %v3769
        %v5434 = vmul.f32 %v4541, %v3738
        %v5435 = vmul.f32 %v4541, %v3739
        %v5436 = vmul.f32 %v4545, %v3740
        %v5437 = vmul.f32 %v4545, %v3741
        %v5438 = vmul.f32 %v4549, %v3742
        %v5439 = vmul.f32 %v4549, %v3743
        %v5440 = vmul.f32 %v4553, %v3744
        %v5441 = vmul.f32 %v4553, %v3745
        %v5442 = vmul.f32 %v4557, %v3746
        %v5443 = vmul.f32 %v4557, %v3747
        %v5444 = vmul.f32 %v4561, %v3748
        %v5445 = vmul.f32 %v4561, %v3749
        %v5446 = vmul.f32 %v4565, %v3750
        %v5447 = vmul.f32 %v4565, %v3751
        %v5448 = vmul.f32 %v4569, %v3752
        %v5449 = vmul.f32 %v4569, %v3753
        %v5450 = vmul.f32 %v4573, %v3754
        %v5451 = vmul.f32 %v4573, %v3755
        %v5452 = vmul.f32 %v4577, %v3756
        %v5453 = vmul.f32 %v4577, %v3757
        %v5454 = vmul.f32 %v4581, %v3758
        %v5455 = vmul.f32 %v4581, %v3759
        %v5456 = vmul.f32 %v4585, %v3760
        %v5457 = vmul.f32 %v4585, %v3761
        %v5458 = vmul.f32 %v4589, %v3762
        %v5459 = vmul.f32 %v4589, %v3763
        %v5460 = vmul.f32 %v4593, %v3764
        %v5461 = vmul.f32 %v4593, %v3765
        %v5462 = vmul.f32 %v4597, %v3766
        %v5463 = vmul.f32 %v4597, %v3767
        %v5464 = vmul.f32 %v4601, %v3768
        %v5465 = vmul.f32 %v4601, %v3769
        %v5466 = vmul.f32 %v4605, %v3738
        %v5467 = vmul.f32 %v4605, %v3739
        %v5468 = vmul.f32 %v4609, %v3740
        %v5469 = vmul.f32 %v4609, %v3741
        %v5470 = vmul.f32 %v4613, %v3742
        %v5471 = vmul.f32 %v4613, %v3743
        %v5472 = vmul.f32 %v4617, %v3744
        %v5473 = vmul.f32 %v4617, %v3745
        %v5474 = vmul.f32 %v4621, %v3746
        %v5475 = vmul.f32 %v4621, %v3747
        %v5476 = vmul.f32 %v4625, %v3748
        %v5477 = vmul.f32 %v4625, %v3749
        %v5478 = vmul.f32 %v4629, %v3750
        %v5479 = vmul.f32 %v4629, %v3751
        %v5480 = vmul.f32 %v4633, %v3752
        %v5481 = vmul.f32 %v4633, %v3753
        %v5482 = vmul.f32 %v4637, %v3754
        %v5483 = vmul.f32 %v4637, %v3755
        %v5484 = vmul.f32 %v4641, %v3756
        %v5485 = vmul.f32 %v4641, %v3757
        %v5486 = vmul.f32 %v4645, %v3758
        %v5487 = vmul.f32 %v4645, %v3759
        %v5488 = vmul.f32 %v4649, %v3760
        %v5489 = vmul.f32 %v4649, %v3761
        %v5490 = vmul.f32 %v4653, %v3762
        %v5491 = vmul.f32 %v4653, %v3763
        %v5492 = vmul.f32 %v4657, %v3764
        %v5493 = vmul.f32 %v4657, %v3765
        %v5494 = vmul.f32 %v4661, %v3766
        %v5495 = vmul.f32 %v4661, %v3767
        %v5496 = vmul.f32 %v4665, %v3768
        %v5497 = vmul.f32 %v4665, %v3769
        %v5498 = vmul.f32 %v4669, %v3738
        %v5499 = vmul.f32 %v4669, %v3739
        %v5500 = vmul.f32 %v4673, %v3740
        %v5501 = vmul.f32 %v4673, %v3741
        %v5502 = vmul.f32 %v4677, %v3742
        %v5503 = vmul.f32 %v4677, %v3743
        %v5504 = vmul.f32 %v4681, %v3744
        %v5505 = vmul.f32 %v4681, %v3745
        %v5506 = vmul.f32 %v4685, %v3746
        %v5507 = vmul.f32 %v4685, %v3747
        %v5508 = vmul.f32 %v4689, %v3748
        %v5509 = vmul.f32 %v4689, %v3749
        %v5510 = vmul.f32 %v4693, %v3750
        %v5511 = vmul.f32 %v4693, %v3751
        %v5512 = vmul.f32 %v4697, %v3752
        %v5513 = vmul.f32 %v4697, %v3753
        %v5514 = vmul.f32 %v4701, %v3754
        %v5515 = vmul.f32 %v4701, %v3755
        %v5516 = vmul.f32 %v4705, %v3756
        %v5517 = vmul.f32 %v4705, %v3757
        %v5518 = vmul.f32 %v4709, %v3758
        %v5519 = vmul.f32 %v4709, %v3759
        %v5520 = vmul.f32 %v4713, %v3760
        %v5521 = vmul.f32 %v4713, %v3761
        %v5522 = vmul.f32 %v4717, %v3762
        %v5523 = vmul.f32 %v4717, %v3763
        %v5524 = vmul.f32 %v4721, %v3764
        %v5525 = vmul.f32 %v4721, %v3765
        %v5526 = vmul.f32 %v4725, %v3766
        %v5527 = vmul.f32 %v4725, %v3767
        %v5528 = vmul.f32 %v4729, %v3768
        %v5529 = vmul.f32 %v4729, %v3769
        %v5530 = vmul.f32 %v4733, %v3738
        %v5531 = vmul.f32 %v4733, %v3739
        %v5532 = vmul.f32 %v4737, %v3740
        %v5533 = vmul.f32 %v4737, %v3741
        %v5534 = vmul.f32 %v4741, %v3742
        %v5535 = vmul.f32 %v4741, %v3743
        %v5536 = vmul.f32 %v4745, %v3744
        %v5537 = vmul.f32 %v4745, %v3745
        %v5538 = vmul.f32 %v4749, %v3746
        %v5539 = vmul.f32 %v4749, %v3747
        %v5540 = vmul.f32 %v4753, %v3748
        %v5541 = vmul.f32 %v4753, %v3749
        %v5542 = vmul.f32 %v4757, %v3750
        %v5543 = vmul.f32 %v4757, %v3751
        %v5544 = vmul.f32 %v4761, %v3752
        %v5545 = vmul.f32 %v4761, %v3753
        %v5546 = vmul.f32 %v4765, %v3754
        %v5547 = vmul.f32 %v4765, %v3755
        %v5548 = vmul.f32 %v4769, %v3756
        %v5549 = vmul.f32 %v4769, %v3757
        %v5550 = vmul.f32 %v4773, %v3758
        %v5551 = vmul.f32 %v4773, %v3759
        %v5552 = vmul.f32 %v4777, %v3760
        %v5553 = vmul.f32 %v4777, %v3761
        %v5554 = vmul.f32 %v4781, %v3762
        %v5555 = vmul.f32 %v4781, %v3763
        %v5556 = vmul.f32 %v4785, %v3764
        %v5557 = vmul.f32 %v4785, %v3765
        %v5558 = vmul.f32 %v4789, %v3766
        %v5559 = vmul.f32 %v4789, %v3767
        %v5560 = vmul.f32 %v4793, %v3768
        %v5561 = vmul.f32 %v4793, %v3769
        %v5562 = vsel %vm777, %v5050, 0.0
        %5563 = vadd.xlane.f32.xlu0 %v5562
        %v5564 = vpop.xlane.xlu0 %5563
        %v5565 = vsel %vm777, %v5051, 0.0
        %5566 = vadd.xlane.f32.xlu0 %v5565
        %v5567 = vpop.xlane.xlu0 %5566
        %v5568 = vsel %vm777, %v5052, 0.0
        %5569 = vadd.xlane.f32.xlu0 %v5568
        %v5570 = vpop.xlane.xlu0 %5569
        %v5571 = vsel %vm777, %v5053, 0.0
        %5572 = vadd.xlane.f32.xlu0 %v5571
        %v5573 = vpop.xlane.xlu0 %5572
        %v5574 = vsel %vm777, %v5054, 0.0
        %5575 = vadd.xlane.f32.xlu0 %v5574
        %v5576 = vpop.xlane.xlu0 %5575
        %v5577 = vsel %vm777, %v5055, 0.0
        %5578 = vadd.xlane.f32.xlu0 %v5577
        %v5579 = vpop.xlane.xlu0 %5578
        %v5580 = vsel %vm777, %v5056, 0.0
        %5581 = vadd.xlane.f32.xlu0 %v5580
        %v5582 = vpop.xlane.xlu0 %5581
        %v5583 = vsel %vm777, %v5057, 0.0
        %5584 = vadd.xlane.f32.xlu0 %v5583
        %v5585 = vpop.xlane.xlu0 %5584
        %v5586 = vsel %vm777, %v5058, 0.0
        %5587 = vadd.xlane.f32.xlu0 %v5586
        %v5588 = vpop.xlane.xlu0 %5587
        %v5589 = vsel %vm777, %v5059, 0.0
        %5590 = vadd.xlane.f32.xlu0 %v5589
        %v5591 = vpop.xlane.xlu0 %5590
        %v5592 = vsel %vm777, %v5060, 0.0
        %5593 = vadd.xlane.f32.xlu0 %v5592
        %v5594 = vpop.xlane.xlu0 %5593
        %v5595 = vsel %vm777, %v5061, 0.0
        %5596 = vadd.xlane.f32.xlu0 %v5595
        %v5597 = vpop.xlane.xlu0 %5596
        %v5598 = vsel %vm777, %v5062, 0.0
        %5599 = vadd.xlane.f32.xlu0 %v5598
        %v5600 = vpop.xlane.xlu0 %5599
        %v5601 = vsel %vm777, %v5063, 0.0
        %5602 = vadd.xlane.f32.xlu0 %v5601
        %v5603 = vpop.xlane.xlu0 %5602
        %v5604 = vsel %vm777, %v5064, 0.0
        %5605 = vadd.xlane.f32.xlu0 %v5604
        %v5606 = vpop.xlane.xlu0 %5605
        %v5607 = vsel %vm777, %v5065, 0.0
        %5608 = vadd.xlane.f32.xlu0 %v5607
        %v5609 = vpop.xlane.xlu0 %5608
        %v5610 = vsel %vm777, %v5066, 0.0
        %5611 = vadd.xlane.f32.xlu0 %v5610
        %v5612 = vpop.xlane.xlu0 %5611
        %v5613 = vsel %vm777, %v5067, 0.0
        %5614 = vadd.xlane.f32.xlu0 %v5613
        %v5615 = vpop.xlane.xlu0 %5614
        %v5616 = vsel %vm777, %v5068, 0.0
        %5617 = vadd.xlane.f32.xlu0 %v5616
        %v5618 = vpop.xlane.xlu0 %5617
        %v5619 = vsel %vm777, %v5069, 0.0
        %5620 = vadd.xlane.f32.xlu0 %v5619
        %v5621 = vpop.xlane.xlu0 %5620
        %v5622 = vsel %vm777, %v5070, 0.0
        %5623 = vadd.xlane.f32.xlu0 %v5622
        %v5624 = vpop.xlane.xlu0 %5623
        %v5625 = vsel %vm777, %v5071, 0.0
        %5626 = vadd.xlane.f32.xlu0 %v5625
        %v5627 = vpop.xlane.xlu0 %5626
        %v5628 = vsel %vm777, %v5072, 0.0
        %5629 = vadd.xlane.f32.xlu0 %v5628
        %v5630 = vpop.xlane.xlu0 %5629
        %v5631 = vsel %vm777, %v5073, 0.0
        %5632 = vadd.xlane.f32.xlu0 %v5631
        %v5633 = vpop.xlane.xlu0 %5632
        %v5634 = vsel %vm777, %v5074, 0.0
        %5635 = vadd.xlane.f32.xlu0 %v5634
        %v5636 = vpop.xlane.xlu0 %5635
        %v5637 = vsel %vm777, %v5075, 0.0
        %5638 = vadd.xlane.f32.xlu0 %v5637
        %v5639 = vpop.xlane.xlu0 %5638
        %v5640 = vsel %vm777, %v5076, 0.0
        %5641 = vadd.xlane.f32.xlu0 %v5640
        %v5642 = vpop.xlane.xlu0 %5641
        %v5643 = vsel %vm777, %v5077, 0.0
        %5644 = vadd.xlane.f32.xlu0 %v5643
        %v5645 = vpop.xlane.xlu0 %5644
        %v5646 = vsel %vm777, %v5078, 0.0
        %5647 = vadd.xlane.f32.xlu0 %v5646
        %v5648 = vpop.xlane.xlu0 %5647
        %v5649 = vsel %vm777, %v5079, 0.0
        %5650 = vadd.xlane.f32.xlu0 %v5649
        %v5651 = vpop.xlane.xlu0 %5650
        %v5652 = vsel %vm777, %v5080, 0.0
        %5653 = vadd.xlane.f32.xlu0 %v5652
        %v5654 = vpop.xlane.xlu0 %5653
        %v5655 = vsel %vm777, %v5081, 0.0
        %5656 = vadd.xlane.f32.xlu0 %v5655
        %v5657 = vpop.xlane.xlu0 %5656
        %v5658 = vsel %vm777, %v5082, 0.0
        %5659 = vadd.xlane.f32.xlu0 %v5658
        %v5660 = vpop.xlane.xlu0 %5659
        %v5661 = vsel %vm777, %v5083, 0.0
        %5662 = vadd.xlane.f32.xlu0 %v5661
        %v5663 = vpop.xlane.xlu0 %5662
        %v5664 = vsel %vm777, %v5084, 0.0
        %5665 = vadd.xlane.f32.xlu0 %v5664
        %v5666 = vpop.xlane.xlu0 %5665
        %v5667 = vsel %vm777, %v5085, 0.0
        %5668 = vadd.xlane.f32.xlu0 %v5667
        %v5669 = vpop.xlane.xlu0 %5668
        %v5670 = vsel %vm777, %v5086, 0.0
        %5671 = vadd.xlane.f32.xlu0 %v5670
        %v5672 = vpop.xlane.xlu0 %5671
        %v5673 = vsel %vm777, %v5087, 0.0
        %5674 = vadd.xlane.f32.xlu0 %v5673
        %v5675 = vpop.xlane.xlu0 %5674
        %v5676 = vsel %vm777, %v5088, 0.0
        %5677 = vadd.xlane.f32.xlu0 %v5676
        %v5678 = vpop.xlane.xlu0 %5677
        %v5679 = vsel %vm777, %v5089, 0.0
        %5680 = vadd.xlane.f32.xlu0 %v5679
        %v5681 = vpop.xlane.xlu0 %5680
        %v5682 = vsel %vm777, %v5090, 0.0
        %5683 = vadd.xlane.f32.xlu0 %v5682
        %v5684 = vpop.xlane.xlu0 %5683
        %v5685 = vsel %vm777, %v5091, 0.0
        %5686 = vadd.xlane.f32.xlu0 %v5685
        %v5687 = vpop.xlane.xlu0 %5686
        %v5688 = vsel %vm777, %v5092, 0.0
        %5689 = vadd.xlane.f32.xlu0 %v5688
        %v5690 = vpop.xlane.xlu0 %5689
        %v5691 = vsel %vm777, %v5093, 0.0
        %5692 = vadd.xlane.f32.xlu0 %v5691
        %v5693 = vpop.xlane.xlu0 %5692
        %v5694 = vsel %vm777, %v5094, 0.0
        %5695 = vadd.xlane.f32.xlu0 %v5694
        %v5696 = vpop.xlane.xlu0 %5695
        %v5697 = vsel %vm777, %v5095, 0.0
        %5698 = vadd.xlane.f32.xlu0 %v5697
        %v5699 = vpop.xlane.xlu0 %5698
        %v5700 = vsel %vm777, %v5096, 0.0
        %5701 = vadd.xlane.f32.xlu0 %v5700
        %v5702 = vpop.xlane.xlu0 %5701
        %v5703 = vsel %vm777, %v5097, 0.0
        %5704 = vadd.xlane.f32.xlu0 %v5703
        %v5705 = vpop.xlane.xlu0 %5704
        %v5706 = vsel %vm777, %v5098, 0.0
        %5707 = vadd.xlane.f32.xlu0 %v5706
        %v5708 = vpop.xlane.xlu0 %5707
        %v5709 = vsel %vm777, %v5099, 0.0
        %5710 = vadd.xlane.f32.xlu0 %v5709
        %v5711 = vpop.xlane.xlu0 %5710
        %v5712 = vsel %vm777, %v5100, 0.0
        %5713 = vadd.xlane.f32.xlu0 %v5712
        %v5714 = vpop.xlane.xlu0 %5713
        %v5715 = vsel %vm777, %v5101, 0.0
        %5716 = vadd.xlane.f32.xlu0 %v5715
        %v5717 = vpop.xlane.xlu0 %5716
        %v5718 = vsel %vm777, %v5102, 0.0
        %5719 = vadd.xlane.f32.xlu0 %v5718
        %v5720 = vpop.xlane.xlu0 %5719
        %v5721 = vsel %vm777, %v5103, 0.0
        %5722 = vadd.xlane.f32.xlu0 %v5721
        %v5723 = vpop.xlane.xlu0 %5722
        %v5724 = vsel %vm777, %v5104, 0.0
        %5725 = vadd.xlane.f32.xlu0 %v5724
        %v5726 = vpop.xlane.xlu0 %5725
        %v5727 = vsel %vm777, %v5105, 0.0
        %5728 = vadd.xlane.f32.xlu0 %v5727
        %v5729 = vpop.xlane.xlu0 %5728
        %v5730 = vsel %vm777, %v5106, 0.0
        %5731 = vadd.xlane.f32.xlu0 %v5730
        %v5732 = vpop.xlane.xlu0 %5731
        %v5733 = vsel %vm777, %v5107, 0.0
        %5734 = vadd.xlane.f32.xlu0 %v5733
        %v5735 = vpop.xlane.xlu0 %5734
        %v5736 = vsel %vm777, %v5108, 0.0
        %5737 = vadd.xlane.f32.xlu0 %v5736
        %v5738 = vpop.xlane.xlu0 %5737
        %v5739 = vsel %vm777, %v5109, 0.0
        %5740 = vadd.xlane.f32.xlu0 %v5739
        %v5741 = vpop.xlane.xlu0 %5740
        %v5742 = vsel %vm777, %v5110, 0.0
        %5743 = vadd.xlane.f32.xlu0 %v5742
        %v5744 = vpop.xlane.xlu0 %5743
        %v5745 = vsel %vm777, %v5111, 0.0
        %5746 = vadd.xlane.f32.xlu0 %v5745
        %v5747 = vpop.xlane.xlu0 %5746
        %v5748 = vsel %vm777, %v5112, 0.0
        %5749 = vadd.xlane.f32.xlu0 %v5748
        %v5750 = vpop.xlane.xlu0 %5749
        %v5751 = vsel %vm777, %v5113, 0.0
        %5752 = vadd.xlane.f32.xlu0 %v5751
        %v5753 = vpop.xlane.xlu0 %5752
        %v5754 = vsel %vm777, %v5114, 0.0
        %5755 = vadd.xlane.f32.xlu0 %v5754
        %v5756 = vpop.xlane.xlu0 %5755
        %v5757 = vsel %vm777, %v5115, 0.0
        %5758 = vadd.xlane.f32.xlu0 %v5757
        %v5759 = vpop.xlane.xlu0 %5758
        %v5760 = vsel %vm777, %v5116, 0.0
        %5761 = vadd.xlane.f32.xlu0 %v5760
        %v5762 = vpop.xlane.xlu0 %5761
        %v5763 = vsel %vm777, %v5117, 0.0
        %5764 = vadd.xlane.f32.xlu0 %v5763
        %v5765 = vpop.xlane.xlu0 %5764
        %v5766 = vsel %vm777, %v5118, 0.0
        %5767 = vadd.xlane.f32.xlu0 %v5766
        %v5768 = vpop.xlane.xlu0 %5767
        %v5769 = vsel %vm777, %v5119, 0.0
        %5770 = vadd.xlane.f32.xlu0 %v5769
        %v5771 = vpop.xlane.xlu0 %5770
        %v5772 = vsel %vm777, %v5120, 0.0
        %5773 = vadd.xlane.f32.xlu0 %v5772
        %v5774 = vpop.xlane.xlu0 %5773
        %v5775 = vsel %vm777, %v5121, 0.0
        %5776 = vadd.xlane.f32.xlu0 %v5775
        %v5777 = vpop.xlane.xlu0 %5776
        %v5778 = vsel %vm777, %v5122, 0.0
        %5779 = vadd.xlane.f32.xlu0 %v5778
        %v5780 = vpop.xlane.xlu0 %5779
        %v5781 = vsel %vm777, %v5123, 0.0
        %5782 = vadd.xlane.f32.xlu0 %v5781
        %v5783 = vpop.xlane.xlu0 %5782
        %v5784 = vsel %vm777, %v5124, 0.0
        %5785 = vadd.xlane.f32.xlu0 %v5784
        %v5786 = vpop.xlane.xlu0 %5785
        %v5787 = vsel %vm777, %v5125, 0.0
        %5788 = vadd.xlane.f32.xlu0 %v5787
        %v5789 = vpop.xlane.xlu0 %5788
        %v5790 = vsel %vm777, %v5126, 0.0
        %5791 = vadd.xlane.f32.xlu0 %v5790
        %v5792 = vpop.xlane.xlu0 %5791
        %v5793 = vsel %vm777, %v5127, 0.0
        %5794 = vadd.xlane.f32.xlu0 %v5793
        %v5795 = vpop.xlane.xlu0 %5794
        %v5796 = vsel %vm777, %v5128, 0.0
        %5797 = vadd.xlane.f32.xlu0 %v5796
        %v5798 = vpop.xlane.xlu0 %5797
        %v5799 = vsel %vm777, %v5129, 0.0
        %5800 = vadd.xlane.f32.xlu0 %v5799
        %v5801 = vpop.xlane.xlu0 %5800
        %v5802 = vsel %vm777, %v5130, 0.0
        %5803 = vadd.xlane.f32.xlu0 %v5802
        %v5804 = vpop.xlane.xlu0 %5803
        %v5805 = vsel %vm777, %v5131, 0.0
        %5806 = vadd.xlane.f32.xlu0 %v5805
        %v5807 = vpop.xlane.xlu0 %5806
        %v5808 = vsel %vm777, %v5132, 0.0
        %5809 = vadd.xlane.f32.xlu0 %v5808
        %v5810 = vpop.xlane.xlu0 %5809
        %v5811 = vsel %vm777, %v5133, 0.0
        %5812 = vadd.xlane.f32.xlu0 %v5811
        %v5813 = vpop.xlane.xlu0 %5812
        %v5814 = vsel %vm777, %v5134, 0.0
        %5815 = vadd.xlane.f32.xlu0 %v5814
        %v5816 = vpop.xlane.xlu0 %5815
        %v5817 = vsel %vm777, %v5135, 0.0
        %5818 = vadd.xlane.f32.xlu0 %v5817
        %v5819 = vpop.xlane.xlu0 %5818
        %v5820 = vsel %vm777, %v5136, 0.0
        %5821 = vadd.xlane.f32.xlu0 %v5820
        %v5822 = vpop.xlane.xlu0 %5821
        %v5823 = vsel %vm777, %v5137, 0.0
        %5824 = vadd.xlane.f32.xlu0 %v5823
        %v5825 = vpop.xlane.xlu0 %5824
        %v5826 = vsel %vm777, %v5138, 0.0
        %5827 = vadd.xlane.f32.xlu0 %v5826
        %v5828 = vpop.xlane.xlu0 %5827
        %v5829 = vsel %vm777, %v5139, 0.0
        %5830 = vadd.xlane.f32.xlu0 %v5829
        %v5831 = vpop.xlane.xlu0 %5830
        %v5832 = vsel %vm777, %v5140, 0.0
        %5833 = vadd.xlane.f32.xlu0 %v5832
        %v5834 = vpop.xlane.xlu0 %5833
        %v5835 = vsel %vm777, %v5141, 0.0
        %5836 = vadd.xlane.f32.xlu0 %v5835
        %v5837 = vpop.xlane.xlu0 %5836
        %v5838 = vsel %vm777, %v5142, 0.0
        %5839 = vadd.xlane.f32.xlu0 %v5838
        %v5840 = vpop.xlane.xlu0 %5839
        %v5841 = vsel %vm777, %v5143, 0.0
        %5842 = vadd.xlane.f32.xlu0 %v5841
        %v5843 = vpop.xlane.xlu0 %5842
        %v5844 = vsel %vm777, %v5144, 0.0
        %5845 = vadd.xlane.f32.xlu0 %v5844
        %v5846 = vpop.xlane.xlu0 %5845
        %v5847 = vsel %vm777, %v5145, 0.0
        %5848 = vadd.xlane.f32.xlu0 %v5847
        %v5849 = vpop.xlane.xlu0 %5848
        %v5850 = vsel %vm777, %v5146, 0.0
        %5851 = vadd.xlane.f32.xlu0 %v5850
        %v5852 = vpop.xlane.xlu0 %5851
        %v5853 = vsel %vm777, %v5147, 0.0
        %5854 = vadd.xlane.f32.xlu0 %v5853
        %v5855 = vpop.xlane.xlu0 %5854
        %v5856 = vsel %vm777, %v5148, 0.0
        %5857 = vadd.xlane.f32.xlu0 %v5856
        %v5858 = vpop.xlane.xlu0 %5857
        %v5859 = vsel %vm777, %v5149, 0.0
        %5860 = vadd.xlane.f32.xlu0 %v5859
        %v5861 = vpop.xlane.xlu0 %5860
        %v5862 = vsel %vm777, %v5150, 0.0
        %5863 = vadd.xlane.f32.xlu0 %v5862
        %v5864 = vpop.xlane.xlu0 %5863
        %v5865 = vsel %vm777, %v5151, 0.0
        %5866 = vadd.xlane.f32.xlu0 %v5865
        %v5867 = vpop.xlane.xlu0 %5866
        %v5868 = vsel %vm777, %v5152, 0.0
        %5869 = vadd.xlane.f32.xlu0 %v5868
        %v5870 = vpop.xlane.xlu0 %5869
        %v5871 = vsel %vm777, %v5153, 0.0
        %5872 = vadd.xlane.f32.xlu0 %v5871
        %v5873 = vpop.xlane.xlu0 %5872
        %v5874 = vsel %vm777, %v5154, 0.0
        %5875 = vadd.xlane.f32.xlu0 %v5874
        %v5876 = vpop.xlane.xlu0 %5875
        %v5877 = vsel %vm777, %v5155, 0.0
        %5878 = vadd.xlane.f32.xlu0 %v5877
        %v5879 = vpop.xlane.xlu0 %5878
        %v5880 = vsel %vm777, %v5156, 0.0
        %5881 = vadd.xlane.f32.xlu0 %v5880
        %v5882 = vpop.xlane.xlu0 %5881
        %v5883 = vsel %vm777, %v5157, 0.0
        %5884 = vadd.xlane.f32.xlu0 %v5883
        %v5885 = vpop.xlane.xlu0 %5884
        %v5886 = vsel %vm777, %v5158, 0.0
        %5887 = vadd.xlane.f32.xlu0 %v5886
        %v5888 = vpop.xlane.xlu0 %5887
        %v5889 = vsel %vm777, %v5159, 0.0
        %5890 = vadd.xlane.f32.xlu0 %v5889
        %v5891 = vpop.xlane.xlu0 %5890
        %v5892 = vsel %vm777, %v5160, 0.0
        %5893 = vadd.xlane.f32.xlu0 %v5892
        %v5894 = vpop.xlane.xlu0 %5893
        %v5895 = vsel %vm777, %v5161, 0.0
        %5896 = vadd.xlane.f32.xlu0 %v5895
        %v5897 = vpop.xlane.xlu0 %5896
        %v5898 = vsel %vm777, %v5162, 0.0
        %5899 = vadd.xlane.f32.xlu0 %v5898
        %v5900 = vpop.xlane.xlu0 %5899
        %v5901 = vsel %vm777, %v5163, 0.0
        %5902 = vadd.xlane.f32.xlu0 %v5901
        %v5903 = vpop.xlane.xlu0 %5902
        %v5904 = vsel %vm777, %v5164, 0.0
        %5905 = vadd.xlane.f32.xlu0 %v5904
        %v5906 = vpop.xlane.xlu0 %5905
        %v5907 = vsel %vm777, %v5165, 0.0
        %5908 = vadd.xlane.f32.xlu0 %v5907
        %v5909 = vpop.xlane.xlu0 %5908
        %v5910 = vsel %vm777, %v5166, 0.0
        %5911 = vadd.xlane.f32.xlu0 %v5910
        %v5912 = vpop.xlane.xlu0 %5911
        %v5913 = vsel %vm777, %v5167, 0.0
        %5914 = vadd.xlane.f32.xlu0 %v5913
        %v5915 = vpop.xlane.xlu0 %5914
        %v5916 = vsel %vm777, %v5168, 0.0
        %5917 = vadd.xlane.f32.xlu0 %v5916
        %v5918 = vpop.xlane.xlu0 %5917
        %v5919 = vsel %vm777, %v5169, 0.0
        %5920 = vadd.xlane.f32.xlu0 %v5919
        %v5921 = vpop.xlane.xlu0 %5920
        %v5922 = vsel %vm777, %v5170, 0.0
        %5923 = vadd.xlane.f32.xlu0 %v5922
        %v5924 = vpop.xlane.xlu0 %5923
        %v5925 = vsel %vm777, %v5171, 0.0
        %5926 = vadd.xlane.f32.xlu0 %v5925
        %v5927 = vpop.xlane.xlu0 %5926
        %v5928 = vsel %vm777, %v5172, 0.0
        %5929 = vadd.xlane.f32.xlu0 %v5928
        %v5930 = vpop.xlane.xlu0 %5929
        %v5931 = vsel %vm777, %v5173, 0.0
        %5932 = vadd.xlane.f32.xlu0 %v5931
        %v5933 = vpop.xlane.xlu0 %5932
        %v5934 = vsel %vm777, %v5174, 0.0
        %5935 = vadd.xlane.f32.xlu0 %v5934
        %v5936 = vpop.xlane.xlu0 %5935
        %v5937 = vsel %vm777, %v5175, 0.0
        %5938 = vadd.xlane.f32.xlu0 %v5937
        %v5939 = vpop.xlane.xlu0 %5938
        %v5940 = vsel %vm777, %v5176, 0.0
        %5941 = vadd.xlane.f32.xlu0 %v5940
        %v5942 = vpop.xlane.xlu0 %5941
        %v5943 = vsel %vm777, %v5177, 0.0
        %5944 = vadd.xlane.f32.xlu0 %v5943
        %v5945 = vpop.xlane.xlu0 %5944
        %v5946 = vsel %vm777, %v5178, 0.0
        %5947 = vadd.xlane.f32.xlu0 %v5946
        %v5948 = vpop.xlane.xlu0 %5947
        %v5949 = vsel %vm777, %v5179, 0.0
        %5950 = vadd.xlane.f32.xlu0 %v5949
        %v5951 = vpop.xlane.xlu0 %5950
        %v5952 = vsel %vm777, %v5180, 0.0
        %5953 = vadd.xlane.f32.xlu0 %v5952
        %v5954 = vpop.xlane.xlu0 %5953
        %v5955 = vsel %vm777, %v5181, 0.0
        %5956 = vadd.xlane.f32.xlu0 %v5955
        %v5957 = vpop.xlane.xlu0 %5956
        %v5958 = vsel %vm777, %v5182, 0.0
        %5959 = vadd.xlane.f32.xlu0 %v5958
        %v5960 = vpop.xlane.xlu0 %5959
        %v5961 = vsel %vm777, %v5183, 0.0
        %5962 = vadd.xlane.f32.xlu0 %v5961
        %v5963 = vpop.xlane.xlu0 %5962
        %v5964 = vsel %vm777, %v5184, 0.0
        %5965 = vadd.xlane.f32.xlu0 %v5964
        %v5966 = vpop.xlane.xlu0 %5965
        %v5967 = vsel %vm777, %v5185, 0.0
        %5968 = vadd.xlane.f32.xlu0 %v5967
        %v5969 = vpop.xlane.xlu0 %5968
        %v5970 = vsel %vm777, %v5186, 0.0
        %5971 = vadd.xlane.f32.xlu0 %v5970
        %v5972 = vpop.xlane.xlu0 %5971
        %v5973 = vsel %vm777, %v5187, 0.0
        %5974 = vadd.xlane.f32.xlu0 %v5973
        %v5975 = vpop.xlane.xlu0 %5974
        %v5976 = vsel %vm777, %v5188, 0.0
        %5977 = vadd.xlane.f32.xlu0 %v5976
        %v5978 = vpop.xlane.xlu0 %5977
        %v5979 = vsel %vm777, %v5189, 0.0
        %5980 = vadd.xlane.f32.xlu0 %v5979
        %v5981 = vpop.xlane.xlu0 %5980
        %v5982 = vsel %vm777, %v5190, 0.0
        %5983 = vadd.xlane.f32.xlu0 %v5982
        %v5984 = vpop.xlane.xlu0 %5983
        %v5985 = vsel %vm777, %v5191, 0.0
        %5986 = vadd.xlane.f32.xlu0 %v5985
        %v5987 = vpop.xlane.xlu0 %5986
        %v5988 = vsel %vm777, %v5192, 0.0
        %5989 = vadd.xlane.f32.xlu0 %v5988
        %v5990 = vpop.xlane.xlu0 %5989
        %v5991 = vsel %vm777, %v5193, 0.0
        %5992 = vadd.xlane.f32.xlu0 %v5991
        %v5993 = vpop.xlane.xlu0 %5992
        %v5994 = vsel %vm777, %v5194, 0.0
        %5995 = vadd.xlane.f32.xlu0 %v5994
        %v5996 = vpop.xlane.xlu0 %5995
        %v5997 = vsel %vm777, %v5195, 0.0
        %5998 = vadd.xlane.f32.xlu0 %v5997
        %v5999 = vpop.xlane.xlu0 %5998
        %v6000 = vsel %vm777, %v5196, 0.0
        %6001 = vadd.xlane.f32.xlu0 %v6000
        %v6002 = vpop.xlane.xlu0 %6001
        %v6003 = vsel %vm777, %v5197, 0.0
        %6004 = vadd.xlane.f32.xlu0 %v6003
        %v6005 = vpop.xlane.xlu0 %6004
        %v6006 = vsel %vm777, %v5198, 0.0
        %6007 = vadd.xlane.f32.xlu0 %v6006
        %v6008 = vpop.xlane.xlu0 %6007
        %v6009 = vsel %vm777, %v5199, 0.0
        %6010 = vadd.xlane.f32.xlu0 %v6009
        %v6011 = vpop.xlane.xlu0 %6010
        %v6012 = vsel %vm777, %v5200, 0.0
        %6013 = vadd.xlane.f32.xlu0 %v6012
        %v6014 = vpop.xlane.xlu0 %6013
        %v6015 = vsel %vm777, %v5201, 0.0
        %6016 = vadd.xlane.f32.xlu0 %v6015
        %v6017 = vpop.xlane.xlu0 %6016
        %v6018 = vsel %vm777, %v5202, 0.0
        %6019 = vadd.xlane.f32.xlu0 %v6018
        %v6020 = vpop.xlane.xlu0 %6019
        %v6021 = vsel %vm777, %v5203, 0.0
        %6022 = vadd.xlane.f32.xlu0 %v6021
        %v6023 = vpop.xlane.xlu0 %6022
        %v6024 = vsel %vm777, %v5204, 0.0
        %6025 = vadd.xlane.f32.xlu0 %v6024
        %v6026 = vpop.xlane.xlu0 %6025
        %v6027 = vsel %vm777, %v5205, 0.0
        %6028 = vadd.xlane.f32.xlu0 %v6027
        %v6029 = vpop.xlane.xlu0 %6028
        %v6030 = vsel %vm777, %v5206, 0.0
        %6031 = vadd.xlane.f32.xlu0 %v6030
        %v6032 = vpop.xlane.xlu0 %6031
        %v6033 = vsel %vm777, %v5207, 0.0
        %6034 = vadd.xlane.f32.xlu0 %v6033
        %v6035 = vpop.xlane.xlu0 %6034
        %v6036 = vsel %vm777, %v5208, 0.0
        %6037 = vadd.xlane.f32.xlu0 %v6036
        %v6038 = vpop.xlane.xlu0 %6037
        %v6039 = vsel %vm777, %v5209, 0.0
        %6040 = vadd.xlane.f32.xlu0 %v6039
        %v6041 = vpop.xlane.xlu0 %6040
        %v6042 = vsel %vm777, %v5210, 0.0
        %6043 = vadd.xlane.f32.xlu0 %v6042
        %v6044 = vpop.xlane.xlu0 %6043
        %v6045 = vsel %vm777, %v5211, 0.0
        %6046 = vadd.xlane.f32.xlu0 %v6045
        %v6047 = vpop.xlane.xlu0 %6046
        %v6048 = vsel %vm777, %v5212, 0.0
        %6049 = vadd.xlane.f32.xlu0 %v6048
        %v6050 = vpop.xlane.xlu0 %6049
        %v6051 = vsel %vm777, %v5213, 0.0
        %6052 = vadd.xlane.f32.xlu0 %v6051
        %v6053 = vpop.xlane.xlu0 %6052
        %v6054 = vsel %vm777, %v5214, 0.0
        %6055 = vadd.xlane.f32.xlu0 %v6054
        %v6056 = vpop.xlane.xlu0 %6055
        %v6057 = vsel %vm777, %v5215, 0.0
        %6058 = vadd.xlane.f32.xlu0 %v6057
        %v6059 = vpop.xlane.xlu0 %6058
        %v6060 = vsel %vm777, %v5216, 0.0
        %6061 = vadd.xlane.f32.xlu0 %v6060
        %v6062 = vpop.xlane.xlu0 %6061
        %v6063 = vsel %vm777, %v5217, 0.0
        %6064 = vadd.xlane.f32.xlu0 %v6063
        %v6065 = vpop.xlane.xlu0 %6064
        %v6066 = vsel %vm777, %v5218, 0.0
        %6067 = vadd.xlane.f32.xlu0 %v6066
        %v6068 = vpop.xlane.xlu0 %6067
        %v6069 = vsel %vm777, %v5219, 0.0
        %6070 = vadd.xlane.f32.xlu0 %v6069
        %v6071 = vpop.xlane.xlu0 %6070
        %v6072 = vsel %vm777, %v5220, 0.0
        %6073 = vadd.xlane.f32.xlu0 %v6072
        %v6074 = vpop.xlane.xlu0 %6073
        %v6075 = vsel %vm777, %v5221, 0.0
        %6076 = vadd.xlane.f32.xlu0 %v6075
        %v6077 = vpop.xlane.xlu0 %6076
        %v6078 = vsel %vm777, %v5222, 0.0
        %6079 = vadd.xlane.f32.xlu0 %v6078
        %v6080 = vpop.xlane.xlu0 %6079
        %v6081 = vsel %vm777, %v5223, 0.0
        %6082 = vadd.xlane.f32.xlu0 %v6081
        %v6083 = vpop.xlane.xlu0 %6082
        %v6084 = vsel %vm777, %v5224, 0.0
        %6085 = vadd.xlane.f32.xlu0 %v6084
        %v6086 = vpop.xlane.xlu0 %6085
        %v6087 = vsel %vm777, %v5225, 0.0
        %6088 = vadd.xlane.f32.xlu0 %v6087
        %v6089 = vpop.xlane.xlu0 %6088
        %v6090 = vsel %vm777, %v5226, 0.0
        %6091 = vadd.xlane.f32.xlu0 %v6090
        %v6092 = vpop.xlane.xlu0 %6091
        %v6093 = vsel %vm777, %v5227, 0.0
        %6094 = vadd.xlane.f32.xlu0 %v6093
        %v6095 = vpop.xlane.xlu0 %6094
        %v6096 = vsel %vm777, %v5228, 0.0
        %6097 = vadd.xlane.f32.xlu0 %v6096
        %v6098 = vpop.xlane.xlu0 %6097
        %v6099 = vsel %vm777, %v5229, 0.0
        %6100 = vadd.xlane.f32.xlu0 %v6099
        %v6101 = vpop.xlane.xlu0 %6100
        %v6102 = vsel %vm777, %v5230, 0.0
        %6103 = vadd.xlane.f32.xlu0 %v6102
        %v6104 = vpop.xlane.xlu0 %6103
        %v6105 = vsel %vm777, %v5231, 0.0
        %6106 = vadd.xlane.f32.xlu0 %v6105
        %v6107 = vpop.xlane.xlu0 %6106
        %v6108 = vsel %vm777, %v5232, 0.0
        %6109 = vadd.xlane.f32.xlu0 %v6108
        %v6110 = vpop.xlane.xlu0 %6109
        %v6111 = vsel %vm777, %v5233, 0.0
        %6112 = vadd.xlane.f32.xlu0 %v6111
        %v6113 = vpop.xlane.xlu0 %6112
        %v6114 = vsel %vm777, %v5234, 0.0
        %6115 = vadd.xlane.f32.xlu0 %v6114
        %v6116 = vpop.xlane.xlu0 %6115
        %v6117 = vsel %vm777, %v5235, 0.0
        %6118 = vadd.xlane.f32.xlu0 %v6117
        %v6119 = vpop.xlane.xlu0 %6118
        %v6120 = vsel %vm777, %v5236, 0.0
        %6121 = vadd.xlane.f32.xlu0 %v6120
        %v6122 = vpop.xlane.xlu0 %6121
        %v6123 = vsel %vm777, %v5237, 0.0
        %6124 = vadd.xlane.f32.xlu0 %v6123
        %v6125 = vpop.xlane.xlu0 %6124
        %v6126 = vsel %vm777, %v5238, 0.0
        %6127 = vadd.xlane.f32.xlu0 %v6126
        %v6128 = vpop.xlane.xlu0 %6127
        %v6129 = vsel %vm777, %v5239, 0.0
        %6130 = vadd.xlane.f32.xlu0 %v6129
        %v6131 = vpop.xlane.xlu0 %6130
        %v6132 = vsel %vm777, %v5240, 0.0
        %6133 = vadd.xlane.f32.xlu0 %v6132
        %v6134 = vpop.xlane.xlu0 %6133
        %v6135 = vsel %vm777, %v5241, 0.0
        %6136 = vadd.xlane.f32.xlu0 %v6135
        %v6137 = vpop.xlane.xlu0 %6136
        %v6138 = vsel %vm777, %v5242, 0.0
        %6139 = vadd.xlane.f32.xlu0 %v6138
        %v6140 = vpop.xlane.xlu0 %6139
        %v6141 = vsel %vm777, %v5243, 0.0
        %6142 = vadd.xlane.f32.xlu0 %v6141
        %v6143 = vpop.xlane.xlu0 %6142
        %v6144 = vsel %vm777, %v5244, 0.0
        %6145 = vadd.xlane.f32.xlu0 %v6144
        %v6146 = vpop.xlane.xlu0 %6145
        %v6147 = vsel %vm777, %v5245, 0.0
        %6148 = vadd.xlane.f32.xlu0 %v6147
        %v6149 = vpop.xlane.xlu0 %6148
        %v6150 = vsel %vm777, %v5246, 0.0
        %6151 = vadd.xlane.f32.xlu0 %v6150
        %v6152 = vpop.xlane.xlu0 %6151
        %v6153 = vsel %vm777, %v5247, 0.0
        %6154 = vadd.xlane.f32.xlu0 %v6153
        %v6155 = vpop.xlane.xlu0 %6154
        %v6156 = vsel %vm777, %v5248, 0.0
        %6157 = vadd.xlane.f32.xlu0 %v6156
        %v6158 = vpop.xlane.xlu0 %6157
        %v6159 = vsel %vm777, %v5249, 0.0
        %6160 = vadd.xlane.f32.xlu0 %v6159
        %v6161 = vpop.xlane.xlu0 %6160
        %v6162 = vsel %vm777, %v5250, 0.0
        %6163 = vadd.xlane.f32.xlu0 %v6162
        %v6164 = vpop.xlane.xlu0 %6163
        %v6165 = vsel %vm777, %v5251, 0.0
        %6166 = vadd.xlane.f32.xlu0 %v6165
        %v6167 = vpop.xlane.xlu0 %6166
        %v6168 = vsel %vm777, %v5252, 0.0
        %6169 = vadd.xlane.f32.xlu0 %v6168
        %v6170 = vpop.xlane.xlu0 %6169
        %v6171 = vsel %vm777, %v5253, 0.0
        %6172 = vadd.xlane.f32.xlu0 %v6171
        %v6173 = vpop.xlane.xlu0 %6172
        %v6174 = vsel %vm777, %v5254, 0.0
        %6175 = vadd.xlane.f32.xlu0 %v6174
        %v6176 = vpop.xlane.xlu0 %6175
        %v6177 = vsel %vm777, %v5255, 0.0
        %6178 = vadd.xlane.f32.xlu0 %v6177
        %v6179 = vpop.xlane.xlu0 %6178
        %v6180 = vsel %vm777, %v5256, 0.0
        %6181 = vadd.xlane.f32.xlu0 %v6180
        %v6182 = vpop.xlane.xlu0 %6181
        %v6183 = vsel %vm777, %v5257, 0.0
        %6184 = vadd.xlane.f32.xlu0 %v6183
        %v6185 = vpop.xlane.xlu0 %6184
        %v6186 = vsel %vm777, %v5258, 0.0
        %6187 = vadd.xlane.f32.xlu0 %v6186
        %v6188 = vpop.xlane.xlu0 %6187
        %v6189 = vsel %vm777, %v5259, 0.0
        %6190 = vadd.xlane.f32.xlu0 %v6189
        %v6191 = vpop.xlane.xlu0 %6190
        %v6192 = vsel %vm777, %v5260, 0.0
        %6193 = vadd.xlane.f32.xlu0 %v6192
        %v6194 = vpop.xlane.xlu0 %6193
        %v6195 = vsel %vm777, %v5261, 0.0
        %6196 = vadd.xlane.f32.xlu0 %v6195
        %v6197 = vpop.xlane.xlu0 %6196
        %v6198 = vsel %vm777, %v5262, 0.0
        %6199 = vadd.xlane.f32.xlu0 %v6198
        %v6200 = vpop.xlane.xlu0 %6199
        %v6201 = vsel %vm777, %v5263, 0.0
        %6202 = vadd.xlane.f32.xlu0 %v6201
        %v6203 = vpop.xlane.xlu0 %6202
        %v6204 = vsel %vm777, %v5264, 0.0
        %6205 = vadd.xlane.f32.xlu0 %v6204
        %v6206 = vpop.xlane.xlu0 %6205
        %v6207 = vsel %vm777, %v5265, 0.0
        %6208 = vadd.xlane.f32.xlu0 %v6207
        %v6209 = vpop.xlane.xlu0 %6208
        %v6210 = vsel %vm777, %v5266, 0.0
        %6211 = vadd.xlane.f32.xlu0 %v6210
        %v6212 = vpop.xlane.xlu0 %6211
        %v6213 = vsel %vm777, %v5267, 0.0
        %6214 = vadd.xlane.f32.xlu0 %v6213
        %v6215 = vpop.xlane.xlu0 %6214
        %v6216 = vsel %vm777, %v5268, 0.0
        %6217 = vadd.xlane.f32.xlu0 %v6216
        %v6218 = vpop.xlane.xlu0 %6217
        %v6219 = vsel %vm777, %v5269, 0.0
        %6220 = vadd.xlane.f32.xlu0 %v6219
        %v6221 = vpop.xlane.xlu0 %6220
        %v6222 = vsel %vm777, %v5270, 0.0
        %6223 = vadd.xlane.f32.xlu0 %v6222
        %v6224 = vpop.xlane.xlu0 %6223
        %v6225 = vsel %vm777, %v5271, 0.0
        %6226 = vadd.xlane.f32.xlu0 %v6225
        %v6227 = vpop.xlane.xlu0 %6226
        %v6228 = vsel %vm777, %v5272, 0.0
        %6229 = vadd.xlane.f32.xlu0 %v6228
        %v6230 = vpop.xlane.xlu0 %6229
        %v6231 = vsel %vm777, %v5273, 0.0
        %6232 = vadd.xlane.f32.xlu0 %v6231
        %v6233 = vpop.xlane.xlu0 %6232
        %v6234 = vsel %vm777, %v5274, 0.0
        %6235 = vadd.xlane.f32.xlu0 %v6234
        %v6236 = vpop.xlane.xlu0 %6235
        %v6237 = vsel %vm777, %v5275, 0.0
        %6238 = vadd.xlane.f32.xlu0 %v6237
        %v6239 = vpop.xlane.xlu0 %6238
        %v6240 = vsel %vm777, %v5276, 0.0
        %6241 = vadd.xlane.f32.xlu0 %v6240
        %v6242 = vpop.xlane.xlu0 %6241
        %v6243 = vsel %vm777, %v5277, 0.0
        %6244 = vadd.xlane.f32.xlu0 %v6243
        %v6245 = vpop.xlane.xlu0 %6244
        %v6246 = vsel %vm777, %v5278, 0.0
        %6247 = vadd.xlane.f32.xlu0 %v6246
        %v6248 = vpop.xlane.xlu0 %6247
        %v6249 = vsel %vm777, %v5279, 0.0
        %6250 = vadd.xlane.f32.xlu0 %v6249
        %v6251 = vpop.xlane.xlu0 %6250
        %v6252 = vsel %vm777, %v5280, 0.0
        %6253 = vadd.xlane.f32.xlu0 %v6252
        %v6254 = vpop.xlane.xlu0 %6253
        %v6255 = vsel %vm777, %v5281, 0.0
        %6256 = vadd.xlane.f32.xlu0 %v6255
        %v6257 = vpop.xlane.xlu0 %6256
        %v6258 = vsel %vm777, %v5282, 0.0
        %6259 = vadd.xlane.f32.xlu0 %v6258
        %v6260 = vpop.xlane.xlu0 %6259
        %v6261 = vsel %vm777, %v5283, 0.0
        %6262 = vadd.xlane.f32.xlu0 %v6261
        %v6263 = vpop.xlane.xlu0 %6262
        %v6264 = vsel %vm777, %v5284, 0.0
        %6265 = vadd.xlane.f32.xlu0 %v6264
        %v6266 = vpop.xlane.xlu0 %6265
        %v6267 = vsel %vm777, %v5285, 0.0
        %6268 = vadd.xlane.f32.xlu0 %v6267
        %v6269 = vpop.xlane.xlu0 %6268
        %v6270 = vsel %vm777, %v5286, 0.0
        %6271 = vadd.xlane.f32.xlu0 %v6270
        %v6272 = vpop.xlane.xlu0 %6271
        %v6273 = vsel %vm777, %v5287, 0.0
        %6274 = vadd.xlane.f32.xlu0 %v6273
        %v6275 = vpop.xlane.xlu0 %6274
        %v6276 = vsel %vm777, %v5288, 0.0
        %6277 = vadd.xlane.f32.xlu0 %v6276
        %v6278 = vpop.xlane.xlu0 %6277
        %v6279 = vsel %vm777, %v5289, 0.0
        %6280 = vadd.xlane.f32.xlu0 %v6279
        %v6281 = vpop.xlane.xlu0 %6280
        %v6282 = vsel %vm777, %v5290, 0.0
        %6283 = vadd.xlane.f32.xlu0 %v6282
        %v6284 = vpop.xlane.xlu0 %6283
        %v6285 = vsel %vm777, %v5291, 0.0
        %6286 = vadd.xlane.f32.xlu0 %v6285
        %v6287 = vpop.xlane.xlu0 %6286
        %v6288 = vsel %vm777, %v5292, 0.0
        %6289 = vadd.xlane.f32.xlu0 %v6288
        %v6290 = vpop.xlane.xlu0 %6289
        %v6291 = vsel %vm777, %v5293, 0.0
        %6292 = vadd.xlane.f32.xlu0 %v6291
        %v6293 = vpop.xlane.xlu0 %6292
        %v6294 = vsel %vm777, %v5294, 0.0
        %6295 = vadd.xlane.f32.xlu0 %v6294
        %v6296 = vpop.xlane.xlu0 %6295
        %v6297 = vsel %vm777, %v5295, 0.0
        %6298 = vadd.xlane.f32.xlu0 %v6297
        %v6299 = vpop.xlane.xlu0 %6298
        %v6300 = vsel %vm777, %v5296, 0.0
        %6301 = vadd.xlane.f32.xlu0 %v6300
        %v6302 = vpop.xlane.xlu0 %6301
        %v6303 = vsel %vm777, %v5297, 0.0
        %6304 = vadd.xlane.f32.xlu0 %v6303
        %v6305 = vpop.xlane.xlu0 %6304
        %v6306 = vsel %vm777, %v5298, 0.0
        %6307 = vadd.xlane.f32.xlu0 %v6306
        %v6308 = vpop.xlane.xlu0 %6307
        %v6309 = vsel %vm777, %v5299, 0.0
        %6310 = vadd.xlane.f32.xlu0 %v6309
        %v6311 = vpop.xlane.xlu0 %6310
        %v6312 = vsel %vm777, %v5300, 0.0
        %6313 = vadd.xlane.f32.xlu0 %v6312
        %v6314 = vpop.xlane.xlu0 %6313
        %v6315 = vsel %vm777, %v5301, 0.0
        %6316 = vadd.xlane.f32.xlu0 %v6315
        %v6317 = vpop.xlane.xlu0 %6316
        %v6318 = vsel %vm777, %v5302, 0.0
        %6319 = vadd.xlane.f32.xlu0 %v6318
        %v6320 = vpop.xlane.xlu0 %6319
        %v6321 = vsel %vm777, %v5303, 0.0
        %6322 = vadd.xlane.f32.xlu0 %v6321
        %v6323 = vpop.xlane.xlu0 %6322
        %v6324 = vsel %vm777, %v5304, 0.0
        %6325 = vadd.xlane.f32.xlu0 %v6324
        %v6326 = vpop.xlane.xlu0 %6325
        %v6327 = vsel %vm777, %v5305, 0.0
        %6328 = vadd.xlane.f32.xlu0 %v6327
        %v6329 = vpop.xlane.xlu0 %6328
        %v6330 = vsel %vm777, %v5306, 0.0
        %6331 = vadd.xlane.f32.xlu0 %v6330
        %v6332 = vpop.xlane.xlu0 %6331
        %v6333 = vsel %vm777, %v5307, 0.0
        %6334 = vadd.xlane.f32.xlu0 %v6333
        %v6335 = vpop.xlane.xlu0 %6334
        %v6336 = vsel %vm777, %v5308, 0.0
        %6337 = vadd.xlane.f32.xlu0 %v6336
        %v6338 = vpop.xlane.xlu0 %6337
        %v6339 = vsel %vm777, %v5309, 0.0
        %6340 = vadd.xlane.f32.xlu0 %v6339
        %v6341 = vpop.xlane.xlu0 %6340
        %v6342 = vsel %vm777, %v5310, 0.0
        %6343 = vadd.xlane.f32.xlu0 %v6342
        %v6344 = vpop.xlane.xlu0 %6343
        %v6345 = vsel %vm777, %v5311, 0.0
        %6346 = vadd.xlane.f32.xlu0 %v6345
        %v6347 = vpop.xlane.xlu0 %6346
        %v6348 = vsel %vm777, %v5312, 0.0
        %6349 = vadd.xlane.f32.xlu0 %v6348
        %v6350 = vpop.xlane.xlu0 %6349
        %v6351 = vsel %vm777, %v5313, 0.0
        %6352 = vadd.xlane.f32.xlu0 %v6351
        %v6353 = vpop.xlane.xlu0 %6352
        %v6354 = vsel %vm777, %v5314, 0.0
        %6355 = vadd.xlane.f32.xlu0 %v6354
        %v6356 = vpop.xlane.xlu0 %6355
        %v6357 = vsel %vm777, %v5315, 0.0
        %6358 = vadd.xlane.f32.xlu0 %v6357
        %v6359 = vpop.xlane.xlu0 %6358
        %v6360 = vsel %vm777, %v5316, 0.0
        %6361 = vadd.xlane.f32.xlu0 %v6360
        %v6362 = vpop.xlane.xlu0 %6361
        %v6363 = vsel %vm777, %v5317, 0.0
        %6364 = vadd.xlane.f32.xlu0 %v6363
        %v6365 = vpop.xlane.xlu0 %6364
        %v6366 = vsel %vm777, %v5318, 0.0
        %6367 = vadd.xlane.f32.xlu0 %v6366
        %v6368 = vpop.xlane.xlu0 %6367
        %v6369 = vsel %vm777, %v5319, 0.0
        %6370 = vadd.xlane.f32.xlu0 %v6369
        %v6371 = vpop.xlane.xlu0 %6370
        %v6372 = vsel %vm777, %v5320, 0.0
        %6373 = vadd.xlane.f32.xlu0 %v6372
        %v6374 = vpop.xlane.xlu0 %6373
        %v6375 = vsel %vm777, %v5321, 0.0
        %6376 = vadd.xlane.f32.xlu0 %v6375
        %v6377 = vpop.xlane.xlu0 %6376
        %v6378 = vsel %vm777, %v5322, 0.0
        %6379 = vadd.xlane.f32.xlu0 %v6378
        %v6380 = vpop.xlane.xlu0 %6379
        %v6381 = vsel %vm777, %v5323, 0.0
        %6382 = vadd.xlane.f32.xlu0 %v6381
        %v6383 = vpop.xlane.xlu0 %6382
        %v6384 = vsel %vm777, %v5324, 0.0
        %6385 = vadd.xlane.f32.xlu0 %v6384
        %v6386 = vpop.xlane.xlu0 %6385
        %v6387 = vsel %vm777, %v5325, 0.0
        %6388 = vadd.xlane.f32.xlu0 %v6387
        %v6389 = vpop.xlane.xlu0 %6388
        %v6390 = vsel %vm777, %v5326, 0.0
        %6391 = vadd.xlane.f32.xlu0 %v6390
        %v6392 = vpop.xlane.xlu0 %6391
        %v6393 = vsel %vm777, %v5327, 0.0
        %6394 = vadd.xlane.f32.xlu0 %v6393
        %v6395 = vpop.xlane.xlu0 %6394
        %v6396 = vsel %vm777, %v5328, 0.0
        %6397 = vadd.xlane.f32.xlu0 %v6396
        %v6398 = vpop.xlane.xlu0 %6397
        %v6399 = vsel %vm777, %v5329, 0.0
        %6400 = vadd.xlane.f32.xlu0 %v6399
        %v6401 = vpop.xlane.xlu0 %6400
        %v6402 = vsel %vm777, %v5330, 0.0
        %6403 = vadd.xlane.f32.xlu0 %v6402
        %v6404 = vpop.xlane.xlu0 %6403
        %v6405 = vsel %vm777, %v5331, 0.0
        %6406 = vadd.xlane.f32.xlu0 %v6405
        %v6407 = vpop.xlane.xlu0 %6406
        %v6408 = vsel %vm777, %v5332, 0.0
        %6409 = vadd.xlane.f32.xlu0 %v6408
        %v6410 = vpop.xlane.xlu0 %6409
        %v6411 = vsel %vm777, %v5333, 0.0
        %6412 = vadd.xlane.f32.xlu0 %v6411
        %v6413 = vpop.xlane.xlu0 %6412
        %v6414 = vsel %vm777, %v5334, 0.0
        %6415 = vadd.xlane.f32.xlu0 %v6414
        %v6416 = vpop.xlane.xlu0 %6415
        %v6417 = vsel %vm777, %v5335, 0.0
        %6418 = vadd.xlane.f32.xlu0 %v6417
        %v6419 = vpop.xlane.xlu0 %6418
        %v6420 = vsel %vm777, %v5336, 0.0
        %6421 = vadd.xlane.f32.xlu0 %v6420
        %v6422 = vpop.xlane.xlu0 %6421
        %v6423 = vsel %vm777, %v5337, 0.0
        %6424 = vadd.xlane.f32.xlu0 %v6423
        %v6425 = vpop.xlane.xlu0 %6424
        %v6426 = vsel %vm777, %v5338, 0.0
        %6427 = vadd.xlane.f32.xlu0 %v6426
        %v6428 = vpop.xlane.xlu0 %6427
        %v6429 = vsel %vm777, %v5339, 0.0
        %6430 = vadd.xlane.f32.xlu0 %v6429
        %v6431 = vpop.xlane.xlu0 %6430
        %v6432 = vsel %vm777, %v5340, 0.0
        %6433 = vadd.xlane.f32.xlu0 %v6432
        %v6434 = vpop.xlane.xlu0 %6433
        %v6435 = vsel %vm777, %v5341, 0.0
        %6436 = vadd.xlane.f32.xlu0 %v6435
        %v6437 = vpop.xlane.xlu0 %6436
        %v6438 = vsel %vm777, %v5342, 0.0
        %6439 = vadd.xlane.f32.xlu0 %v6438
        %v6440 = vpop.xlane.xlu0 %6439
        %v6441 = vsel %vm777, %v5343, 0.0
        %6442 = vadd.xlane.f32.xlu0 %v6441
        %v6443 = vpop.xlane.xlu0 %6442
        %v6444 = vsel %vm777, %v5344, 0.0
        %6445 = vadd.xlane.f32.xlu0 %v6444
        %v6446 = vpop.xlane.xlu0 %6445
        %v6447 = vsel %vm777, %v5345, 0.0
        %6448 = vadd.xlane.f32.xlu0 %v6447
        %v6449 = vpop.xlane.xlu0 %6448
        %v6450 = vsel %vm777, %v5346, 0.0
        %6451 = vadd.xlane.f32.xlu0 %v6450
        %v6452 = vpop.xlane.xlu0 %6451
        %v6453 = vsel %vm777, %v5347, 0.0
        %6454 = vadd.xlane.f32.xlu0 %v6453
        %v6455 = vpop.xlane.xlu0 %6454
        %v6456 = vsel %vm777, %v5348, 0.0
        %6457 = vadd.xlane.f32.xlu0 %v6456
        %v6458 = vpop.xlane.xlu0 %6457
        %v6459 = vsel %vm777, %v5349, 0.0
        %6460 = vadd.xlane.f32.xlu0 %v6459
        %v6461 = vpop.xlane.xlu0 %6460
        %v6462 = vsel %vm777, %v5350, 0.0
        %6463 = vadd.xlane.f32.xlu0 %v6462
        %v6464 = vpop.xlane.xlu0 %6463
        %v6465 = vsel %vm777, %v5351, 0.0
        %6466 = vadd.xlane.f32.xlu0 %v6465
        %v6467 = vpop.xlane.xlu0 %6466
        %v6468 = vsel %vm777, %v5352, 0.0
        %6469 = vadd.xlane.f32.xlu0 %v6468
        %v6470 = vpop.xlane.xlu0 %6469
        %v6471 = vsel %vm777, %v5353, 0.0
        %6472 = vadd.xlane.f32.xlu0 %v6471
        %v6473 = vpop.xlane.xlu0 %6472
        %v6474 = vsel %vm777, %v5354, 0.0
        %6475 = vadd.xlane.f32.xlu0 %v6474
        %v6476 = vpop.xlane.xlu0 %6475
        %v6477 = vsel %vm777, %v5355, 0.0
        %6478 = vadd.xlane.f32.xlu0 %v6477
        %v6479 = vpop.xlane.xlu0 %6478
        %v6480 = vsel %vm777, %v5356, 0.0
        %6481 = vadd.xlane.f32.xlu0 %v6480
        %v6482 = vpop.xlane.xlu0 %6481
        %v6483 = vsel %vm777, %v5357, 0.0
        %6484 = vadd.xlane.f32.xlu0 %v6483
        %v6485 = vpop.xlane.xlu0 %6484
        %v6486 = vsel %vm777, %v5358, 0.0
        %6487 = vadd.xlane.f32.xlu0 %v6486
        %v6488 = vpop.xlane.xlu0 %6487
        %v6489 = vsel %vm777, %v5359, 0.0
        %6490 = vadd.xlane.f32.xlu0 %v6489
        %v6491 = vpop.xlane.xlu0 %6490
        %v6492 = vsel %vm777, %v5360, 0.0
        %6493 = vadd.xlane.f32.xlu0 %v6492
        %v6494 = vpop.xlane.xlu0 %6493
        %v6495 = vsel %vm777, %v5361, 0.0
        %6496 = vadd.xlane.f32.xlu0 %v6495
        %v6497 = vpop.xlane.xlu0 %6496
        %v6498 = vsel %vm777, %v5362, 0.0
        %6499 = vadd.xlane.f32.xlu0 %v6498
        %v6500 = vpop.xlane.xlu0 %6499
        %v6501 = vsel %vm777, %v5363, 0.0
        %6502 = vadd.xlane.f32.xlu0 %v6501
        %v6503 = vpop.xlane.xlu0 %6502
        %v6504 = vsel %vm777, %v5364, 0.0
        %6505 = vadd.xlane.f32.xlu0 %v6504
        %v6506 = vpop.xlane.xlu0 %6505
        %v6507 = vsel %vm777, %v5365, 0.0
        %6508 = vadd.xlane.f32.xlu0 %v6507
        %v6509 = vpop.xlane.xlu0 %6508
        %v6510 = vsel %vm777, %v5366, 0.0
        %6511 = vadd.xlane.f32.xlu0 %v6510
        %v6512 = vpop.xlane.xlu0 %6511
        %v6513 = vsel %vm777, %v5367, 0.0
        %6514 = vadd.xlane.f32.xlu0 %v6513
        %v6515 = vpop.xlane.xlu0 %6514
        %v6516 = vsel %vm777, %v5368, 0.0
        %6517 = vadd.xlane.f32.xlu0 %v6516
        %v6518 = vpop.xlane.xlu0 %6517
        %v6519 = vsel %vm777, %v5369, 0.0
        %6520 = vadd.xlane.f32.xlu0 %v6519
        %v6521 = vpop.xlane.xlu0 %6520
        %v6522 = vsel %vm777, %v5370, 0.0
        %6523 = vadd.xlane.f32.xlu0 %v6522
        %v6524 = vpop.xlane.xlu0 %6523
        %v6525 = vsel %vm777, %v5371, 0.0
        %6526 = vadd.xlane.f32.xlu0 %v6525
        %v6527 = vpop.xlane.xlu0 %6526
        %v6528 = vsel %vm777, %v5372, 0.0
        %6529 = vadd.xlane.f32.xlu0 %v6528
        %v6530 = vpop.xlane.xlu0 %6529
        %v6531 = vsel %vm777, %v5373, 0.0
        %6532 = vadd.xlane.f32.xlu0 %v6531
        %v6533 = vpop.xlane.xlu0 %6532
        %v6534 = vsel %vm777, %v5374, 0.0
        %6535 = vadd.xlane.f32.xlu0 %v6534
        %v6536 = vpop.xlane.xlu0 %6535
        %v6537 = vsel %vm777, %v5375, 0.0
        %6538 = vadd.xlane.f32.xlu0 %v6537
        %v6539 = vpop.xlane.xlu0 %6538
        %v6540 = vsel %vm777, %v5376, 0.0
        %6541 = vadd.xlane.f32.xlu0 %v6540
        %v6542 = vpop.xlane.xlu0 %6541
        %v6543 = vsel %vm777, %v5377, 0.0
        %6544 = vadd.xlane.f32.xlu0 %v6543
        %v6545 = vpop.xlane.xlu0 %6544
        %v6546 = vsel %vm777, %v5378, 0.0
        %6547 = vadd.xlane.f32.xlu0 %v6546
        %v6548 = vpop.xlane.xlu0 %6547
        %v6549 = vsel %vm777, %v5379, 0.0
        %6550 = vadd.xlane.f32.xlu0 %v6549
        %v6551 = vpop.xlane.xlu0 %6550
        %v6552 = vsel %vm777, %v5380, 0.0
        %6553 = vadd.xlane.f32.xlu0 %v6552
        %v6554 = vpop.xlane.xlu0 %6553
        %v6555 = vsel %vm777, %v5381, 0.0
        %6556 = vadd.xlane.f32.xlu0 %v6555
        %v6557 = vpop.xlane.xlu0 %6556
        %v6558 = vsel %vm777, %v5382, 0.0
        %6559 = vadd.xlane.f32.xlu0 %v6558
        %v6560 = vpop.xlane.xlu0 %6559
        %v6561 = vsel %vm777, %v5383, 0.0
        %6562 = vadd.xlane.f32.xlu0 %v6561
        %v6563 = vpop.xlane.xlu0 %6562
        %v6564 = vsel %vm777, %v5384, 0.0
        %6565 = vadd.xlane.f32.xlu0 %v6564
        %v6566 = vpop.xlane.xlu0 %6565
        %v6567 = vsel %vm777, %v5385, 0.0
        %6568 = vadd.xlane.f32.xlu0 %v6567
        %v6569 = vpop.xlane.xlu0 %6568
        %v6570 = vsel %vm777, %v5386, 0.0
        %6571 = vadd.xlane.f32.xlu0 %v6570
        %v6572 = vpop.xlane.xlu0 %6571
        %v6573 = vsel %vm777, %v5387, 0.0
        %6574 = vadd.xlane.f32.xlu0 %v6573
        %v6575 = vpop.xlane.xlu0 %6574
        %v6576 = vsel %vm777, %v5388, 0.0
        %6577 = vadd.xlane.f32.xlu0 %v6576
        %v6578 = vpop.xlane.xlu0 %6577
        %v6579 = vsel %vm777, %v5389, 0.0
        %6580 = vadd.xlane.f32.xlu0 %v6579
        %v6581 = vpop.xlane.xlu0 %6580
        %v6582 = vsel %vm777, %v5390, 0.0
        %6583 = vadd.xlane.f32.xlu0 %v6582
        %v6584 = vpop.xlane.xlu0 %6583
        %v6585 = vsel %vm777, %v5391, 0.0
        %6586 = vadd.xlane.f32.xlu0 %v6585
        %v6587 = vpop.xlane.xlu0 %6586
        %v6588 = vsel %vm777, %v5392, 0.0
        %6589 = vadd.xlane.f32.xlu0 %v6588
        %v6590 = vpop.xlane.xlu0 %6589
        %v6591 = vsel %vm777, %v5393, 0.0
        %6592 = vadd.xlane.f32.xlu0 %v6591
        %v6593 = vpop.xlane.xlu0 %6592
        %v6594 = vsel %vm777, %v5394, 0.0
        %6595 = vadd.xlane.f32.xlu0 %v6594
        %v6596 = vpop.xlane.xlu0 %6595
        %v6597 = vsel %vm777, %v5395, 0.0
        %6598 = vadd.xlane.f32.xlu0 %v6597
        %v6599 = vpop.xlane.xlu0 %6598
        %v6600 = vsel %vm777, %v5396, 0.0
        %6601 = vadd.xlane.f32.xlu0 %v6600
        %v6602 = vpop.xlane.xlu0 %6601
        %v6603 = vsel %vm777, %v5397, 0.0
        %6604 = vadd.xlane.f32.xlu0 %v6603
        %v6605 = vpop.xlane.xlu0 %6604
        %v6606 = vsel %vm777, %v5398, 0.0
        %6607 = vadd.xlane.f32.xlu0 %v6606
        %v6608 = vpop.xlane.xlu0 %6607
        %v6609 = vsel %vm777, %v5399, 0.0
        %6610 = vadd.xlane.f32.xlu0 %v6609
        %v6611 = vpop.xlane.xlu0 %6610
        %v6612 = vsel %vm777, %v5400, 0.0
        %6613 = vadd.xlane.f32.xlu0 %v6612
        %v6614 = vpop.xlane.xlu0 %6613
        %v6615 = vsel %vm777, %v5401, 0.0
        %6616 = vadd.xlane.f32.xlu0 %v6615
        %v6617 = vpop.xlane.xlu0 %6616
        %v6618 = vsel %vm777, %v5402, 0.0
        %6619 = vadd.xlane.f32.xlu0 %v6618
        %v6620 = vpop.xlane.xlu0 %6619
        %v6621 = vsel %vm777, %v5403, 0.0
        %6622 = vadd.xlane.f32.xlu0 %v6621
        %v6623 = vpop.xlane.xlu0 %6622
        %v6624 = vsel %vm777, %v5404, 0.0
        %6625 = vadd.xlane.f32.xlu0 %v6624
        %v6626 = vpop.xlane.xlu0 %6625
        %v6627 = vsel %vm777, %v5405, 0.0
        %6628 = vadd.xlane.f32.xlu0 %v6627
        %v6629 = vpop.xlane.xlu0 %6628
        %v6630 = vsel %vm777, %v5406, 0.0
        %6631 = vadd.xlane.f32.xlu0 %v6630
        %v6632 = vpop.xlane.xlu0 %6631
        %v6633 = vsel %vm777, %v5407, 0.0
        %6634 = vadd.xlane.f32.xlu0 %v6633
        %v6635 = vpop.xlane.xlu0 %6634
        %v6636 = vsel %vm777, %v5408, 0.0
        %6637 = vadd.xlane.f32.xlu0 %v6636
        %v6638 = vpop.xlane.xlu0 %6637
        %v6639 = vsel %vm777, %v5409, 0.0
        %6640 = vadd.xlane.f32.xlu0 %v6639
        %v6641 = vpop.xlane.xlu0 %6640
        %v6642 = vsel %vm777, %v5410, 0.0
        %6643 = vadd.xlane.f32.xlu0 %v6642
        %v6644 = vpop.xlane.xlu0 %6643
        %v6645 = vsel %vm777, %v5411, 0.0
        %6646 = vadd.xlane.f32.xlu0 %v6645
        %v6647 = vpop.xlane.xlu0 %6646
        %v6648 = vsel %vm777, %v5412, 0.0
        %6649 = vadd.xlane.f32.xlu0 %v6648
        %v6650 = vpop.xlane.xlu0 %6649
        %v6651 = vsel %vm777, %v5413, 0.0
        %6652 = vadd.xlane.f32.xlu0 %v6651
        %v6653 = vpop.xlane.xlu0 %6652
        %v6654 = vsel %vm777, %v5414, 0.0
        %6655 = vadd.xlane.f32.xlu0 %v6654
        %v6656 = vpop.xlane.xlu0 %6655
        %v6657 = vsel %vm777, %v5415, 0.0
        %6658 = vadd.xlane.f32.xlu0 %v6657
        %v6659 = vpop.xlane.xlu0 %6658
        %v6660 = vsel %vm777, %v5416, 0.0
        %6661 = vadd.xlane.f32.xlu0 %v6660
        %v6662 = vpop.xlane.xlu0 %6661
        %v6663 = vsel %vm777, %v5417, 0.0
        %6664 = vadd.xlane.f32.xlu0 %v6663
        %v6665 = vpop.xlane.xlu0 %6664
        %v6666 = vsel %vm777, %v5418, 0.0
        %6667 = vadd.xlane.f32.xlu0 %v6666
        %v6668 = vpop.xlane.xlu0 %6667
        %v6669 = vsel %vm777, %v5419, 0.0
        %6670 = vadd.xlane.f32.xlu0 %v6669
        %v6671 = vpop.xlane.xlu0 %6670
        %v6672 = vsel %vm777, %v5420, 0.0
        %6673 = vadd.xlane.f32.xlu0 %v6672
        %v6674 = vpop.xlane.xlu0 %6673
        %v6675 = vsel %vm777, %v5421, 0.0
        %6676 = vadd.xlane.f32.xlu0 %v6675
        %v6677 = vpop.xlane.xlu0 %6676
        %v6678 = vsel %vm777, %v5422, 0.0
        %6679 = vadd.xlane.f32.xlu0 %v6678
        %v6680 = vpop.xlane.xlu0 %6679
        %v6681 = vsel %vm777, %v5423, 0.0
        %6682 = vadd.xlane.f32.xlu0 %v6681
        %v6683 = vpop.xlane.xlu0 %6682
        %v6684 = vsel %vm777, %v5424, 0.0
        %6685 = vadd.xlane.f32.xlu0 %v6684
        %v6686 = vpop.xlane.xlu0 %6685
        %v6687 = vsel %vm777, %v5425, 0.0
        %6688 = vadd.xlane.f32.xlu0 %v6687
        %v6689 = vpop.xlane.xlu0 %6688
        %v6690 = vsel %vm777, %v5426, 0.0
        %6691 = vadd.xlane.f32.xlu0 %v6690
        %v6692 = vpop.xlane.xlu0 %6691
        %v6693 = vsel %vm777, %v5427, 0.0
        %6694 = vadd.xlane.f32.xlu0 %v6693
        %v6695 = vpop.xlane.xlu0 %6694
        %v6696 = vsel %vm777, %v5428, 0.0
        %6697 = vadd.xlane.f32.xlu0 %v6696
        %v6698 = vpop.xlane.xlu0 %6697
        %v6699 = vsel %vm777, %v5429, 0.0
        %6700 = vadd.xlane.f32.xlu0 %v6699
        %v6701 = vpop.xlane.xlu0 %6700
        %v6702 = vsel %vm777, %v5430, 0.0
        %6703 = vadd.xlane.f32.xlu0 %v6702
        %v6704 = vpop.xlane.xlu0 %6703
        %v6705 = vsel %vm777, %v5431, 0.0
        %6706 = vadd.xlane.f32.xlu0 %v6705
        %v6707 = vpop.xlane.xlu0 %6706
        %v6708 = vsel %vm777, %v5432, 0.0
        %6709 = vadd.xlane.f32.xlu0 %v6708
        %v6710 = vpop.xlane.xlu0 %6709
        %v6711 = vsel %vm777, %v5433, 0.0
        %6712 = vadd.xlane.f32.xlu0 %v6711
        %v6713 = vpop.xlane.xlu0 %6712
        %v6714 = vsel %vm777, %v5434, 0.0
        %6715 = vadd.xlane.f32.xlu0 %v6714
        %v6716 = vpop.xlane.xlu0 %6715
        %v6717 = vsel %vm777, %v5435, 0.0
        %6718 = vadd.xlane.f32.xlu0 %v6717
        %v6719 = vpop.xlane.xlu0 %6718
        %v6720 = vsel %vm777, %v5436, 0.0
        %6721 = vadd.xlane.f32.xlu0 %v6720
        %v6722 = vpop.xlane.xlu0 %6721
        %v6723 = vsel %vm777, %v5437, 0.0
        %6724 = vadd.xlane.f32.xlu0 %v6723
        %v6725 = vpop.xlane.xlu0 %6724
        %v6726 = vsel %vm777, %v5438, 0.0
        %6727 = vadd.xlane.f32.xlu0 %v6726
        %v6728 = vpop.xlane.xlu0 %6727
        %v6729 = vsel %vm777, %v5439, 0.0
        %6730 = vadd.xlane.f32.xlu0 %v6729
        %v6731 = vpop.xlane.xlu0 %6730
        %v6732 = vsel %vm777, %v5440, 0.0
        %6733 = vadd.xlane.f32.xlu0 %v6732
        %v6734 = vpop.xlane.xlu0 %6733
        %v6735 = vsel %vm777, %v5441, 0.0
        %6736 = vadd.xlane.f32.xlu0 %v6735
        %v6737 = vpop.xlane.xlu0 %6736
        %v6738 = vsel %vm777, %v5442, 0.0
        %6739 = vadd.xlane.f32.xlu0 %v6738
        %v6740 = vpop.xlane.xlu0 %6739
        %v6741 = vsel %vm777, %v5443, 0.0
        %6742 = vadd.xlane.f32.xlu0 %v6741
        %v6743 = vpop.xlane.xlu0 %6742
        %v6744 = vsel %vm777, %v5444, 0.0
        %6745 = vadd.xlane.f32.xlu0 %v6744
        %v6746 = vpop.xlane.xlu0 %6745
        %v6747 = vsel %vm777, %v5445, 0.0
        %6748 = vadd.xlane.f32.xlu0 %v6747
        %v6749 = vpop.xlane.xlu0 %6748
        %v6750 = vsel %vm777, %v5446, 0.0
        %6751 = vadd.xlane.f32.xlu0 %v6750
        %v6752 = vpop.xlane.xlu0 %6751
        %v6753 = vsel %vm777, %v5447, 0.0
        %6754 = vadd.xlane.f32.xlu0 %v6753
        %v6755 = vpop.xlane.xlu0 %6754
        %v6756 = vsel %vm777, %v5448, 0.0
        %6757 = vadd.xlane.f32.xlu0 %v6756
        %v6758 = vpop.xlane.xlu0 %6757
        %v6759 = vsel %vm777, %v5449, 0.0
        %6760 = vadd.xlane.f32.xlu0 %v6759
        %v6761 = vpop.xlane.xlu0 %6760
        %v6762 = vsel %vm777, %v5450, 0.0
        %6763 = vadd.xlane.f32.xlu0 %v6762
        %v6764 = vpop.xlane.xlu0 %6763
        %v6765 = vsel %vm777, %v5451, 0.0
        %6766 = vadd.xlane.f32.xlu0 %v6765
        %v6767 = vpop.xlane.xlu0 %6766
        %v6768 = vsel %vm777, %v5452, 0.0
        %6769 = vadd.xlane.f32.xlu0 %v6768
        %v6770 = vpop.xlane.xlu0 %6769
        %v6771 = vsel %vm777, %v5453, 0.0
        %6772 = vadd.xlane.f32.xlu0 %v6771
        %v6773 = vpop.xlane.xlu0 %6772
        %v6774 = vsel %vm777, %v5454, 0.0
        %6775 = vadd.xlane.f32.xlu0 %v6774
        %v6776 = vpop.xlane.xlu0 %6775
        %v6777 = vsel %vm777, %v5455, 0.0
        %6778 = vadd.xlane.f32.xlu0 %v6777
        %v6779 = vpop.xlane.xlu0 %6778
        %v6780 = vsel %vm777, %v5456, 0.0
        %6781 = vadd.xlane.f32.xlu0 %v6780
        %v6782 = vpop.xlane.xlu0 %6781
        %v6783 = vsel %vm777, %v5457, 0.0
        %6784 = vadd.xlane.f32.xlu0 %v6783
        %v6785 = vpop.xlane.xlu0 %6784
        %v6786 = vsel %vm777, %v5458, 0.0
        %6787 = vadd.xlane.f32.xlu0 %v6786
        %v6788 = vpop.xlane.xlu0 %6787
        %v6789 = vsel %vm777, %v5459, 0.0
        %6790 = vadd.xlane.f32.xlu0 %v6789
        %v6791 = vpop.xlane.xlu0 %6790
        %v6792 = vsel %vm777, %v5460, 0.0
        %6793 = vadd.xlane.f32.xlu0 %v6792
        %v6794 = vpop.xlane.xlu0 %6793
        %v6795 = vsel %vm777, %v5461, 0.0
        %6796 = vadd.xlane.f32.xlu0 %v6795
        %v6797 = vpop.xlane.xlu0 %6796
        %v6798 = vsel %vm777, %v5462, 0.0
        %6799 = vadd.xlane.f32.xlu0 %v6798
        %v6800 = vpop.xlane.xlu0 %6799
        %v6801 = vsel %vm777, %v5463, 0.0
        %6802 = vadd.xlane.f32.xlu0 %v6801
        %v6803 = vpop.xlane.xlu0 %6802
        %v6804 = vsel %vm777, %v5464, 0.0
        %6805 = vadd.xlane.f32.xlu0 %v6804
        %v6806 = vpop.xlane.xlu0 %6805
        %v6807 = vsel %vm777, %v5465, 0.0
        %6808 = vadd.xlane.f32.xlu0 %v6807
        %v6809 = vpop.xlane.xlu0 %6808
        %v6810 = vsel %vm777, %v5466, 0.0
        %6811 = vadd.xlane.f32.xlu0 %v6810
        %v6812 = vpop.xlane.xlu0 %6811
        %v6813 = vsel %vm777, %v5467, 0.0
        %6814 = vadd.xlane.f32.xlu0 %v6813
        %v6815 = vpop.xlane.xlu0 %6814
        %v6816 = vsel %vm777, %v5468, 0.0
        %6817 = vadd.xlane.f32.xlu0 %v6816
        %v6818 = vpop.xlane.xlu0 %6817
        %v6819 = vsel %vm777, %v5469, 0.0
        %6820 = vadd.xlane.f32.xlu0 %v6819
        %v6821 = vpop.xlane.xlu0 %6820
        %v6822 = vsel %vm777, %v5470, 0.0
        %6823 = vadd.xlane.f32.xlu0 %v6822
        %v6824 = vpop.xlane.xlu0 %6823
        %v6825 = vsel %vm777, %v5471, 0.0
        %6826 = vadd.xlane.f32.xlu0 %v6825
        %v6827 = vpop.xlane.xlu0 %6826
        %v6828 = vsel %vm777, %v5472, 0.0
        %6829 = vadd.xlane.f32.xlu0 %v6828
        %v6830 = vpop.xlane.xlu0 %6829
        %v6831 = vsel %vm777, %v5473, 0.0
        %6832 = vadd.xlane.f32.xlu0 %v6831
        %v6833 = vpop.xlane.xlu0 %6832
        %v6834 = vsel %vm777, %v5474, 0.0
        %6835 = vadd.xlane.f32.xlu0 %v6834
        %v6836 = vpop.xlane.xlu0 %6835
        %v6837 = vsel %vm777, %v5475, 0.0
        %6838 = vadd.xlane.f32.xlu0 %v6837
        %v6839 = vpop.xlane.xlu0 %6838
        %v6840 = vsel %vm777, %v5476, 0.0
        %6841 = vadd.xlane.f32.xlu0 %v6840
        %v6842 = vpop.xlane.xlu0 %6841
        %v6843 = vsel %vm777, %v5477, 0.0
        %6844 = vadd.xlane.f32.xlu0 %v6843
        %v6845 = vpop.xlane.xlu0 %6844
        %v6846 = vsel %vm777, %v5478, 0.0
        %6847 = vadd.xlane.f32.xlu0 %v6846
        %v6848 = vpop.xlane.xlu0 %6847
        %v6849 = vsel %vm777, %v5479, 0.0
        %6850 = vadd.xlane.f32.xlu0 %v6849
        %v6851 = vpop.xlane.xlu0 %6850
        %v6852 = vsel %vm777, %v5480, 0.0
        %6853 = vadd.xlane.f32.xlu0 %v6852
        %v6854 = vpop.xlane.xlu0 %6853
        %v6855 = vsel %vm777, %v5481, 0.0
        %6856 = vadd.xlane.f32.xlu0 %v6855
        %v6857 = vpop.xlane.xlu0 %6856
        %v6858 = vsel %vm777, %v5482, 0.0
        %6859 = vadd.xlane.f32.xlu0 %v6858
        %v6860 = vpop.xlane.xlu0 %6859
        %v6861 = vsel %vm777, %v5483, 0.0
        %6862 = vadd.xlane.f32.xlu0 %v6861
        %v6863 = vpop.xlane.xlu0 %6862
        %v6864 = vsel %vm777, %v5484, 0.0
        %6865 = vadd.xlane.f32.xlu0 %v6864
        %v6866 = vpop.xlane.xlu0 %6865
        %v6867 = vsel %vm777, %v5485, 0.0
        %6868 = vadd.xlane.f32.xlu0 %v6867
        %v6869 = vpop.xlane.xlu0 %6868
        %v6870 = vsel %vm777, %v5486, 0.0
        %6871 = vadd.xlane.f32.xlu0 %v6870
        %v6872 = vpop.xlane.xlu0 %6871
        %v6873 = vsel %vm777, %v5487, 0.0
        %6874 = vadd.xlane.f32.xlu0 %v6873
        %v6875 = vpop.xlane.xlu0 %6874
        %v6876 = vsel %vm777, %v5488, 0.0
        %6877 = vadd.xlane.f32.xlu0 %v6876
        %v6878 = vpop.xlane.xlu0 %6877
        %v6879 = vsel %vm777, %v5489, 0.0
        %6880 = vadd.xlane.f32.xlu0 %v6879
        %v6881 = vpop.xlane.xlu0 %6880
        %v6882 = vsel %vm777, %v5490, 0.0
        %6883 = vadd.xlane.f32.xlu0 %v6882
        %v6884 = vpop.xlane.xlu0 %6883
        %v6885 = vsel %vm777, %v5491, 0.0
        %6886 = vadd.xlane.f32.xlu0 %v6885
        %v6887 = vpop.xlane.xlu0 %6886
        %v6888 = vsel %vm777, %v5492, 0.0
        %6889 = vadd.xlane.f32.xlu0 %v6888
        %v6890 = vpop.xlane.xlu0 %6889
        %v6891 = vsel %vm777, %v5493, 0.0
        %6892 = vadd.xlane.f32.xlu0 %v6891
        %v6893 = vpop.xlane.xlu0 %6892
        %v6894 = vsel %vm777, %v5494, 0.0
        %6895 = vadd.xlane.f32.xlu0 %v6894
        %v6896 = vpop.xlane.xlu0 %6895
        %v6897 = vsel %vm777, %v5495, 0.0
        %6898 = vadd.xlane.f32.xlu0 %v6897
        %v6899 = vpop.xlane.xlu0 %6898
        %v6900 = vsel %vm777, %v5496, 0.0
        %6901 = vadd.xlane.f32.xlu0 %v6900
        %v6902 = vpop.xlane.xlu0 %6901
        %v6903 = vsel %vm777, %v5497, 0.0
        %6904 = vadd.xlane.f32.xlu0 %v6903
        %v6905 = vpop.xlane.xlu0 %6904
        %v6906 = vsel %vm777, %v5498, 0.0
        %6907 = vadd.xlane.f32.xlu0 %v6906
        %v6908 = vpop.xlane.xlu0 %6907
        %v6909 = vsel %vm777, %v5499, 0.0
        %6910 = vadd.xlane.f32.xlu0 %v6909
        %v6911 = vpop.xlane.xlu0 %6910
        %v6912 = vsel %vm777, %v5500, 0.0
        %6913 = vadd.xlane.f32.xlu0 %v6912
        %v6914 = vpop.xlane.xlu0 %6913
        %v6915 = vsel %vm777, %v5501, 0.0
        %6916 = vadd.xlane.f32.xlu0 %v6915
        %v6917 = vpop.xlane.xlu0 %6916
        %v6918 = vsel %vm777, %v5502, 0.0
        %6919 = vadd.xlane.f32.xlu0 %v6918
        %v6920 = vpop.xlane.xlu0 %6919
        %v6921 = vsel %vm777, %v5503, 0.0
        %6922 = vadd.xlane.f32.xlu0 %v6921
        %v6923 = vpop.xlane.xlu0 %6922
        %v6924 = vsel %vm777, %v5504, 0.0
        %6925 = vadd.xlane.f32.xlu0 %v6924
        %v6926 = vpop.xlane.xlu0 %6925
        %v6927 = vsel %vm777, %v5505, 0.0
        %6928 = vadd.xlane.f32.xlu0 %v6927
        %v6929 = vpop.xlane.xlu0 %6928
        %v6930 = vsel %vm777, %v5506, 0.0
        %6931 = vadd.xlane.f32.xlu0 %v6930
        %v6932 = vpop.xlane.xlu0 %6931
        %v6933 = vsel %vm777, %v5507, 0.0
        %6934 = vadd.xlane.f32.xlu0 %v6933
        %v6935 = vpop.xlane.xlu0 %6934
        %v6936 = vsel %vm777, %v5508, 0.0
        %6937 = vadd.xlane.f32.xlu0 %v6936
        %v6938 = vpop.xlane.xlu0 %6937
        %v6939 = vsel %vm777, %v5509, 0.0
        %6940 = vadd.xlane.f32.xlu0 %v6939
        %v6941 = vpop.xlane.xlu0 %6940
        %v6942 = vsel %vm777, %v5510, 0.0
        %6943 = vadd.xlane.f32.xlu0 %v6942
        %v6944 = vpop.xlane.xlu0 %6943
        %v6945 = vsel %vm777, %v5511, 0.0
        %6946 = vadd.xlane.f32.xlu0 %v6945
        %v6947 = vpop.xlane.xlu0 %6946
        %v6948 = vsel %vm777, %v5512, 0.0
        %6949 = vadd.xlane.f32.xlu0 %v6948
        %v6950 = vpop.xlane.xlu0 %6949
        %v6951 = vsel %vm777, %v5513, 0.0
        %6952 = vadd.xlane.f32.xlu0 %v6951
        %v6953 = vpop.xlane.xlu0 %6952
        %v6954 = vsel %vm777, %v5514, 0.0
        %6955 = vadd.xlane.f32.xlu0 %v6954
        %v6956 = vpop.xlane.xlu0 %6955
        %v6957 = vsel %vm777, %v5515, 0.0
        %6958 = vadd.xlane.f32.xlu0 %v6957
        %v6959 = vpop.xlane.xlu0 %6958
        %v6960 = vsel %vm777, %v5516, 0.0
        %6961 = vadd.xlane.f32.xlu0 %v6960
        %v6962 = vpop.xlane.xlu0 %6961
        %v6963 = vsel %vm777, %v5517, 0.0
        %6964 = vadd.xlane.f32.xlu0 %v6963
        %v6965 = vpop.xlane.xlu0 %6964
        %v6966 = vsel %vm777, %v5518, 0.0
        %6967 = vadd.xlane.f32.xlu0 %v6966
        %v6968 = vpop.xlane.xlu0 %6967
        %v6969 = vsel %vm777, %v5519, 0.0
        %6970 = vadd.xlane.f32.xlu0 %v6969
        %v6971 = vpop.xlane.xlu0 %6970
        %v6972 = vsel %vm777, %v5520, 0.0
        %6973 = vadd.xlane.f32.xlu0 %v6972
        %v6974 = vpop.xlane.xlu0 %6973
        %v6975 = vsel %vm777, %v5521, 0.0
        %6976 = vadd.xlane.f32.xlu0 %v6975
        %v6977 = vpop.xlane.xlu0 %6976
        %v6978 = vsel %vm777, %v5522, 0.0
        %6979 = vadd.xlane.f32.xlu0 %v6978
        %v6980 = vpop.xlane.xlu0 %6979
        %v6981 = vsel %vm777, %v5523, 0.0
        %6982 = vadd.xlane.f32.xlu0 %v6981
        %v6983 = vpop.xlane.xlu0 %6982
        %v6984 = vsel %vm777, %v5524, 0.0
        %6985 = vadd.xlane.f32.xlu0 %v6984
        %v6986 = vpop.xlane.xlu0 %6985
        %v6987 = vsel %vm777, %v5525, 0.0
        %6988 = vadd.xlane.f32.xlu0 %v6987
        %v6989 = vpop.xlane.xlu0 %6988
        %v6990 = vsel %vm777, %v5526, 0.0
        %6991 = vadd.xlane.f32.xlu0 %v6990
        %v6992 = vpop.xlane.xlu0 %6991
        %v6993 = vsel %vm777, %v5527, 0.0
        %6994 = vadd.xlane.f32.xlu0 %v6993
        %v6995 = vpop.xlane.xlu0 %6994
        %v6996 = vsel %vm777, %v5528, 0.0
        %6997 = vadd.xlane.f32.xlu0 %v6996
        %v6998 = vpop.xlane.xlu0 %6997
        %v6999 = vsel %vm777, %v5529, 0.0
        %7000 = vadd.xlane.f32.xlu0 %v6999
        %v7001 = vpop.xlane.xlu0 %7000
        %v7002 = vsel %vm777, %v5530, 0.0
        %7003 = vadd.xlane.f32.xlu0 %v7002
        %v7004 = vpop.xlane.xlu0 %7003
        %v7005 = vsel %vm777, %v5531, 0.0
        %7006 = vadd.xlane.f32.xlu0 %v7005
        %v7007 = vpop.xlane.xlu0 %7006
        %v7008 = vsel %vm777, %v5532, 0.0
        %7009 = vadd.xlane.f32.xlu0 %v7008
        %v7010 = vpop.xlane.xlu0 %7009
        %v7011 = vsel %vm777, %v5533, 0.0
        %7012 = vadd.xlane.f32.xlu0 %v7011
        %v7013 = vpop.xlane.xlu0 %7012
        %v7014 = vsel %vm777, %v5534, 0.0
        %7015 = vadd.xlane.f32.xlu0 %v7014
        %v7016 = vpop.xlane.xlu0 %7015
        %v7017 = vsel %vm777, %v5535, 0.0
        %7018 = vadd.xlane.f32.xlu0 %v7017
        %v7019 = vpop.xlane.xlu0 %7018
        %v7020 = vsel %vm777, %v5536, 0.0
        %7021 = vadd.xlane.f32.xlu0 %v7020
        %v7022 = vpop.xlane.xlu0 %7021
        %v7023 = vsel %vm777, %v5537, 0.0
        %7024 = vadd.xlane.f32.xlu0 %v7023
        %v7025 = vpop.xlane.xlu0 %7024
        %v7026 = vsel %vm777, %v5538, 0.0
        %7027 = vadd.xlane.f32.xlu0 %v7026
        %v7028 = vpop.xlane.xlu0 %7027
        %v7029 = vsel %vm777, %v5539, 0.0
        %7030 = vadd.xlane.f32.xlu0 %v7029
        %v7031 = vpop.xlane.xlu0 %7030
        %v7032 = vsel %vm777, %v5540, 0.0
        %7033 = vadd.xlane.f32.xlu0 %v7032
        %v7034 = vpop.xlane.xlu0 %7033
        %v7035 = vsel %vm777, %v5541, 0.0
        %7036 = vadd.xlane.f32.xlu0 %v7035
        %v7037 = vpop.xlane.xlu0 %7036
        %v7038 = vsel %vm777, %v5542, 0.0
        %7039 = vadd.xlane.f32.xlu0 %v7038
        %v7040 = vpop.xlane.xlu0 %7039
        %v7041 = vsel %vm777, %v5543, 0.0
        %7042 = vadd.xlane.f32.xlu0 %v7041
        %v7043 = vpop.xlane.xlu0 %7042
        %v7044 = vsel %vm777, %v5544, 0.0
        %7045 = vadd.xlane.f32.xlu0 %v7044
        %v7046 = vpop.xlane.xlu0 %7045
        %v7047 = vsel %vm777, %v5545, 0.0
        %7048 = vadd.xlane.f32.xlu0 %v7047
        %v7049 = vpop.xlane.xlu0 %7048
        %v7050 = vsel %vm777, %v5546, 0.0
        %7051 = vadd.xlane.f32.xlu0 %v7050
        %v7052 = vpop.xlane.xlu0 %7051
        %v7053 = vsel %vm777, %v5547, 0.0
        %7054 = vadd.xlane.f32.xlu0 %v7053
        %v7055 = vpop.xlane.xlu0 %7054
        %v7056 = vsel %vm777, %v5548, 0.0
        %7057 = vadd.xlane.f32.xlu0 %v7056
        %v7058 = vpop.xlane.xlu0 %7057
        %v7059 = vsel %vm777, %v5549, 0.0
        %7060 = vadd.xlane.f32.xlu0 %v7059
        %v7061 = vpop.xlane.xlu0 %7060
        %v7062 = vsel %vm777, %v5550, 0.0
        %7063 = vadd.xlane.f32.xlu0 %v7062
        %v7064 = vpop.xlane.xlu0 %7063
        %v7065 = vsel %vm777, %v5551, 0.0
        %7066 = vadd.xlane.f32.xlu0 %v7065
        %v7067 = vpop.xlane.xlu0 %7066
        %v7068 = vsel %vm777, %v5552, 0.0
        %7069 = vadd.xlane.f32.xlu0 %v7068
        %v7070 = vpop.xlane.xlu0 %7069
        %v7071 = vsel %vm777, %v5553, 0.0
        %7072 = vadd.xlane.f32.xlu0 %v7071
        %v7073 = vpop.xlane.xlu0 %7072
        %v7074 = vsel %vm777, %v5554, 0.0
        %7075 = vadd.xlane.f32.xlu0 %v7074
        %v7076 = vpop.xlane.xlu0 %7075
        %v7077 = vsel %vm777, %v5555, 0.0
        %7078 = vadd.xlane.f32.xlu0 %v7077
        %v7079 = vpop.xlane.xlu0 %7078
        %v7080 = vsel %vm777, %v5556, 0.0
        %7081 = vadd.xlane.f32.xlu0 %v7080
        %v7082 = vpop.xlane.xlu0 %7081
        %v7083 = vsel %vm777, %v5557, 0.0
        %7084 = vadd.xlane.f32.xlu0 %v7083
        %v7085 = vpop.xlane.xlu0 %7084
        %v7086 = vsel %vm777, %v5558, 0.0
        %7087 = vadd.xlane.f32.xlu0 %v7086
        %v7088 = vpop.xlane.xlu0 %7087
        %v7089 = vsel %vm777, %v5559, 0.0
        %7090 = vadd.xlane.f32.xlu0 %v7089
        %v7091 = vpop.xlane.xlu0 %7090
        %v7092 = vsel %vm777, %v5560, 0.0
        %7093 = vadd.xlane.f32.xlu0 %v7092
        %v7094 = vpop.xlane.xlu0 %7093
        %v7095 = vsel %vm777, %v5561, 0.0
        %7096 = vadd.xlane.f32.xlu0 %v7095
        %v7097 = vpop.xlane.xlu0 %7096
        %v7098 = vld [vmem:[%s5] sm:$0xff]
        %v7099 = vld [vmem:[%s5 + $0x8] sm:$0xff]
        %v7100 = vld [vmem:[%s5 + $0x10] sm:$0xff]
        %v7101 = vld [vmem:[%s5 + $0x18] sm:$0xff]
        %v7102 = vld [vmem:[%s6] sm:$0xff]
        %v7103 = vld [vmem:[%s6 + $0x8] sm:$0xff]
        %v7104 = vld [vmem:[%s6 + $0x10] sm:$0xff]
        %v7105 = vld [vmem:[%s6 + $0x18] sm:$0xff]
        %v7618 = vlaneseq
        %v7619 = vand.u32 %v7618, 127
        %v7620 = vlaneseq
        %v7621 = vshrl.u32 %v7620, 7
        %v7622 = vsub.s32 %v7619, %v7621
        %v7623 = vrot.slane %v5564, %v7622
        %v7624 = vadd.s32 %v7619, 4294967288
        %v7625 = vlaneseq
        %v7626 = vshrl.u32 %v7625, 7
        %v7627 = vsub.s32 %v7624, %v7626
        %v7628 = vrot.slane %v5567, %v7627
        %vm7629 = vcmask 130112
        %v7630 = vsel %vm7629, %v7628, %v7623
        %v7631 = vlaneseq
        %v7632 = vshrl.u32 %v7631, 7
        %v7633 = vsub.s32 %v7619, %v7632
        %v7634 = vrot.slane %v5570, %v7633
        %v7635 = vlaneseq
        %v7636 = vshrl.u32 %v7635, 7
        %v7637 = vsub.s32 %v7624, %v7636
        %v7638 = vrot.slane %v5573, %v7637
        %v7639 = vsel %vm7629, %v7638, %v7634
        %v7640 = vlaneseq
        %v7641 = vshrl.u32 %v7640, 7
        %v7642 = vsub.s32 %v7619, %v7641
        %v7643 = vrot.slane %v5576, %v7642
        %v7644 = vlaneseq
        %v7645 = vshrl.u32 %v7644, 7
        %v7646 = vsub.s32 %v7624, %v7645
        %v7647 = vrot.slane %v5579, %v7646
        %v7648 = vsel %vm7629, %v7647, %v7643
        %v7649 = vlaneseq
        %v7650 = vshrl.u32 %v7649, 7
        %v7651 = vsub.s32 %v7619, %v7650
        %v7652 = vrot.slane %v5582, %v7651
        %v7653 = vlaneseq
        %v7654 = vshrl.u32 %v7653, 7
        %v7655 = vsub.s32 %v7624, %v7654
        %v7656 = vrot.slane %v5585, %v7655
        %v7657 = vsel %vm7629, %v7656, %v7652
        %v7658 = vlaneseq
        %v7659 = vshrl.u32 %v7658, 7
        %v7660 = vsub.s32 %v7619, %v7659
        %v7661 = vrot.slane %v5588, %v7660
        %v7662 = vlaneseq
        %v7663 = vshrl.u32 %v7662, 7
        %v7664 = vsub.s32 %v7624, %v7663
        %v7665 = vrot.slane %v5591, %v7664
        %v7666 = vsel %vm7629, %v7665, %v7661
        %v7667 = vlaneseq
        %v7668 = vshrl.u32 %v7667, 7
        %v7669 = vsub.s32 %v7619, %v7668
        %v7670 = vrot.slane %v5594, %v7669
        %v7671 = vlaneseq
        %v7672 = vshrl.u32 %v7671, 7
        %v7673 = vsub.s32 %v7624, %v7672
        %v7674 = vrot.slane %v5597, %v7673
        %v7675 = vsel %vm7629, %v7674, %v7670
        %v7676 = vlaneseq
        %v7677 = vshrl.u32 %v7676, 7
        %v7678 = vsub.s32 %v7619, %v7677
        %v7679 = vrot.slane %v5600, %v7678
        %v7680 = vlaneseq
        %v7681 = vshrl.u32 %v7680, 7
        %v7682 = vsub.s32 %v7624, %v7681
        %v7683 = vrot.slane %v5603, %v7682
        %v7684 = vsel %vm7629, %v7683, %v7679
        %v7685 = vlaneseq
        %v7686 = vshrl.u32 %v7685, 7
        %v7687 = vsub.s32 %v7619, %v7686
        %v7688 = vrot.slane %v5606, %v7687
        %v7689 = vlaneseq
        %v7690 = vshrl.u32 %v7689, 7
        %v7691 = vsub.s32 %v7624, %v7690
        %v7692 = vrot.slane %v5609, %v7691
        %v7693 = vsel %vm7629, %v7692, %v7688
        %v7694 = vlaneseq
        %v7695 = vshrl.u32 %v7694, 7
        %v7696 = vsub.s32 %v7619, %v7695
        %v7697 = vrot.slane %v5612, %v7696
        %v7698 = vlaneseq
        %v7699 = vshrl.u32 %v7698, 7
        %v7700 = vsub.s32 %v7624, %v7699
        %v7701 = vrot.slane %v5615, %v7700
        %v7702 = vsel %vm7629, %v7701, %v7697
        %v7703 = vlaneseq
        %v7704 = vshrl.u32 %v7703, 7
        %v7705 = vsub.s32 %v7619, %v7704
        %v7706 = vrot.slane %v5618, %v7705
        %v7707 = vlaneseq
        %v7708 = vshrl.u32 %v7707, 7
        %v7709 = vsub.s32 %v7624, %v7708
        %v7710 = vrot.slane %v5621, %v7709
        %v7711 = vsel %vm7629, %v7710, %v7706
        %v7712 = vlaneseq
        %v7713 = vshrl.u32 %v7712, 7
        %v7714 = vsub.s32 %v7619, %v7713
        %v7715 = vrot.slane %v5624, %v7714
        %v7716 = vlaneseq
        %v7717 = vshrl.u32 %v7716, 7
        %v7718 = vsub.s32 %v7624, %v7717
        %v7719 = vrot.slane %v5627, %v7718
        %v7720 = vsel %vm7629, %v7719, %v7715
        %v7721 = vlaneseq
        %v7722 = vshrl.u32 %v7721, 7
        %v7723 = vsub.s32 %v7619, %v7722
        %v7724 = vrot.slane %v5630, %v7723
        %v7725 = vlaneseq
        %v7726 = vshrl.u32 %v7725, 7
        %v7727 = vsub.s32 %v7624, %v7726
        %v7728 = vrot.slane %v5633, %v7727
        %v7729 = vsel %vm7629, %v7728, %v7724
        %v7730 = vlaneseq
        %v7731 = vshrl.u32 %v7730, 7
        %v7732 = vsub.s32 %v7619, %v7731
        %v7733 = vrot.slane %v5636, %v7732
        %v7734 = vlaneseq
        %v7735 = vshrl.u32 %v7734, 7
        %v7736 = vsub.s32 %v7624, %v7735
        %v7737 = vrot.slane %v5639, %v7736
        %v7738 = vsel %vm7629, %v7737, %v7733
        %v7739 = vlaneseq
        %v7740 = vshrl.u32 %v7739, 7
        %v7741 = vsub.s32 %v7619, %v7740
        %v7742 = vrot.slane %v5642, %v7741
        %v7743 = vlaneseq
        %v7744 = vshrl.u32 %v7743, 7
        %v7745 = vsub.s32 %v7624, %v7744
        %v7746 = vrot.slane %v5645, %v7745
        %v7747 = vsel %vm7629, %v7746, %v7742
        %v7748 = vlaneseq
        %v7749 = vshrl.u32 %v7748, 7
        %v7750 = vsub.s32 %v7619, %v7749
        %v7751 = vrot.slane %v5648, %v7750
        %v7752 = vlaneseq
        %v7753 = vshrl.u32 %v7752, 7
        %v7754 = vsub.s32 %v7624, %v7753
        %v7755 = vrot.slane %v5651, %v7754
        %v7756 = vsel %vm7629, %v7755, %v7751
        %v7757 = vlaneseq
        %v7758 = vshrl.u32 %v7757, 7
        %v7759 = vsub.s32 %v7619, %v7758
        %v7760 = vrot.slane %v5654, %v7759
        %v7761 = vlaneseq
        %v7762 = vshrl.u32 %v7761, 7
        %v7763 = vsub.s32 %v7624, %v7762
        %v7764 = vrot.slane %v5657, %v7763
        %v7765 = vsel %vm7629, %v7764, %v7760
        %v7766 = vlaneseq
        %v7767 = vshrl.u32 %v7766, 7
        %v7768 = vsub.s32 %v7619, %v7767
        %v7769 = vrot.slane %v5660, %v7768
        %v7770 = vlaneseq
        %v7771 = vshrl.u32 %v7770, 7
        %v7772 = vsub.s32 %v7624, %v7771
        %v7773 = vrot.slane %v5663, %v7772
        %v7774 = vsel %vm7629, %v7773, %v7769
        %v7775 = vlaneseq
        %v7776 = vshrl.u32 %v7775, 7
        %v7777 = vsub.s32 %v7619, %v7776
        %v7778 = vrot.slane %v5666, %v7777
        %v7779 = vlaneseq
        %v7780 = vshrl.u32 %v7779, 7
        %v7781 = vsub.s32 %v7624, %v7780
        %v7782 = vrot.slane %v5669, %v7781
        %v7783 = vsel %vm7629, %v7782, %v7778
        %v7784 = vlaneseq
        %v7785 = vshrl.u32 %v7784, 7
        %v7786 = vsub.s32 %v7619, %v7785
        %v7787 = vrot.slane %v5672, %v7786
        %v7788 = vlaneseq
        %v7789 = vshrl.u32 %v7788, 7
        %v7790 = vsub.s32 %v7624, %v7789
        %v7791 = vrot.slane %v5675, %v7790
        %v7792 = vsel %vm7629, %v7791, %v7787
        %v7793 = vlaneseq
        %v7794 = vshrl.u32 %v7793, 7
        %v7795 = vsub.s32 %v7619, %v7794
        %v7796 = vrot.slane %v5678, %v7795
        %v7797 = vlaneseq
        %v7798 = vshrl.u32 %v7797, 7
        %v7799 = vsub.s32 %v7624, %v7798
        %v7800 = vrot.slane %v5681, %v7799
        %v7801 = vsel %vm7629, %v7800, %v7796
        %v7802 = vlaneseq
        %v7803 = vshrl.u32 %v7802, 7
        %v7804 = vsub.s32 %v7619, %v7803
        %v7805 = vrot.slane %v5684, %v7804
        %v7806 = vlaneseq
        %v7807 = vshrl.u32 %v7806, 7
        %v7808 = vsub.s32 %v7624, %v7807
        %v7809 = vrot.slane %v5687, %v7808
        %v7810 = vsel %vm7629, %v7809, %v7805
        %v7811 = vlaneseq
        %v7812 = vshrl.u32 %v7811, 7
        %v7813 = vsub.s32 %v7619, %v7812
        %v7814 = vrot.slane %v5690, %v7813
        %v7815 = vlaneseq
        %v7816 = vshrl.u32 %v7815, 7
        %v7817 = vsub.s32 %v7624, %v7816
        %v7818 = vrot.slane %v5693, %v7817
        %v7819 = vsel %vm7629, %v7818, %v7814
        %v7820 = vlaneseq
        %v7821 = vshrl.u32 %v7820, 7
        %v7822 = vsub.s32 %v7619, %v7821
        %v7823 = vrot.slane %v5696, %v7822
        %v7824 = vlaneseq
        %v7825 = vshrl.u32 %v7824, 7
        %v7826 = vsub.s32 %v7624, %v7825
        %v7827 = vrot.slane %v5699, %v7826
        %v7828 = vsel %vm7629, %v7827, %v7823
        %v7829 = vlaneseq
        %v7830 = vshrl.u32 %v7829, 7
        %v7831 = vsub.s32 %v7619, %v7830
        %v7832 = vrot.slane %v5702, %v7831
        %v7833 = vlaneseq
        %v7834 = vshrl.u32 %v7833, 7
        %v7835 = vsub.s32 %v7624, %v7834
        %v7836 = vrot.slane %v5705, %v7835
        %v7837 = vsel %vm7629, %v7836, %v7832
        %v7838 = vlaneseq
        %v7839 = vshrl.u32 %v7838, 7
        %v7840 = vsub.s32 %v7619, %v7839
        %v7841 = vrot.slane %v5708, %v7840
        %v7842 = vlaneseq
        %v7843 = vshrl.u32 %v7842, 7
        %v7844 = vsub.s32 %v7624, %v7843
        %v7845 = vrot.slane %v5711, %v7844
        %v7846 = vsel %vm7629, %v7845, %v7841
        %v7847 = vlaneseq
        %v7848 = vshrl.u32 %v7847, 7
        %v7849 = vsub.s32 %v7619, %v7848
        %v7850 = vrot.slane %v5714, %v7849
        %v7851 = vlaneseq
        %v7852 = vshrl.u32 %v7851, 7
        %v7853 = vsub.s32 %v7624, %v7852
        %v7854 = vrot.slane %v5717, %v7853
        %v7855 = vsel %vm7629, %v7854, %v7850
        %v7856 = vlaneseq
        %v7857 = vshrl.u32 %v7856, 7
        %v7858 = vsub.s32 %v7619, %v7857
        %v7859 = vrot.slane %v5720, %v7858
        %v7860 = vlaneseq
        %v7861 = vshrl.u32 %v7860, 7
        %v7862 = vsub.s32 %v7624, %v7861
        %v7863 = vrot.slane %v5723, %v7862
        %v7864 = vsel %vm7629, %v7863, %v7859
        %v7865 = vlaneseq
        %v7866 = vshrl.u32 %v7865, 7
        %v7867 = vsub.s32 %v7619, %v7866
        %v7868 = vrot.slane %v5726, %v7867
        %v7869 = vlaneseq
        %v7870 = vshrl.u32 %v7869, 7
        %v7871 = vsub.s32 %v7624, %v7870
        %v7872 = vrot.slane %v5729, %v7871
        %v7873 = vsel %vm7629, %v7872, %v7868
        %v7874 = vlaneseq
        %v7875 = vshrl.u32 %v7874, 7
        %v7876 = vsub.s32 %v7619, %v7875
        %v7877 = vrot.slane %v5732, %v7876
        %v7878 = vlaneseq
        %v7879 = vshrl.u32 %v7878, 7
        %v7880 = vsub.s32 %v7624, %v7879
        %v7881 = vrot.slane %v5735, %v7880
        %v7882 = vsel %vm7629, %v7881, %v7877
        %v7883 = vlaneseq
        %v7884 = vshrl.u32 %v7883, 7
        %v7885 = vsub.s32 %v7619, %v7884
        %v7886 = vrot.slane %v5738, %v7885
        %v7887 = vlaneseq
        %v7888 = vshrl.u32 %v7887, 7
        %v7889 = vsub.s32 %v7624, %v7888
        %v7890 = vrot.slane %v5741, %v7889
        %v7891 = vsel %vm7629, %v7890, %v7886
        %v7892 = vlaneseq
        %v7893 = vshrl.u32 %v7892, 7
        %v7894 = vsub.s32 %v7619, %v7893
        %v7895 = vrot.slane %v5744, %v7894
        %v7896 = vlaneseq
        %v7897 = vshrl.u32 %v7896, 7
        %v7898 = vsub.s32 %v7624, %v7897
        %v7899 = vrot.slane %v5747, %v7898
        %v7900 = vsel %vm7629, %v7899, %v7895
        %v7901 = vlaneseq
        %v7902 = vshrl.u32 %v7901, 7
        %v7903 = vsub.s32 %v7619, %v7902
        %v7904 = vrot.slane %v5750, %v7903
        %v7905 = vlaneseq
        %v7906 = vshrl.u32 %v7905, 7
        %v7907 = vsub.s32 %v7624, %v7906
        %v7908 = vrot.slane %v5753, %v7907
        %v7909 = vsel %vm7629, %v7908, %v7904
        %v7910 = vlaneseq
        %v7911 = vshrl.u32 %v7910, 7
        %v7912 = vsub.s32 %v7619, %v7911
        %v7913 = vrot.slane %v5756, %v7912
        %v7914 = vlaneseq
        %v7915 = vshrl.u32 %v7914, 7
        %v7916 = vsub.s32 %v7624, %v7915
        %v7917 = vrot.slane %v5759, %v7916
        %v7918 = vsel %vm7629, %v7917, %v7913
        %v7919 = vlaneseq
        %v7920 = vshrl.u32 %v7919, 7
        %v7921 = vsub.s32 %v7619, %v7920
        %v7922 = vrot.slane %v5762, %v7921
        %v7923 = vlaneseq
        %v7924 = vshrl.u32 %v7923, 7
        %v7925 = vsub.s32 %v7624, %v7924
        %v7926 = vrot.slane %v5765, %v7925
        %v7927 = vsel %vm7629, %v7926, %v7922
        %v7928 = vlaneseq
        %v7929 = vshrl.u32 %v7928, 7
        %v7930 = vsub.s32 %v7619, %v7929
        %v7931 = vrot.slane %v5768, %v7930
        %v7932 = vlaneseq
        %v7933 = vshrl.u32 %v7932, 7
        %v7934 = vsub.s32 %v7624, %v7933
        %v7935 = vrot.slane %v5771, %v7934
        %v7936 = vsel %vm7629, %v7935, %v7931
        %v7937 = vlaneseq
        %v7938 = vshrl.u32 %v7937, 7
        %v7939 = vsub.s32 %v7619, %v7938
        %v7940 = vrot.slane %v5774, %v7939
        %v7941 = vlaneseq
        %v7942 = vshrl.u32 %v7941, 7
        %v7943 = vsub.s32 %v7624, %v7942
        %v7944 = vrot.slane %v5777, %v7943
        %v7945 = vsel %vm7629, %v7944, %v7940
        %v7946 = vlaneseq
        %v7947 = vshrl.u32 %v7946, 7
        %v7948 = vsub.s32 %v7619, %v7947
        %v7949 = vrot.slane %v5780, %v7948
        %v7950 = vlaneseq
        %v7951 = vshrl.u32 %v7950, 7
        %v7952 = vsub.s32 %v7624, %v7951
        %v7953 = vrot.slane %v5783, %v7952
        %v7954 = vsel %vm7629, %v7953, %v7949
        %v7955 = vlaneseq
        %v7956 = vshrl.u32 %v7955, 7
        %v7957 = vsub.s32 %v7619, %v7956
        %v7958 = vrot.slane %v5786, %v7957
        %v7959 = vlaneseq
        %v7960 = vshrl.u32 %v7959, 7
        %v7961 = vsub.s32 %v7624, %v7960
        %v7962 = vrot.slane %v5789, %v7961
        %v7963 = vsel %vm7629, %v7962, %v7958
        %v7964 = vlaneseq
        %v7965 = vshrl.u32 %v7964, 7
        %v7966 = vsub.s32 %v7619, %v7965
        %v7967 = vrot.slane %v5792, %v7966
        %v7968 = vlaneseq
        %v7969 = vshrl.u32 %v7968, 7
        %v7970 = vsub.s32 %v7624, %v7969
        %v7971 = vrot.slane %v5795, %v7970
        %v7972 = vsel %vm7629, %v7971, %v7967
        %v7973 = vlaneseq
        %v7974 = vshrl.u32 %v7973, 7
        %v7975 = vsub.s32 %v7619, %v7974
        %v7976 = vrot.slane %v5798, %v7975
        %v7977 = vlaneseq
        %v7978 = vshrl.u32 %v7977, 7
        %v7979 = vsub.s32 %v7624, %v7978
        %v7980 = vrot.slane %v5801, %v7979
        %v7981 = vsel %vm7629, %v7980, %v7976
        %v7982 = vlaneseq
        %v7983 = vshrl.u32 %v7982, 7
        %v7984 = vsub.s32 %v7619, %v7983
        %v7985 = vrot.slane %v5804, %v7984
        %v7986 = vlaneseq
        %v7987 = vshrl.u32 %v7986, 7
        %v7988 = vsub.s32 %v7624, %v7987
        %v7989 = vrot.slane %v5807, %v7988
        %v7990 = vsel %vm7629, %v7989, %v7985
        %v7991 = vlaneseq
        %v7992 = vshrl.u32 %v7991, 7
        %v7993 = vsub.s32 %v7619, %v7992
        %v7994 = vrot.slane %v5810, %v7993
        %v7995 = vlaneseq
        %v7996 = vshrl.u32 %v7995, 7
        %v7997 = vsub.s32 %v7624, %v7996
        %v7998 = vrot.slane %v5813, %v7997
        %v7999 = vsel %vm7629, %v7998, %v7994
        %v8000 = vlaneseq
        %v8001 = vshrl.u32 %v8000, 7
        %v8002 = vsub.s32 %v7619, %v8001
        %v8003 = vrot.slane %v5816, %v8002
        %v8004 = vlaneseq
        %v8005 = vshrl.u32 %v8004, 7
        %v8006 = vsub.s32 %v7624, %v8005
        %v8007 = vrot.slane %v5819, %v8006
        %v8008 = vsel %vm7629, %v8007, %v8003
        %v8009 = vlaneseq
        %v8010 = vshrl.u32 %v8009, 7
        %v8011 = vsub.s32 %v7619, %v8010
        %v8012 = vrot.slane %v5822, %v8011
        %v8013 = vlaneseq
        %v8014 = vshrl.u32 %v8013, 7
        %v8015 = vsub.s32 %v7624, %v8014
        %v8016 = vrot.slane %v5825, %v8015
        %v8017 = vsel %vm7629, %v8016, %v8012
        %v8018 = vlaneseq
        %v8019 = vshrl.u32 %v8018, 7
        %v8020 = vsub.s32 %v7619, %v8019
        %v8021 = vrot.slane %v5828, %v8020
        %v8022 = vlaneseq
        %v8023 = vshrl.u32 %v8022, 7
        %v8024 = vsub.s32 %v7624, %v8023
        %v8025 = vrot.slane %v5831, %v8024
        %v8026 = vsel %vm7629, %v8025, %v8021
        %v8027 = vlaneseq
        %v8028 = vshrl.u32 %v8027, 7
        %v8029 = vsub.s32 %v7619, %v8028
        %v8030 = vrot.slane %v5834, %v8029
        %v8031 = vlaneseq
        %v8032 = vshrl.u32 %v8031, 7
        %v8033 = vsub.s32 %v7624, %v8032
        %v8034 = vrot.slane %v5837, %v8033
        %v8035 = vsel %vm7629, %v8034, %v8030
        %v8036 = vlaneseq
        %v8037 = vshrl.u32 %v8036, 7
        %v8038 = vsub.s32 %v7619, %v8037
        %v8039 = vrot.slane %v5840, %v8038
        %v8040 = vlaneseq
        %v8041 = vshrl.u32 %v8040, 7
        %v8042 = vsub.s32 %v7624, %v8041
        %v8043 = vrot.slane %v5843, %v8042
        %v8044 = vsel %vm7629, %v8043, %v8039
        %v8045 = vlaneseq
        %v8046 = vshrl.u32 %v8045, 7
        %v8047 = vsub.s32 %v7619, %v8046
        %v8048 = vrot.slane %v5846, %v8047
        %v8049 = vlaneseq
        %v8050 = vshrl.u32 %v8049, 7
        %v8051 = vsub.s32 %v7624, %v8050
        %v8052 = vrot.slane %v5849, %v8051
        %v8053 = vsel %vm7629, %v8052, %v8048
        %v8054 = vlaneseq
        %v8055 = vshrl.u32 %v8054, 7
        %v8056 = vsub.s32 %v7619, %v8055
        %v8057 = vrot.slane %v5852, %v8056
        %v8058 = vlaneseq
        %v8059 = vshrl.u32 %v8058, 7
        %v8060 = vsub.s32 %v7624, %v8059
        %v8061 = vrot.slane %v5855, %v8060
        %v8062 = vsel %vm7629, %v8061, %v8057
        %v8063 = vlaneseq
        %v8064 = vshrl.u32 %v8063, 7
        %v8065 = vsub.s32 %v7619, %v8064
        %v8066 = vrot.slane %v5858, %v8065
        %v8067 = vlaneseq
        %v8068 = vshrl.u32 %v8067, 7
        %v8069 = vsub.s32 %v7624, %v8068
        %v8070 = vrot.slane %v5861, %v8069
        %v8071 = vsel %vm7629, %v8070, %v8066
        %v8072 = vlaneseq
        %v8073 = vshrl.u32 %v8072, 7
        %v8074 = vsub.s32 %v7619, %v8073
        %v8075 = vrot.slane %v5864, %v8074
        %v8076 = vlaneseq
        %v8077 = vshrl.u32 %v8076, 7
        %v8078 = vsub.s32 %v7624, %v8077
        %v8079 = vrot.slane %v5867, %v8078
        %v8080 = vsel %vm7629, %v8079, %v8075
        %v8081 = vlaneseq
        %v8082 = vshrl.u32 %v8081, 7
        %v8083 = vsub.s32 %v7619, %v8082
        %v8084 = vrot.slane %v5870, %v8083
        %v8085 = vlaneseq
        %v8086 = vshrl.u32 %v8085, 7
        %v8087 = vsub.s32 %v7624, %v8086
        %v8088 = vrot.slane %v5873, %v8087
        %v8089 = vsel %vm7629, %v8088, %v8084
        %v8090 = vlaneseq
        %v8091 = vshrl.u32 %v8090, 7
        %v8092 = vsub.s32 %v7619, %v8091
        %v8093 = vrot.slane %v5876, %v8092
        %v8094 = vlaneseq
        %v8095 = vshrl.u32 %v8094, 7
        %v8096 = vsub.s32 %v7624, %v8095
        %v8097 = vrot.slane %v5879, %v8096
        %v8098 = vsel %vm7629, %v8097, %v8093
        %v8099 = vlaneseq
        %v8100 = vshrl.u32 %v8099, 7
        %v8101 = vsub.s32 %v7619, %v8100
        %v8102 = vrot.slane %v5882, %v8101
        %v8103 = vlaneseq
        %v8104 = vshrl.u32 %v8103, 7
        %v8105 = vsub.s32 %v7624, %v8104
        %v8106 = vrot.slane %v5885, %v8105
        %v8107 = vsel %vm7629, %v8106, %v8102
        %v8108 = vlaneseq
        %v8109 = vshrl.u32 %v8108, 7
        %v8110 = vsub.s32 %v7619, %v8109
        %v8111 = vrot.slane %v5888, %v8110
        %v8112 = vlaneseq
        %v8113 = vshrl.u32 %v8112, 7
        %v8114 = vsub.s32 %v7624, %v8113
        %v8115 = vrot.slane %v5891, %v8114
        %v8116 = vsel %vm7629, %v8115, %v8111
        %v8117 = vlaneseq
        %v8118 = vshrl.u32 %v8117, 7
        %v8119 = vsub.s32 %v7619, %v8118
        %v8120 = vrot.slane %v5894, %v8119
        %v8121 = vlaneseq
        %v8122 = vshrl.u32 %v8121, 7
        %v8123 = vsub.s32 %v7624, %v8122
        %v8124 = vrot.slane %v5897, %v8123
        %v8125 = vsel %vm7629, %v8124, %v8120
        %v8126 = vlaneseq
        %v8127 = vshrl.u32 %v8126, 7
        %v8128 = vsub.s32 %v7619, %v8127
        %v8129 = vrot.slane %v5900, %v8128
        %v8130 = vlaneseq
        %v8131 = vshrl.u32 %v8130, 7
        %v8132 = vsub.s32 %v7624, %v8131
        %v8133 = vrot.slane %v5903, %v8132
        %v8134 = vsel %vm7629, %v8133, %v8129
        %v8135 = vlaneseq
        %v8136 = vshrl.u32 %v8135, 7
        %v8137 = vsub.s32 %v7619, %v8136
        %v8138 = vrot.slane %v5906, %v8137
        %v8139 = vlaneseq
        %v8140 = vshrl.u32 %v8139, 7
        %v8141 = vsub.s32 %v7624, %v8140
        %v8142 = vrot.slane %v5909, %v8141
        %v8143 = vsel %vm7629, %v8142, %v8138
        %v8144 = vlaneseq
        %v8145 = vshrl.u32 %v8144, 7
        %v8146 = vsub.s32 %v7619, %v8145
        %v8147 = vrot.slane %v5912, %v8146
        %v8148 = vlaneseq
        %v8149 = vshrl.u32 %v8148, 7
        %v8150 = vsub.s32 %v7624, %v8149
        %v8151 = vrot.slane %v5915, %v8150
        %v8152 = vsel %vm7629, %v8151, %v8147
        %v8153 = vlaneseq
        %v8154 = vshrl.u32 %v8153, 7
        %v8155 = vsub.s32 %v7619, %v8154
        %v8156 = vrot.slane %v5918, %v8155
        %v8157 = vlaneseq
        %v8158 = vshrl.u32 %v8157, 7
        %v8159 = vsub.s32 %v7624, %v8158
        %v8160 = vrot.slane %v5921, %v8159
        %v8161 = vsel %vm7629, %v8160, %v8156
        %v8162 = vlaneseq
        %v8163 = vshrl.u32 %v8162, 7
        %v8164 = vsub.s32 %v7619, %v8163
        %v8165 = vrot.slane %v5924, %v8164
        %v8166 = vlaneseq
        %v8167 = vshrl.u32 %v8166, 7
        %v8168 = vsub.s32 %v7624, %v8167
        %v8169 = vrot.slane %v5927, %v8168
        %v8170 = vsel %vm7629, %v8169, %v8165
        %v8171 = vlaneseq
        %v8172 = vshrl.u32 %v8171, 7
        %v8173 = vsub.s32 %v7619, %v8172
        %v8174 = vrot.slane %v5930, %v8173
        %v8175 = vlaneseq
        %v8176 = vshrl.u32 %v8175, 7
        %v8177 = vsub.s32 %v7624, %v8176
        %v8178 = vrot.slane %v5933, %v8177
        %v8179 = vsel %vm7629, %v8178, %v8174
        %v8180 = vlaneseq
        %v8181 = vshrl.u32 %v8180, 7
        %v8182 = vsub.s32 %v7619, %v8181
        %v8183 = vrot.slane %v5936, %v8182
        %v8184 = vlaneseq
        %v8185 = vshrl.u32 %v8184, 7
        %v8186 = vsub.s32 %v7624, %v8185
        %v8187 = vrot.slane %v5939, %v8186
        %v8188 = vsel %vm7629, %v8187, %v8183
        %v8189 = vlaneseq
        %v8190 = vshrl.u32 %v8189, 7
        %v8191 = vsub.s32 %v7619, %v8190
        %v8192 = vrot.slane %v5942, %v8191
        %v8193 = vlaneseq
        %v8194 = vshrl.u32 %v8193, 7
        %v8195 = vsub.s32 %v7624, %v8194
        %v8196 = vrot.slane %v5945, %v8195
        %v8197 = vsel %vm7629, %v8196, %v8192
        %v8198 = vlaneseq
        %v8199 = vshrl.u32 %v8198, 7
        %v8200 = vsub.s32 %v7619, %v8199
        %v8201 = vrot.slane %v5948, %v8200
        %v8202 = vlaneseq
        %v8203 = vshrl.u32 %v8202, 7
        %v8204 = vsub.s32 %v7624, %v8203
        %v8205 = vrot.slane %v5951, %v8204
        %v8206 = vsel %vm7629, %v8205, %v8201
        %v8207 = vlaneseq
        %v8208 = vshrl.u32 %v8207, 7
        %v8209 = vsub.s32 %v7619, %v8208
        %v8210 = vrot.slane %v5954, %v8209
        %v8211 = vlaneseq
        %v8212 = vshrl.u32 %v8211, 7
        %v8213 = vsub.s32 %v7624, %v8212
        %v8214 = vrot.slane %v5957, %v8213
        %v8215 = vsel %vm7629, %v8214, %v8210
        %v8216 = vlaneseq
        %v8217 = vshrl.u32 %v8216, 7
        %v8218 = vsub.s32 %v7619, %v8217
        %v8219 = vrot.slane %v5960, %v8218
        %v8220 = vlaneseq
        %v8221 = vshrl.u32 %v8220, 7
        %v8222 = vsub.s32 %v7624, %v8221
        %v8223 = vrot.slane %v5963, %v8222
        %v8224 = vsel %vm7629, %v8223, %v8219
        %v8225 = vlaneseq
        %v8226 = vshrl.u32 %v8225, 7
        %v8227 = vsub.s32 %v7619, %v8226
        %v8228 = vrot.slane %v5966, %v8227
        %v8229 = vlaneseq
        %v8230 = vshrl.u32 %v8229, 7
        %v8231 = vsub.s32 %v7624, %v8230
        %v8232 = vrot.slane %v5969, %v8231
        %v8233 = vsel %vm7629, %v8232, %v8228
        %v8234 = vlaneseq
        %v8235 = vshrl.u32 %v8234, 7
        %v8236 = vsub.s32 %v7619, %v8235
        %v8237 = vrot.slane %v5972, %v8236
        %v8238 = vlaneseq
        %v8239 = vshrl.u32 %v8238, 7
        %v8240 = vsub.s32 %v7624, %v8239
        %v8241 = vrot.slane %v5975, %v8240
        %v8242 = vsel %vm7629, %v8241, %v8237
        %v8243 = vlaneseq
        %v8244 = vshrl.u32 %v8243, 7
        %v8245 = vsub.s32 %v7619, %v8244
        %v8246 = vrot.slane %v5978, %v8245
        %v8247 = vlaneseq
        %v8248 = vshrl.u32 %v8247, 7
        %v8249 = vsub.s32 %v7624, %v8248
        %v8250 = vrot.slane %v5981, %v8249
        %v8251 = vsel %vm7629, %v8250, %v8246
        %v8252 = vlaneseq
        %v8253 = vshrl.u32 %v8252, 7
        %v8254 = vsub.s32 %v7619, %v8253
        %v8255 = vrot.slane %v5984, %v8254
        %v8256 = vlaneseq
        %v8257 = vshrl.u32 %v8256, 7
        %v8258 = vsub.s32 %v7624, %v8257
        %v8259 = vrot.slane %v5987, %v8258
        %v8260 = vsel %vm7629, %v8259, %v8255
        %v8261 = vlaneseq
        %v8262 = vshrl.u32 %v8261, 7
        %v8263 = vsub.s32 %v7619, %v8262
        %v8264 = vrot.slane %v5990, %v8263
        %v8265 = vlaneseq
        %v8266 = vshrl.u32 %v8265, 7
        %v8267 = vsub.s32 %v7624, %v8266
        %v8268 = vrot.slane %v5993, %v8267
        %v8269 = vsel %vm7629, %v8268, %v8264
        %v8270 = vlaneseq
        %v8271 = vshrl.u32 %v8270, 7
        %v8272 = vsub.s32 %v7619, %v8271
        %v8273 = vrot.slane %v5996, %v8272
        %v8274 = vlaneseq
        %v8275 = vshrl.u32 %v8274, 7
        %v8276 = vsub.s32 %v7624, %v8275
        %v8277 = vrot.slane %v5999, %v8276
        %v8278 = vsel %vm7629, %v8277, %v8273
        %v8279 = vlaneseq
        %v8280 = vshrl.u32 %v8279, 7
        %v8281 = vsub.s32 %v7619, %v8280
        %v8282 = vrot.slane %v6002, %v8281
        %v8283 = vlaneseq
        %v8284 = vshrl.u32 %v8283, 7
        %v8285 = vsub.s32 %v7624, %v8284
        %v8286 = vrot.slane %v6005, %v8285
        %v8287 = vsel %vm7629, %v8286, %v8282
        %v8288 = vlaneseq
        %v8289 = vshrl.u32 %v8288, 7
        %v8290 = vsub.s32 %v7619, %v8289
        %v8291 = vrot.slane %v6008, %v8290
        %v8292 = vlaneseq
        %v8293 = vshrl.u32 %v8292, 7
        %v8294 = vsub.s32 %v7624, %v8293
        %v8295 = vrot.slane %v6011, %v8294
        %v8296 = vsel %vm7629, %v8295, %v8291
        %v8297 = vlaneseq
        %v8298 = vshrl.u32 %v8297, 7
        %v8299 = vsub.s32 %v7619, %v8298
        %v8300 = vrot.slane %v6014, %v8299
        %v8301 = vlaneseq
        %v8302 = vshrl.u32 %v8301, 7
        %v8303 = vsub.s32 %v7624, %v8302
        %v8304 = vrot.slane %v6017, %v8303
        %v8305 = vsel %vm7629, %v8304, %v8300
        %v8306 = vlaneseq
        %v8307 = vshrl.u32 %v8306, 7
        %v8308 = vsub.s32 %v7619, %v8307
        %v8309 = vrot.slane %v6020, %v8308
        %v8310 = vlaneseq
        %v8311 = vshrl.u32 %v8310, 7
        %v8312 = vsub.s32 %v7624, %v8311
        %v8313 = vrot.slane %v6023, %v8312
        %v8314 = vsel %vm7629, %v8313, %v8309
        %v8315 = vlaneseq
        %v8316 = vshrl.u32 %v8315, 7
        %v8317 = vsub.s32 %v7619, %v8316
        %v8318 = vrot.slane %v6026, %v8317
        %v8319 = vlaneseq
        %v8320 = vshrl.u32 %v8319, 7
        %v8321 = vsub.s32 %v7624, %v8320
        %v8322 = vrot.slane %v6029, %v8321
        %v8323 = vsel %vm7629, %v8322, %v8318
        %v8324 = vlaneseq
        %v8325 = vshrl.u32 %v8324, 7
        %v8326 = vsub.s32 %v7619, %v8325
        %v8327 = vrot.slane %v6032, %v8326
        %v8328 = vlaneseq
        %v8329 = vshrl.u32 %v8328, 7
        %v8330 = vsub.s32 %v7624, %v8329
        %v8331 = vrot.slane %v6035, %v8330
        %v8332 = vsel %vm7629, %v8331, %v8327
        %v8333 = vlaneseq
        %v8334 = vshrl.u32 %v8333, 7
        %v8335 = vsub.s32 %v7619, %v8334
        %v8336 = vrot.slane %v6038, %v8335
        %v8337 = vlaneseq
        %v8338 = vshrl.u32 %v8337, 7
        %v8339 = vsub.s32 %v7624, %v8338
        %v8340 = vrot.slane %v6041, %v8339
        %v8341 = vsel %vm7629, %v8340, %v8336
        %v8342 = vlaneseq
        %v8343 = vshrl.u32 %v8342, 7
        %v8344 = vsub.s32 %v7619, %v8343
        %v8345 = vrot.slane %v6044, %v8344
        %v8346 = vlaneseq
        %v8347 = vshrl.u32 %v8346, 7
        %v8348 = vsub.s32 %v7624, %v8347
        %v8349 = vrot.slane %v6047, %v8348
        %v8350 = vsel %vm7629, %v8349, %v8345
        %v8351 = vlaneseq
        %v8352 = vshrl.u32 %v8351, 7
        %v8353 = vsub.s32 %v7619, %v8352
        %v8354 = vrot.slane %v6050, %v8353
        %v8355 = vlaneseq
        %v8356 = vshrl.u32 %v8355, 7
        %v8357 = vsub.s32 %v7624, %v8356
        %v8358 = vrot.slane %v6053, %v8357
        %v8359 = vsel %vm7629, %v8358, %v8354
        %v8360 = vlaneseq
        %v8361 = vshrl.u32 %v8360, 7
        %v8362 = vsub.s32 %v7619, %v8361
        %v8363 = vrot.slane %v6056, %v8362
        %v8364 = vlaneseq
        %v8365 = vshrl.u32 %v8364, 7
        %v8366 = vsub.s32 %v7624, %v8365
        %v8367 = vrot.slane %v6059, %v8366
        %v8368 = vsel %vm7629, %v8367, %v8363
        %v8369 = vlaneseq
        %v8370 = vshrl.u32 %v8369, 7
        %v8371 = vsub.s32 %v7619, %v8370
        %v8372 = vrot.slane %v6062, %v8371
        %v8373 = vlaneseq
        %v8374 = vshrl.u32 %v8373, 7
        %v8375 = vsub.s32 %v7624, %v8374
        %v8376 = vrot.slane %v6065, %v8375
        %v8377 = vsel %vm7629, %v8376, %v8372
        %v8378 = vlaneseq
        %v8379 = vshrl.u32 %v8378, 7
        %v8380 = vsub.s32 %v7619, %v8379
        %v8381 = vrot.slane %v6068, %v8380
        %v8382 = vlaneseq
        %v8383 = vshrl.u32 %v8382, 7
        %v8384 = vsub.s32 %v7624, %v8383
        %v8385 = vrot.slane %v6071, %v8384
        %v8386 = vsel %vm7629, %v8385, %v8381
        %v8387 = vlaneseq
        %v8388 = vshrl.u32 %v8387, 7
        %v8389 = vsub.s32 %v7619, %v8388
        %v8390 = vrot.slane %v6074, %v8389
        %v8391 = vlaneseq
        %v8392 = vshrl.u32 %v8391, 7
        %v8393 = vsub.s32 %v7624, %v8392
        %v8394 = vrot.slane %v6077, %v8393
        %v8395 = vsel %vm7629, %v8394, %v8390
        %v8396 = vlaneseq
        %v8397 = vshrl.u32 %v8396, 7
        %v8398 = vsub.s32 %v7619, %v8397
        %v8399 = vrot.slane %v6080, %v8398
        %v8400 = vlaneseq
        %v8401 = vshrl.u32 %v8400, 7
        %v8402 = vsub.s32 %v7624, %v8401
        %v8403 = vrot.slane %v6083, %v8402
        %v8404 = vsel %vm7629, %v8403, %v8399
        %v8405 = vlaneseq
        %v8406 = vshrl.u32 %v8405, 7
        %v8407 = vsub.s32 %v7619, %v8406
        %v8408 = vrot.slane %v6086, %v8407
        %v8409 = vlaneseq
        %v8410 = vshrl.u32 %v8409, 7
        %v8411 = vsub.s32 %v7624, %v8410
        %v8412 = vrot.slane %v6089, %v8411
        %v8413 = vsel %vm7629, %v8412, %v8408
        %v8414 = vlaneseq
        %v8415 = vshrl.u32 %v8414, 7
        %v8416 = vsub.s32 %v7619, %v8415
        %v8417 = vrot.slane %v6092, %v8416
        %v8418 = vlaneseq
        %v8419 = vshrl.u32 %v8418, 7
        %v8420 = vsub.s32 %v7624, %v8419
        %v8421 = vrot.slane %v6095, %v8420
        %v8422 = vsel %vm7629, %v8421, %v8417
        %v8423 = vlaneseq
        %v8424 = vshrl.u32 %v8423, 7
        %v8425 = vsub.s32 %v7619, %v8424
        %v8426 = vrot.slane %v6098, %v8425
        %v8427 = vlaneseq
        %v8428 = vshrl.u32 %v8427, 7
        %v8429 = vsub.s32 %v7624, %v8428
        %v8430 = vrot.slane %v6101, %v8429
        %v8431 = vsel %vm7629, %v8430, %v8426
        %v8432 = vlaneseq
        %v8433 = vshrl.u32 %v8432, 7
        %v8434 = vsub.s32 %v7619, %v8433
        %v8435 = vrot.slane %v6104, %v8434
        %v8436 = vlaneseq
        %v8437 = vshrl.u32 %v8436, 7
        %v8438 = vsub.s32 %v7624, %v8437
        %v8439 = vrot.slane %v6107, %v8438
        %v8440 = vsel %vm7629, %v8439, %v8435
        %v8441 = vlaneseq
        %v8442 = vshrl.u32 %v8441, 7
        %v8443 = vsub.s32 %v7619, %v8442
        %v8444 = vrot.slane %v6110, %v8443
        %v8445 = vlaneseq
        %v8446 = vshrl.u32 %v8445, 7
        %v8447 = vsub.s32 %v7624, %v8446
        %v8448 = vrot.slane %v6113, %v8447
        %v8449 = vsel %vm7629, %v8448, %v8444
        %v8450 = vlaneseq
        %v8451 = vshrl.u32 %v8450, 7
        %v8452 = vsub.s32 %v7619, %v8451
        %v8453 = vrot.slane %v6116, %v8452
        %v8454 = vlaneseq
        %v8455 = vshrl.u32 %v8454, 7
        %v8456 = vsub.s32 %v7624, %v8455
        %v8457 = vrot.slane %v6119, %v8456
        %v8458 = vsel %vm7629, %v8457, %v8453
        %v8459 = vlaneseq
        %v8460 = vshrl.u32 %v8459, 7
        %v8461 = vsub.s32 %v7619, %v8460
        %v8462 = vrot.slane %v6122, %v8461
        %v8463 = vlaneseq
        %v8464 = vshrl.u32 %v8463, 7
        %v8465 = vsub.s32 %v7624, %v8464
        %v8466 = vrot.slane %v6125, %v8465
        %v8467 = vsel %vm7629, %v8466, %v8462
        %v8468 = vlaneseq
        %v8469 = vshrl.u32 %v8468, 7
        %v8470 = vsub.s32 %v7619, %v8469
        %v8471 = vrot.slane %v6128, %v8470
        %v8472 = vlaneseq
        %v8473 = vshrl.u32 %v8472, 7
        %v8474 = vsub.s32 %v7624, %v8473
        %v8475 = vrot.slane %v6131, %v8474
        %v8476 = vsel %vm7629, %v8475, %v8471
        %v8477 = vlaneseq
        %v8478 = vshrl.u32 %v8477, 7
        %v8479 = vsub.s32 %v7619, %v8478
        %v8480 = vrot.slane %v6134, %v8479
        %v8481 = vlaneseq
        %v8482 = vshrl.u32 %v8481, 7
        %v8483 = vsub.s32 %v7624, %v8482
        %v8484 = vrot.slane %v6137, %v8483
        %v8485 = vsel %vm7629, %v8484, %v8480
        %v8486 = vlaneseq
        %v8487 = vshrl.u32 %v8486, 7
        %v8488 = vsub.s32 %v7619, %v8487
        %v8489 = vrot.slane %v6140, %v8488
        %v8490 = vlaneseq
        %v8491 = vshrl.u32 %v8490, 7
        %v8492 = vsub.s32 %v7624, %v8491
        %v8493 = vrot.slane %v6143, %v8492
        %v8494 = vsel %vm7629, %v8493, %v8489
        %v8495 = vlaneseq
        %v8496 = vshrl.u32 %v8495, 7
        %v8497 = vsub.s32 %v7619, %v8496
        %v8498 = vrot.slane %v6146, %v8497
        %v8499 = vlaneseq
        %v8500 = vshrl.u32 %v8499, 7
        %v8501 = vsub.s32 %v7624, %v8500
        %v8502 = vrot.slane %v6149, %v8501
        %v8503 = vsel %vm7629, %v8502, %v8498
        %v8504 = vlaneseq
        %v8505 = vshrl.u32 %v8504, 7
        %v8506 = vsub.s32 %v7619, %v8505
        %v8507 = vrot.slane %v6152, %v8506
        %v8508 = vlaneseq
        %v8509 = vshrl.u32 %v8508, 7
        %v8510 = vsub.s32 %v7624, %v8509
        %v8511 = vrot.slane %v6155, %v8510
        %v8512 = vsel %vm7629, %v8511, %v8507
        %v8513 = vlaneseq
        %v8514 = vshrl.u32 %v8513, 7
        %v8515 = vsub.s32 %v7619, %v8514
        %v8516 = vrot.slane %v6158, %v8515
        %v8517 = vlaneseq
        %v8518 = vshrl.u32 %v8517, 7
        %v8519 = vsub.s32 %v7624, %v8518
        %v8520 = vrot.slane %v6161, %v8519
        %v8521 = vsel %vm7629, %v8520, %v8516
        %v8522 = vlaneseq
        %v8523 = vshrl.u32 %v8522, 7
        %v8524 = vsub.s32 %v7619, %v8523
        %v8525 = vrot.slane %v6164, %v8524
        %v8526 = vlaneseq
        %v8527 = vshrl.u32 %v8526, 7
        %v8528 = vsub.s32 %v7624, %v8527
        %v8529 = vrot.slane %v6167, %v8528
        %v8530 = vsel %vm7629, %v8529, %v8525
        %v8531 = vlaneseq
        %v8532 = vshrl.u32 %v8531, 7
        %v8533 = vsub.s32 %v7619, %v8532
        %v8534 = vrot.slane %v6170, %v8533
        %v8535 = vlaneseq
        %v8536 = vshrl.u32 %v8535, 7
        %v8537 = vsub.s32 %v7624, %v8536
        %v8538 = vrot.slane %v6173, %v8537
        %v8539 = vsel %vm7629, %v8538, %v8534
        %v8540 = vlaneseq
        %v8541 = vshrl.u32 %v8540, 7
        %v8542 = vsub.s32 %v7619, %v8541
        %v8543 = vrot.slane %v6176, %v8542
        %v8544 = vlaneseq
        %v8545 = vshrl.u32 %v8544, 7
        %v8546 = vsub.s32 %v7624, %v8545
        %v8547 = vrot.slane %v6179, %v8546
        %v8548 = vsel %vm7629, %v8547, %v8543
        %v8549 = vlaneseq
        %v8550 = vshrl.u32 %v8549, 7
        %v8551 = vsub.s32 %v7619, %v8550
        %v8552 = vrot.slane %v6182, %v8551
        %v8553 = vlaneseq
        %v8554 = vshrl.u32 %v8553, 7
        %v8555 = vsub.s32 %v7624, %v8554
        %v8556 = vrot.slane %v6185, %v8555
        %v8557 = vsel %vm7629, %v8556, %v8552
        %v8558 = vlaneseq
        %v8559 = vshrl.u32 %v8558, 7
        %v8560 = vsub.s32 %v7619, %v8559
        %v8561 = vrot.slane %v6188, %v8560
        %v8562 = vlaneseq
        %v8563 = vshrl.u32 %v8562, 7
        %v8564 = vsub.s32 %v7624, %v8563
        %v8565 = vrot.slane %v6191, %v8564
        %v8566 = vsel %vm7629, %v8565, %v8561
        %v8567 = vlaneseq
        %v8568 = vshrl.u32 %v8567, 7
        %v8569 = vsub.s32 %v7619, %v8568
        %v8570 = vrot.slane %v6194, %v8569
        %v8571 = vlaneseq
        %v8572 = vshrl.u32 %v8571, 7
        %v8573 = vsub.s32 %v7624, %v8572
        %v8574 = vrot.slane %v6197, %v8573
        %v8575 = vsel %vm7629, %v8574, %v8570
        %v8576 = vlaneseq
        %v8577 = vshrl.u32 %v8576, 7
        %v8578 = vsub.s32 %v7619, %v8577
        %v8579 = vrot.slane %v6200, %v8578
        %v8580 = vlaneseq
        %v8581 = vshrl.u32 %v8580, 7
        %v8582 = vsub.s32 %v7624, %v8581
        %v8583 = vrot.slane %v6203, %v8582
        %v8584 = vsel %vm7629, %v8583, %v8579
        %v8585 = vlaneseq
        %v8586 = vshrl.u32 %v8585, 7
        %v8587 = vsub.s32 %v7619, %v8586
        %v8588 = vrot.slane %v6206, %v8587
        %v8589 = vlaneseq
        %v8590 = vshrl.u32 %v8589, 7
        %v8591 = vsub.s32 %v7624, %v8590
        %v8592 = vrot.slane %v6209, %v8591
        %v8593 = vsel %vm7629, %v8592, %v8588
        %v8594 = vlaneseq
        %v8595 = vshrl.u32 %v8594, 7
        %v8596 = vsub.s32 %v7619, %v8595
        %v8597 = vrot.slane %v6212, %v8596
        %v8598 = vlaneseq
        %v8599 = vshrl.u32 %v8598, 7
        %v8600 = vsub.s32 %v7624, %v8599
        %v8601 = vrot.slane %v6215, %v8600
        %v8602 = vsel %vm7629, %v8601, %v8597
        %v8603 = vlaneseq
        %v8604 = vshrl.u32 %v8603, 7
        %v8605 = vsub.s32 %v7619, %v8604
        %v8606 = vrot.slane %v6218, %v8605
        %v8607 = vlaneseq
        %v8608 = vshrl.u32 %v8607, 7
        %v8609 = vsub.s32 %v7624, %v8608
        %v8610 = vrot.slane %v6221, %v8609
        %v8611 = vsel %vm7629, %v8610, %v8606
        %v8612 = vlaneseq
        %v8613 = vshrl.u32 %v8612, 7
        %v8614 = vsub.s32 %v7619, %v8613
        %v8615 = vrot.slane %v6224, %v8614
        %v8616 = vlaneseq
        %v8617 = vshrl.u32 %v8616, 7
        %v8618 = vsub.s32 %v7624, %v8617
        %v8619 = vrot.slane %v6227, %v8618
        %v8620 = vsel %vm7629, %v8619, %v8615
        %v8621 = vlaneseq
        %v8622 = vshrl.u32 %v8621, 7
        %v8623 = vsub.s32 %v7619, %v8622
        %v8624 = vrot.slane %v6230, %v8623
        %v8625 = vlaneseq
        %v8626 = vshrl.u32 %v8625, 7
        %v8627 = vsub.s32 %v7624, %v8626
        %v8628 = vrot.slane %v6233, %v8627
        %v8629 = vsel %vm7629, %v8628, %v8624
        %v8630 = vlaneseq
        %v8631 = vshrl.u32 %v8630, 7
        %v8632 = vsub.s32 %v7619, %v8631
        %v8633 = vrot.slane %v6236, %v8632
        %v8634 = vlaneseq
        %v8635 = vshrl.u32 %v8634, 7
        %v8636 = vsub.s32 %v7624, %v8635
        %v8637 = vrot.slane %v6239, %v8636
        %v8638 = vsel %vm7629, %v8637, %v8633
        %v8639 = vlaneseq
        %v8640 = vshrl.u32 %v8639, 7
        %v8641 = vsub.s32 %v7619, %v8640
        %v8642 = vrot.slane %v6242, %v8641
        %v8643 = vlaneseq
        %v8644 = vshrl.u32 %v8643, 7
        %v8645 = vsub.s32 %v7624, %v8644
        %v8646 = vrot.slane %v6245, %v8645
        %v8647 = vsel %vm7629, %v8646, %v8642
        %v8648 = vlaneseq
        %v8649 = vshrl.u32 %v8648, 7
        %v8650 = vsub.s32 %v7619, %v8649
        %v8651 = vrot.slane %v6248, %v8650
        %v8652 = vlaneseq
        %v8653 = vshrl.u32 %v8652, 7
        %v8654 = vsub.s32 %v7624, %v8653
        %v8655 = vrot.slane %v6251, %v8654
        %v8656 = vsel %vm7629, %v8655, %v8651
        %v8657 = vlaneseq
        %v8658 = vshrl.u32 %v8657, 7
        %v8659 = vsub.s32 %v7619, %v8658
        %v8660 = vrot.slane %v6254, %v8659
        %v8661 = vlaneseq
        %v8662 = vshrl.u32 %v8661, 7
        %v8663 = vsub.s32 %v7624, %v8662
        %v8664 = vrot.slane %v6257, %v8663
        %v8665 = vsel %vm7629, %v8664, %v8660
        %v8666 = vlaneseq
        %v8667 = vshrl.u32 %v8666, 7
        %v8668 = vsub.s32 %v7619, %v8667
        %v8669 = vrot.slane %v6260, %v8668
        %v8670 = vlaneseq
        %v8671 = vshrl.u32 %v8670, 7
        %v8672 = vsub.s32 %v7624, %v8671
        %v8673 = vrot.slane %v6263, %v8672
        %v8674 = vsel %vm7629, %v8673, %v8669
        %v8675 = vlaneseq
        %v8676 = vshrl.u32 %v8675, 7
        %v8677 = vsub.s32 %v7619, %v8676
        %v8678 = vrot.slane %v6266, %v8677
        %v8679 = vlaneseq
        %v8680 = vshrl.u32 %v8679, 7
        %v8681 = vsub.s32 %v7624, %v8680
        %v8682 = vrot.slane %v6269, %v8681
        %v8683 = vsel %vm7629, %v8682, %v8678
        %v8684 = vlaneseq
        %v8685 = vshrl.u32 %v8684, 7
        %v8686 = vsub.s32 %v7619, %v8685
        %v8687 = vrot.slane %v6272, %v8686
        %v8688 = vlaneseq
        %v8689 = vshrl.u32 %v8688, 7
        %v8690 = vsub.s32 %v7624, %v8689
        %v8691 = vrot.slane %v6275, %v8690
        %v8692 = vsel %vm7629, %v8691, %v8687
        %v8693 = vlaneseq
        %v8694 = vshrl.u32 %v8693, 7
        %v8695 = vsub.s32 %v7619, %v8694
        %v8696 = vrot.slane %v6278, %v8695
        %v8697 = vlaneseq
        %v8698 = vshrl.u32 %v8697, 7
        %v8699 = vsub.s32 %v7624, %v8698
        %v8700 = vrot.slane %v6281, %v8699
        %v8701 = vsel %vm7629, %v8700, %v8696
        %v8702 = vlaneseq
        %v8703 = vshrl.u32 %v8702, 7
        %v8704 = vsub.s32 %v7619, %v8703
        %v8705 = vrot.slane %v6284, %v8704
        %v8706 = vlaneseq
        %v8707 = vshrl.u32 %v8706, 7
        %v8708 = vsub.s32 %v7624, %v8707
        %v8709 = vrot.slane %v6287, %v8708
        %v8710 = vsel %vm7629, %v8709, %v8705
        %v8711 = vlaneseq
        %v8712 = vshrl.u32 %v8711, 7
        %v8713 = vsub.s32 %v7619, %v8712
        %v8714 = vrot.slane %v6290, %v8713
        %v8715 = vlaneseq
        %v8716 = vshrl.u32 %v8715, 7
        %v8717 = vsub.s32 %v7624, %v8716
        %v8718 = vrot.slane %v6293, %v8717
        %v8719 = vsel %vm7629, %v8718, %v8714
        %v8720 = vlaneseq
        %v8721 = vshrl.u32 %v8720, 7
        %v8722 = vsub.s32 %v7619, %v8721
        %v8723 = vrot.slane %v6296, %v8722
        %v8724 = vlaneseq
        %v8725 = vshrl.u32 %v8724, 7
        %v8726 = vsub.s32 %v7624, %v8725
        %v8727 = vrot.slane %v6299, %v8726
        %v8728 = vsel %vm7629, %v8727, %v8723
        %v8729 = vlaneseq
        %v8730 = vshrl.u32 %v8729, 7
        %v8731 = vsub.s32 %v7619, %v8730
        %v8732 = vrot.slane %v6302, %v8731
        %v8733 = vlaneseq
        %v8734 = vshrl.u32 %v8733, 7
        %v8735 = vsub.s32 %v7624, %v8734
        %v8736 = vrot.slane %v6305, %v8735
        %v8737 = vsel %vm7629, %v8736, %v8732
        %v8738 = vlaneseq
        %v8739 = vshrl.u32 %v8738, 7
        %v8740 = vsub.s32 %v7619, %v8739
        %v8741 = vrot.slane %v6308, %v8740
        %v8742 = vlaneseq
        %v8743 = vshrl.u32 %v8742, 7
        %v8744 = vsub.s32 %v7624, %v8743
        %v8745 = vrot.slane %v6311, %v8744
        %v8746 = vsel %vm7629, %v8745, %v8741
        %v8747 = vlaneseq
        %v8748 = vshrl.u32 %v8747, 7
        %v8749 = vsub.s32 %v7619, %v8748
        %v8750 = vrot.slane %v6314, %v8749
        %v8751 = vlaneseq
        %v8752 = vshrl.u32 %v8751, 7
        %v8753 = vsub.s32 %v7624, %v8752
        %v8754 = vrot.slane %v6317, %v8753
        %v8755 = vsel %vm7629, %v8754, %v8750
        %v8756 = vlaneseq
        %v8757 = vshrl.u32 %v8756, 7
        %v8758 = vsub.s32 %v7619, %v8757
        %v8759 = vrot.slane %v6320, %v8758
        %v8760 = vlaneseq
        %v8761 = vshrl.u32 %v8760, 7
        %v8762 = vsub.s32 %v7624, %v8761
        %v8763 = vrot.slane %v6323, %v8762
        %v8764 = vsel %vm7629, %v8763, %v8759
        %v8765 = vlaneseq
        %v8766 = vshrl.u32 %v8765, 7
        %v8767 = vsub.s32 %v7619, %v8766
        %v8768 = vrot.slane %v6326, %v8767
        %v8769 = vlaneseq
        %v8770 = vshrl.u32 %v8769, 7
        %v8771 = vsub.s32 %v7624, %v8770
        %v8772 = vrot.slane %v6329, %v8771
        %v8773 = vsel %vm7629, %v8772, %v8768
        %v8774 = vlaneseq
        %v8775 = vshrl.u32 %v8774, 7
        %v8776 = vsub.s32 %v7619, %v8775
        %v8777 = vrot.slane %v6332, %v8776
        %v8778 = vlaneseq
        %v8779 = vshrl.u32 %v8778, 7
        %v8780 = vsub.s32 %v7624, %v8779
        %v8781 = vrot.slane %v6335, %v8780
        %v8782 = vsel %vm7629, %v8781, %v8777
        %v8783 = vlaneseq
        %v8784 = vshrl.u32 %v8783, 7
        %v8785 = vsub.s32 %v7619, %v8784
        %v8786 = vrot.slane %v6338, %v8785
        %v8787 = vlaneseq
        %v8788 = vshrl.u32 %v8787, 7
        %v8789 = vsub.s32 %v7624, %v8788
        %v8790 = vrot.slane %v6341, %v8789
        %v8791 = vsel %vm7629, %v8790, %v8786
        %v8792 = vlaneseq
        %v8793 = vshrl.u32 %v8792, 7
        %v8794 = vsub.s32 %v7619, %v8793
        %v8795 = vrot.slane %v6344, %v8794
        %v8796 = vlaneseq
        %v8797 = vshrl.u32 %v8796, 7
        %v8798 = vsub.s32 %v7624, %v8797
        %v8799 = vrot.slane %v6347, %v8798
        %v8800 = vsel %vm7629, %v8799, %v8795
        %v8801 = vlaneseq
        %v8802 = vshrl.u32 %v8801, 7
        %v8803 = vsub.s32 %v7619, %v8802
        %v8804 = vrot.slane %v6350, %v8803
        %v8805 = vlaneseq
        %v8806 = vshrl.u32 %v8805, 7
        %v8807 = vsub.s32 %v7624, %v8806
        %v8808 = vrot.slane %v6353, %v8807
        %v8809 = vsel %vm7629, %v8808, %v8804
        %v8810 = vlaneseq
        %v8811 = vshrl.u32 %v8810, 7
        %v8812 = vsub.s32 %v7619, %v8811
        %v8813 = vrot.slane %v6356, %v8812
        %v8814 = vlaneseq
        %v8815 = vshrl.u32 %v8814, 7
        %v8816 = vsub.s32 %v7624, %v8815
        %v8817 = vrot.slane %v6359, %v8816
        %v8818 = vsel %vm7629, %v8817, %v8813
        %v8819 = vlaneseq
        %v8820 = vshrl.u32 %v8819, 7
        %v8821 = vsub.s32 %v7619, %v8820
        %v8822 = vrot.slane %v6362, %v8821
        %v8823 = vlaneseq
        %v8824 = vshrl.u32 %v8823, 7
        %v8825 = vsub.s32 %v7624, %v8824
        %v8826 = vrot.slane %v6365, %v8825
        %v8827 = vsel %vm7629, %v8826, %v8822
        %v8828 = vlaneseq
        %v8829 = vshrl.u32 %v8828, 7
        %v8830 = vsub.s32 %v7619, %v8829
        %v8831 = vrot.slane %v6368, %v8830
        %v8832 = vlaneseq
        %v8833 = vshrl.u32 %v8832, 7
        %v8834 = vsub.s32 %v7624, %v8833
        %v8835 = vrot.slane %v6371, %v8834
        %v8836 = vsel %vm7629, %v8835, %v8831
        %v8837 = vlaneseq
        %v8838 = vshrl.u32 %v8837, 7
        %v8839 = vsub.s32 %v7619, %v8838
        %v8840 = vrot.slane %v6374, %v8839
        %v8841 = vlaneseq
        %v8842 = vshrl.u32 %v8841, 7
        %v8843 = vsub.s32 %v7624, %v8842
        %v8844 = vrot.slane %v6377, %v8843
        %v8845 = vsel %vm7629, %v8844, %v8840
        %v8846 = vlaneseq
        %v8847 = vshrl.u32 %v8846, 7
        %v8848 = vsub.s32 %v7619, %v8847
        %v8849 = vrot.slane %v6380, %v8848
        %v8850 = vlaneseq
        %v8851 = vshrl.u32 %v8850, 7
        %v8852 = vsub.s32 %v7624, %v8851
        %v8853 = vrot.slane %v6383, %v8852
        %v8854 = vsel %vm7629, %v8853, %v8849
        %v8855 = vlaneseq
        %v8856 = vshrl.u32 %v8855, 7
        %v8857 = vsub.s32 %v7619, %v8856
        %v8858 = vrot.slane %v6386, %v8857
        %v8859 = vlaneseq
        %v8860 = vshrl.u32 %v8859, 7
        %v8861 = vsub.s32 %v7624, %v8860
        %v8862 = vrot.slane %v6389, %v8861
        %v8863 = vsel %vm7629, %v8862, %v8858
        %v8864 = vlaneseq
        %v8865 = vshrl.u32 %v8864, 7
        %v8866 = vsub.s32 %v7619, %v8865
        %v8867 = vrot.slane %v6392, %v8866
        %v8868 = vlaneseq
        %v8869 = vshrl.u32 %v8868, 7
        %v8870 = vsub.s32 %v7624, %v8869
        %v8871 = vrot.slane %v6395, %v8870
        %v8872 = vsel %vm7629, %v8871, %v8867
        %v8873 = vlaneseq
        %v8874 = vshrl.u32 %v8873, 7
        %v8875 = vsub.s32 %v7619, %v8874
        %v8876 = vrot.slane %v6398, %v8875
        %v8877 = vlaneseq
        %v8878 = vshrl.u32 %v8877, 7
        %v8879 = vsub.s32 %v7624, %v8878
        %v8880 = vrot.slane %v6401, %v8879
        %v8881 = vsel %vm7629, %v8880, %v8876
        %v8882 = vlaneseq
        %v8883 = vshrl.u32 %v8882, 7
        %v8884 = vsub.s32 %v7619, %v8883
        %v8885 = vrot.slane %v6404, %v8884
        %v8886 = vlaneseq
        %v8887 = vshrl.u32 %v8886, 7
        %v8888 = vsub.s32 %v7624, %v8887
        %v8889 = vrot.slane %v6407, %v8888
        %v8890 = vsel %vm7629, %v8889, %v8885
        %v8891 = vlaneseq
        %v8892 = vshrl.u32 %v8891, 7
        %v8893 = vsub.s32 %v7619, %v8892
        %v8894 = vrot.slane %v6410, %v8893
        %v8895 = vlaneseq
        %v8896 = vshrl.u32 %v8895, 7
        %v8897 = vsub.s32 %v7624, %v8896
        %v8898 = vrot.slane %v6413, %v8897
        %v8899 = vsel %vm7629, %v8898, %v8894
        %v8900 = vlaneseq
        %v8901 = vshrl.u32 %v8900, 7
        %v8902 = vsub.s32 %v7619, %v8901
        %v8903 = vrot.slane %v6416, %v8902
        %v8904 = vlaneseq
        %v8905 = vshrl.u32 %v8904, 7
        %v8906 = vsub.s32 %v7624, %v8905
        %v8907 = vrot.slane %v6419, %v8906
        %v8908 = vsel %vm7629, %v8907, %v8903
        %v8909 = vlaneseq
        %v8910 = vshrl.u32 %v8909, 7
        %v8911 = vsub.s32 %v7619, %v8910
        %v8912 = vrot.slane %v6422, %v8911
        %v8913 = vlaneseq
        %v8914 = vshrl.u32 %v8913, 7
        %v8915 = vsub.s32 %v7624, %v8914
        %v8916 = vrot.slane %v6425, %v8915
        %v8917 = vsel %vm7629, %v8916, %v8912
        %v8918 = vlaneseq
        %v8919 = vshrl.u32 %v8918, 7
        %v8920 = vsub.s32 %v7619, %v8919
        %v8921 = vrot.slane %v6428, %v8920
        %v8922 = vlaneseq
        %v8923 = vshrl.u32 %v8922, 7
        %v8924 = vsub.s32 %v7624, %v8923
        %v8925 = vrot.slane %v6431, %v8924
        %v8926 = vsel %vm7629, %v8925, %v8921
        %v8927 = vlaneseq
        %v8928 = vshrl.u32 %v8927, 7
        %v8929 = vsub.s32 %v7619, %v8928
        %v8930 = vrot.slane %v6434, %v8929
        %v8931 = vlaneseq
        %v8932 = vshrl.u32 %v8931, 7
        %v8933 = vsub.s32 %v7624, %v8932
        %v8934 = vrot.slane %v6437, %v8933
        %v8935 = vsel %vm7629, %v8934, %v8930
        %v8936 = vlaneseq
        %v8937 = vshrl.u32 %v8936, 7
        %v8938 = vsub.s32 %v7619, %v8937
        %v8939 = vrot.slane %v6440, %v8938
        %v8940 = vlaneseq
        %v8941 = vshrl.u32 %v8940, 7
        %v8942 = vsub.s32 %v7624, %v8941
        %v8943 = vrot.slane %v6443, %v8942
        %v8944 = vsel %vm7629, %v8943, %v8939
        %v8945 = vlaneseq
        %v8946 = vshrl.u32 %v8945, 7
        %v8947 = vsub.s32 %v7619, %v8946
        %v8948 = vrot.slane %v6446, %v8947
        %v8949 = vlaneseq
        %v8950 = vshrl.u32 %v8949, 7
        %v8951 = vsub.s32 %v7624, %v8950
        %v8952 = vrot.slane %v6449, %v8951
        %v8953 = vsel %vm7629, %v8952, %v8948
        %v8954 = vlaneseq
        %v8955 = vshrl.u32 %v8954, 7
        %v8956 = vsub.s32 %v7619, %v8955
        %v8957 = vrot.slane %v6452, %v8956
        %v8958 = vlaneseq
        %v8959 = vshrl.u32 %v8958, 7
        %v8960 = vsub.s32 %v7624, %v8959
        %v8961 = vrot.slane %v6455, %v8960
        %v8962 = vsel %vm7629, %v8961, %v8957
        %v8963 = vlaneseq
        %v8964 = vshrl.u32 %v8963, 7
        %v8965 = vsub.s32 %v7619, %v8964
        %v8966 = vrot.slane %v6458, %v8965
        %v8967 = vlaneseq
        %v8968 = vshrl.u32 %v8967, 7
        %v8969 = vsub.s32 %v7624, %v8968
        %v8970 = vrot.slane %v6461, %v8969
        %v8971 = vsel %vm7629, %v8970, %v8966
        %v8972 = vlaneseq
        %v8973 = vshrl.u32 %v8972, 7
        %v8974 = vsub.s32 %v7619, %v8973
        %v8975 = vrot.slane %v6464, %v8974
        %v8976 = vlaneseq
        %v8977 = vshrl.u32 %v8976, 7
        %v8978 = vsub.s32 %v7624, %v8977
        %v8979 = vrot.slane %v6467, %v8978
        %v8980 = vsel %vm7629, %v8979, %v8975
        %v8981 = vlaneseq
        %v8982 = vshrl.u32 %v8981, 7
        %v8983 = vsub.s32 %v7619, %v8982
        %v8984 = vrot.slane %v6470, %v8983
        %v8985 = vlaneseq
        %v8986 = vshrl.u32 %v8985, 7
        %v8987 = vsub.s32 %v7624, %v8986
        %v8988 = vrot.slane %v6473, %v8987
        %v8989 = vsel %vm7629, %v8988, %v8984
        %v8990 = vlaneseq
        %v8991 = vshrl.u32 %v8990, 7
        %v8992 = vsub.s32 %v7619, %v8991
        %v8993 = vrot.slane %v6476, %v8992
        %v8994 = vlaneseq
        %v8995 = vshrl.u32 %v8994, 7
        %v8996 = vsub.s32 %v7624, %v8995
        %v8997 = vrot.slane %v6479, %v8996
        %v8998 = vsel %vm7629, %v8997, %v8993
        %v8999 = vlaneseq
        %v9000 = vshrl.u32 %v8999, 7
        %v9001 = vsub.s32 %v7619, %v9000
        %v9002 = vrot.slane %v6482, %v9001
        %v9003 = vlaneseq
        %v9004 = vshrl.u32 %v9003, 7
        %v9005 = vsub.s32 %v7624, %v9004
        %v9006 = vrot.slane %v6485, %v9005
        %v9007 = vsel %vm7629, %v9006, %v9002
        %v9008 = vlaneseq
        %v9009 = vshrl.u32 %v9008, 7
        %v9010 = vsub.s32 %v7619, %v9009
        %v9011 = vrot.slane %v6488, %v9010
        %v9012 = vlaneseq
        %v9013 = vshrl.u32 %v9012, 7
        %v9014 = vsub.s32 %v7624, %v9013
        %v9015 = vrot.slane %v6491, %v9014
        %v9016 = vsel %vm7629, %v9015, %v9011
        %v9017 = vlaneseq
        %v9018 = vshrl.u32 %v9017, 7
        %v9019 = vsub.s32 %v7619, %v9018
        %v9020 = vrot.slane %v6494, %v9019
        %v9021 = vlaneseq
        %v9022 = vshrl.u32 %v9021, 7
        %v9023 = vsub.s32 %v7624, %v9022
        %v9024 = vrot.slane %v6497, %v9023
        %v9025 = vsel %vm7629, %v9024, %v9020
        %v9026 = vlaneseq
        %v9027 = vshrl.u32 %v9026, 7
        %v9028 = vsub.s32 %v7619, %v9027
        %v9029 = vrot.slane %v6500, %v9028
        %v9030 = vlaneseq
        %v9031 = vshrl.u32 %v9030, 7
        %v9032 = vsub.s32 %v7624, %v9031
        %v9033 = vrot.slane %v6503, %v9032
        %v9034 = vsel %vm7629, %v9033, %v9029
        %v9035 = vlaneseq
        %v9036 = vshrl.u32 %v9035, 7
        %v9037 = vsub.s32 %v7619, %v9036
        %v9038 = vrot.slane %v6506, %v9037
        %v9039 = vlaneseq
        %v9040 = vshrl.u32 %v9039, 7
        %v9041 = vsub.s32 %v7624, %v9040
        %v9042 = vrot.slane %v6509, %v9041
        %v9043 = vsel %vm7629, %v9042, %v9038
        %v9044 = vlaneseq
        %v9045 = vshrl.u32 %v9044, 7
        %v9046 = vsub.s32 %v7619, %v9045
        %v9047 = vrot.slane %v6512, %v9046
        %v9048 = vlaneseq
        %v9049 = vshrl.u32 %v9048, 7
        %v9050 = vsub.s32 %v7624, %v9049
        %v9051 = vrot.slane %v6515, %v9050
        %v9052 = vsel %vm7629, %v9051, %v9047
        %v9053 = vlaneseq
        %v9054 = vshrl.u32 %v9053, 7
        %v9055 = vsub.s32 %v7619, %v9054
        %v9056 = vrot.slane %v6518, %v9055
        %v9057 = vlaneseq
        %v9058 = vshrl.u32 %v9057, 7
        %v9059 = vsub.s32 %v7624, %v9058
        %v9060 = vrot.slane %v6521, %v9059
        %v9061 = vsel %vm7629, %v9060, %v9056
        %v9062 = vlaneseq
        %v9063 = vshrl.u32 %v9062, 7
        %v9064 = vsub.s32 %v7619, %v9063
        %v9065 = vrot.slane %v6524, %v9064
        %v9066 = vlaneseq
        %v9067 = vshrl.u32 %v9066, 7
        %v9068 = vsub.s32 %v7624, %v9067
        %v9069 = vrot.slane %v6527, %v9068
        %v9070 = vsel %vm7629, %v9069, %v9065
        %v9071 = vlaneseq
        %v9072 = vshrl.u32 %v9071, 7
        %v9073 = vsub.s32 %v7619, %v9072
        %v9074 = vrot.slane %v6530, %v9073
        %v9075 = vlaneseq
        %v9076 = vshrl.u32 %v9075, 7
        %v9077 = vsub.s32 %v7624, %v9076
        %v9078 = vrot.slane %v6533, %v9077
        %v9079 = vsel %vm7629, %v9078, %v9074
        %v9080 = vlaneseq
        %v9081 = vshrl.u32 %v9080, 7
        %v9082 = vsub.s32 %v7619, %v9081
        %v9083 = vrot.slane %v6536, %v9082
        %v9084 = vlaneseq
        %v9085 = vshrl.u32 %v9084, 7
        %v9086 = vsub.s32 %v7624, %v9085
        %v9087 = vrot.slane %v6539, %v9086
        %v9088 = vsel %vm7629, %v9087, %v9083
        %v9089 = vlaneseq
        %v9090 = vshrl.u32 %v9089, 7
        %v9091 = vsub.s32 %v7619, %v9090
        %v9092 = vrot.slane %v6542, %v9091
        %v9093 = vlaneseq
        %v9094 = vshrl.u32 %v9093, 7
        %v9095 = vsub.s32 %v7624, %v9094
        %v9096 = vrot.slane %v6545, %v9095
        %v9097 = vsel %vm7629, %v9096, %v9092
        %v9098 = vlaneseq
        %v9099 = vshrl.u32 %v9098, 7
        %v9100 = vsub.s32 %v7619, %v9099
        %v9101 = vrot.slane %v6548, %v9100
        %v9102 = vlaneseq
        %v9103 = vshrl.u32 %v9102, 7
        %v9104 = vsub.s32 %v7624, %v9103
        %v9105 = vrot.slane %v6551, %v9104
        %v9106 = vsel %vm7629, %v9105, %v9101
        %v9107 = vlaneseq
        %v9108 = vshrl.u32 %v9107, 7
        %v9109 = vsub.s32 %v7619, %v9108
        %v9110 = vrot.slane %v6554, %v9109
        %v9111 = vlaneseq
        %v9112 = vshrl.u32 %v9111, 7
        %v9113 = vsub.s32 %v7624, %v9112
        %v9114 = vrot.slane %v6557, %v9113
        %v9115 = vsel %vm7629, %v9114, %v9110
        %v9116 = vlaneseq
        %v9117 = vshrl.u32 %v9116, 7
        %v9118 = vsub.s32 %v7619, %v9117
        %v9119 = vrot.slane %v6560, %v9118
        %v9120 = vlaneseq
        %v9121 = vshrl.u32 %v9120, 7
        %v9122 = vsub.s32 %v7624, %v9121
        %v9123 = vrot.slane %v6563, %v9122
        %v9124 = vsel %vm7629, %v9123, %v9119
        %v9125 = vlaneseq
        %v9126 = vshrl.u32 %v9125, 7
        %v9127 = vsub.s32 %v7619, %v9126
        %v9128 = vrot.slane %v6566, %v9127
        %v9129 = vlaneseq
        %v9130 = vshrl.u32 %v9129, 7
        %v9131 = vsub.s32 %v7624, %v9130
        %v9132 = vrot.slane %v6569, %v9131
        %v9133 = vsel %vm7629, %v9132, %v9128
        %v9134 = vlaneseq
        %v9135 = vshrl.u32 %v9134, 7
        %v9136 = vsub.s32 %v7619, %v9135
        %v9137 = vrot.slane %v6572, %v9136
        %v9138 = vlaneseq
        %v9139 = vshrl.u32 %v9138, 7
        %v9140 = vsub.s32 %v7624, %v9139
        %v9141 = vrot.slane %v6575, %v9140
        %v9142 = vsel %vm7629, %v9141, %v9137
        %v9143 = vlaneseq
        %v9144 = vshrl.u32 %v9143, 7
        %v9145 = vsub.s32 %v7619, %v9144
        %v9146 = vrot.slane %v6578, %v9145
        %v9147 = vlaneseq
        %v9148 = vshrl.u32 %v9147, 7
        %v9149 = vsub.s32 %v7624, %v9148
        %v9150 = vrot.slane %v6581, %v9149
        %v9151 = vsel %vm7629, %v9150, %v9146
        %v9152 = vlaneseq
        %v9153 = vshrl.u32 %v9152, 7
        %v9154 = vsub.s32 %v7619, %v9153
        %v9155 = vrot.slane %v6584, %v9154
        %v9156 = vlaneseq
        %v9157 = vshrl.u32 %v9156, 7
        %v9158 = vsub.s32 %v7624, %v9157
        %v9159 = vrot.slane %v6587, %v9158
        %v9160 = vsel %vm7629, %v9159, %v9155
        %v9161 = vlaneseq
        %v9162 = vshrl.u32 %v9161, 7
        %v9163 = vsub.s32 %v7619, %v9162
        %v9164 = vrot.slane %v6590, %v9163
        %v9165 = vlaneseq
        %v9166 = vshrl.u32 %v9165, 7
        %v9167 = vsub.s32 %v7624, %v9166
        %v9168 = vrot.slane %v6593, %v9167
        %v9169 = vsel %vm7629, %v9168, %v9164
        %v9170 = vlaneseq
        %v9171 = vshrl.u32 %v9170, 7
        %v9172 = vsub.s32 %v7619, %v9171
        %v9173 = vrot.slane %v6596, %v9172
        %v9174 = vlaneseq
        %v9175 = vshrl.u32 %v9174, 7
        %v9176 = vsub.s32 %v7624, %v9175
        %v9177 = vrot.slane %v6599, %v9176
        %v9178 = vsel %vm7629, %v9177, %v9173
        %v9179 = vlaneseq
        %v9180 = vshrl.u32 %v9179, 7
        %v9181 = vsub.s32 %v7619, %v9180
        %v9182 = vrot.slane %v6602, %v9181
        %v9183 = vlaneseq
        %v9184 = vshrl.u32 %v9183, 7
        %v9185 = vsub.s32 %v7624, %v9184
        %v9186 = vrot.slane %v6605, %v9185
        %v9187 = vsel %vm7629, %v9186, %v9182
        %v9188 = vlaneseq
        %v9189 = vshrl.u32 %v9188, 7
        %v9190 = vsub.s32 %v7619, %v9189
        %v9191 = vrot.slane %v6608, %v9190
        %v9192 = vlaneseq
        %v9193 = vshrl.u32 %v9192, 7
        %v9194 = vsub.s32 %v7624, %v9193
        %v9195 = vrot.slane %v6611, %v9194
        %v9196 = vsel %vm7629, %v9195, %v9191
        %v9197 = vlaneseq
        %v9198 = vshrl.u32 %v9197, 7
        %v9199 = vsub.s32 %v7619, %v9198
        %v9200 = vrot.slane %v6614, %v9199
        %v9201 = vlaneseq
        %v9202 = vshrl.u32 %v9201, 7
        %v9203 = vsub.s32 %v7624, %v9202
        %v9204 = vrot.slane %v6617, %v9203
        %v9205 = vsel %vm7629, %v9204, %v9200
        %v9206 = vlaneseq
        %v9207 = vshrl.u32 %v9206, 7
        %v9208 = vsub.s32 %v7619, %v9207
        %v9209 = vrot.slane %v6620, %v9208
        %v9210 = vlaneseq
        %v9211 = vshrl.u32 %v9210, 7
        %v9212 = vsub.s32 %v7624, %v9211
        %v9213 = vrot.slane %v6623, %v9212
        %v9214 = vsel %vm7629, %v9213, %v9209
        %v9215 = vlaneseq
        %v9216 = vshrl.u32 %v9215, 7
        %v9217 = vsub.s32 %v7619, %v9216
        %v9218 = vrot.slane %v6626, %v9217
        %v9219 = vlaneseq
        %v9220 = vshrl.u32 %v9219, 7
        %v9221 = vsub.s32 %v7624, %v9220
        %v9222 = vrot.slane %v6629, %v9221
        %v9223 = vsel %vm7629, %v9222, %v9218
        %v9224 = vlaneseq
        %v9225 = vshrl.u32 %v9224, 7
        %v9226 = vsub.s32 %v7619, %v9225
        %v9227 = vrot.slane %v6632, %v9226
        %v9228 = vlaneseq
        %v9229 = vshrl.u32 %v9228, 7
        %v9230 = vsub.s32 %v7624, %v9229
        %v9231 = vrot.slane %v6635, %v9230
        %v9232 = vsel %vm7629, %v9231, %v9227
        %v9233 = vlaneseq
        %v9234 = vshrl.u32 %v9233, 7
        %v9235 = vsub.s32 %v7619, %v9234
        %v9236 = vrot.slane %v6638, %v9235
        %v9237 = vlaneseq
        %v9238 = vshrl.u32 %v9237, 7
        %v9239 = vsub.s32 %v7624, %v9238
        %v9240 = vrot.slane %v6641, %v9239
        %v9241 = vsel %vm7629, %v9240, %v9236
        %v9242 = vlaneseq
        %v9243 = vshrl.u32 %v9242, 7
        %v9244 = vsub.s32 %v7619, %v9243
        %v9245 = vrot.slane %v6644, %v9244
        %v9246 = vlaneseq
        %v9247 = vshrl.u32 %v9246, 7
        %v9248 = vsub.s32 %v7624, %v9247
        %v9249 = vrot.slane %v6647, %v9248
        %v9250 = vsel %vm7629, %v9249, %v9245
        %v9251 = vlaneseq
        %v9252 = vshrl.u32 %v9251, 7
        %v9253 = vsub.s32 %v7619, %v9252
        %v9254 = vrot.slane %v6650, %v9253
        %v9255 = vlaneseq
        %v9256 = vshrl.u32 %v9255, 7
        %v9257 = vsub.s32 %v7624, %v9256
        %v9258 = vrot.slane %v6653, %v9257
        %v9259 = vsel %vm7629, %v9258, %v9254
        %v9260 = vlaneseq
        %v9261 = vshrl.u32 %v9260, 7
        %v9262 = vsub.s32 %v7619, %v9261
        %v9263 = vrot.slane %v6656, %v9262
        %v9264 = vlaneseq
        %v9265 = vshrl.u32 %v9264, 7
        %v9266 = vsub.s32 %v7624, %v9265
        %v9267 = vrot.slane %v6659, %v9266
        %v9268 = vsel %vm7629, %v9267, %v9263
        %v9269 = vlaneseq
        %v9270 = vshrl.u32 %v9269, 7
        %v9271 = vsub.s32 %v7619, %v9270
        %v9272 = vrot.slane %v6662, %v9271
        %v9273 = vlaneseq
        %v9274 = vshrl.u32 %v9273, 7
        %v9275 = vsub.s32 %v7624, %v9274
        %v9276 = vrot.slane %v6665, %v9275
        %v9277 = vsel %vm7629, %v9276, %v9272
        %v9278 = vlaneseq
        %v9279 = vshrl.u32 %v9278, 7
        %v9280 = vsub.s32 %v7619, %v9279
        %v9281 = vrot.slane %v6668, %v9280
        %v9282 = vlaneseq
        %v9283 = vshrl.u32 %v9282, 7
        %v9284 = vsub.s32 %v7624, %v9283
        %v9285 = vrot.slane %v6671, %v9284
        %v9286 = vsel %vm7629, %v9285, %v9281
        %v9287 = vlaneseq
        %v9288 = vshrl.u32 %v9287, 7
        %v9289 = vsub.s32 %v7619, %v9288
        %v9290 = vrot.slane %v6674, %v9289
        %v9291 = vlaneseq
        %v9292 = vshrl.u32 %v9291, 7
        %v9293 = vsub.s32 %v7624, %v9292
        %v9294 = vrot.slane %v6677, %v9293
        %v9295 = vsel %vm7629, %v9294, %v9290
        %v9296 = vlaneseq
        %v9297 = vshrl.u32 %v9296, 7
        %v9298 = vsub.s32 %v7619, %v9297
        %v9299 = vrot.slane %v6680, %v9298
        %v9300 = vlaneseq
        %v9301 = vshrl.u32 %v9300, 7
        %v9302 = vsub.s32 %v7624, %v9301
        %v9303 = vrot.slane %v6683, %v9302
        %v9304 = vsel %vm7629, %v9303, %v9299
        %v9305 = vlaneseq
        %v9306 = vshrl.u32 %v9305, 7
        %v9307 = vsub.s32 %v7619, %v9306
        %v9308 = vrot.slane %v6686, %v9307
        %v9309 = vlaneseq
        %v9310 = vshrl.u32 %v9309, 7
        %v9311 = vsub.s32 %v7624, %v9310
        %v9312 = vrot.slane %v6689, %v9311
        %v9313 = vsel %vm7629, %v9312, %v9308
        %v9314 = vlaneseq
        %v9315 = vshrl.u32 %v9314, 7
        %v9316 = vsub.s32 %v7619, %v9315
        %v9317 = vrot.slane %v6692, %v9316
        %v9318 = vlaneseq
        %v9319 = vshrl.u32 %v9318, 7
        %v9320 = vsub.s32 %v7624, %v9319
        %v9321 = vrot.slane %v6695, %v9320
        %v9322 = vsel %vm7629, %v9321, %v9317
        %v9323 = vlaneseq
        %v9324 = vshrl.u32 %v9323, 7
        %v9325 = vsub.s32 %v7619, %v9324
        %v9326 = vrot.slane %v6698, %v9325
        %v9327 = vlaneseq
        %v9328 = vshrl.u32 %v9327, 7
        %v9329 = vsub.s32 %v7624, %v9328
        %v9330 = vrot.slane %v6701, %v9329
        %v9331 = vsel %vm7629, %v9330, %v9326
        %v9332 = vlaneseq
        %v9333 = vshrl.u32 %v9332, 7
        %v9334 = vsub.s32 %v7619, %v9333
        %v9335 = vrot.slane %v6704, %v9334
        %v9336 = vlaneseq
        %v9337 = vshrl.u32 %v9336, 7
        %v9338 = vsub.s32 %v7624, %v9337
        %v9339 = vrot.slane %v6707, %v9338
        %v9340 = vsel %vm7629, %v9339, %v9335
        %v9341 = vlaneseq
        %v9342 = vshrl.u32 %v9341, 7
        %v9343 = vsub.s32 %v7619, %v9342
        %v9344 = vrot.slane %v6710, %v9343
        %v9345 = vlaneseq
        %v9346 = vshrl.u32 %v9345, 7
        %v9347 = vsub.s32 %v7624, %v9346
        %v9348 = vrot.slane %v6713, %v9347
        %v9349 = vsel %vm7629, %v9348, %v9344
        %v9350 = vlaneseq
        %v9351 = vshrl.u32 %v9350, 7
        %v9352 = vsub.s32 %v7619, %v9351
        %v9353 = vrot.slane %v6716, %v9352
        %v9354 = vlaneseq
        %v9355 = vshrl.u32 %v9354, 7
        %v9356 = vsub.s32 %v7624, %v9355
        %v9357 = vrot.slane %v6719, %v9356
        %v9358 = vsel %vm7629, %v9357, %v9353
        %v9359 = vlaneseq
        %v9360 = vshrl.u32 %v9359, 7
        %v9361 = vsub.s32 %v7619, %v9360
        %v9362 = vrot.slane %v6722, %v9361
        %v9363 = vlaneseq
        %v9364 = vshrl.u32 %v9363, 7
        %v9365 = vsub.s32 %v7624, %v9364
        %v9366 = vrot.slane %v6725, %v9365
        %v9367 = vsel %vm7629, %v9366, %v9362
        %v9368 = vlaneseq
        %v9369 = vshrl.u32 %v9368, 7
        %v9370 = vsub.s32 %v7619, %v9369
        %v9371 = vrot.slane %v6728, %v9370
        %v9372 = vlaneseq
        %v9373 = vshrl.u32 %v9372, 7
        %v9374 = vsub.s32 %v7624, %v9373
        %v9375 = vrot.slane %v6731, %v9374
        %v9376 = vsel %vm7629, %v9375, %v9371
        %v9377 = vlaneseq
        %v9378 = vshrl.u32 %v9377, 7
        %v9379 = vsub.s32 %v7619, %v9378
        %v9380 = vrot.slane %v6734, %v9379
        %v9381 = vlaneseq
        %v9382 = vshrl.u32 %v9381, 7
        %v9383 = vsub.s32 %v7624, %v9382
        %v9384 = vrot.slane %v6737, %v9383
        %v9385 = vsel %vm7629, %v9384, %v9380
        %v9386 = vlaneseq
        %v9387 = vshrl.u32 %v9386, 7
        %v9388 = vsub.s32 %v7619, %v9387
        %v9389 = vrot.slane %v6740, %v9388
        %v9390 = vlaneseq
        %v9391 = vshrl.u32 %v9390, 7
        %v9392 = vsub.s32 %v7624, %v9391
        %v9393 = vrot.slane %v6743, %v9392
        %v9394 = vsel %vm7629, %v9393, %v9389
        %v9395 = vlaneseq
        %v9396 = vshrl.u32 %v9395, 7
        %v9397 = vsub.s32 %v7619, %v9396
        %v9398 = vrot.slane %v6746, %v9397
        %v9399 = vlaneseq
        %v9400 = vshrl.u32 %v9399, 7
        %v9401 = vsub.s32 %v7624, %v9400
        %v9402 = vrot.slane %v6749, %v9401
        %v9403 = vsel %vm7629, %v9402, %v9398
        %v9404 = vlaneseq
        %v9405 = vshrl.u32 %v9404, 7
        %v9406 = vsub.s32 %v7619, %v9405
        %v9407 = vrot.slane %v6752, %v9406
        %v9408 = vlaneseq
        %v9409 = vshrl.u32 %v9408, 7
        %v9410 = vsub.s32 %v7624, %v9409
        %v9411 = vrot.slane %v6755, %v9410
        %v9412 = vsel %vm7629, %v9411, %v9407
        %v9413 = vlaneseq
        %v9414 = vshrl.u32 %v9413, 7
        %v9415 = vsub.s32 %v7619, %v9414
        %v9416 = vrot.slane %v6758, %v9415
        %v9417 = vlaneseq
        %v9418 = vshrl.u32 %v9417, 7
        %v9419 = vsub.s32 %v7624, %v9418
        %v9420 = vrot.slane %v6761, %v9419
        %v9421 = vsel %vm7629, %v9420, %v9416
        %v9422 = vlaneseq
        %v9423 = vshrl.u32 %v9422, 7
        %v9424 = vsub.s32 %v7619, %v9423
        %v9425 = vrot.slane %v6764, %v9424
        %v9426 = vlaneseq
        %v9427 = vshrl.u32 %v9426, 7
        %v9428 = vsub.s32 %v7624, %v9427
        %v9429 = vrot.slane %v6767, %v9428
        %v9430 = vsel %vm7629, %v9429, %v9425
        %v9431 = vlaneseq
        %v9432 = vshrl.u32 %v9431, 7
        %v9433 = vsub.s32 %v7619, %v9432
        %v9434 = vrot.slane %v6770, %v9433
        %v9435 = vlaneseq
        %v9436 = vshrl.u32 %v9435, 7
        %v9437 = vsub.s32 %v7624, %v9436
        %v9438 = vrot.slane %v6773, %v9437
        %v9439 = vsel %vm7629, %v9438, %v9434
        %v9440 = vlaneseq
        %v9441 = vshrl.u32 %v9440, 7
        %v9442 = vsub.s32 %v7619, %v9441
        %v9443 = vrot.slane %v6776, %v9442
        %v9444 = vlaneseq
        %v9445 = vshrl.u32 %v9444, 7
        %v9446 = vsub.s32 %v7624, %v9445
        %v9447 = vrot.slane %v6779, %v9446
        %v9448 = vsel %vm7629, %v9447, %v9443
        %v9449 = vlaneseq
        %v9450 = vshrl.u32 %v9449, 7
        %v9451 = vsub.s32 %v7619, %v9450
        %v9452 = vrot.slane %v6782, %v9451
        %v9453 = vlaneseq
        %v9454 = vshrl.u32 %v9453, 7
        %v9455 = vsub.s32 %v7624, %v9454
        %v9456 = vrot.slane %v6785, %v9455
        %v9457 = vsel %vm7629, %v9456, %v9452
        %v9458 = vlaneseq
        %v9459 = vshrl.u32 %v9458, 7
        %v9460 = vsub.s32 %v7619, %v9459
        %v9461 = vrot.slane %v6788, %v9460
        %v9462 = vlaneseq
        %v9463 = vshrl.u32 %v9462, 7
        %v9464 = vsub.s32 %v7624, %v9463
        %v9465 = vrot.slane %v6791, %v9464
        %v9466 = vsel %vm7629, %v9465, %v9461
        %v9467 = vlaneseq
        %v9468 = vshrl.u32 %v9467, 7
        %v9469 = vsub.s32 %v7619, %v9468
        %v9470 = vrot.slane %v6794, %v9469
        %v9471 = vlaneseq
        %v9472 = vshrl.u32 %v9471, 7
        %v9473 = vsub.s32 %v7624, %v9472
        %v9474 = vrot.slane %v6797, %v9473
        %v9475 = vsel %vm7629, %v9474, %v9470
        %v9476 = vlaneseq
        %v9477 = vshrl.u32 %v9476, 7
        %v9478 = vsub.s32 %v7619, %v9477
        %v9479 = vrot.slane %v6800, %v9478
        %v9480 = vlaneseq
        %v9481 = vshrl.u32 %v9480, 7
        %v9482 = vsub.s32 %v7624, %v9481
        %v9483 = vrot.slane %v6803, %v9482
        %v9484 = vsel %vm7629, %v9483, %v9479
        %v9485 = vlaneseq
        %v9486 = vshrl.u32 %v9485, 7
        %v9487 = vsub.s32 %v7619, %v9486
        %v9488 = vrot.slane %v6806, %v9487
        %v9489 = vlaneseq
        %v9490 = vshrl.u32 %v9489, 7
        %v9491 = vsub.s32 %v7624, %v9490
        %v9492 = vrot.slane %v6809, %v9491
        %v9493 = vsel %vm7629, %v9492, %v9488
        %v9494 = vlaneseq
        %v9495 = vshrl.u32 %v9494, 7
        %v9496 = vsub.s32 %v7619, %v9495
        %v9497 = vrot.slane %v6812, %v9496
        %v9498 = vlaneseq
        %v9499 = vshrl.u32 %v9498, 7
        %v9500 = vsub.s32 %v7624, %v9499
        %v9501 = vrot.slane %v6815, %v9500
        %v9502 = vsel %vm7629, %v9501, %v9497
        %v9503 = vlaneseq
        %v9504 = vshrl.u32 %v9503, 7
        %v9505 = vsub.s32 %v7619, %v9504
        %v9506 = vrot.slane %v6818, %v9505
        %v9507 = vlaneseq
        %v9508 = vshrl.u32 %v9507, 7
        %v9509 = vsub.s32 %v7624, %v9508
        %v9510 = vrot.slane %v6821, %v9509
        %v9511 = vsel %vm7629, %v9510, %v9506
        %v9512 = vlaneseq
        %v9513 = vshrl.u32 %v9512, 7
        %v9514 = vsub.s32 %v7619, %v9513
        %v9515 = vrot.slane %v6824, %v9514
        %v9516 = vlaneseq
        %v9517 = vshrl.u32 %v9516, 7
        %v9518 = vsub.s32 %v7624, %v9517
        %v9519 = vrot.slane %v6827, %v9518
        %v9520 = vsel %vm7629, %v9519, %v9515
        %v9521 = vlaneseq
        %v9522 = vshrl.u32 %v9521, 7
        %v9523 = vsub.s32 %v7619, %v9522
        %v9524 = vrot.slane %v6830, %v9523
        %v9525 = vlaneseq
        %v9526 = vshrl.u32 %v9525, 7
        %v9527 = vsub.s32 %v7624, %v9526
        %v9528 = vrot.slane %v6833, %v9527
        %v9529 = vsel %vm7629, %v9528, %v9524
        %v9530 = vlaneseq
        %v9531 = vshrl.u32 %v9530, 7
        %v9532 = vsub.s32 %v7619, %v9531
        %v9533 = vrot.slane %v6836, %v9532
        %v9534 = vlaneseq
        %v9535 = vshrl.u32 %v9534, 7
        %v9536 = vsub.s32 %v7624, %v9535
        %v9537 = vrot.slane %v6839, %v9536
        %v9538 = vsel %vm7629, %v9537, %v9533
        %v9539 = vlaneseq
        %v9540 = vshrl.u32 %v9539, 7
        %v9541 = vsub.s32 %v7619, %v9540
        %v9542 = vrot.slane %v6842, %v9541
        %v9543 = vlaneseq
        %v9544 = vshrl.u32 %v9543, 7
        %v9545 = vsub.s32 %v7624, %v9544
        %v9546 = vrot.slane %v6845, %v9545
        %v9547 = vsel %vm7629, %v9546, %v9542
        %v9548 = vlaneseq
        %v9549 = vshrl.u32 %v9548, 7
        %v9550 = vsub.s32 %v7619, %v9549
        %v9551 = vrot.slane %v6848, %v9550
        %v9552 = vlaneseq
        %v9553 = vshrl.u32 %v9552, 7
        %v9554 = vsub.s32 %v7624, %v9553
        %v9555 = vrot.slane %v6851, %v9554
        %v9556 = vsel %vm7629, %v9555, %v9551
        %v9557 = vlaneseq
        %v9558 = vshrl.u32 %v9557, 7
        %v9559 = vsub.s32 %v7619, %v9558
        %v9560 = vrot.slane %v6854, %v9559
        %v9561 = vlaneseq
        %v9562 = vshrl.u32 %v9561, 7
        %v9563 = vsub.s32 %v7624, %v9562
        %v9564 = vrot.slane %v6857, %v9563
        %v9565 = vsel %vm7629, %v9564, %v9560
        %v9566 = vlaneseq
        %v9567 = vshrl.u32 %v9566, 7
        %v9568 = vsub.s32 %v7619, %v9567
        %v9569 = vrot.slane %v6860, %v9568
        %v9570 = vlaneseq
        %v9571 = vshrl.u32 %v9570, 7
        %v9572 = vsub.s32 %v7624, %v9571
        %v9573 = vrot.slane %v6863, %v9572
        %v9574 = vsel %vm7629, %v9573, %v9569
        %v9575 = vlaneseq
        %v9576 = vshrl.u32 %v9575, 7
        %v9577 = vsub.s32 %v7619, %v9576
        %v9578 = vrot.slane %v6866, %v9577
        %v9579 = vlaneseq
        %v9580 = vshrl.u32 %v9579, 7
        %v9581 = vsub.s32 %v7624, %v9580
        %v9582 = vrot.slane %v6869, %v9581
        %v9583 = vsel %vm7629, %v9582, %v9578
        %v9584 = vlaneseq
        %v9585 = vshrl.u32 %v9584, 7
        %v9586 = vsub.s32 %v7619, %v9585
        %v9587 = vrot.slane %v6872, %v9586
        %v9588 = vlaneseq
        %v9589 = vshrl.u32 %v9588, 7
        %v9590 = vsub.s32 %v7624, %v9589
        %v9591 = vrot.slane %v6875, %v9590
        %v9592 = vsel %vm7629, %v9591, %v9587
        %v9593 = vlaneseq
        %v9594 = vshrl.u32 %v9593, 7
        %v9595 = vsub.s32 %v7619, %v9594
        %v9596 = vrot.slane %v6878, %v9595
        %v9597 = vlaneseq
        %v9598 = vshrl.u32 %v9597, 7
        %v9599 = vsub.s32 %v7624, %v9598
        %v9600 = vrot.slane %v6881, %v9599
        %v9601 = vsel %vm7629, %v9600, %v9596
        %v9602 = vlaneseq
        %v9603 = vshrl.u32 %v9602, 7
        %v9604 = vsub.s32 %v7619, %v9603
        %v9605 = vrot.slane %v6884, %v9604
        %v9606 = vlaneseq
        %v9607 = vshrl.u32 %v9606, 7
        %v9608 = vsub.s32 %v7624, %v9607
        %v9609 = vrot.slane %v6887, %v9608
        %v9610 = vsel %vm7629, %v9609, %v9605
        %v9611 = vlaneseq
        %v9612 = vshrl.u32 %v9611, 7
        %v9613 = vsub.s32 %v7619, %v9612
        %v9614 = vrot.slane %v6890, %v9613
        %v9615 = vlaneseq
        %v9616 = vshrl.u32 %v9615, 7
        %v9617 = vsub.s32 %v7624, %v9616
        %v9618 = vrot.slane %v6893, %v9617
        %v9619 = vsel %vm7629, %v9618, %v9614
        %v9620 = vlaneseq
        %v9621 = vshrl.u32 %v9620, 7
        %v9622 = vsub.s32 %v7619, %v9621
        %v9623 = vrot.slane %v6896, %v9622
        %v9624 = vlaneseq
        %v9625 = vshrl.u32 %v9624, 7
        %v9626 = vsub.s32 %v7624, %v9625
        %v9627 = vrot.slane %v6899, %v9626
        %v9628 = vsel %vm7629, %v9627, %v9623
        %v9629 = vlaneseq
        %v9630 = vshrl.u32 %v9629, 7
        %v9631 = vsub.s32 %v7619, %v9630
        %v9632 = vrot.slane %v6902, %v9631
        %v9633 = vlaneseq
        %v9634 = vshrl.u32 %v9633, 7
        %v9635 = vsub.s32 %v7624, %v9634
        %v9636 = vrot.slane %v6905, %v9635
        %v9637 = vsel %vm7629, %v9636, %v9632
        %v9638 = vlaneseq
        %v9639 = vshrl.u32 %v9638, 7
        %v9640 = vsub.s32 %v7619, %v9639
        %v9641 = vrot.slane %v6908, %v9640
        %v9642 = vlaneseq
        %v9643 = vshrl.u32 %v9642, 7
        %v9644 = vsub.s32 %v7624, %v9643
        %v9645 = vrot.slane %v6911, %v9644
        %v9646 = vsel %vm7629, %v9645, %v9641
        %v9647 = vlaneseq
        %v9648 = vshrl.u32 %v9647, 7
        %v9649 = vsub.s32 %v7619, %v9648
        %v9650 = vrot.slane %v6914, %v9649
        %v9651 = vlaneseq
        %v9652 = vshrl.u32 %v9651, 7
        %v9653 = vsub.s32 %v7624, %v9652
        %v9654 = vrot.slane %v6917, %v9653
        %v9655 = vsel %vm7629, %v9654, %v9650
        %v9656 = vlaneseq
        %v9657 = vshrl.u32 %v9656, 7
        %v9658 = vsub.s32 %v7619, %v9657
        %v9659 = vrot.slane %v6920, %v9658
        %v9660 = vlaneseq
        %v9661 = vshrl.u32 %v9660, 7
        %v9662 = vsub.s32 %v7624, %v9661
        %v9663 = vrot.slane %v6923, %v9662
        %v9664 = vsel %vm7629, %v9663, %v9659
        %v9665 = vlaneseq
        %v9666 = vshrl.u32 %v9665, 7
        %v9667 = vsub.s32 %v7619, %v9666
        %v9668 = vrot.slane %v6926, %v9667
        %v9669 = vlaneseq
        %v9670 = vshrl.u32 %v9669, 7
        %v9671 = vsub.s32 %v7624, %v9670
        %v9672 = vrot.slane %v6929, %v9671
        %v9673 = vsel %vm7629, %v9672, %v9668
        %v9674 = vlaneseq
        %v9675 = vshrl.u32 %v9674, 7
        %v9676 = vsub.s32 %v7619, %v9675
        %v9677 = vrot.slane %v6932, %v9676
        %v9678 = vlaneseq
        %v9679 = vshrl.u32 %v9678, 7
        %v9680 = vsub.s32 %v7624, %v9679
        %v9681 = vrot.slane %v6935, %v9680
        %v9682 = vsel %vm7629, %v9681, %v9677
        %v9683 = vlaneseq
        %v9684 = vshrl.u32 %v9683, 7
        %v9685 = vsub.s32 %v7619, %v9684
        %v9686 = vrot.slane %v6938, %v9685
        %v9687 = vlaneseq
        %v9688 = vshrl.u32 %v9687, 7
        %v9689 = vsub.s32 %v7624, %v9688
        %v9690 = vrot.slane %v6941, %v9689
        %v9691 = vsel %vm7629, %v9690, %v9686
        %v9692 = vlaneseq
        %v9693 = vshrl.u32 %v9692, 7
        %v9694 = vsub.s32 %v7619, %v9693
        %v9695 = vrot.slane %v6944, %v9694
        %v9696 = vlaneseq
        %v9697 = vshrl.u32 %v9696, 7
        %v9698 = vsub.s32 %v7624, %v9697
        %v9699 = vrot.slane %v6947, %v9698
        %v9700 = vsel %vm7629, %v9699, %v9695
        %v9701 = vlaneseq
        %v9702 = vshrl.u32 %v9701, 7
        %v9703 = vsub.s32 %v7619, %v9702
        %v9704 = vrot.slane %v6950, %v9703
        %v9705 = vlaneseq
        %v9706 = vshrl.u32 %v9705, 7
        %v9707 = vsub.s32 %v7624, %v9706
        %v9708 = vrot.slane %v6953, %v9707
        %v9709 = vsel %vm7629, %v9708, %v9704
        %v9710 = vlaneseq
        %v9711 = vshrl.u32 %v9710, 7
        %v9712 = vsub.s32 %v7619, %v9711
        %v9713 = vrot.slane %v6956, %v9712
        %v9714 = vlaneseq
        %v9715 = vshrl.u32 %v9714, 7
        %v9716 = vsub.s32 %v7624, %v9715
        %v9717 = vrot.slane %v6959, %v9716
        %v9718 = vsel %vm7629, %v9717, %v9713
        %v9719 = vlaneseq
        %v9720 = vshrl.u32 %v9719, 7
        %v9721 = vsub.s32 %v7619, %v9720
        %v9722 = vrot.slane %v6962, %v9721
        %v9723 = vlaneseq
        %v9724 = vshrl.u32 %v9723, 7
        %v9725 = vsub.s32 %v7624, %v9724
        %v9726 = vrot.slane %v6965, %v9725
        %v9727 = vsel %vm7629, %v9726, %v9722
        %v9728 = vlaneseq
        %v9729 = vshrl.u32 %v9728, 7
        %v9730 = vsub.s32 %v7619, %v9729
        %v9731 = vrot.slane %v6968, %v9730
        %v9732 = vlaneseq
        %v9733 = vshrl.u32 %v9732, 7
        %v9734 = vsub.s32 %v7624, %v9733
        %v9735 = vrot.slane %v6971, %v9734
        %v9736 = vsel %vm7629, %v9735, %v9731
        %v9737 = vlaneseq
        %v9738 = vshrl.u32 %v9737, 7
        %v9739 = vsub.s32 %v7619, %v9738
        %v9740 = vrot.slane %v6974, %v9739
        %v9741 = vlaneseq
        %v9742 = vshrl.u32 %v9741, 7
        %v9743 = vsub.s32 %v7624, %v9742
        %v9744 = vrot.slane %v6977, %v9743
        %v9745 = vsel %vm7629, %v9744, %v9740
        %v9746 = vlaneseq
        %v9747 = vshrl.u32 %v9746, 7
        %v9748 = vsub.s32 %v7619, %v9747
        %v9749 = vrot.slane %v6980, %v9748
        %v9750 = vlaneseq
        %v9751 = vshrl.u32 %v9750, 7
        %v9752 = vsub.s32 %v7624, %v9751
        %v9753 = vrot.slane %v6983, %v9752
        %v9754 = vsel %vm7629, %v9753, %v9749
        %v9755 = vlaneseq
        %v9756 = vshrl.u32 %v9755, 7
        %v9757 = vsub.s32 %v7619, %v9756
        %v9758 = vrot.slane %v6986, %v9757
        %v9759 = vlaneseq
        %v9760 = vshrl.u32 %v9759, 7
        %v9761 = vsub.s32 %v7624, %v9760
        %v9762 = vrot.slane %v6989, %v9761
        %v9763 = vsel %vm7629, %v9762, %v9758
        %v9764 = vlaneseq
        %v9765 = vshrl.u32 %v9764, 7
        %v9766 = vsub.s32 %v7619, %v9765
        %v9767 = vrot.slane %v6992, %v9766
        %v9768 = vlaneseq
        %v9769 = vshrl.u32 %v9768, 7
        %v9770 = vsub.s32 %v7624, %v9769
        %v9771 = vrot.slane %v6995, %v9770
        %v9772 = vsel %vm7629, %v9771, %v9767
        %v9773 = vlaneseq
        %v9774 = vshrl.u32 %v9773, 7
        %v9775 = vsub.s32 %v7619, %v9774
        %v9776 = vrot.slane %v6998, %v9775
        %v9777 = vlaneseq
        %v9778 = vshrl.u32 %v9777, 7
        %v9779 = vsub.s32 %v7624, %v9778
        %v9780 = vrot.slane %v7001, %v9779
        %v9781 = vsel %vm7629, %v9780, %v9776
        %v9782 = vlaneseq
        %v9783 = vshrl.u32 %v9782, 7
        %v9784 = vsub.s32 %v7619, %v9783
        %v9785 = vrot.slane %v7004, %v9784
        %v9786 = vlaneseq
        %v9787 = vshrl.u32 %v9786, 7
        %v9788 = vsub.s32 %v7624, %v9787
        %v9789 = vrot.slane %v7007, %v9788
        %v9790 = vsel %vm7629, %v9789, %v9785
        %v9791 = vlaneseq
        %v9792 = vshrl.u32 %v9791, 7
        %v9793 = vsub.s32 %v7619, %v9792
        %v9794 = vrot.slane %v7010, %v9793
        %v9795 = vlaneseq
        %v9796 = vshrl.u32 %v9795, 7
        %v9797 = vsub.s32 %v7624, %v9796
        %v9798 = vrot.slane %v7013, %v9797
        %v9799 = vsel %vm7629, %v9798, %v9794
        %v9800 = vlaneseq
        %v9801 = vshrl.u32 %v9800, 7
        %v9802 = vsub.s32 %v7619, %v9801
        %v9803 = vrot.slane %v7016, %v9802
        %v9804 = vlaneseq
        %v9805 = vshrl.u32 %v9804, 7
        %v9806 = vsub.s32 %v7624, %v9805
        %v9807 = vrot.slane %v7019, %v9806
        %v9808 = vsel %vm7629, %v9807, %v9803
        %v9809 = vlaneseq
        %v9810 = vshrl.u32 %v9809, 7
        %v9811 = vsub.s32 %v7619, %v9810
        %v9812 = vrot.slane %v7022, %v9811
        %v9813 = vlaneseq
        %v9814 = vshrl.u32 %v9813, 7
        %v9815 = vsub.s32 %v7624, %v9814
        %v9816 = vrot.slane %v7025, %v9815
        %v9817 = vsel %vm7629, %v9816, %v9812
        %v9818 = vlaneseq
        %v9819 = vshrl.u32 %v9818, 7
        %v9820 = vsub.s32 %v7619, %v9819
        %v9821 = vrot.slane %v7028, %v9820
        %v9822 = vlaneseq
        %v9823 = vshrl.u32 %v9822, 7
        %v9824 = vsub.s32 %v7624, %v9823
        %v9825 = vrot.slane %v7031, %v9824
        %v9826 = vsel %vm7629, %v9825, %v9821
        %v9827 = vlaneseq
        %v9828 = vshrl.u32 %v9827, 7
        %v9829 = vsub.s32 %v7619, %v9828
        %v9830 = vrot.slane %v7034, %v9829
        %v9831 = vlaneseq
        %v9832 = vshrl.u32 %v9831, 7
        %v9833 = vsub.s32 %v7624, %v9832
        %v9834 = vrot.slane %v7037, %v9833
        %v9835 = vsel %vm7629, %v9834, %v9830
        %v9836 = vlaneseq
        %v9837 = vshrl.u32 %v9836, 7
        %v9838 = vsub.s32 %v7619, %v9837
        %v9839 = vrot.slane %v7040, %v9838
        %v9840 = vlaneseq
        %v9841 = vshrl.u32 %v9840, 7
        %v9842 = vsub.s32 %v7624, %v9841
        %v9843 = vrot.slane %v7043, %v9842
        %v9844 = vsel %vm7629, %v9843, %v9839
        %v9845 = vlaneseq
        %v9846 = vshrl.u32 %v9845, 7
        %v9847 = vsub.s32 %v7619, %v9846
        %v9848 = vrot.slane %v7046, %v9847
        %v9849 = vlaneseq
        %v9850 = vshrl.u32 %v9849, 7
        %v9851 = vsub.s32 %v7624, %v9850
        %v9852 = vrot.slane %v7049, %v9851
        %v9853 = vsel %vm7629, %v9852, %v9848
        %v9854 = vlaneseq
        %v9855 = vshrl.u32 %v9854, 7
        %v9856 = vsub.s32 %v7619, %v9855
        %v9857 = vrot.slane %v7052, %v9856
        %v9858 = vlaneseq
        %v9859 = vshrl.u32 %v9858, 7
        %v9860 = vsub.s32 %v7624, %v9859
        %v9861 = vrot.slane %v7055, %v9860
        %v9862 = vsel %vm7629, %v9861, %v9857
        %v9863 = vlaneseq
        %v9864 = vshrl.u32 %v9863, 7
        %v9865 = vsub.s32 %v7619, %v9864
        %v9866 = vrot.slane %v7058, %v9865
        %v9867 = vlaneseq
        %v9868 = vshrl.u32 %v9867, 7
        %v9869 = vsub.s32 %v7624, %v9868
        %v9870 = vrot.slane %v7061, %v9869
        %v9871 = vsel %vm7629, %v9870, %v9866
        %v9872 = vlaneseq
        %v9873 = vshrl.u32 %v9872, 7
        %v9874 = vsub.s32 %v7619, %v9873
        %v9875 = vrot.slane %v7064, %v9874
        %v9876 = vlaneseq
        %v9877 = vshrl.u32 %v9876, 7
        %v9878 = vsub.s32 %v7624, %v9877
        %v9879 = vrot.slane %v7067, %v9878
        %v9880 = vsel %vm7629, %v9879, %v9875
        %v9881 = vlaneseq
        %v9882 = vshrl.u32 %v9881, 7
        %v9883 = vsub.s32 %v7619, %v9882
        %v9884 = vrot.slane %v7070, %v9883
        %v9885 = vlaneseq
        %v9886 = vshrl.u32 %v9885, 7
        %v9887 = vsub.s32 %v7624, %v9886
        %v9888 = vrot.slane %v7073, %v9887
        %v9889 = vsel %vm7629, %v9888, %v9884
        %v9890 = vlaneseq
        %v9891 = vshrl.u32 %v9890, 7
        %v9892 = vsub.s32 %v7619, %v9891
        %v9893 = vrot.slane %v7076, %v9892
        %v9894 = vlaneseq
        %v9895 = vshrl.u32 %v9894, 7
        %v9896 = vsub.s32 %v7624, %v9895
        %v9897 = vrot.slane %v7079, %v9896
        %v9898 = vsel %vm7629, %v9897, %v9893
        %v9899 = vlaneseq
        %v9900 = vshrl.u32 %v9899, 7
        %v9901 = vsub.s32 %v7619, %v9900
        %v9902 = vrot.slane %v7082, %v9901
        %v9903 = vlaneseq
        %v9904 = vshrl.u32 %v9903, 7
        %v9905 = vsub.s32 %v7624, %v9904
        %v9906 = vrot.slane %v7085, %v9905
        %v9907 = vsel %vm7629, %v9906, %v9902
        %v9908 = vlaneseq
        %v9909 = vshrl.u32 %v9908, 7
        %v9910 = vsub.s32 %v7619, %v9909
        %v9911 = vrot.slane %v7088, %v9910
        %v9912 = vlaneseq
        %v9913 = vshrl.u32 %v9912, 7
        %v9914 = vsub.s32 %v7624, %v9913
        %v9915 = vrot.slane %v7091, %v9914
        %v9916 = vsel %vm7629, %v9915, %v9911
        %v9917 = vlaneseq
        %v9918 = vshrl.u32 %v9917, 7
        %v9919 = vsub.s32 %v7619, %v9918
        %v9920 = vrot.slane %v7094, %v9919
        %v9921 = vlaneseq
        %v9922 = vshrl.u32 %v9921, 7
        %v9923 = vsub.s32 %v7624, %v9922
        %v9924 = vrot.slane %v7097, %v9923
        %v9925 = vsel %vm7629, %v9924, %v9920
        %vm9926 = vcmask 1041409
        %v9927 = vsel %vm9926, %v7639, %v7630
        %vm9928 = vcmask 1042434
        %v9929 = vsel %vm9928, %v7648, %v9927
        %vm9930 = vcmask 1043459
        %v9931 = vsel %vm9930, %v7657, %v9929
        %vm9932 = vcmask 1044484
        %v9933 = vsel %vm9932, %v7666, %v9931
        %vm9934 = vcmask 1045509
        %v9935 = vsel %vm9934, %v7675, %v9933
        %vm9936 = vcmask 1046534
        %v9937 = vsel %vm9936, %v7684, %v9935
        %vm9938 = vcmask 1047559
        %v9939 = vsel %vm9938, %v7693, %v9937
        %v9940 = vsel %vm9926, %v7711, %v7702
        %v9941 = vsel %vm9928, %v7720, %v9940
        %v9942 = vsel %vm9930, %v7729, %v9941
        %v9943 = vsel %vm9932, %v7738, %v9942
        %v9944 = vsel %vm9934, %v7747, %v9943
        %v9945 = vsel %vm9936, %v7756, %v9944
        %v9946 = vsel %vm9938, %v7765, %v9945
        %v9947 = vsel %vm9926, %v7783, %v7774
        %v9948 = vsel %vm9928, %v7792, %v9947
        %v9949 = vsel %vm9930, %v7801, %v9948
        %v9950 = vsel %vm9932, %v7810, %v9949
        %v9951 = vsel %vm9934, %v7819, %v9950
        %v9952 = vsel %vm9936, %v7828, %v9951
        %v9953 = vsel %vm9938, %v7837, %v9952
        %v9954 = vsel %vm9926, %v7855, %v7846
        %v9955 = vsel %vm9928, %v7864, %v9954
        %v9956 = vsel %vm9930, %v7873, %v9955
        %v9957 = vsel %vm9932, %v7882, %v9956
        %v9958 = vsel %vm9934, %v7891, %v9957
        %v9959 = vsel %vm9936, %v7900, %v9958
        %v9960 = vsel %vm9938, %v7909, %v9959
        %v9961 = vsel %vm9926, %v7927, %v7918
        %v9962 = vsel %vm9928, %v7936, %v9961
        %v9963 = vsel %vm9930, %v7945, %v9962
        %v9964 = vsel %vm9932, %v7954, %v9963
        %v9965 = vsel %vm9934, %v7963, %v9964
        %v9966 = vsel %vm9936, %v7972, %v9965
        %v9967 = vsel %vm9938, %v7981, %v9966
        %v9968 = vsel %vm9926, %v7999, %v7990
        %v9969 = vsel %vm9928, %v8008, %v9968
        %v9970 = vsel %vm9930, %v8017, %v9969
        %v9971 = vsel %vm9932, %v8026, %v9970
        %v9972 = vsel %vm9934, %v8035, %v9971
        %v9973 = vsel %vm9936, %v8044, %v9972
        %v9974 = vsel %vm9938, %v8053, %v9973
        %v9975 = vsel %vm9926, %v8071, %v8062
        %v9976 = vsel %vm9928, %v8080, %v9975
        %v9977 = vsel %vm9930, %v8089, %v9976
        %v9978 = vsel %vm9932, %v8098, %v9977
        %v9979 = vsel %vm9934, %v8107, %v9978
        %v9980 = vsel %vm9936, %v8116, %v9979
        %v9981 = vsel %vm9938, %v8125, %v9980
        %v9982 = vsel %vm9926, %v8143, %v8134
        %v9983 = vsel %vm9928, %v8152, %v9982
        %v9984 = vsel %vm9930, %v8161, %v9983
        %v9985 = vsel %vm9932, %v8170, %v9984
        %v9986 = vsel %vm9934, %v8179, %v9985
        %v9987 = vsel %vm9936, %v8188, %v9986
        %v9988 = vsel %vm9938, %v8197, %v9987
        %v9989 = vsel %vm9926, %v8215, %v8206
        %v9990 = vsel %vm9928, %v8224, %v9989
        %v9991 = vsel %vm9930, %v8233, %v9990
        %v9992 = vsel %vm9932, %v8242, %v9991
        %v9993 = vsel %vm9934, %v8251, %v9992
        %v9994 = vsel %vm9936, %v8260, %v9993
        %v9995 = vsel %vm9938, %v8269, %v9994
        %v9996 = vsel %vm9926, %v8287, %v8278
        %v9997 = vsel %vm9928, %v8296, %v9996
        %v9998 = vsel %vm9930, %v8305, %v9997
        %v9999 = vsel %vm9932, %v8314, %v9998
        %v10000 = vsel %vm9934, %v8323, %v9999
        %v10001 = vsel %vm9936, %v8332, %v10000
        %v10002 = vsel %vm9938, %v8341, %v10001
        %v10003 = vsel %vm9926, %v8359, %v8350
        %v10004 = vsel %vm9928, %v8368, %v10003
        %v10005 = vsel %vm9930, %v8377, %v10004
        %v10006 = vsel %vm9932, %v8386, %v10005
        %v10007 = vsel %vm9934, %v8395, %v10006
        %v10008 = vsel %vm9936, %v8404, %v10007
        %v10009 = vsel %vm9938, %v8413, %v10008
        %v10010 = vsel %vm9926, %v8431, %v8422
        %v10011 = vsel %vm9928, %v8440, %v10010
        %v10012 = vsel %vm9930, %v8449, %v10011
        %v10013 = vsel %vm9932, %v8458, %v10012
        %v10014 = vsel %vm9934, %v8467, %v10013
        %v10015 = vsel %vm9936, %v8476, %v10014
        %v10016 = vsel %vm9938, %v8485, %v10015
        %v10017 = vsel %vm9926, %v8503, %v8494
        %v10018 = vsel %vm9928, %v8512, %v10017
        %v10019 = vsel %vm9930, %v8521, %v10018
        %v10020 = vsel %vm9932, %v8530, %v10019
        %v10021 = vsel %vm9934, %v8539, %v10020
        %v10022 = vsel %vm9936, %v8548, %v10021
        %v10023 = vsel %vm9938, %v8557, %v10022
        %v10024 = vsel %vm9926, %v8575, %v8566
        %v10025 = vsel %vm9928, %v8584, %v10024
        %v10026 = vsel %vm9930, %v8593, %v10025
        %v10027 = vsel %vm9932, %v8602, %v10026
        %v10028 = vsel %vm9934, %v8611, %v10027
        %v10029 = vsel %vm9936, %v8620, %v10028
        %v10030 = vsel %vm9938, %v8629, %v10029
        %v10031 = vsel %vm9926, %v8647, %v8638
        %v10032 = vsel %vm9928, %v8656, %v10031
        %v10033 = vsel %vm9930, %v8665, %v10032
        %v10034 = vsel %vm9932, %v8674, %v10033
        %v10035 = vsel %vm9934, %v8683, %v10034
        %v10036 = vsel %vm9936, %v8692, %v10035
        %v10037 = vsel %vm9938, %v8701, %v10036
        %v10038 = vsel %vm9926, %v8719, %v8710
        %v10039 = vsel %vm9928, %v8728, %v10038
        %v10040 = vsel %vm9930, %v8737, %v10039
        %v10041 = vsel %vm9932, %v8746, %v10040
        %v10042 = vsel %vm9934, %v8755, %v10041
        %v10043 = vsel %vm9936, %v8764, %v10042
        %v10044 = vsel %vm9938, %v8773, %v10043
        %v10045 = vsel %vm9926, %v8791, %v8782
        %v10046 = vsel %vm9928, %v8800, %v10045
        %v10047 = vsel %vm9930, %v8809, %v10046
        %v10048 = vsel %vm9932, %v8818, %v10047
        %v10049 = vsel %vm9934, %v8827, %v10048
        %v10050 = vsel %vm9936, %v8836, %v10049
        %v10051 = vsel %vm9938, %v8845, %v10050
        %v10052 = vsel %vm9926, %v8863, %v8854
        %v10053 = vsel %vm9928, %v8872, %v10052
        %v10054 = vsel %vm9930, %v8881, %v10053
        %v10055 = vsel %vm9932, %v8890, %v10054
        %v10056 = vsel %vm9934, %v8899, %v10055
        %v10057 = vsel %vm9936, %v8908, %v10056
        %v10058 = vsel %vm9938, %v8917, %v10057
        %v10059 = vsel %vm9926, %v8935, %v8926
        %v10060 = vsel %vm9928, %v8944, %v10059
        %v10061 = vsel %vm9930, %v8953, %v10060
        %v10062 = vsel %vm9932, %v8962, %v10061
        %v10063 = vsel %vm9934, %v8971, %v10062
        %v10064 = vsel %vm9936, %v8980, %v10063
        %v10065 = vsel %vm9938, %v8989, %v10064
        %v10066 = vsel %vm9926, %v9007, %v8998
        %v10067 = vsel %vm9928, %v9016, %v10066
        %v10068 = vsel %vm9930, %v9025, %v10067
        %v10069 = vsel %vm9932, %v9034, %v10068
        %v10070 = vsel %vm9934, %v9043, %v10069
        %v10071 = vsel %vm9936, %v9052, %v10070
        %v10072 = vsel %vm9938, %v9061, %v10071
        %v10073 = vsel %vm9926, %v9079, %v9070
        %v10074 = vsel %vm9928, %v9088, %v10073
        %v10075 = vsel %vm9930, %v9097, %v10074
        %v10076 = vsel %vm9932, %v9106, %v10075
        %v10077 = vsel %vm9934, %v9115, %v10076
        %v10078 = vsel %vm9936, %v9124, %v10077
        %v10079 = vsel %vm9938, %v9133, %v10078
        %v10080 = vsel %vm9926, %v9151, %v9142
        %v10081 = vsel %vm9928, %v9160, %v10080
        %v10082 = vsel %vm9930, %v9169, %v10081
        %v10083 = vsel %vm9932, %v9178, %v10082
        %v10084 = vsel %vm9934, %v9187, %v10083
        %v10085 = vsel %vm9936, %v9196, %v10084
        %v10086 = vsel %vm9938, %v9205, %v10085
        %v10087 = vsel %vm9926, %v9223, %v9214
        %v10088 = vsel %vm9928, %v9232, %v10087
        %v10089 = vsel %vm9930, %v9241, %v10088
        %v10090 = vsel %vm9932, %v9250, %v10089
        %v10091 = vsel %vm9934, %v9259, %v10090
        %v10092 = vsel %vm9936, %v9268, %v10091
        %v10093 = vsel %vm9938, %v9277, %v10092
        %v10094 = vsel %vm9926, %v9295, %v9286
        %v10095 = vsel %vm9928, %v9304, %v10094
        %v10096 = vsel %vm9930, %v9313, %v10095
        %v10097 = vsel %vm9932, %v9322, %v10096
        %v10098 = vsel %vm9934, %v9331, %v10097
        %v10099 = vsel %vm9936, %v9340, %v10098
        %v10100 = vsel %vm9938, %v9349, %v10099
        %v10101 = vsel %vm9926, %v9367, %v9358
        %v10102 = vsel %vm9928, %v9376, %v10101
        %v10103 = vsel %vm9930, %v9385, %v10102
        %v10104 = vsel %vm9932, %v9394, %v10103
        %v10105 = vsel %vm9934, %v9403, %v10104
        %v10106 = vsel %vm9936, %v9412, %v10105
        %v10107 = vsel %vm9938, %v9421, %v10106
        %v10108 = vsel %vm9926, %v9439, %v9430
        %v10109 = vsel %vm9928, %v9448, %v10108
        %v10110 = vsel %vm9930, %v9457, %v10109
        %v10111 = vsel %vm9932, %v9466, %v10110
        %v10112 = vsel %vm9934, %v9475, %v10111
        %v10113 = vsel %vm9936, %v9484, %v10112
        %v10114 = vsel %vm9938, %v9493, %v10113
        %v10115 = vsel %vm9926, %v9511, %v9502
        %v10116 = vsel %vm9928, %v9520, %v10115
        %v10117 = vsel %vm9930, %v9529, %v10116
        %v10118 = vsel %vm9932, %v9538, %v10117
        %v10119 = vsel %vm9934, %v9547, %v10118
        %v10120 = vsel %vm9936, %v9556, %v10119
        %v10121 = vsel %vm9938, %v9565, %v10120
        %v10122 = vsel %vm9926, %v9583, %v9574
        %v10123 = vsel %vm9928, %v9592, %v10122
        %v10124 = vsel %vm9930, %v9601, %v10123
        %v10125 = vsel %vm9932, %v9610, %v10124
        %v10126 = vsel %vm9934, %v9619, %v10125
        %v10127 = vsel %vm9936, %v9628, %v10126
        %v10128 = vsel %vm9938, %v9637, %v10127
        %v10129 = vsel %vm9926, %v9655, %v9646
        %v10130 = vsel %vm9928, %v9664, %v10129
        %v10131 = vsel %vm9930, %v9673, %v10130
        %v10132 = vsel %vm9932, %v9682, %v10131
        %v10133 = vsel %vm9934, %v9691, %v10132
        %v10134 = vsel %vm9936, %v9700, %v10133
        %v10135 = vsel %vm9938, %v9709, %v10134
        %v10136 = vsel %vm9926, %v9727, %v9718
        %v10137 = vsel %vm9928, %v9736, %v10136
        %v10138 = vsel %vm9930, %v9745, %v10137
        %v10139 = vsel %vm9932, %v9754, %v10138
        %v10140 = vsel %vm9934, %v9763, %v10139
        %v10141 = vsel %vm9936, %v9772, %v10140
        %v10142 = vsel %vm9938, %v9781, %v10141
        %v10143 = vsel %vm9926, %v9799, %v9790
        %v10144 = vsel %vm9928, %v9808, %v10143
        %v10145 = vsel %vm9930, %v9817, %v10144
        %v10146 = vsel %vm9932, %v9826, %v10145
        %v10147 = vsel %vm9934, %v9835, %v10146
        %v10148 = vsel %vm9936, %v9844, %v10147
        %v10149 = vsel %vm9938, %v9853, %v10148
        %v10150 = vsel %vm9926, %v9871, %v9862
        %v10151 = vsel %vm9928, %v9880, %v10150
        %v10152 = vsel %vm9930, %v9889, %v10151
        %v10153 = vsel %vm9932, %v9898, %v10152
        %v10154 = vsel %vm9934, %v9907, %v10153
        %v10155 = vsel %vm9936, %v9916, %v10154
        %v10156 = vsel %vm9938, %v9925, %v10155
        %v10157 = vsel %vm777, %v9939, 0
        %v10159 = vsel %vm777, %v9946, 0
        %v10161 = vsel %vm777, %v9953, 0
        %v10163 = vsel %vm777, %v9960, 0
        %v10165 = vsel %vm777, %v9967, 0
        %v10167 = vsel %vm777, %v9974, 0
        %v10169 = vsel %vm777, %v9981, 0
        %v10171 = vsel %vm777, %v9988, 0
        %v10173 = vsel %vm777, %v9995, 0
        %v10175 = vsel %vm777, %v10002, 0
        %v10177 = vsel %vm777, %v10009, 0
        %v10179 = vsel %vm777, %v10016, 0
        %v10181 = vsel %vm777, %v10023, 0
        %v10183 = vsel %vm777, %v10030, 0
        %v10185 = vsel %vm777, %v10037, 0
        %v10187 = vsel %vm777, %v10044, 0
        %v10189 = vsel %vm777, %v10051, 0
        %v10191 = vsel %vm777, %v10058, 0
        %v10193 = vsel %vm777, %v10065, 0
        %v10195 = vsel %vm777, %v10072, 0
        %v10197 = vsel %vm777, %v10079, 0
        %v10199 = vsel %vm777, %v10086, 0
        %v10201 = vsel %vm777, %v10093, 0
        %v10203 = vsel %vm777, %v10100, 0
        %v10205 = vsel %vm777, %v10107, 0
        %v10207 = vsel %vm777, %v10114, 0
        %v10209 = vsel %vm777, %v10121, 0
        %v10211 = vsel %vm777, %v10128, 0
        %v10213 = vsel %vm777, %v10135, 0
        %v10215 = vsel %vm777, %v10142, 0
        %v10217 = vsel %vm777, %v10149, 0
        %v10219 = vsel %vm777, %v10156, 0
        %10221 = vmatprep.subr.mxu0 0.0
        %10222 = vmatpush1.msra.mxu0 0.0
        %10223 = vmatprep.subr.mxu0 0.0
        %10224 = vmatpush1.msra.mxu0 0.0
        %10225 = vmatprep.subr.mxu0 0.0
        %10226 = vmatpush1.msra.mxu0 0.0
        %10227 = vmatprep.subr.mxu0 0.0
        %10228 = vmatpush1.msra.mxu0 0.0
        %10229 = vmatprep.subr.mxu0 0.0
        %10230 = vmatpush1.msra.mxu0 0.0
        %10231 = vmatprep.subr.mxu0 0.0
        %10232 = vmatpush1.msra.mxu0 0.0
        %10233 = vmatprep.subr.mxu0 0.0
        %10234 = vmatpush1.msra.mxu0 0.0
        %10235 = vmatprep.subr.mxu0 0.0
        %10236 = vmatpush1.msra.mxu0 0.0
        %10237 = vmatprep.subr.mxu0 0.0
        %10238 = vmatpush1.msra.mxu0 0.0
        %10239 = vmatprep.subr.mxu0 0.0
        %10240 = vmatpush1.msra.mxu0 0.0
        %10241 = vmatprep.subr.mxu0 0.0
        %10242 = vmatpush1.msra.mxu0 0.0
        %10243 = vmatprep.subr.mxu0 0.0
        %10244 = vmatpush1.msra.mxu0 0.0
        %10245 = vmatprep.subr.mxu0 0.0
        %10246 = vmatpush1.msra.mxu0 0.0
        %10247 = vmatprep.subr.mxu0 0.0
        %10248 = vmatpush1.msra.mxu0 0.0
        %10249 = vmatprep.subr.mxu0 %v7105
        %10250 = vmatpush1.msra.mxu0 %v7104
        %10251 = vmatprep.subr.mxu0 %v7103
        %10252 = vmatpush1.msra.mxu0 %v7102
        %10253 = vmatprep.subr.mxu0 0.0
        %10254 = vmatpush2.msra.mxu0 0.0
        %10255 = vmatprep.subr.mxu0 0.0
        %10256 = vmatpush2.msra.mxu0 0.0
        %10257 = vmatprep.subr.mxu0 0.0
        %10258 = vmatpush2.msra.mxu0 0.0
        %10259 = vmatprep.subr.mxu0 0.0
        %10260 = vmatpush2.msra.mxu0 0.0
        %10261 = vmatprep.subr.mxu0 0.0
        %10262 = vmatpush2.msra.mxu0 0.0
        %10263 = vmatprep.subr.mxu0 0.0
        %10264 = vmatpush2.msra.mxu0 0.0
        %10265 = vmatprep.subr.mxu0 0.0
        %10266 = vmatpush2.msra.mxu0 0.0
        %10267 = vmatprep.subr.mxu0 0.0
        %10268 = vmatpush2.msra.mxu0 0.0
        %10269 = vmatprep.subr.mxu0 0.0
        %10270 = vmatpush2.msra.mxu0 0.0
        %10271 = vmatprep.subr.mxu0 0.0
        %10272 = vmatpush2.msra.mxu0 0.0
        %10273 = vmatprep.subr.mxu0 0.0
        %10274 = vmatpush2.msra.mxu0 0.0
        %10275 = vmatprep.subr.mxu0 0.0
        %10276 = vmatpush2.msra.mxu0 0.0
        %10277 = vmatprep.subr.mxu0 0.0
        %10278 = vmatpush2.msra.mxu0 0.0
        %10279 = vmatprep.subr.mxu0 0.0
        %10280 = vmatpush2.msra.mxu0 0.0
        %10281 = vmatprep.subr.mxu0 0.0
        %10282 = vmatpush2.msra.mxu0 0.0
        %10283 = vmatprep.subr.mxu0 0.0
        %10284 = vmatpush2.msra.mxu0 0.0
        %10285 = vmatprep.mubr.f32.mxu0 0.0
        %10286 = vmatmul.mubr.f32.gmra.mxu0 %v10157
        %v10287 = vpop.f32.mrf.mxu0
        %v10288 = vadd.f32 0.0, %v10287
        %v10289 = vpop.f32.mrf.mxu0
        %v10290 = vadd.f32 0.0, %v10289
        %10291 = vmatprep.mubr.f32.mxu0 0.0
        %10292 = vmatmul.mubr.f32.gmra.mxu0 %v10159
        %v10293 = vpop.f32.mrf.mxu0
        %v10294 = vadd.f32 0.0, %v10293
        %v10295 = vpop.f32.mrf.mxu0
        %v10296 = vadd.f32 0.0, %v10295
        %10297 = vmatprep.mubr.f32.mxu0 0.0
        %10298 = vmatmul.mubr.f32.gmra.mxu0 %v10161
        %v10299 = vpop.f32.mrf.mxu0
        %v10300 = vadd.f32 0.0, %v10299
        %v10301 = vpop.f32.mrf.mxu0
        %v10302 = vadd.f32 0.0, %v10301
        %10303 = vmatprep.mubr.f32.mxu0 0.0
        %10304 = vmatmul.mubr.f32.gmra.mxu0 %v10163
        %v10305 = vpop.f32.mrf.mxu0
        %v10306 = vadd.f32 0.0, %v10305
        %v10307 = vpop.f32.mrf.mxu0
        %v10308 = vadd.f32 0.0, %v10307
        %10309 = vmatprep.mubr.f32.mxu0 0.0
        %10310 = vmatmul.mubr.f32.gmra.mxu0 %v10165
        %v10311 = vpop.f32.mrf.mxu0
        %v10312 = vadd.f32 0.0, %v10311
        %v10313 = vpop.f32.mrf.mxu0
        %v10314 = vadd.f32 0.0, %v10313
        %10315 = vmatprep.mubr.f32.mxu0 0.0
        %10316 = vmatmul.mubr.f32.gmra.mxu0 %v10167
        %v10317 = vpop.f32.mrf.mxu0
        %v10318 = vadd.f32 0.0, %v10317
        %v10319 = vpop.f32.mrf.mxu0
        %v10320 = vadd.f32 0.0, %v10319
        %10321 = vmatprep.mubr.f32.mxu0 0.0
        %10322 = vmatmul.mubr.f32.gmra.mxu0 %v10169
        %v10323 = vpop.f32.mrf.mxu0
        %v10324 = vadd.f32 0.0, %v10323
        %v10325 = vpop.f32.mrf.mxu0
        %v10326 = vadd.f32 0.0, %v10325
        %10327 = vmatprep.mubr.f32.mxu0 0.0
        %10328 = vmatmul.mubr.f32.gmra.mxu0 %v10171
        %v10329 = vpop.f32.mrf.mxu0
        %v10330 = vadd.f32 0.0, %v10329
        %v10331 = vpop.f32.mrf.mxu0
        %v10332 = vadd.f32 0.0, %v10331
        %10333 = vmatprep.mubr.f32.mxu0 0.0
        %10334 = vmatmul.mubr.f32.gmra.mxu0 %v10173
        %v10335 = vpop.f32.mrf.mxu0
        %v10336 = vadd.f32 0.0, %v10335
        %v10337 = vpop.f32.mrf.mxu0
        %v10338 = vadd.f32 0.0, %v10337
        %10339 = vmatprep.mubr.f32.mxu0 0.0
        %10340 = vmatmul.mubr.f32.gmra.mxu0 %v10175
        %v10341 = vpop.f32.mrf.mxu0
        %v10342 = vadd.f32 0.0, %v10341
        %v10343 = vpop.f32.mrf.mxu0
        %v10344 = vadd.f32 0.0, %v10343
        %10345 = vmatprep.mubr.f32.mxu0 0.0
        %10346 = vmatmul.mubr.f32.gmra.mxu0 %v10177
        %v10347 = vpop.f32.mrf.mxu0
        %v10348 = vadd.f32 0.0, %v10347
        %v10349 = vpop.f32.mrf.mxu0
        %v10350 = vadd.f32 0.0, %v10349
        %10351 = vmatprep.mubr.f32.mxu0 0.0
        %10352 = vmatmul.mubr.f32.gmra.mxu0 %v10179
        %v10353 = vpop.f32.mrf.mxu0
        %v10354 = vadd.f32 0.0, %v10353
        %v10355 = vpop.f32.mrf.mxu0
        %v10356 = vadd.f32 0.0, %v10355
        %10357 = vmatprep.mubr.f32.mxu0 0.0
        %10358 = vmatmul.mubr.f32.gmra.mxu0 %v10181
        %v10359 = vpop.f32.mrf.mxu0
        %v10360 = vadd.f32 0.0, %v10359
        %v10361 = vpop.f32.mrf.mxu0
        %v10362 = vadd.f32 0.0, %v10361
        %10363 = vmatprep.mubr.f32.mxu0 0.0
        %10364 = vmatmul.mubr.f32.gmra.mxu0 %v10183
        %v10365 = vpop.f32.mrf.mxu0
        %v10366 = vadd.f32 0.0, %v10365
        %v10367 = vpop.f32.mrf.mxu0
        %v10368 = vadd.f32 0.0, %v10367
        %10369 = vmatprep.mubr.f32.mxu0 0.0
        %10370 = vmatmul.mubr.f32.gmra.mxu0 %v10185
        %v10371 = vpop.f32.mrf.mxu0
        %v10372 = vadd.f32 0.0, %v10371
        %v10373 = vpop.f32.mrf.mxu0
        %v10374 = vadd.f32 0.0, %v10373
        %10375 = vmatprep.mubr.f32.mxu0 0.0
        %10376 = vmatmul.mubr.f32.gmra.mxu0 %v10187
        %v10377 = vpop.f32.mrf.mxu0
        %v10378 = vadd.f32 0.0, %v10377
        %v10379 = vpop.f32.mrf.mxu0
        %v10380 = vadd.f32 0.0, %v10379
        %10381 = vmatprep.mubr.f32.mxu0 0.0
        %10382 = vmatmul.mubr.f32.gmra.mxu0 %v10189
        %v10383 = vpop.f32.mrf.mxu0
        %v10384 = vadd.f32 0.0, %v10383
        %v10385 = vpop.f32.mrf.mxu0
        %v10386 = vadd.f32 0.0, %v10385
        %10387 = vmatprep.mubr.f32.mxu0 0.0
        %10388 = vmatmul.mubr.f32.gmra.mxu0 %v10191
        %v10389 = vpop.f32.mrf.mxu0
        %v10390 = vadd.f32 0.0, %v10389
        %v10391 = vpop.f32.mrf.mxu0
        %v10392 = vadd.f32 0.0, %v10391
        %10393 = vmatprep.mubr.f32.mxu0 0.0
        %10394 = vmatmul.mubr.f32.gmra.mxu0 %v10193
        %v10395 = vpop.f32.mrf.mxu0
        %v10396 = vadd.f32 0.0, %v10395
        %v10397 = vpop.f32.mrf.mxu0
        %v10398 = vadd.f32 0.0, %v10397
        %10399 = vmatprep.mubr.f32.mxu0 0.0
        %10400 = vmatmul.mubr.f32.gmra.mxu0 %v10195
        %v10401 = vpop.f32.mrf.mxu0
        %v10402 = vadd.f32 0.0, %v10401
        %v10403 = vpop.f32.mrf.mxu0
        %v10404 = vadd.f32 0.0, %v10403
        %10405 = vmatprep.mubr.f32.mxu0 0.0
        %10406 = vmatmul.mubr.f32.gmra.mxu0 %v10197
        %v10407 = vpop.f32.mrf.mxu0
        %v10408 = vadd.f32 0.0, %v10407
        %v10409 = vpop.f32.mrf.mxu0
        %v10410 = vadd.f32 0.0, %v10409
        %10411 = vmatprep.mubr.f32.mxu0 0.0
        %10412 = vmatmul.mubr.f32.gmra.mxu0 %v10199
        %v10413 = vpop.f32.mrf.mxu0
        %v10414 = vadd.f32 0.0, %v10413
        %v10415 = vpop.f32.mrf.mxu0
        %v10416 = vadd.f32 0.0, %v10415
        %10417 = vmatprep.mubr.f32.mxu0 0.0
        %10418 = vmatmul.mubr.f32.gmra.mxu0 %v10201
        %v10419 = vpop.f32.mrf.mxu0
        %v10420 = vadd.f32 0.0, %v10419
        %v10421 = vpop.f32.mrf.mxu0
        %v10422 = vadd.f32 0.0, %v10421
        %10423 = vmatprep.mubr.f32.mxu0 0.0
        %10424 = vmatmul.mubr.f32.gmra.mxu0 %v10203
        %v10425 = vpop.f32.mrf.mxu0
        %v10426 = vadd.f32 0.0, %v10425
        %v10427 = vpop.f32.mrf.mxu0
        %v10428 = vadd.f32 0.0, %v10427
        %10429 = vmatprep.mubr.f32.mxu0 0.0
        %10430 = vmatmul.mubr.f32.gmra.mxu0 %v10205
        %v10431 = vpop.f32.mrf.mxu0
        %v10432 = vadd.f32 0.0, %v10431
        %v10433 = vpop.f32.mrf.mxu0
        %v10434 = vadd.f32 0.0, %v10433
        %10435 = vmatprep.mubr.f32.mxu0 0.0
        %10436 = vmatmul.mubr.f32.gmra.mxu0 %v10207
        %v10437 = vpop.f32.mrf.mxu0
        %v10438 = vadd.f32 0.0, %v10437
        %v10439 = vpop.f32.mrf.mxu0
        %v10440 = vadd.f32 0.0, %v10439
        %10441 = vmatprep.mubr.f32.mxu0 0.0
        %10442 = vmatmul.mubr.f32.gmra.mxu0 %v10209
        %v10443 = vpop.f32.mrf.mxu0
        %v10444 = vadd.f32 0.0, %v10443
        %v10445 = vpop.f32.mrf.mxu0
        %v10446 = vadd.f32 0.0, %v10445
        %10447 = vmatprep.mubr.f32.mxu0 0.0
        %10448 = vmatmul.mubr.f32.gmra.mxu0 %v10211
        %v10449 = vpop.f32.mrf.mxu0
        %v10450 = vadd.f32 0.0, %v10449
        %v10451 = vpop.f32.mrf.mxu0
        %v10452 = vadd.f32 0.0, %v10451
        %10453 = vmatprep.mubr.f32.mxu0 0.0
        %10454 = vmatmul.mubr.f32.gmra.mxu0 %v10213
        %v10455 = vpop.f32.mrf.mxu0
        %v10456 = vadd.f32 0.0, %v10455
        %v10457 = vpop.f32.mrf.mxu0
        %v10458 = vadd.f32 0.0, %v10457
        %10459 = vmatprep.mubr.f32.mxu0 0.0
        %10460 = vmatmul.mubr.f32.gmra.mxu0 %v10215
        %v10461 = vpop.f32.mrf.mxu0
        %v10462 = vadd.f32 0.0, %v10461
        %v10463 = vpop.f32.mrf.mxu0
        %v10464 = vadd.f32 0.0, %v10463
        %10465 = vmatprep.mubr.f32.mxu0 0.0
        %10466 = vmatmul.mubr.f32.gmra.mxu0 %v10217
        %v10467 = vpop.f32.mrf.mxu0
        %v10468 = vadd.f32 0.0, %v10467
        %v10469 = vpop.f32.mrf.mxu0
        %v10470 = vadd.f32 0.0, %v10469
        %10471 = vmatprep.mubr.f32.mxu0 0.0
        %10472 = vmatmul.mubr.f32.gmra.mxu0 %v10219
        %v10473 = vpop.f32.mrf.mxu0
        %v10474 = vadd.f32 0.0, %v10473
        %v10475 = vpop.f32.mrf.mxu0
        %v10476 = vadd.f32 0.0, %v10475
        %10477 = vdwg.mxu0
        %v10479 = vsel %vm777, %v857, 0
        %v10482 = vsel %vm777, %v862, 0
        %v10485 = vsel %vm777, %v944, 0
        %v10488 = vsel %vm777, %v949, 0
        %v10491 = vsel %vm777, %v1031, 0
        %v10494 = vsel %vm777, %v1036, 0
        %v10497 = vsel %vm777, %v1118, 0
        %v10500 = vsel %vm777, %v1123, 0
        %v10503 = vsel %vm777, %v1205, 0
        %v10506 = vsel %vm777, %v1210, 0
        %v10509 = vsel %vm777, %v1292, 0
        %v10512 = vsel %vm777, %v1297, 0
        %v10515 = vsel %vm777, %v1379, 0
        %v10518 = vsel %vm777, %v1384, 0
        %v10521 = vsel %vm777, %v1466, 0
        %v10524 = vsel %vm777, %v1471, 0
        %v10527 = vsel %vm777, %v1553, 0
        %v10530 = vsel %vm777, %v1558, 0
        %v10533 = vsel %vm777, %v1640, 0
        %v10536 = vsel %vm777, %v1645, 0
        %v10539 = vsel %vm777, %v1727, 0
        %v10542 = vsel %vm777, %v1732, 0
        %v10545 = vsel %vm777, %v1814, 0
        %v10548 = vsel %vm777, %v1819, 0
        %v10551 = vsel %vm777, %v1901, 0
        %v10554 = vsel %vm777, %v1906, 0
        %v10557 = vsel %vm777, %v1988, 0
        %v10560 = vsel %vm777, %v1993, 0
        %v10563 = vsel %vm777, %v2075, 0
        %v10566 = vsel %vm777, %v2080, 0
        %v10569 = vsel %vm777, %v2162, 0
        %v10572 = vsel %vm777, %v2167, 0
        %10574 = vmatprep.subr.mxu0 0.0
        %10575 = vmatpush1.msra.mxu0 0.0
        %10576 = vmatprep.subr.mxu0 0.0
        %10577 = vmatpush1.msra.mxu0 0.0
        %10578 = vmatprep.subr.mxu0 0.0
        %10579 = vmatpush1.msra.mxu0 0.0
        %10580 = vmatprep.subr.mxu0 0.0
        %10581 = vmatpush1.msra.mxu0 0.0
        %10582 = vmatprep.subr.mxu0 0.0
        %10583 = vmatpush1.msra.mxu0 0.0
        %10584 = vmatprep.subr.mxu0 0.0
        %10585 = vmatpush1.msra.mxu0 0.0
        %10586 = vmatprep.subr.mxu0 0.0
        %10587 = vmatpush1.msra.mxu0 0.0
        %10588 = vmatprep.subr.mxu0 0.0
        %10589 = vmatpush1.msra.mxu0 0.0
        %10590 = vmatprep.subr.mxu0 0.0
        %10591 = vmatpush1.msra.mxu0 0.0
        %10592 = vmatprep.subr.mxu0 0.0
        %10593 = vmatpush1.msra.mxu0 0.0
        %10594 = vmatprep.subr.mxu0 0.0
        %10595 = vmatpush1.msra.mxu0 0.0
        %10596 = vmatprep.subr.mxu0 0.0
        %10597 = vmatpush1.msra.mxu0 0.0
        %10598 = vmatprep.subr.mxu0 0.0
        %10599 = vmatpush1.msra.mxu0 0.0
        %10600 = vmatprep.subr.mxu0 0.0
        %10601 = vmatpush1.msra.mxu0 0.0
        %10602 = vmatprep.subr.mxu0 %v7101
        %10603 = vmatpush1.msra.mxu0 %v7100
        %10604 = vmatprep.subr.mxu0 %v7099
        %10605 = vmatpush1.msra.mxu0 %v7098
        %10606 = vmatprep.subr.mxu0 0.0
        %10607 = vmatpush2.msra.mxu0 0.0
        %10608 = vmatprep.subr.mxu0 0.0
        %10609 = vmatpush2.msra.mxu0 0.0
        %10610 = vmatprep.subr.mxu0 0.0
        %10611 = vmatpush2.msra.mxu0 0.0
        %10612 = vmatprep.subr.mxu0 0.0
        %10613 = vmatpush2.msra.mxu0 0.0
        %10614 = vmatprep.subr.mxu0 0.0
        %10615 = vmatpush2.msra.mxu0 0.0
        %10616 = vmatprep.subr.mxu0 0.0
        %10617 = vmatpush2.msra.mxu0 0.0
        %10618 = vmatprep.subr.mxu0 0.0
        %10619 = vmatpush2.msra.mxu0 0.0
        %10620 = vmatprep.subr.mxu0 0.0
        %10621 = vmatpush2.msra.mxu0 0.0
        %10622 = vmatprep.subr.mxu0 0.0
        %10623 = vmatpush2.msra.mxu0 0.0
        %10624 = vmatprep.subr.mxu0 0.0
        %10625 = vmatpush2.msra.mxu0 0.0
        %10626 = vmatprep.subr.mxu0 0.0
        %10627 = vmatpush2.msra.mxu0 0.0
        %10628 = vmatprep.subr.mxu0 0.0
        %10629 = vmatpush2.msra.mxu0 0.0
        %10630 = vmatprep.subr.mxu0 0.0
        %10631 = vmatpush2.msra.mxu0 0.0
        %10632 = vmatprep.subr.mxu0 0.0
        %10633 = vmatpush2.msra.mxu0 0.0
        %10634 = vmatprep.subr.mxu0 0.0
        %10635 = vmatpush2.msra.mxu0 0.0
        %10636 = vmatprep.subr.mxu0 0.0
        %10637 = vmatpush2.msra.mxu0 0.0
        %10638 = vmatprep.mubr.f32.mxu0 0.0
        %10639 = vmatmul.mubr.f32.gmra.mxu0 %v10479
        %v10640 = vpop.f32.mrf.mxu0
        %v10641 = vadd.f32 %v10288, %v10640
        %v10642 = vpop.f32.mrf.mxu0
        %v10643 = vadd.f32 %v10290, %v10642
        %10644 = vmatprep.mubr.f32.mxu0 0.0
        %10645 = vmatmul.mubr.f32.gmra.mxu0 %v10482
        %v10646 = vpop.f32.mrf.mxu0
        %v10647 = vadd.f32 %v10294, %v10646
        %v10648 = vpop.f32.mrf.mxu0
        %v10649 = vadd.f32 %v10296, %v10648
        %10650 = vmatprep.mubr.f32.mxu0 0.0
        %10651 = vmatmul.mubr.f32.gmra.mxu0 %v10485
        %v10652 = vpop.f32.mrf.mxu0
        %v10653 = vadd.f32 %v10300, %v10652
        %v10654 = vpop.f32.mrf.mxu0
        %v10655 = vadd.f32 %v10302, %v10654
        %10656 = vmatprep.mubr.f32.mxu0 0.0
        %10657 = vmatmul.mubr.f32.gmra.mxu0 %v10488
        %v10658 = vpop.f32.mrf.mxu0
        %v10659 = vadd.f32 %v10306, %v10658
        %v10660 = vpop.f32.mrf.mxu0
        %v10661 = vadd.f32 %v10308, %v10660
        %10662 = vmatprep.mubr.f32.mxu0 0.0
        %10663 = vmatmul.mubr.f32.gmra.mxu0 %v10491
        %v10664 = vpop.f32.mrf.mxu0
        %v10665 = vadd.f32 %v10312, %v10664
        %v10666 = vpop.f32.mrf.mxu0
        %v10667 = vadd.f32 %v10314, %v10666
        %10668 = vmatprep.mubr.f32.mxu0 0.0
        %10669 = vmatmul.mubr.f32.gmra.mxu0 %v10494
        %v10670 = vpop.f32.mrf.mxu0
        %v10671 = vadd.f32 %v10318, %v10670
        %v10672 = vpop.f32.mrf.mxu0
        %v10673 = vadd.f32 %v10320, %v10672
        %10674 = vmatprep.mubr.f32.mxu0 0.0
        %10675 = vmatmul.mubr.f32.gmra.mxu0 %v10497
        %v10676 = vpop.f32.mrf.mxu0
        %v10677 = vadd.f32 %v10324, %v10676
        %v10678 = vpop.f32.mrf.mxu0
        %v10679 = vadd.f32 %v10326, %v10678
        %10680 = vmatprep.mubr.f32.mxu0 0.0
        %10681 = vmatmul.mubr.f32.gmra.mxu0 %v10500
        %v10682 = vpop.f32.mrf.mxu0
        %v10683 = vadd.f32 %v10330, %v10682
        %v10684 = vpop.f32.mrf.mxu0
        %v10685 = vadd.f32 %v10332, %v10684
        %10686 = vmatprep.mubr.f32.mxu0 0.0
        %10687 = vmatmul.mubr.f32.gmra.mxu0 %v10503
        %v10688 = vpop.f32.mrf.mxu0
        %v10689 = vadd.f32 %v10336, %v10688
        %v10690 = vpop.f32.mrf.mxu0
        %v10691 = vadd.f32 %v10338, %v10690
        %10692 = vmatprep.mubr.f32.mxu0 0.0
        %10693 = vmatmul.mubr.f32.gmra.mxu0 %v10506
        %v10694 = vpop.f32.mrf.mxu0
        %v10695 = vadd.f32 %v10342, %v10694
        %v10696 = vpop.f32.mrf.mxu0
        %v10697 = vadd.f32 %v10344, %v10696
        %10698 = vmatprep.mubr.f32.mxu0 0.0
        %10699 = vmatmul.mubr.f32.gmra.mxu0 %v10509
        %v10700 = vpop.f32.mrf.mxu0
        %v10701 = vadd.f32 %v10348, %v10700
        %v10702 = vpop.f32.mrf.mxu0
        %v10703 = vadd.f32 %v10350, %v10702
        %10704 = vmatprep.mubr.f32.mxu0 0.0
        %10705 = vmatmul.mubr.f32.gmra.mxu0 %v10512
        %v10706 = vpop.f32.mrf.mxu0
        %v10707 = vadd.f32 %v10354, %v10706
        %v10708 = vpop.f32.mrf.mxu0
        %v10709 = vadd.f32 %v10356, %v10708
        %10710 = vmatprep.mubr.f32.mxu0 0.0
        %10711 = vmatmul.mubr.f32.gmra.mxu0 %v10515
        %v10712 = vpop.f32.mrf.mxu0
        %v10713 = vadd.f32 %v10360, %v10712
        %v10714 = vpop.f32.mrf.mxu0
        %v10715 = vadd.f32 %v10362, %v10714
        %10716 = vmatprep.mubr.f32.mxu0 0.0
        %10717 = vmatmul.mubr.f32.gmra.mxu0 %v10518
        %v10718 = vpop.f32.mrf.mxu0
        %v10719 = vadd.f32 %v10366, %v10718
        %v10720 = vpop.f32.mrf.mxu0
        %v10721 = vadd.f32 %v10368, %v10720
        %10722 = vmatprep.mubr.f32.mxu0 0.0
        %10723 = vmatmul.mubr.f32.gmra.mxu0 %v10521
        %v10724 = vpop.f32.mrf.mxu0
        %v10725 = vadd.f32 %v10372, %v10724
        %v10726 = vpop.f32.mrf.mxu0
        %v10727 = vadd.f32 %v10374, %v10726
        %10728 = vmatprep.mubr.f32.mxu0 0.0
        %10729 = vmatmul.mubr.f32.gmra.mxu0 %v10524
        %v10730 = vpop.f32.mrf.mxu0
        %v10731 = vadd.f32 %v10378, %v10730
        %v10732 = vpop.f32.mrf.mxu0
        %v10733 = vadd.f32 %v10380, %v10732
        %10734 = vmatprep.mubr.f32.mxu0 0.0
        %10735 = vmatmul.mubr.f32.gmra.mxu0 %v10527
        %v10736 = vpop.f32.mrf.mxu0
        %v10737 = vadd.f32 %v10384, %v10736
        %v10738 = vpop.f32.mrf.mxu0
        %v10739 = vadd.f32 %v10386, %v10738
        %10740 = vmatprep.mubr.f32.mxu0 0.0
        %10741 = vmatmul.mubr.f32.gmra.mxu0 %v10530
        %v10742 = vpop.f32.mrf.mxu0
        %v10743 = vadd.f32 %v10390, %v10742
        %v10744 = vpop.f32.mrf.mxu0
        %v10745 = vadd.f32 %v10392, %v10744
        %10746 = vmatprep.mubr.f32.mxu0 0.0
        %10747 = vmatmul.mubr.f32.gmra.mxu0 %v10533
        %v10748 = vpop.f32.mrf.mxu0
        %v10749 = vadd.f32 %v10396, %v10748
        %v10750 = vpop.f32.mrf.mxu0
        %v10751 = vadd.f32 %v10398, %v10750
        %10752 = vmatprep.mubr.f32.mxu0 0.0
        %10753 = vmatmul.mubr.f32.gmra.mxu0 %v10536
        %v10754 = vpop.f32.mrf.mxu0
        %v10755 = vadd.f32 %v10402, %v10754
        %v10756 = vpop.f32.mrf.mxu0
        %v10757 = vadd.f32 %v10404, %v10756
        %10758 = vmatprep.mubr.f32.mxu0 0.0
        %10759 = vmatmul.mubr.f32.gmra.mxu0 %v10539
        %v10760 = vpop.f32.mrf.mxu0
        %v10761 = vadd.f32 %v10408, %v10760
        %v10762 = vpop.f32.mrf.mxu0
        %v10763 = vadd.f32 %v10410, %v10762
        %10764 = vmatprep.mubr.f32.mxu0 0.0
        %10765 = vmatmul.mubr.f32.gmra.mxu0 %v10542
        %v10766 = vpop.f32.mrf.mxu0
        %v10767 = vadd.f32 %v10414, %v10766
        %v10768 = vpop.f32.mrf.mxu0
        %v10769 = vadd.f32 %v10416, %v10768
        %10770 = vmatprep.mubr.f32.mxu0 0.0
        %10771 = vmatmul.mubr.f32.gmra.mxu0 %v10545
        %v10772 = vpop.f32.mrf.mxu0
        %v10773 = vadd.f32 %v10420, %v10772
        %v10774 = vpop.f32.mrf.mxu0
        %v10775 = vadd.f32 %v10422, %v10774
        %10776 = vmatprep.mubr.f32.mxu0 0.0
        %10777 = vmatmul.mubr.f32.gmra.mxu0 %v10548
        %v10778 = vpop.f32.mrf.mxu0
        %v10779 = vadd.f32 %v10426, %v10778
        %v10780 = vpop.f32.mrf.mxu0
        %v10781 = vadd.f32 %v10428, %v10780
        %10782 = vmatprep.mubr.f32.mxu0 0.0
        %10783 = vmatmul.mubr.f32.gmra.mxu0 %v10551
        %v10784 = vpop.f32.mrf.mxu0
        %v10785 = vadd.f32 %v10432, %v10784
        %v10786 = vpop.f32.mrf.mxu0
        %v10787 = vadd.f32 %v10434, %v10786
        %10788 = vmatprep.mubr.f32.mxu0 0.0
        %10789 = vmatmul.mubr.f32.gmra.mxu0 %v10554
        %v10790 = vpop.f32.mrf.mxu0
        %v10791 = vadd.f32 %v10438, %v10790
        %v10792 = vpop.f32.mrf.mxu0
        %v10793 = vadd.f32 %v10440, %v10792
        %10794 = vmatprep.mubr.f32.mxu0 0.0
        %10795 = vmatmul.mubr.f32.gmra.mxu0 %v10557
        %v10796 = vpop.f32.mrf.mxu0
        %v10797 = vadd.f32 %v10444, %v10796
        %v10798 = vpop.f32.mrf.mxu0
        %v10799 = vadd.f32 %v10446, %v10798
        %10800 = vmatprep.mubr.f32.mxu0 0.0
        %10801 = vmatmul.mubr.f32.gmra.mxu0 %v10560
        %v10802 = vpop.f32.mrf.mxu0
        %v10803 = vadd.f32 %v10450, %v10802
        %v10804 = vpop.f32.mrf.mxu0
        %v10805 = vadd.f32 %v10452, %v10804
        %10806 = vmatprep.mubr.f32.mxu0 0.0
        %10807 = vmatmul.mubr.f32.gmra.mxu0 %v10563
        %v10808 = vpop.f32.mrf.mxu0
        %v10809 = vadd.f32 %v10456, %v10808
        %v10810 = vpop.f32.mrf.mxu0
        %v10811 = vadd.f32 %v10458, %v10810
        %10812 = vmatprep.mubr.f32.mxu0 0.0
        %10813 = vmatmul.mubr.f32.gmra.mxu0 %v10566
        %v10814 = vpop.f32.mrf.mxu0
        %v10815 = vadd.f32 %v10462, %v10814
        %v10816 = vpop.f32.mrf.mxu0
        %v10817 = vadd.f32 %v10464, %v10816
        %10818 = vmatprep.mubr.f32.mxu0 0.0
        %10819 = vmatmul.mubr.f32.gmra.mxu0 %v10569
        %v10820 = vpop.f32.mrf.mxu0
        %v10821 = vadd.f32 %v10468, %v10820
        %v10822 = vpop.f32.mrf.mxu0
        %v10823 = vadd.f32 %v10470, %v10822
        %10824 = vmatprep.mubr.f32.mxu0 0.0
        %10825 = vmatmul.mubr.f32.gmra.mxu0 %v10572
        %v10826 = vpop.f32.mrf.mxu0
        %v10827 = vadd.f32 %v10474, %v10826
        %v10828 = vpop.f32.mrf.mxu0
        %v10829 = vadd.f32 %v10476, %v10828
        %10830 = vdwg.mxu0
        %10831 = vrot.lane.b32.xlu0 %v555, 112
        %v10832 = vpop.permute.xlu0 %10831
        %10833 = vrot.lane.b32.xlu0 %v560, 112
        %v10834 = vpop.permute.xlu0 %10833
        %10835 = vrot.lane.b32.xlu0 %v565, 112
        %v10836 = vpop.permute.xlu0 %10835
        %10837 = vrot.lane.b32.xlu0 %v570, 112
        %v10838 = vpop.permute.xlu0 %10837
        %10839 = vrot.lane.b32.xlu0 %v575, 112
        %v10840 = vpop.permute.xlu0 %10839
        %10841 = vrot.lane.b32.xlu0 %v580, 112
        %v10842 = vpop.permute.xlu0 %10841
        %10843 = vrot.lane.b32.xlu0 %v585, 112
        %v10844 = vpop.permute.xlu0 %10843
        %10845 = vrot.lane.b32.xlu0 %v590, 112
        %v10846 = vpop.permute.xlu0 %10845
        %10847 = vrot.lane.b32.xlu0 %v595, 112
        %v10848 = vpop.permute.xlu0 %10847
        %10849 = vrot.lane.b32.xlu0 %v600, 112
        %v10850 = vpop.permute.xlu0 %10849
        %10851 = vrot.lane.b32.xlu0 %v605, 112
        %v10852 = vpop.permute.xlu0 %10851
        %10853 = vrot.lane.b32.xlu0 %v610, 112
        %v10854 = vpop.permute.xlu0 %10853
        %10855 = vrot.lane.b32.xlu0 %v615, 112
        %v10856 = vpop.permute.xlu0 %10855
        %10857 = vrot.lane.b32.xlu0 %v620, 112
        %v10858 = vpop.permute.xlu0 %10857
        %10859 = vrot.lane.b32.xlu0 %v625, 112
        %v10860 = vpop.permute.xlu0 %10859
        %10861 = vrot.lane.b32.xlu0 %v630, 112
        %v10862 = vpop.permute.xlu0 %10861
        %10863 = vrot.lane.b32.xlu0 %v635, 112
        %v10864 = vpop.permute.xlu0 %10863
        %10865 = vrot.lane.b32.xlu0 %v640, 112
        %v10866 = vpop.permute.xlu0 %10865
        %10867 = vrot.lane.b32.xlu0 %v645, 112
        %v10868 = vpop.permute.xlu0 %10867
        %10869 = vrot.lane.b32.xlu0 %v650, 112
        %v10870 = vpop.permute.xlu0 %10869
        %10871 = vrot.lane.b32.xlu0 %v655, 112
        %v10872 = vpop.permute.xlu0 %10871
        %10873 = vrot.lane.b32.xlu0 %v660, 112
        %v10874 = vpop.permute.xlu0 %10873
        %10875 = vrot.lane.b32.xlu0 %v665, 112
        %v10876 = vpop.permute.xlu0 %10875
        %10877 = vrot.lane.b32.xlu0 %v670, 112
        %v10878 = vpop.permute.xlu0 %10877
        %10879 = vrot.lane.b32.xlu0 %v675, 112
        %v10880 = vpop.permute.xlu0 %10879
        %10881 = vrot.lane.b32.xlu0 %v680, 112
        %v10882 = vpop.permute.xlu0 %10881
        %10883 = vrot.lane.b32.xlu0 %v685, 112
        %v10884 = vpop.permute.xlu0 %10883
        %10885 = vrot.lane.b32.xlu0 %v690, 112
        %v10886 = vpop.permute.xlu0 %10885
        %10887 = vrot.lane.b32.xlu0 %v695, 112
        %v10888 = vpop.permute.xlu0 %10887
        %10889 = vrot.lane.b32.xlu0 %v700, 112
        %v10890 = vpop.permute.xlu0 %10889
        %10891 = vrot.lane.b32.xlu0 %v705, 112
        %v10892 = vpop.permute.xlu0 %10891
        %10893 = vrot.lane.b32.xlu0 %v710, 112
        %v10894 = vpop.permute.xlu0 %10893
        %v10896 = vsel %vm777, %v713, 0
        %v10899 = vsel %vm777, %v714, 0
        %v10902 = vsel %vm777, %v715, 0
        %v10905 = vsel %vm777, %v716, 0
        %v10908 = vsel %vm777, %v717, 0
        %v10911 = vsel %vm777, %v718, 0
        %v10914 = vsel %vm777, %v719, 0
        %v10917 = vsel %vm777, %v720, 0
        %v10920 = vsel %vm777, %v721, 0
        %v10923 = vsel %vm777, %v722, 0
        %v10926 = vsel %vm777, %v723, 0
        %v10929 = vsel %vm777, %v724, 0
        %v10932 = vsel %vm777, %v725, 0
        %v10935 = vsel %vm777, %v726, 0
        %v10938 = vsel %vm777, %v727, 0
        %v10941 = vsel %vm777, %v728, 0
        %v10944 = vsel %vm777, %v729, 0
        %v10947 = vsel %vm777, %v730, 0
        %v10950 = vsel %vm777, %v731, 0
        %v10953 = vsel %vm777, %v732, 0
        %v10956 = vsel %vm777, %v733, 0
        %v10959 = vsel %vm777, %v734, 0
        %v10962 = vsel %vm777, %v735, 0
        %v10965 = vsel %vm777, %v736, 0
        %v10968 = vsel %vm777, %v737, 0
        %v10971 = vsel %vm777, %v738, 0
        %v10974 = vsel %vm777, %v739, 0
        %v10977 = vsel %vm777, %v740, 0
        %v10980 = vsel %vm777, %v741, 0
        %v10983 = vsel %vm777, %v742, 0
        %v10986 = vsel %vm777, %v743, 0
        %v10989 = vsel %vm777, %v744, 0
        %v10991 = vsel %vm777, %v10832, 0
        %v10993 = vsel %vm777, %v10834, 0
        %v10995 = vsel %vm777, %v10836, 0
        %v10997 = vsel %vm777, %v10838, 0
        %v10999 = vsel %vm777, %v10840, 0
        %v11001 = vsel %vm777, %v10842, 0
        %v11003 = vsel %vm777, %v10844, 0
        %v11005 = vsel %vm777, %v10846, 0
        %v11007 = vsel %vm777, %v10848, 0
        %v11009 = vsel %vm777, %v10850, 0
        %v11011 = vsel %vm777, %v10852, 0
        %v11013 = vsel %vm777, %v10854, 0
        %v11015 = vsel %vm777, %v10856, 0
        %v11017 = vsel %vm777, %v10858, 0
        %v11019 = vsel %vm777, %v10860, 0
        %v11021 = vsel %vm777, %v10862, 0
        %v11023 = vsel %vm777, %v10864, 0
        %v11025 = vsel %vm777, %v10866, 0
        %v11027 = vsel %vm777, %v10868, 0
        %v11029 = vsel %vm777, %v10870, 0
        %v11031 = vsel %vm777, %v10872, 0
        %v11033 = vsel %vm777, %v10874, 0
        %v11035 = vsel %vm777, %v10876, 0
        %v11037 = vsel %vm777, %v10878, 0
        %v11039 = vsel %vm777, %v10880, 0
        %v11041 = vsel %vm777, %v10882, 0
        %v11043 = vsel %vm777, %v10884, 0
        %v11045 = vsel %vm777, %v10886, 0
        %v11047 = vsel %vm777, %v10888, 0
        %v11049 = vsel %vm777, %v10890, 0
        %v11051 = vsel %vm777, %v10892, 0
        %v11053 = vsel %vm777, %v10894, 0
        %11055 = vmatprep.subr.mxu0 0.0
        %11056 = vmatpush1.xpose.msra.mxu0 %v11021
        %11057 = vmatprep.subr.mxu0 0.0
        %11058 = vmatpush1.xpose.msra.mxu0 %v11019
        %11059 = vmatprep.subr.mxu0 0.0
        %11060 = vmatpush1.xpose.msra.mxu0 %v11017
        %11061 = vmatprep.subr.mxu0 0.0
        %11062 = vmatpush1.xpose.msra.mxu0 %v11015
        %11063 = vmatprep.subr.mxu0 0.0
        %11064 = vmatpush1.xpose.msra.mxu0 %v11013
        %11065 = vmatprep.subr.mxu0 0.0
        %11066 = vmatpush1.xpose.msra.mxu0 %v11011
        %11067 = vmatprep.subr.mxu0 0.0
        %11068 = vmatpush1.xpose.msra.mxu0 %v11009
        %11069 = vmatprep.subr.mxu0 0.0
        %11070 = vmatpush1.xpose.msra.mxu0 %v11007
        %11071 = vmatprep.subr.mxu0 0.0
        %11072 = vmatpush1.xpose.msra.mxu0 %v11005
        %11073 = vmatprep.subr.mxu0 0.0
        %11074 = vmatpush1.xpose.msra.mxu0 %v11003
        %11075 = vmatprep.subr.mxu0 0.0
        %11076 = vmatpush1.xpose.msra.mxu0 %v11001
        %11077 = vmatprep.subr.mxu0 0.0
        %11078 = vmatpush1.xpose.msra.mxu0 %v10999
        %11079 = vmatprep.subr.mxu0 0.0
        %11080 = vmatpush1.xpose.msra.mxu0 %v10997
        %11081 = vmatprep.subr.mxu0 0.0
        %11082 = vmatpush1.xpose.msra.mxu0 %v10995
        %11083 = vmatprep.subr.mxu0 0.0
        %11084 = vmatpush1.xpose.msra.mxu0 %v10993
        %11085 = vmatprep.subr.mxu0 0.0
        %11086 = vmatpush1.xpose.msra.mxu0 %v10991
        %11087 = vmatprep.subr.mxu0 0.0
        %11088 = vmatpush2.xpose.msra.mxu0 %v11053
        %11089 = vmatprep.subr.mxu0 0.0
        %11090 = vmatpush2.xpose.msra.mxu0 %v11051
        %11091 = vmatprep.subr.mxu0 0.0
        %11092 = vmatpush2.xpose.msra.mxu0 %v11049
        %11093 = vmatprep.subr.mxu0 0.0
        %11094 = vmatpush2.xpose.msra.mxu0 %v11047
        %11095 = vmatprep.subr.mxu0 0.0
        %11096 = vmatpush2.xpose.msra.mxu0 %v11045
        %11097 = vmatprep.subr.mxu0 0.0
        %11098 = vmatpush2.xpose.msra.mxu0 %v11043
        %11099 = vmatprep.subr.mxu0 0.0
        %11100 = vmatpush2.xpose.msra.mxu0 %v11041
        %11101 = vmatprep.subr.mxu0 0.0
        %11102 = vmatpush2.xpose.msra.mxu0 %v11039
        %11103 = vmatprep.subr.mxu0 0.0
        %11104 = vmatpush2.xpose.msra.mxu0 %v11037
        %11105 = vmatprep.subr.mxu0 0.0
        %11106 = vmatpush2.xpose.msra.mxu0 %v11035
        %11107 = vmatprep.subr.mxu0 0.0
        %11108 = vmatpush2.xpose.msra.mxu0 %v11033
        %11109 = vmatprep.subr.mxu0 0.0
        %11110 = vmatpush2.xpose.msra.mxu0 %v11031
        %11111 = vmatprep.subr.mxu0 0.0
        %11112 = vmatpush2.xpose.msra.mxu0 %v11029
        %11113 = vmatprep.subr.mxu0 0.0
        %11114 = vmatpush2.xpose.msra.mxu0 %v11027
        %11115 = vmatprep.subr.mxu0 0.0
        %11116 = vmatpush2.xpose.msra.mxu0 %v11025
        %11117 = vmatprep.subr.mxu0 0.0
        %11118 = vmatpush2.xpose.msra.mxu0 %v11023
        %11119 = vmatprep.mubr.f32.mxu0 0.0
        %11120 = vmatmul.mubr.f32.gmra.mxu0 %v10896
        %v11121 = vpop.f32.mrf.mxu0
        %v11122 = vadd.f32 %v10641, %v11121
        %v11123 = vpop.f32.mrf.mxu0
        %v11124 = vadd.f32 %v10643, %v11123
        %11125 = vmatprep.mubr.f32.mxu0 0.0
        %11126 = vmatmul.mubr.f32.gmra.mxu0 %v10899
        %v11127 = vpop.f32.mrf.mxu0
        %v11128 = vadd.f32 %v10647, %v11127
        %v11129 = vpop.f32.mrf.mxu0
        %v11130 = vadd.f32 %v10649, %v11129
        %11131 = vmatprep.mubr.f32.mxu0 0.0
        %11132 = vmatmul.mubr.f32.gmra.mxu0 %v10902
        %v11133 = vpop.f32.mrf.mxu0
        %v11134 = vadd.f32 %v10653, %v11133
        %v11135 = vpop.f32.mrf.mxu0
        %v11136 = vadd.f32 %v10655, %v11135
        %11137 = vmatprep.mubr.f32.mxu0 0.0
        %11138 = vmatmul.mubr.f32.gmra.mxu0 %v10905
        %v11139 = vpop.f32.mrf.mxu0
        %v11140 = vadd.f32 %v10659, %v11139
        %v11141 = vpop.f32.mrf.mxu0
        %v11142 = vadd.f32 %v10661, %v11141
        %11143 = vmatprep.mubr.f32.mxu0 0.0
        %11144 = vmatmul.mubr.f32.gmra.mxu0 %v10908
        %v11145 = vpop.f32.mrf.mxu0
        %v11146 = vadd.f32 %v10665, %v11145
        %v11147 = vpop.f32.mrf.mxu0
        %v11148 = vadd.f32 %v10667, %v11147
        %11149 = vmatprep.mubr.f32.mxu0 0.0
        %11150 = vmatmul.mubr.f32.gmra.mxu0 %v10911
        %v11151 = vpop.f32.mrf.mxu0
        %v11152 = vadd.f32 %v10671, %v11151
        %v11153 = vpop.f32.mrf.mxu0
        %v11154 = vadd.f32 %v10673, %v11153
        %11155 = vmatprep.mubr.f32.mxu0 0.0
        %11156 = vmatmul.mubr.f32.gmra.mxu0 %v10914
        %v11157 = vpop.f32.mrf.mxu0
        %v11158 = vadd.f32 %v10677, %v11157
        %v11159 = vpop.f32.mrf.mxu0
        %v11160 = vadd.f32 %v10679, %v11159
        %11161 = vmatprep.mubr.f32.mxu0 0.0
        %11162 = vmatmul.mubr.f32.gmra.mxu0 %v10917
        %v11163 = vpop.f32.mrf.mxu0
        %v11164 = vadd.f32 %v10683, %v11163
        %v11165 = vpop.f32.mrf.mxu0
        %v11166 = vadd.f32 %v10685, %v11165
        %11167 = vmatprep.mubr.f32.mxu0 0.0
        %11168 = vmatmul.mubr.f32.gmra.mxu0 %v10920
        %v11169 = vpop.f32.mrf.mxu0
        %v11170 = vadd.f32 %v10689, %v11169
        %v11171 = vpop.f32.mrf.mxu0
        %v11172 = vadd.f32 %v10691, %v11171
        %11173 = vmatprep.mubr.f32.mxu0 0.0
        %11174 = vmatmul.mubr.f32.gmra.mxu0 %v10923
        %v11175 = vpop.f32.mrf.mxu0
        %v11176 = vadd.f32 %v10695, %v11175
        %v11177 = vpop.f32.mrf.mxu0
        %v11178 = vadd.f32 %v10697, %v11177
        %11179 = vmatprep.mubr.f32.mxu0 0.0
        %11180 = vmatmul.mubr.f32.gmra.mxu0 %v10926
        %v11181 = vpop.f32.mrf.mxu0
        %v11182 = vadd.f32 %v10701, %v11181
        %v11183 = vpop.f32.mrf.mxu0
        %v11184 = vadd.f32 %v10703, %v11183
        %11185 = vmatprep.mubr.f32.mxu0 0.0
        %11186 = vmatmul.mubr.f32.gmra.mxu0 %v10929
        %v11187 = vpop.f32.mrf.mxu0
        %v11188 = vadd.f32 %v10707, %v11187
        %v11189 = vpop.f32.mrf.mxu0
        %v11190 = vadd.f32 %v10709, %v11189
        %11191 = vmatprep.mubr.f32.mxu0 0.0
        %11192 = vmatmul.mubr.f32.gmra.mxu0 %v10932
        %v11193 = vpop.f32.mrf.mxu0
        %v11194 = vadd.f32 %v10713, %v11193
        %v11195 = vpop.f32.mrf.mxu0
        %v11196 = vadd.f32 %v10715, %v11195
        %11197 = vmatprep.mubr.f32.mxu0 0.0
        %11198 = vmatmul.mubr.f32.gmra.mxu0 %v10935
        %v11199 = vpop.f32.mrf.mxu0
        %v11200 = vadd.f32 %v10719, %v11199
        %v11201 = vpop.f32.mrf.mxu0
        %v11202 = vadd.f32 %v10721, %v11201
        %11203 = vmatprep.mubr.f32.mxu0 0.0
        %11204 = vmatmul.mubr.f32.gmra.mxu0 %v10938
        %v11205 = vpop.f32.mrf.mxu0
        %v11206 = vadd.f32 %v10725, %v11205
        %v11207 = vpop.f32.mrf.mxu0
        %v11208 = vadd.f32 %v10727, %v11207
        %11209 = vmatprep.mubr.f32.mxu0 0.0
        %11210 = vmatmul.mubr.f32.gmra.mxu0 %v10941
        %v11211 = vpop.f32.mrf.mxu0
        %v11212 = vadd.f32 %v10731, %v11211
        %v11213 = vpop.f32.mrf.mxu0
        %v11214 = vadd.f32 %v10733, %v11213
        %11215 = vmatprep.mubr.f32.mxu0 0.0
        %11216 = vmatmul.mubr.f32.gmra.mxu0 %v10944
        %v11217 = vpop.f32.mrf.mxu0
        %v11218 = vadd.f32 %v10737, %v11217
        %v11219 = vpop.f32.mrf.mxu0
        %v11220 = vadd.f32 %v10739, %v11219
        %11221 = vmatprep.mubr.f32.mxu0 0.0
        %11222 = vmatmul.mubr.f32.gmra.mxu0 %v10947
        %v11223 = vpop.f32.mrf.mxu0
        %v11224 = vadd.f32 %v10743, %v11223
        %v11225 = vpop.f32.mrf.mxu0
        %v11226 = vadd.f32 %v10745, %v11225
        %11227 = vmatprep.mubr.f32.mxu0 0.0
        %11228 = vmatmul.mubr.f32.gmra.mxu0 %v10950
        %v11229 = vpop.f32.mrf.mxu0
        %v11230 = vadd.f32 %v10749, %v11229
        %v11231 = vpop.f32.mrf.mxu0
        %v11232 = vadd.f32 %v10751, %v11231
        %11233 = vmatprep.mubr.f32.mxu0 0.0
        %11234 = vmatmul.mubr.f32.gmra.mxu0 %v10953
        %v11235 = vpop.f32.mrf.mxu0
        %v11236 = vadd.f32 %v10755, %v11235
        %v11237 = vpop.f32.mrf.mxu0
        %v11238 = vadd.f32 %v10757, %v11237
        %11239 = vmatprep.mubr.f32.mxu0 0.0
        %11240 = vmatmul.mubr.f32.gmra.mxu0 %v10956
        %v11241 = vpop.f32.mrf.mxu0
        %v11242 = vadd.f32 %v10761, %v11241
        %v11243 = vpop.f32.mrf.mxu0
        %v11244 = vadd.f32 %v10763, %v11243
        %11245 = vmatprep.mubr.f32.mxu0 0.0
        %11246 = vmatmul.mubr.f32.gmra.mxu0 %v10959
        %v11247 = vpop.f32.mrf.mxu0
        %v11248 = vadd.f32 %v10767, %v11247
        %v11249 = vpop.f32.mrf.mxu0
        %v11250 = vadd.f32 %v10769, %v11249
        %11251 = vmatprep.mubr.f32.mxu0 0.0
        %11252 = vmatmul.mubr.f32.gmra.mxu0 %v10962
        %v11253 = vpop.f32.mrf.mxu0
        %v11254 = vadd.f32 %v10773, %v11253
        %v11255 = vpop.f32.mrf.mxu0
        %v11256 = vadd.f32 %v10775, %v11255
        %11257 = vmatprep.mubr.f32.mxu0 0.0
        %11258 = vmatmul.mubr.f32.gmra.mxu0 %v10965
        %v11259 = vpop.f32.mrf.mxu0
        %v11260 = vadd.f32 %v10779, %v11259
        %v11261 = vpop.f32.mrf.mxu0
        %v11262 = vadd.f32 %v10781, %v11261
        %11263 = vmatprep.mubr.f32.mxu0 0.0
        %11264 = vmatmul.mubr.f32.gmra.mxu0 %v10968
        %v11265 = vpop.f32.mrf.mxu0
        %v11266 = vadd.f32 %v10785, %v11265
        %v11267 = vpop.f32.mrf.mxu0
        %v11268 = vadd.f32 %v10787, %v11267
        %11269 = vmatprep.mubr.f32.mxu0 0.0
        %11270 = vmatmul.mubr.f32.gmra.mxu0 %v10971
        %v11271 = vpop.f32.mrf.mxu0
        %v11272 = vadd.f32 %v10791, %v11271
        %v11273 = vpop.f32.mrf.mxu0
        %v11274 = vadd.f32 %v10793, %v11273
        %11275 = vmatprep.mubr.f32.mxu0 0.0
        %11276 = vmatmul.mubr.f32.gmra.mxu0 %v10974
        %v11277 = vpop.f32.mrf.mxu0
        %v11278 = vadd.f32 %v10797, %v11277
        %v11279 = vpop.f32.mrf.mxu0
        %v11280 = vadd.f32 %v10799, %v11279
        %11281 = vmatprep.mubr.f32.mxu0 0.0
        %11282 = vmatmul.mubr.f32.gmra.mxu0 %v10977
        %v11283 = vpop.f32.mrf.mxu0
        %v11284 = vadd.f32 %v10803, %v11283
        %v11285 = vpop.f32.mrf.mxu0
        %v11286 = vadd.f32 %v10805, %v11285
        %11287 = vmatprep.mubr.f32.mxu0 0.0
        %11288 = vmatmul.mubr.f32.gmra.mxu0 %v10980
        %v11289 = vpop.f32.mrf.mxu0
        %v11290 = vadd.f32 %v10809, %v11289
        %v11291 = vpop.f32.mrf.mxu0
        %v11292 = vadd.f32 %v10811, %v11291
        %11293 = vmatprep.mubr.f32.mxu0 0.0
        %11294 = vmatmul.mubr.f32.gmra.mxu0 %v10983
        %v11295 = vpop.f32.mrf.mxu0
        %v11296 = vadd.f32 %v10815, %v11295
        %v11297 = vpop.f32.mrf.mxu0
        %v11298 = vadd.f32 %v10817, %v11297
        %11299 = vmatprep.mubr.f32.mxu0 0.0
        %11300 = vmatmul.mubr.f32.gmra.mxu0 %v10986
        %v11301 = vpop.f32.mrf.mxu0
        %v11302 = vadd.f32 %v10821, %v11301
        %v11303 = vpop.f32.mrf.mxu0
        %v11304 = vadd.f32 %v10823, %v11303
        %11305 = vmatprep.mubr.f32.mxu0 0.0
        %11306 = vmatmul.mubr.f32.gmra.mxu0 %v10989
        %v11307 = vpop.f32.mrf.mxu0
        %v11308 = vadd.f32 %v10827, %v11307
        %v11309 = vpop.f32.mrf.mxu0
        %v11310 = vadd.f32 %v10829, %v11309
        %11311 = vdwg.mxu0
        %v11312 = vmax.f32 %v11122, %v11124
        %11313 = vmax.xlane.f32.xlu0 %v11312
        %v11314 = vpop.xlane.xlu0 %11313
        %v11315 = vmax.f32 %v11128, %v11130
        %11316 = vmax.xlane.f32.xlu0 %v11315
        %v11317 = vpop.xlane.xlu0 %11316
        %v11318 = vmax.f32 %v11134, %v11136
        %11319 = vmax.xlane.f32.xlu0 %v11318
        %v11320 = vpop.xlane.xlu0 %11319
        %v11321 = vmax.f32 %v11140, %v11142
        %11322 = vmax.xlane.f32.xlu0 %v11321
        %v11323 = vpop.xlane.xlu0 %11322
        %v11324 = vmax.f32 %v11146, %v11148
        %11325 = vmax.xlane.f32.xlu0 %v11324
        %v11326 = vpop.xlane.xlu0 %11325
        %v11327 = vmax.f32 %v11152, %v11154
        %11328 = vmax.xlane.f32.xlu0 %v11327
        %v11329 = vpop.xlane.xlu0 %11328
        %v11330 = vmax.f32 %v11158, %v11160
        %11331 = vmax.xlane.f32.xlu0 %v11330
        %v11332 = vpop.xlane.xlu0 %11331
        %v11333 = vmax.f32 %v11164, %v11166
        %11334 = vmax.xlane.f32.xlu0 %v11333
        %v11335 = vpop.xlane.xlu0 %11334
        %v11336 = vmax.f32 %v11170, %v11172
        %11337 = vmax.xlane.f32.xlu0 %v11336
        %v11338 = vpop.xlane.xlu0 %11337
        %v11339 = vmax.f32 %v11176, %v11178
        %11340 = vmax.xlane.f32.xlu0 %v11339
        %v11341 = vpop.xlane.xlu0 %11340
        %v11342 = vmax.f32 %v11182, %v11184
        %11343 = vmax.xlane.f32.xlu0 %v11342
        %v11344 = vpop.xlane.xlu0 %11343
        %v11345 = vmax.f32 %v11188, %v11190
        %11346 = vmax.xlane.f32.xlu0 %v11345
        %v11347 = vpop.xlane.xlu0 %11346
        %v11348 = vmax.f32 %v11194, %v11196
        %11349 = vmax.xlane.f32.xlu0 %v11348
        %v11350 = vpop.xlane.xlu0 %11349
        %v11351 = vmax.f32 %v11200, %v11202
        %11352 = vmax.xlane.f32.xlu0 %v11351
        %v11353 = vpop.xlane.xlu0 %11352
        %v11354 = vmax.f32 %v11206, %v11208
        %11355 = vmax.xlane.f32.xlu0 %v11354
        %v11356 = vpop.xlane.xlu0 %11355
        %v11357 = vmax.f32 %v11212, %v11214
        %11358 = vmax.xlane.f32.xlu0 %v11357
        %v11359 = vpop.xlane.xlu0 %11358
        %v11360 = vmax.f32 %v11218, %v11220
        %11361 = vmax.xlane.f32.xlu0 %v11360
        %v11362 = vpop.xlane.xlu0 %11361
        %v11363 = vmax.f32 %v11224, %v11226
        %11364 = vmax.xlane.f32.xlu0 %v11363
        %v11365 = vpop.xlane.xlu0 %11364
        %v11366 = vmax.f32 %v11230, %v11232
        %11367 = vmax.xlane.f32.xlu0 %v11366
        %v11368 = vpop.xlane.xlu0 %11367
        %v11369 = vmax.f32 %v11236, %v11238
        %11370 = vmax.xlane.f32.xlu0 %v11369
        %v11371 = vpop.xlane.xlu0 %11370
        %v11372 = vmax.f32 %v11242, %v11244
        %11373 = vmax.xlane.f32.xlu0 %v11372
        %v11374 = vpop.xlane.xlu0 %11373
        %v11375 = vmax.f32 %v11248, %v11250
        %11376 = vmax.xlane.f32.xlu0 %v11375
        %v11377 = vpop.xlane.xlu0 %11376
        %v11378 = vmax.f32 %v11254, %v11256
        %11379 = vmax.xlane.f32.xlu0 %v11378
        %v11380 = vpop.xlane.xlu0 %11379
        %v11381 = vmax.f32 %v11260, %v11262
        %11382 = vmax.xlane.f32.xlu0 %v11381
        %v11383 = vpop.xlane.xlu0 %11382
        %v11384 = vmax.f32 %v11266, %v11268
        %11385 = vmax.xlane.f32.xlu0 %v11384
        %v11386 = vpop.xlane.xlu0 %11385
        %v11387 = vmax.f32 %v11272, %v11274
        %11388 = vmax.xlane.f32.xlu0 %v11387
        %v11389 = vpop.xlane.xlu0 %11388
        %v11390 = vmax.f32 %v11278, %v11280
        %11391 = vmax.xlane.f32.xlu0 %v11390
        %v11392 = vpop.xlane.xlu0 %11391
        %v11393 = vmax.f32 %v11284, %v11286
        %11394 = vmax.xlane.f32.xlu0 %v11393
        %v11395 = vpop.xlane.xlu0 %11394
        %v11396 = vmax.f32 %v11290, %v11292
        %11397 = vmax.xlane.f32.xlu0 %v11396
        %v11398 = vpop.xlane.xlu0 %11397
        %v11399 = vmax.f32 %v11296, %v11298
        %11400 = vmax.xlane.f32.xlu0 %v11399
        %v11401 = vpop.xlane.xlu0 %11400
        %v11402 = vmax.f32 %v11302, %v11304
        %11403 = vmax.xlane.f32.xlu0 %v11402
        %v11404 = vpop.xlane.xlu0 %11403
        %v11405 = vmax.f32 %v11308, %v11310
        %11406 = vmax.xlane.f32.xlu0 %v11405
        %v11407 = vpop.xlane.xlu0 %11406
        %v11408 = vsub.f32 %v11122, %v11314
        %v11409 = vsub.f32 %v11124, %v11314
        %v11410 = vsub.f32 %v11128, %v11317
        %v11411 = vsub.f32 %v11130, %v11317
        %v11412 = vsub.f32 %v11134, %v11320
        %v11413 = vsub.f32 %v11136, %v11320
        %v11414 = vsub.f32 %v11140, %v11323
        %v11415 = vsub.f32 %v11142, %v11323
        %v11416 = vsub.f32 %v11146, %v11326
        %v11417 = vsub.f32 %v11148, %v11326
        %v11418 = vsub.f32 %v11152, %v11329
        %v11419 = vsub.f32 %v11154, %v11329
        %v11420 = vsub.f32 %v11158, %v11332
        %v11421 = vsub.f32 %v11160, %v11332
        %v11422 = vsub.f32 %v11164, %v11335
        %v11423 = vsub.f32 %v11166, %v11335
        %v11424 = vsub.f32 %v11170, %v11338
        %v11425 = vsub.f32 %v11172, %v11338
        %v11426 = vsub.f32 %v11176, %v11341
        %v11427 = vsub.f32 %v11178, %v11341
        %v11428 = vsub.f32 %v11182, %v11344
        %v11429 = vsub.f32 %v11184, %v11344
        %v11430 = vsub.f32 %v11188, %v11347
        %v11431 = vsub.f32 %v11190, %v11347
        %v11432 = vsub.f32 %v11194, %v11350
        %v11433 = vsub.f32 %v11196, %v11350
        %v11434 = vsub.f32 %v11200, %v11353
        %v11435 = vsub.f32 %v11202, %v11353
        %v11436 = vsub.f32 %v11206, %v11356
        %v11437 = vsub.f32 %v11208, %v11356
        %v11438 = vsub.f32 %v11212, %v11359
        %v11439 = vsub.f32 %v11214, %v11359
        %v11440 = vsub.f32 %v11218, %v11362
        %v11441 = vsub.f32 %v11220, %v11362
        %v11442 = vsub.f32 %v11224, %v11365
        %v11443 = vsub.f32 %v11226, %v11365
        %v11444 = vsub.f32 %v11230, %v11368
        %v11445 = vsub.f32 %v11232, %v11368
        %v11446 = vsub.f32 %v11236, %v11371
        %v11447 = vsub.f32 %v11238, %v11371
        %v11448 = vsub.f32 %v11242, %v11374
        %v11449 = vsub.f32 %v11244, %v11374
        %v11450 = vsub.f32 %v11248, %v11377
        %v11451 = vsub.f32 %v11250, %v11377
        %v11452 = vsub.f32 %v11254, %v11380
        %v11453 = vsub.f32 %v11256, %v11380
        %v11454 = vsub.f32 %v11260, %v11383
        %v11455 = vsub.f32 %v11262, %v11383
        %v11456 = vsub.f32 %v11266, %v11386
        %v11457 = vsub.f32 %v11268, %v11386
        %v11458 = vsub.f32 %v11272, %v11389
        %v11459 = vsub.f32 %v11274, %v11389
        %v11460 = vsub.f32 %v11278, %v11392
        %v11461 = vsub.f32 %v11280, %v11392
        %v11462 = vsub.f32 %v11284, %v11395
        %v11463 = vsub.f32 %v11286, %v11395
        %v11464 = vsub.f32 %v11290, %v11398
        %v11465 = vsub.f32 %v11292, %v11398
        %v11466 = vsub.f32 %v11296, %v11401
        %v11467 = vsub.f32 %v11298, %v11401
        %v11468 = vsub.f32 %v11302, %v11404
        %v11469 = vsub.f32 %v11304, %v11404
        %v11470 = vsub.f32 %v11308, %v11407
        %v11471 = vsub.f32 %v11310, %v11407
        %v11472 = vmul.f32 %v11408, 1.442695
        %v11473 = vpow.pop %v11472
        %v11474 = vmul.f32 %v11409, 1.442695
        %v11475 = vpow.pop %v11474
        %v11476 = vmul.f32 %v11410, 1.442695
        %v11477 = vpow.pop %v11476
        %v11478 = vmul.f32 %v11411, 1.442695
        %v11479 = vpow.pop %v11478
        %v11480 = vmul.f32 %v11412, 1.442695
        %v11481 = vpow.pop %v11480
        %v11482 = vmul.f32 %v11413, 1.442695
        %v11483 = vpow.pop %v11482
        %v11484 = vmul.f32 %v11414, 1.442695
        %v11485 = vpow.pop %v11484
        %v11486 = vmul.f32 %v11415, 1.442695
        %v11487 = vpow.pop %v11486
        %v11488 = vmul.f32 %v11416, 1.442695
        %v11489 = vpow.pop %v11488
        %v11490 = vmul.f32 %v11417, 1.442695
        %v11491 = vpow.pop %v11490
        %v11492 = vmul.f32 %v11418, 1.442695
        %v11493 = vpow.pop %v11492
        %v11494 = vmul.f32 %v11419, 1.442695
        %v11495 = vpow.pop %v11494
        %v11496 = vmul.f32 %v11420, 1.442695
        %v11497 = vpow.pop %v11496
        %v11498 = vmul.f32 %v11421, 1.442695
        %v11499 = vpow.pop %v11498
        %v11500 = vmul.f32 %v11422, 1.442695
        %v11501 = vpow.pop %v11500
        %v11502 = vmul.f32 %v11423, 1.442695
        %v11503 = vpow.pop %v11502
        %v11504 = vmul.f32 %v11424, 1.442695
        %v11505 = vpow.pop %v11504
        %v11506 = vmul.f32 %v11425, 1.442695
        %v11507 = vpow.pop %v11506
        %v11508 = vmul.f32 %v11426, 1.442695
        %v11509 = vpow.pop %v11508
        %v11510 = vmul.f32 %v11427, 1.442695
        %v11511 = vpow.pop %v11510
        %v11512 = vmul.f32 %v11428, 1.442695
        %v11513 = vpow.pop %v11512
        %v11514 = vmul.f32 %v11429, 1.442695
        %v11515 = vpow.pop %v11514
        %v11516 = vmul.f32 %v11430, 1.442695
        %v11517 = vpow.pop %v11516
        %v11518 = vmul.f32 %v11431, 1.442695
        %v11519 = vpow.pop %v11518
        %v11520 = vmul.f32 %v11432, 1.442695
        %v11521 = vpow.pop %v11520
        %v11522 = vmul.f32 %v11433, 1.442695
        %v11523 = vpow.pop %v11522
        %v11524 = vmul.f32 %v11434, 1.442695
        %v11525 = vpow.pop %v11524
        %v11526 = vmul.f32 %v11435, 1.442695
        %v11527 = vpow.pop %v11526
        %v11528 = vmul.f32 %v11436, 1.442695
        %v11529 = vpow.pop %v11528
        %v11530 = vmul.f32 %v11437, 1.442695
        %v11531 = vpow.pop %v11530
        %v11532 = vmul.f32 %v11438, 1.442695
        %v11533 = vpow.pop %v11532
        %v11534 = vmul.f32 %v11439, 1.442695
        %v11535 = vpow.pop %v11534
        %v11536 = vmul.f32 %v11440, 1.442695
        %v11537 = vpow.pop %v11536
        %v11538 = vmul.f32 %v11441, 1.442695
        %v11539 = vpow.pop %v11538
        %v11540 = vmul.f32 %v11442, 1.442695
        %v11541 = vpow.pop %v11540
        %v11542 = vmul.f32 %v11443, 1.442695
        %v11543 = vpow.pop %v11542
        %v11544 = vmul.f32 %v11444, 1.442695
        %v11545 = vpow.pop %v11544
        %v11546 = vmul.f32 %v11445, 1.442695
        %v11547 = vpow.pop %v11546
        %v11548 = vmul.f32 %v11446, 1.442695
        %v11549 = vpow.pop %v11548
        %v11550 = vmul.f32 %v11447, 1.442695
        %v11551 = vpow.pop %v11550
        %v11552 = vmul.f32 %v11448, 1.442695
        %v11553 = vpow.pop %v11552
        %v11554 = vmul.f32 %v11449, 1.442695
        %v11555 = vpow.pop %v11554
        %v11556 = vmul.f32 %v11450, 1.442695
        %v11557 = vpow.pop %v11556
        %v11558 = vmul.f32 %v11451, 1.442695
        %v11559 = vpow.pop %v11558
        %v11560 = vmul.f32 %v11452, 1.442695
        %v11561 = vpow.pop %v11560
        %v11562 = vmul.f32 %v11453, 1.442695
        %v11563 = vpow.pop %v11562
        %v11564 = vmul.f32 %v11454, 1.442695
        %v11565 = vpow.pop %v11564
        %v11566 = vmul.f32 %v11455, 1.442695
        %v11567 = vpow.pop %v11566
        %v11568 = vmul.f32 %v11456, 1.442695
        %v11569 = vpow.pop %v11568
        %v11570 = vmul.f32 %v11457, 1.442695
        %v11571 = vpow.pop %v11570
        %v11572 = vmul.f32 %v11458, 1.442695
        %v11573 = vpow.pop %v11572
        %v11574 = vmul.f32 %v11459, 1.442695
        %v11575 = vpow.pop %v11574
        %v11576 = vmul.f32 %v11460, 1.442695
        %v11577 = vpow.pop %v11576
        %v11578 = vmul.f32 %v11461, 1.442695
        %v11579 = vpow.pop %v11578
        %v11580 = vmul.f32 %v11462, 1.442695
        %v11581 = vpow.pop %v11580
        %v11582 = vmul.f32 %v11463, 1.442695
        %v11583 = vpow.pop %v11582
        %v11584 = vmul.f32 %v11464, 1.442695
        %v11585 = vpow.pop %v11584
        %v11586 = vmul.f32 %v11465, 1.442695
        %v11587 = vpow.pop %v11586
        %v11588 = vmul.f32 %v11466, 1.442695
        %v11589 = vpow.pop %v11588
        %v11590 = vmul.f32 %v11467, 1.442695
        %v11591 = vpow.pop %v11590
        %v11592 = vmul.f32 %v11468, 1.442695
        %v11593 = vpow.pop %v11592
        %v11594 = vmul.f32 %v11469, 1.442695
        %v11595 = vpow.pop %v11594
        %v11596 = vmul.f32 %v11470, 1.442695
        %v11597 = vpow.pop %v11596
        %v11598 = vmul.f32 %v11471, 1.442695
        %v11599 = vpow.pop %v11598
        %v11600 = vadd.f32 %v11473, %v11475
        %11601 = vadd.xlane.f32.xlu0 %v11600
        %v11602 = vpop.xlane.xlu0 %11601
        %v11603 = vadd.f32 %v11477, %v11479
        %11604 = vadd.xlane.f32.xlu0 %v11603
        %v11605 = vpop.xlane.xlu0 %11604
        %v11606 = vadd.f32 %v11481, %v11483
        %11607 = vadd.xlane.f32.xlu0 %v11606
        %v11608 = vpop.xlane.xlu0 %11607
        %v11609 = vadd.f32 %v11485, %v11487
        %11610 = vadd.xlane.f32.xlu0 %v11609
        %v11611 = vpop.xlane.xlu0 %11610
        %v11612 = vadd.f32 %v11489, %v11491
        %11613 = vadd.xlane.f32.xlu0 %v11612
        %v11614 = vpop.xlane.xlu0 %11613
        %v11615 = vadd.f32 %v11493, %v11495
        %11616 = vadd.xlane.f32.xlu0 %v11615
        %v11617 = vpop.xlane.xlu0 %11616
        %v11618 = vadd.f32 %v11497, %v11499
        %11619 = vadd.xlane.f32.xlu0 %v11618
        %v11620 = vpop.xlane.xlu0 %11619
        %v11621 = vadd.f32 %v11501, %v11503
        %11622 = vadd.xlane.f32.xlu0 %v11621
        %v11623 = vpop.xlane.xlu0 %11622
        %v11624 = vadd.f32 %v11505, %v11507
        %11625 = vadd.xlane.f32.xlu0 %v11624
        %v11626 = vpop.xlane.xlu0 %11625
        %v11627 = vadd.f32 %v11509, %v11511
        %11628 = vadd.xlane.f32.xlu0 %v11627
        %v11629 = vpop.xlane.xlu0 %11628
        %v11630 = vadd.f32 %v11513, %v11515
        %11631 = vadd.xlane.f32.xlu0 %v11630
        %v11632 = vpop.xlane.xlu0 %11631
        %v11633 = vadd.f32 %v11517, %v11519
        %11634 = vadd.xlane.f32.xlu0 %v11633
        %v11635 = vpop.xlane.xlu0 %11634
        %v11636 = vadd.f32 %v11521, %v11523
        %11637 = vadd.xlane.f32.xlu0 %v11636
        %v11638 = vpop.xlane.xlu0 %11637
        %v11639 = vadd.f32 %v11525, %v11527
        %11640 = vadd.xlane.f32.xlu0 %v11639
        %v11641 = vpop.xlane.xlu0 %11640
        %v11642 = vadd.f32 %v11529, %v11531
        %11643 = vadd.xlane.f32.xlu0 %v11642
        %v11644 = vpop.xlane.xlu0 %11643
        %v11645 = vadd.f32 %v11533, %v11535
        %11646 = vadd.xlane.f32.xlu0 %v11645
        %v11647 = vpop.xlane.xlu0 %11646
        %v11648 = vadd.f32 %v11537, %v11539
        %11649 = vadd.xlane.f32.xlu0 %v11648
        %v11650 = vpop.xlane.xlu0 %11649
        %v11651 = vadd.f32 %v11541, %v11543
        %11652 = vadd.xlane.f32.xlu0 %v11651
        %v11653 = vpop.xlane.xlu0 %11652
        %v11654 = vadd.f32 %v11545, %v11547
        %11655 = vadd.xlane.f32.xlu0 %v11654
        %v11656 = vpop.xlane.xlu0 %11655
        %v11657 = vadd.f32 %v11549, %v11551
        %11658 = vadd.xlane.f32.xlu0 %v11657
        %v11659 = vpop.xlane.xlu0 %11658
        %v11660 = vadd.f32 %v11553, %v11555
        %11661 = vadd.xlane.f32.xlu0 %v11660
        %v11662 = vpop.xlane.xlu0 %11661
        %v11663 = vadd.f32 %v11557, %v11559
        %11664 = vadd.xlane.f32.xlu0 %v11663
        %v11665 = vpop.xlane.xlu0 %11664
        %v11666 = vadd.f32 %v11561, %v11563
        %11667 = vadd.xlane.f32.xlu0 %v11666
        %v11668 = vpop.xlane.xlu0 %11667
        %v11669 = vadd.f32 %v11565, %v11567
        %11670 = vadd.xlane.f32.xlu0 %v11669
        %v11671 = vpop.xlane.xlu0 %11670
        %v11672 = vadd.f32 %v11569, %v11571
        %11673 = vadd.xlane.f32.xlu0 %v11672
        %v11674 = vpop.xlane.xlu0 %11673
        %v11675 = vadd.f32 %v11573, %v11575
        %11676 = vadd.xlane.f32.xlu0 %v11675
        %v11677 = vpop.xlane.xlu0 %11676
        %v11678 = vadd.f32 %v11577, %v11579
        %11679 = vadd.xlane.f32.xlu0 %v11678
        %v11680 = vpop.xlane.xlu0 %11679
        %v11681 = vadd.f32 %v11581, %v11583
        %11682 = vadd.xlane.f32.xlu0 %v11681
        %v11683 = vpop.xlane.xlu0 %11682
        %v11684 = vadd.f32 %v11585, %v11587
        %11685 = vadd.xlane.f32.xlu0 %v11684
        %v11686 = vpop.xlane.xlu0 %11685
        %v11687 = vadd.f32 %v11589, %v11591
        %11688 = vadd.xlane.f32.xlu0 %v11687
        %v11689 = vpop.xlane.xlu0 %11688
        %v11690 = vadd.f32 %v11593, %v11595
        %11691 = vadd.xlane.f32.xlu0 %v11690
        %v11692 = vpop.xlane.xlu0 %11691
        %v11693 = vadd.f32 %v11597, %v11599
        %11694 = vadd.xlane.f32.xlu0 %v11693
        %v11695 = vpop.xlane.xlu0 %11694
        %v11696 = vrcp.pop %v11602
        %v11697 = vrcp.pop %v11605
        %v11698 = vrcp.pop %v11608
        %v11699 = vrcp.pop %v11611
        %v11700 = vrcp.pop %v11614
        %v11701 = vrcp.pop %v11617
        %v11702 = vrcp.pop %v11620
        %v11703 = vrcp.pop %v11623
        %v11704 = vrcp.pop %v11626
        %v11705 = vrcp.pop %v11629
        %v11706 = vrcp.pop %v11632
        %v11707 = vrcp.pop %v11635
        %v11708 = vrcp.pop %v11638
        %v11709 = vrcp.pop %v11641
        %v11710 = vrcp.pop %v11644
        %v11711 = vrcp.pop %v11647
        %v11712 = vrcp.pop %v11650
        %v11713 = vrcp.pop %v11653
        %v11714 = vrcp.pop %v11656
        %v11715 = vrcp.pop %v11659
        %v11716 = vrcp.pop %v11662
        %v11717 = vrcp.pop %v11665
        %v11718 = vrcp.pop %v11668
        %v11719 = vrcp.pop %v11671
        %v11720 = vrcp.pop %v11674
        %v11721 = vrcp.pop %v11677
        %v11722 = vrcp.pop %v11680
        %v11723 = vrcp.pop %v11683
        %v11724 = vrcp.pop %v11686
        %v11725 = vrcp.pop %v11689
        %v11726 = vrcp.pop %v11692
        %v11727 = vrcp.pop %v11695
        %v11728 = vmul.f32 %v11473, %v11696
        %v11729 = vmul.f32 %v11475, %v11696
        %v11730 = vmul.f32 %v11477, %v11697
        %v11731 = vmul.f32 %v11479, %v11697
        %v11732 = vmul.f32 %v11481, %v11698
        %v11733 = vmul.f32 %v11483, %v11698
        %v11734 = vmul.f32 %v11485, %v11699
        %v11735 = vmul.f32 %v11487, %v11699
        %v11736 = vmul.f32 %v11489, %v11700
        %v11737 = vmul.f32 %v11491, %v11700
        %v11738 = vmul.f32 %v11493, %v11701
        %v11739 = vmul.f32 %v11495, %v11701
        %v11740 = vmul.f32 %v11497, %v11702
        %v11741 = vmul.f32 %v11499, %v11702
        %v11742 = vmul.f32 %v11501, %v11703
        %v11743 = vmul.f32 %v11503, %v11703
        %v11744 = vmul.f32 %v11505, %v11704
        %v11745 = vmul.f32 %v11507, %v11704
        %v11746 = vmul.f32 %v11509, %v11705
        %v11747 = vmul.f32 %v11511, %v11705
        %v11748 = vmul.f32 %v11513, %v11706
        %v11749 = vmul.f32 %v11515, %v11706
        %v11750 = vmul.f32 %v11517, %v11707
        %v11751 = vmul.f32 %v11519, %v11707
        %v11752 = vmul.f32 %v11521, %v11708
        %v11753 = vmul.f32 %v11523, %v11708
        %v11754 = vmul.f32 %v11525, %v11709
        %v11755 = vmul.f32 %v11527, %v11709
        %v11756 = vmul.f32 %v11529, %v11710
        %v11757 = vmul.f32 %v11531, %v11710
        %v11758 = vmul.f32 %v11533, %v11711
        %v11759 = vmul.f32 %v11535, %v11711
        %v11760 = vmul.f32 %v11537, %v11712
        %v11761 = vmul.f32 %v11539, %v11712
        %v11762 = vmul.f32 %v11541, %v11713
        %v11763 = vmul.f32 %v11543, %v11713
        %v11764 = vmul.f32 %v11545, %v11714
        %v11765 = vmul.f32 %v11547, %v11714
        %v11766 = vmul.f32 %v11549, %v11715
        %v11767 = vmul.f32 %v11551, %v11715
        %v11768 = vmul.f32 %v11553, %v11716
        %v11769 = vmul.f32 %v11555, %v11716
        %v11770 = vmul.f32 %v11557, %v11717
        %v11771 = vmul.f32 %v11559, %v11717
        %v11772 = vmul.f32 %v11561, %v11718
        %v11773 = vmul.f32 %v11563, %v11718
        %v11774 = vmul.f32 %v11565, %v11719
        %v11775 = vmul.f32 %v11567, %v11719
        %v11776 = vmul.f32 %v11569, %v11720
        %v11777 = vmul.f32 %v11571, %v11720
        %v11778 = vmul.f32 %v11573, %v11721
        %v11779 = vmul.f32 %v11575, %v11721
        %v11780 = vmul.f32 %v11577, %v11722
        %v11781 = vmul.f32 %v11579, %v11722
        %v11782 = vmul.f32 %v11581, %v11723
        %v11783 = vmul.f32 %v11583, %v11723
        %v11784 = vmul.f32 %v11585, %v11724
        %v11785 = vmul.f32 %v11587, %v11724
        %v11786 = vmul.f32 %v11589, %v11725
        %v11787 = vmul.f32 %v11591, %v11725
        %v11788 = vmul.f32 %v11593, %v11726
        %v11789 = vmul.f32 %v11595, %v11726
        %v11790 = vmul.f32 %v11597, %v11727
        %v11791 = vmul.f32 %v11599, %v11727
        %11792 = vrot.lane.b32.xlu0 %v555, 96
        %v11793 = vpop.permute.xlu0 %11792
        %11794 = vrot.lane.b32.xlu0 %v560, 96
        %v11795 = vpop.permute.xlu0 %11794
        %11796 = vrot.lane.b32.xlu0 %v565, 96
        %v11797 = vpop.permute.xlu0 %11796
        %11798 = vrot.lane.b32.xlu0 %v570, 96
        %v11799 = vpop.permute.xlu0 %11798
        %11800 = vrot.lane.b32.xlu0 %v575, 96
        %v11801 = vpop.permute.xlu0 %11800
        %11802 = vrot.lane.b32.xlu0 %v580, 96
        %v11803 = vpop.permute.xlu0 %11802
        %11804 = vrot.lane.b32.xlu0 %v585, 96
        %v11805 = vpop.permute.xlu0 %11804
        %11806 = vrot.lane.b32.xlu0 %v590, 96
        %v11807 = vpop.permute.xlu0 %11806
        %11808 = vrot.lane.b32.xlu0 %v595, 96
        %v11809 = vpop.permute.xlu0 %11808
        %11810 = vrot.lane.b32.xlu0 %v600, 96
        %v11811 = vpop.permute.xlu0 %11810
        %11812 = vrot.lane.b32.xlu0 %v605, 96
        %v11813 = vpop.permute.xlu0 %11812
        %11814 = vrot.lane.b32.xlu0 %v610, 96
        %v11815 = vpop.permute.xlu0 %11814
        %11816 = vrot.lane.b32.xlu0 %v615, 96
        %v11817 = vpop.permute.xlu0 %11816
        %11818 = vrot.lane.b32.xlu0 %v620, 96
        %v11819 = vpop.permute.xlu0 %11818
        %11820 = vrot.lane.b32.xlu0 %v625, 96
        %v11821 = vpop.permute.xlu0 %11820
        %11822 = vrot.lane.b32.xlu0 %v630, 96
        %v11823 = vpop.permute.xlu0 %11822
        %11824 = vrot.lane.b32.xlu0 %v635, 96
        %v11825 = vpop.permute.xlu0 %11824
        %11826 = vrot.lane.b32.xlu0 %v640, 96
        %v11827 = vpop.permute.xlu0 %11826
        %11828 = vrot.lane.b32.xlu0 %v645, 96
        %v11829 = vpop.permute.xlu0 %11828
        %11830 = vrot.lane.b32.xlu0 %v650, 96
        %v11831 = vpop.permute.xlu0 %11830
        %11832 = vrot.lane.b32.xlu0 %v655, 96
        %v11833 = vpop.permute.xlu0 %11832
        %11834 = vrot.lane.b32.xlu0 %v660, 96
        %v11835 = vpop.permute.xlu0 %11834
        %11836 = vrot.lane.b32.xlu0 %v665, 96
        %v11837 = vpop.permute.xlu0 %11836
        %11838 = vrot.lane.b32.xlu0 %v670, 96
        %v11839 = vpop.permute.xlu0 %11838
        %11840 = vrot.lane.b32.xlu0 %v675, 96
        %v11841 = vpop.permute.xlu0 %11840
        %11842 = vrot.lane.b32.xlu0 %v680, 96
        %v11843 = vpop.permute.xlu0 %11842
        %11844 = vrot.lane.b32.xlu0 %v685, 96
        %v11845 = vpop.permute.xlu0 %11844
        %11846 = vrot.lane.b32.xlu0 %v690, 96
        %v11847 = vpop.permute.xlu0 %11846
        %11848 = vrot.lane.b32.xlu0 %v695, 96
        %v11849 = vpop.permute.xlu0 %11848
        %11850 = vrot.lane.b32.xlu0 %v700, 96
        %v11851 = vpop.permute.xlu0 %11850
        %11852 = vrot.lane.b32.xlu0 %v705, 96
        %v11853 = vpop.permute.xlu0 %11852
        %11854 = vrot.lane.b32.xlu0 %v710, 96
        %v11855 = vpop.permute.xlu0 %11854
        %11888 = vmatprep.subr.mxu0 0.0
        %11889 = vmatpush1.msra.mxu0 %v11823
        %11890 = vmatprep.subr.mxu0 0.0
        %11891 = vmatpush1.msra.mxu0 %v11821
        %11892 = vmatprep.subr.mxu0 0.0
        %11893 = vmatpush1.msra.mxu0 %v11819
        %11894 = vmatprep.subr.mxu0 0.0
        %11895 = vmatpush1.msra.mxu0 %v11817
        %11896 = vmatprep.subr.mxu0 0.0
        %11897 = vmatpush1.msra.mxu0 %v11815
        %11898 = vmatprep.subr.mxu0 0.0
        %11899 = vmatpush1.msra.mxu0 %v11813
        %11900 = vmatprep.subr.mxu0 0.0
        %11901 = vmatpush1.msra.mxu0 %v11811
        %11902 = vmatprep.subr.mxu0 0.0
        %11903 = vmatpush1.msra.mxu0 %v11809
        %11904 = vmatprep.subr.mxu0 0.0
        %11905 = vmatpush1.msra.mxu0 %v11807
        %11906 = vmatprep.subr.mxu0 0.0
        %11907 = vmatpush1.msra.mxu0 %v11805
        %11908 = vmatprep.subr.mxu0 0.0
        %11909 = vmatpush1.msra.mxu0 %v11803
        %11910 = vmatprep.subr.mxu0 0.0
        %11911 = vmatpush1.msra.mxu0 %v11801
        %11912 = vmatprep.subr.mxu0 0.0
        %11913 = vmatpush1.msra.mxu0 %v11799
        %11914 = vmatprep.subr.mxu0 0.0
        %11915 = vmatpush1.msra.mxu0 %v11797
        %11916 = vmatprep.subr.mxu0 0.0
        %11917 = vmatpush1.msra.mxu0 %v11795
        %11918 = vmatprep.subr.mxu0 0.0
        %11919 = vmatpush1.msra.mxu0 %v11793
        %11920 = vmatprep.subr.mxu0 0.0
        %11921 = vmatpush2.msra.mxu0 %v11855
        %11922 = vmatprep.subr.mxu0 0.0
        %11923 = vmatpush2.msra.mxu0 %v11853
        %11924 = vmatprep.subr.mxu0 0.0
        %11925 = vmatpush2.msra.mxu0 %v11851
        %11926 = vmatprep.subr.mxu0 0.0
        %11927 = vmatpush2.msra.mxu0 %v11849
        %11928 = vmatprep.subr.mxu0 0.0
        %11929 = vmatpush2.msra.mxu0 %v11847
        %11930 = vmatprep.subr.mxu0 0.0
        %11931 = vmatpush2.msra.mxu0 %v11845
        %11932 = vmatprep.subr.mxu0 0.0
        %11933 = vmatpush2.msra.mxu0 %v11843
        %11934 = vmatprep.subr.mxu0 0.0
        %11935 = vmatpush2.msra.mxu0 %v11841
        %11936 = vmatprep.subr.mxu0 0.0
        %11937 = vmatpush2.msra.mxu0 %v11839
        %11938 = vmatprep.subr.mxu0 0.0
        %11939 = vmatpush2.msra.mxu0 %v11837
        %11940 = vmatprep.subr.mxu0 0.0
        %11941 = vmatpush2.msra.mxu0 %v11835
        %11942 = vmatprep.subr.mxu0 0.0
        %11943 = vmatpush2.msra.mxu0 %v11833
        %11944 = vmatprep.subr.mxu0 0.0
        %11945 = vmatpush2.msra.mxu0 %v11831
        %11946 = vmatprep.subr.mxu0 0.0
        %11947 = vmatpush2.msra.mxu0 %v11829
        %11948 = vmatprep.subr.mxu0 0.0
        %11949 = vmatpush2.msra.mxu0 %v11827
        %11950 = vmatprep.subr.mxu0 0.0
        %11951 = vmatpush2.msra.mxu0 %v11825
        %11952 = vmatprep.mubr.f32.mxu0 %v11729
        %11953 = vmatmul.mubr.f32.gmra.mxu0 %v11728
        %v11954 = vpop.f32.mrf.mxu0
        %v11955 = vadd.f32 0.0, %v11954
        %v11956 = vpop.f32.mrf.mxu0
        %11957 = vmatprep.mubr.f32.mxu0 %v11731
        %11958 = vmatmul.mubr.f32.gmra.mxu0 %v11730
        %v11959 = vpop.f32.mrf.mxu0
        %v11960 = vadd.f32 0.0, %v11959
        %v11961 = vpop.f32.mrf.mxu0
        %11962 = vmatprep.mubr.f32.mxu0 %v11733
        %11963 = vmatmul.mubr.f32.gmra.mxu0 %v11732
        %v11964 = vpop.f32.mrf.mxu0
        %v11965 = vadd.f32 0.0, %v11964
        %v11966 = vpop.f32.mrf.mxu0
        %11967 = vmatprep.mubr.f32.mxu0 %v11735
        %11968 = vmatmul.mubr.f32.gmra.mxu0 %v11734
        %v11969 = vpop.f32.mrf.mxu0
        %v11970 = vadd.f32 0.0, %v11969
        %v11971 = vpop.f32.mrf.mxu0
        %11972 = vmatprep.mubr.f32.mxu0 %v11737
        %11973 = vmatmul.mubr.f32.gmra.mxu0 %v11736
        %v11974 = vpop.f32.mrf.mxu0
        %v11975 = vadd.f32 0.0, %v11974
        %v11976 = vpop.f32.mrf.mxu0
        %11977 = vmatprep.mubr.f32.mxu0 %v11739
        %11978 = vmatmul.mubr.f32.gmra.mxu0 %v11738
        %v11979 = vpop.f32.mrf.mxu0
        %v11980 = vadd.f32 0.0, %v11979
        %v11981 = vpop.f32.mrf.mxu0
        %11982 = vmatprep.mubr.f32.mxu0 %v11741
        %11983 = vmatmul.mubr.f32.gmra.mxu0 %v11740
        %v11984 = vpop.f32.mrf.mxu0
        %v11985 = vadd.f32 0.0, %v11984
        %v11986 = vpop.f32.mrf.mxu0
        %11987 = vmatprep.mubr.f32.mxu0 %v11743
        %11988 = vmatmul.mubr.f32.gmra.mxu0 %v11742
        %v11989 = vpop.f32.mrf.mxu0
        %v11990 = vadd.f32 0.0, %v11989
        %v11991 = vpop.f32.mrf.mxu0
        %11992 = vmatprep.mubr.f32.mxu0 %v11745
        %11993 = vmatmul.mubr.f32.gmra.mxu0 %v11744
        %v11994 = vpop.f32.mrf.mxu0
        %v11995 = vadd.f32 0.0, %v11994
        %v11996 = vpop.f32.mrf.mxu0
        %11997 = vmatprep.mubr.f32.mxu0 %v11747
        %11998 = vmatmul.mubr.f32.gmra.mxu0 %v11746
        %v11999 = vpop.f32.mrf.mxu0
        %v12000 = vadd.f32 0.0, %v11999
        %v12001 = vpop.f32.mrf.mxu0
        %12002 = vmatprep.mubr.f32.mxu0 %v11749
        %12003 = vmatmul.mubr.f32.gmra.mxu0 %v11748
        %v12004 = vpop.f32.mrf.mxu0
        %v12005 = vadd.f32 0.0, %v12004
        %v12006 = vpop.f32.mrf.mxu0
        %12007 = vmatprep.mubr.f32.mxu0 %v11751
        %12008 = vmatmul.mubr.f32.gmra.mxu0 %v11750
        %v12009 = vpop.f32.mrf.mxu0
        %v12010 = vadd.f32 0.0, %v12009
        %v12011 = vpop.f32.mrf.mxu0
        %12012 = vmatprep.mubr.f32.mxu0 %v11753
        %12013 = vmatmul.mubr.f32.gmra.mxu0 %v11752
        %v12014 = vpop.f32.mrf.mxu0
        %v12015 = vadd.f32 0.0, %v12014
        %v12016 = vpop.f32.mrf.mxu0
        %12017 = vmatprep.mubr.f32.mxu0 %v11755
        %12018 = vmatmul.mubr.f32.gmra.mxu0 %v11754
        %v12019 = vpop.f32.mrf.mxu0
        %v12020 = vadd.f32 0.0, %v12019
        %v12021 = vpop.f32.mrf.mxu0
        %12022 = vmatprep.mubr.f32.mxu0 %v11757
        %12023 = vmatmul.mubr.f32.gmra.mxu0 %v11756
        %v12024 = vpop.f32.mrf.mxu0
        %v12025 = vadd.f32 0.0, %v12024
        %v12026 = vpop.f32.mrf.mxu0
        %12027 = vmatprep.mubr.f32.mxu0 %v11759
        %12028 = vmatmul.mubr.f32.gmra.mxu0 %v11758
        %v12029 = vpop.f32.mrf.mxu0
        %v12030 = vadd.f32 0.0, %v12029
        %v12031 = vpop.f32.mrf.mxu0
        %12032 = vmatprep.mubr.f32.mxu0 %v11761
        %12033 = vmatmul.mubr.f32.gmra.mxu0 %v11760
        %v12034 = vpop.f32.mrf.mxu0
        %v12035 = vadd.f32 0.0, %v12034
        %v12036 = vpop.f32.mrf.mxu0
        %12037 = vmatprep.mubr.f32.mxu0 %v11763
        %12038 = vmatmul.mubr.f32.gmra.mxu0 %v11762
        %v12039 = vpop.f32.mrf.mxu0
        %v12040 = vadd.f32 0.0, %v12039
        %v12041 = vpop.f32.mrf.mxu0
        %12042 = vmatprep.mubr.f32.mxu0 %v11765
        %12043 = vmatmul.mubr.f32.gmra.mxu0 %v11764
        %v12044 = vpop.f32.mrf.mxu0
        %v12045 = vadd.f32 0.0, %v12044
        %v12046 = vpop.f32.mrf.mxu0
        %12047 = vmatprep.mubr.f32.mxu0 %v11767
        %12048 = vmatmul.mubr.f32.gmra.mxu0 %v11766
        %v12049 = vpop.f32.mrf.mxu0
        %v12050 = vadd.f32 0.0, %v12049
        %v12051 = vpop.f32.mrf.mxu0
        %12052 = vmatprep.mubr.f32.mxu0 %v11769
        %12053 = vmatmul.mubr.f32.gmra.mxu0 %v11768
        %v12054 = vpop.f32.mrf.mxu0
        %v12055 = vadd.f32 0.0, %v12054
        %v12056 = vpop.f32.mrf.mxu0
        %12057 = vmatprep.mubr.f32.mxu0 %v11771
        %12058 = vmatmul.mubr.f32.gmra.mxu0 %v11770
        %v12059 = vpop.f32.mrf.mxu0
        %v12060 = vadd.f32 0.0, %v12059
        %v12061 = vpop.f32.mrf.mxu0
        %12062 = vmatprep.mubr.f32.mxu0 %v11773
        %12063 = vmatmul.mubr.f32.gmra.mxu0 %v11772
        %v12064 = vpop.f32.mrf.mxu0
        %v12065 = vadd.f32 0.0, %v12064
        %v12066 = vpop.f32.mrf.mxu0
        %12067 = vmatprep.mubr.f32.mxu0 %v11775
        %12068 = vmatmul.mubr.f32.gmra.mxu0 %v11774
        %v12069 = vpop.f32.mrf.mxu0
        %v12070 = vadd.f32 0.0, %v12069
        %v12071 = vpop.f32.mrf.mxu0
        %12072 = vmatprep.mubr.f32.mxu0 %v11777
        %12073 = vmatmul.mubr.f32.gmra.mxu0 %v11776
        %v12074 = vpop.f32.mrf.mxu0
        %v12075 = vadd.f32 0.0, %v12074
        %v12076 = vpop.f32.mrf.mxu0
        %12077 = vmatprep.mubr.f32.mxu0 %v11779
        %12078 = vmatmul.mubr.f32.gmra.mxu0 %v11778
        %v12079 = vpop.f32.mrf.mxu0
        %v12080 = vadd.f32 0.0, %v12079
        %v12081 = vpop.f32.mrf.mxu0
        %12082 = vmatprep.mubr.f32.mxu0 %v11781
        %12083 = vmatmul.mubr.f32.gmra.mxu0 %v11780
        %v12084 = vpop.f32.mrf.mxu0
        %v12085 = vadd.f32 0.0, %v12084
        %v12086 = vpop.f32.mrf.mxu0
        %12087 = vmatprep.mubr.f32.mxu0 %v11783
        %12088 = vmatmul.mubr.f32.gmra.mxu0 %v11782
        %v12089 = vpop.f32.mrf.mxu0
        %v12090 = vadd.f32 0.0, %v12089
        %v12091 = vpop.f32.mrf.mxu0
        %12092 = vmatprep.mubr.f32.mxu0 %v11785
        %12093 = vmatmul.mubr.f32.gmra.mxu0 %v11784
        %v12094 = vpop.f32.mrf.mxu0
        %v12095 = vadd.f32 0.0, %v12094
        %v12096 = vpop.f32.mrf.mxu0
        %12097 = vmatprep.mubr.f32.mxu0 %v11787
        %12098 = vmatmul.mubr.f32.gmra.mxu0 %v11786
        %v12099 = vpop.f32.mrf.mxu0
        %v12100 = vadd.f32 0.0, %v12099
        %v12101 = vpop.f32.mrf.mxu0
        %12102 = vmatprep.mubr.f32.mxu0 %v11789
        %12103 = vmatmul.mubr.f32.gmra.mxu0 %v11788
        %v12104 = vpop.f32.mrf.mxu0
        %v12105 = vadd.f32 0.0, %v12104
        %v12106 = vpop.f32.mrf.mxu0
        %12107 = vmatprep.mubr.f32.mxu0 %v11791
        %12108 = vmatmul.mubr.f32.gmra.mxu0 %v11790
        %v12109 = vpop.f32.mrf.mxu0
        %v12110 = vadd.f32 0.0, %v12109
        %v12111 = vpop.f32.mrf.mxu0
        %12112 = vdwg.mxu0
        %v12113 = vld [vmem:[#allocation2] sm:$0xff]
        %v12114 = vld [vmem:[#allocation2 + $0x8] sm:$0xff]
        %v12115 = vld [vmem:[#allocation2 + $0x10] sm:$0xff]
        %v12116 = vld [vmem:[#allocation2 + $0x18] sm:$0xff]
        %v12117 = vld [vmem:[#allocation2 + $0x20] sm:$0xff]
        %v12118 = vld [vmem:[#allocation2 + $0x28] sm:$0xff]
        %v12119 = vld [vmem:[#allocation2 + $0x30] sm:$0xff]
        %v12120 = vld [vmem:[#allocation2 + $0x38] sm:$0xff]
        %v12121 = vld [vmem:[#allocation2 + $0x40] sm:$0xff]
        %v12122 = vld [vmem:[#allocation2 + $0x48] sm:$0xff]
        %v12123 = vld [vmem:[#allocation2 + $0x50] sm:$0xff]
        %v12124 = vld [vmem:[#allocation2 + $0x58] sm:$0xff]
        %v12125 = vld [vmem:[#allocation2 + $0x60] sm:$0xff]
        %v12126 = vld [vmem:[#allocation2 + $0x68] sm:$0xff]
        %v12127 = vld [vmem:[#allocation2 + $0x70] sm:$0xff]
        %v12128 = vld [vmem:[#allocation2 + $0x78] sm:$0xff]
        %v12129 = vld [vmem:[#allocation2 + $0x80] sm:$0xff]
        %v12130 = vld [vmem:[#allocation2 + $0x88] sm:$0xff]
        %v12131 = vld [vmem:[#allocation2 + $0x90] sm:$0xff]
        %v12132 = vld [vmem:[#allocation2 + $0x98] sm:$0xff]
        %v12133 = vld [vmem:[#allocation2 + $0xa0] sm:$0xff]
        %v12134 = vld [vmem:[#allocation2 + $0xa8] sm:$0xff]
        %v12135 = vld [vmem:[#allocation2 + $0xb0] sm:$0xff]
        %v12136 = vld [vmem:[#allocation2 + $0xb8] sm:$0xff]
        %v12137 = vld [vmem:[#allocation2 + $0xc0] sm:$0xff]
        %v12138 = vld [vmem:[#allocation2 + $0xc8] sm:$0xff]
        %v12139 = vld [vmem:[#allocation2 + $0xd0] sm:$0xff]
        %v12140 = vld [vmem:[#allocation2 + $0xd8] sm:$0xff]
        %v12141 = vld [vmem:[#allocation2 + $0xe0] sm:$0xff]
        %v12142 = vld [vmem:[#allocation2 + $0xe8] sm:$0xff]
        %v12143 = vld [vmem:[#allocation2 + $0xf0] sm:$0xff]
        %v12144 = vld [vmem:[#allocation2 + $0xf8] sm:$0xff]
        %v12145 = vld [vmem:[%s396] sm:$0xff]
        %v12146 = vld [vmem:[%s396 + $0x8] sm:$0xff]
        %v12148 = vsel %vm777, %v11955, 0
        %v12151 = vsel %vm777, %v11960, 0
        %v12154 = vsel %vm777, %v11965, 0
        %v12157 = vsel %vm777, %v11970, 0
        %v12160 = vsel %vm777, %v11975, 0
        %v12163 = vsel %vm777, %v11980, 0
        %v12166 = vsel %vm777, %v11985, 0
        %v12169 = vsel %vm777, %v11990, 0
        %v12172 = vsel %vm777, %v11995, 0
        %v12175 = vsel %vm777, %v12000, 0
        %v12178 = vsel %vm777, %v12005, 0
        %v12181 = vsel %vm777, %v12010, 0
        %v12184 = vsel %vm777, %v12015, 0
        %v12187 = vsel %vm777, %v12020, 0
        %v12190 = vsel %vm777, %v12025, 0
        %v12193 = vsel %vm777, %v12030, 0
        %v12196 = vsel %vm777, %v12035, 0
        %v12199 = vsel %vm777, %v12040, 0
        %v12202 = vsel %vm777, %v12045, 0
        %v12205 = vsel %vm777, %v12050, 0
        %v12208 = vsel %vm777, %v12055, 0
        %v12211 = vsel %vm777, %v12060, 0
        %v12214 = vsel %vm777, %v12065, 0
        %v12217 = vsel %vm777, %v12070, 0
        %v12220 = vsel %vm777, %v12075, 0
        %v12223 = vsel %vm777, %v12080, 0
        %v12226 = vsel %vm777, %v12085, 0
        %v12229 = vsel %vm777, %v12090, 0
        %v12232 = vsel %vm777, %v12095, 0
        %v12235 = vsel %vm777, %v12100, 0
        %v12238 = vsel %vm777, %v12105, 0
        %v12241 = vsel %vm777, %v12110, 0
        %12243 = vmatprep.subr.mxu0 0.0
        %12244 = vmatpush1.msra.mxu0 0.0
        %12245 = vmatprep.subr.mxu0 0.0
        %12246 = vmatpush1.msra.mxu0 0.0
        %12247 = vmatprep.subr.mxu0 0.0
        %12248 = vmatpush1.msra.mxu0 0.0
        %12249 = vmatprep.subr.mxu0 0.0
        %12250 = vmatpush1.msra.mxu0 0.0
        %12251 = vmatprep.subr.mxu0 0.0
        %12252 = vmatpush1.msra.mxu0 0.0
        %12253 = vmatprep.subr.mxu0 0.0
        %12254 = vmatpush1.msra.mxu0 0.0
        %12255 = vmatprep.subr.mxu0 0.0
        %12256 = vmatpush1.msra.mxu0 0.0
        %12257 = vmatprep.subr.mxu0 0.0
        %12258 = vmatpush1.msra.mxu0 0.0
        %12259 = vmatprep.subr.mxu0 0.0
        %12260 = vmatpush1.msra.mxu0 0.0
        %12261 = vmatprep.subr.mxu0 0.0
        %12262 = vmatpush1.msra.mxu0 0.0
        %12263 = vmatprep.subr.mxu0 0.0
        %12264 = vmatpush1.msra.mxu0 0.0
        %12265 = vmatprep.subr.mxu0 0.0
        %12266 = vmatpush1.msra.mxu0 0.0
        %12267 = vmatprep.subr.mxu0 0.0
        %12268 = vmatpush1.msra.mxu0 0.0
        %12269 = vmatprep.subr.mxu0 0.0
        %12270 = vmatpush1.msra.mxu0 0.0
        %12271 = vmatprep.subr.mxu0 0.0
        %12272 = vmatpush1.msra.mxu0 %v12146
        %12273 = vmatprep.subr.mxu0 0.0
        %12274 = vmatpush1.msra.mxu0 %v12145
        %12275 = vmatprep.subr.mxu0 0.0
        %12276 = vmatpush2.msra.mxu0 0.0
        %12277 = vmatprep.subr.mxu0 0.0
        %12278 = vmatpush2.msra.mxu0 0.0
        %12279 = vmatprep.subr.mxu0 0.0
        %12280 = vmatpush2.msra.mxu0 0.0
        %12281 = vmatprep.subr.mxu0 0.0
        %12282 = vmatpush2.msra.mxu0 0.0
        %12283 = vmatprep.subr.mxu0 0.0
        %12284 = vmatpush2.msra.mxu0 0.0
        %12285 = vmatprep.subr.mxu0 0.0
        %12286 = vmatpush2.msra.mxu0 0.0
        %12287 = vmatprep.subr.mxu0 0.0
        %12288 = vmatpush2.msra.mxu0 0.0
        %12289 = vmatprep.subr.mxu0 0.0
        %12290 = vmatpush2.msra.mxu0 0.0
        %12291 = vmatprep.subr.mxu0 0.0
        %12292 = vmatpush2.msra.mxu0 0.0
        %12293 = vmatprep.subr.mxu0 0.0
        %12294 = vmatpush2.msra.mxu0 0.0
        %12295 = vmatprep.subr.mxu0 0.0
        %12296 = vmatpush2.msra.mxu0 0.0
        %12297 = vmatprep.subr.mxu0 0.0
        %12298 = vmatpush2.msra.mxu0 0.0
        %12299 = vmatprep.subr.mxu0 0.0
        %12300 = vmatpush2.msra.mxu0 0.0
        %12301 = vmatprep.subr.mxu0 0.0
        %12302 = vmatpush2.msra.mxu0 0.0
        %12303 = vmatprep.subr.mxu0 0.0
        %12304 = vmatpush2.msra.mxu0 0.0
        %12305 = vmatprep.subr.mxu0 0.0
        %12306 = vmatpush2.msra.mxu0 0.0
        %12307 = vmatprep.mubr.f32.mxu0 0.0
        %12308 = vmatmul.mubr.f32.gmra.mxu0 %v12148
        %v12309 = vpop.f32.mrf.mxu0
        %v12310 = vadd.f32 0.0, %v12309
        %v12311 = vpop.f32.mrf.mxu0
        %12312 = vmatprep.mubr.f32.mxu0 0.0
        %12313 = vmatmul.mubr.f32.gmra.mxu0 %v12151
        %v12314 = vpop.f32.mrf.mxu0
        %v12315 = vadd.f32 0.0, %v12314
        %v12316 = vpop.f32.mrf.mxu0
        %12317 = vmatprep.mubr.f32.mxu0 0.0
        %12318 = vmatmul.mubr.f32.gmra.mxu0 %v12154
        %v12319 = vpop.f32.mrf.mxu0
        %v12320 = vadd.f32 0.0, %v12319
        %v12321 = vpop.f32.mrf.mxu0
        %12322 = vmatprep.mubr.f32.mxu0 0.0
        %12323 = vmatmul.mubr.f32.gmra.mxu0 %v12157
        %v12324 = vpop.f32.mrf.mxu0
        %v12325 = vadd.f32 0.0, %v12324
        %v12326 = vpop.f32.mrf.mxu0
        %12327 = vmatprep.mubr.f32.mxu0 0.0
        %12328 = vmatmul.mubr.f32.gmra.mxu0 %v12160
        %v12329 = vpop.f32.mrf.mxu0
        %v12330 = vadd.f32 0.0, %v12329
        %v12331 = vpop.f32.mrf.mxu0
        %12332 = vmatprep.mubr.f32.mxu0 0.0
        %12333 = vmatmul.mubr.f32.gmra.mxu0 %v12163
        %v12334 = vpop.f32.mrf.mxu0
        %v12335 = vadd.f32 0.0, %v12334
        %v12336 = vpop.f32.mrf.mxu0
        %12337 = vmatprep.mubr.f32.mxu0 0.0
        %12338 = vmatmul.mubr.f32.gmra.mxu0 %v12166
        %v12339 = vpop.f32.mrf.mxu0
        %v12340 = vadd.f32 0.0, %v12339
        %v12341 = vpop.f32.mrf.mxu0
        %12342 = vmatprep.mubr.f32.mxu0 0.0
        %12343 = vmatmul.mubr.f32.gmra.mxu0 %v12169
        %v12344 = vpop.f32.mrf.mxu0
        %v12345 = vadd.f32 0.0, %v12344
        %v12346 = vpop.f32.mrf.mxu0
        %12347 = vmatprep.mubr.f32.mxu0 0.0
        %12348 = vmatmul.mubr.f32.gmra.mxu0 %v12172
        %v12349 = vpop.f32.mrf.mxu0
        %v12350 = vadd.f32 0.0, %v12349
        %v12351 = vpop.f32.mrf.mxu0
        %12352 = vmatprep.mubr.f32.mxu0 0.0
        %12353 = vmatmul.mubr.f32.gmra.mxu0 %v12175
        %v12354 = vpop.f32.mrf.mxu0
        %v12355 = vadd.f32 0.0, %v12354
        %v12356 = vpop.f32.mrf.mxu0
        %12357 = vmatprep.mubr.f32.mxu0 0.0
        %12358 = vmatmul.mubr.f32.gmra.mxu0 %v12178
        %v12359 = vpop.f32.mrf.mxu0
        %v12360 = vadd.f32 0.0, %v12359
        %v12361 = vpop.f32.mrf.mxu0
        %12362 = vmatprep.mubr.f32.mxu0 0.0
        %12363 = vmatmul.mubr.f32.gmra.mxu0 %v12181
        %v12364 = vpop.f32.mrf.mxu0
        %v12365 = vadd.f32 0.0, %v12364
        %v12366 = vpop.f32.mrf.mxu0
        %12367 = vmatprep.mubr.f32.mxu0 0.0
        %12368 = vmatmul.mubr.f32.gmra.mxu0 %v12184
        %v12369 = vpop.f32.mrf.mxu0
        %v12370 = vadd.f32 0.0, %v12369
        %v12371 = vpop.f32.mrf.mxu0
        %12372 = vmatprep.mubr.f32.mxu0 0.0
        %12373 = vmatmul.mubr.f32.gmra.mxu0 %v12187
        %v12374 = vpop.f32.mrf.mxu0
        %v12375 = vadd.f32 0.0, %v12374
        %v12376 = vpop.f32.mrf.mxu0
        %12377 = vmatprep.mubr.f32.mxu0 0.0
        %12378 = vmatmul.mubr.f32.gmra.mxu0 %v12190
        %v12379 = vpop.f32.mrf.mxu0
        %v12380 = vadd.f32 0.0, %v12379
        %v12381 = vpop.f32.mrf.mxu0
        %12382 = vmatprep.mubr.f32.mxu0 0.0
        %12383 = vmatmul.mubr.f32.gmra.mxu0 %v12193
        %v12384 = vpop.f32.mrf.mxu0
        %v12385 = vadd.f32 0.0, %v12384
        %v12386 = vpop.f32.mrf.mxu0
        %12387 = vmatprep.mubr.f32.mxu0 0.0
        %12388 = vmatmul.mubr.f32.gmra.mxu0 %v12196
        %v12389 = vpop.f32.mrf.mxu0
        %v12390 = vadd.f32 0.0, %v12389
        %v12391 = vpop.f32.mrf.mxu0
        %12392 = vmatprep.mubr.f32.mxu0 0.0
        %12393 = vmatmul.mubr.f32.gmra.mxu0 %v12199
        %v12394 = vpop.f32.mrf.mxu0
        %v12395 = vadd.f32 0.0, %v12394
        %v12396 = vpop.f32.mrf.mxu0
        %12397 = vmatprep.mubr.f32.mxu0 0.0
        %12398 = vmatmul.mubr.f32.gmra.mxu0 %v12202
        %v12399 = vpop.f32.mrf.mxu0
        %v12400 = vadd.f32 0.0, %v12399
        %v12401 = vpop.f32.mrf.mxu0
        %12402 = vmatprep.mubr.f32.mxu0 0.0
        %12403 = vmatmul.mubr.f32.gmra.mxu0 %v12205
        %v12404 = vpop.f32.mrf.mxu0
        %v12405 = vadd.f32 0.0, %v12404
        %v12406 = vpop.f32.mrf.mxu0
        %12407 = vmatprep.mubr.f32.mxu0 0.0
        %12408 = vmatmul.mubr.f32.gmra.mxu0 %v12208
        %v12409 = vpop.f32.mrf.mxu0
        %v12410 = vadd.f32 0.0, %v12409
        %v12411 = vpop.f32.mrf.mxu0
        %12412 = vmatprep.mubr.f32.mxu0 0.0
        %12413 = vmatmul.mubr.f32.gmra.mxu0 %v12211
        %v12414 = vpop.f32.mrf.mxu0
        %v12415 = vadd.f32 0.0, %v12414
        %v12416 = vpop.f32.mrf.mxu0
        %12417 = vmatprep.mubr.f32.mxu0 0.0
        %12418 = vmatmul.mubr.f32.gmra.mxu0 %v12214
        %v12419 = vpop.f32.mrf.mxu0
        %v12420 = vadd.f32 0.0, %v12419
        %v12421 = vpop.f32.mrf.mxu0
        %12422 = vmatprep.mubr.f32.mxu0 0.0
        %12423 = vmatmul.mubr.f32.gmra.mxu0 %v12217
        %v12424 = vpop.f32.mrf.mxu0
        %v12425 = vadd.f32 0.0, %v12424
        %v12426 = vpop.f32.mrf.mxu0
        %12427 = vmatprep.mubr.f32.mxu0 0.0
        %12428 = vmatmul.mubr.f32.gmra.mxu0 %v12220
        %v12429 = vpop.f32.mrf.mxu0
        %v12430 = vadd.f32 0.0, %v12429
        %v12431 = vpop.f32.mrf.mxu0
        %12432 = vmatprep.mubr.f32.mxu0 0.0
        %12433 = vmatmul.mubr.f32.gmra.mxu0 %v12223
        %v12434 = vpop.f32.mrf.mxu0
        %v12435 = vadd.f32 0.0, %v12434
        %v12436 = vpop.f32.mrf.mxu0
        %12437 = vmatprep.mubr.f32.mxu0 0.0
        %12438 = vmatmul.mubr.f32.gmra.mxu0 %v12226
        %v12439 = vpop.f32.mrf.mxu0
        %v12440 = vadd.f32 0.0, %v12439
        %v12441 = vpop.f32.mrf.mxu0
        %12442 = vmatprep.mubr.f32.mxu0 0.0
        %12443 = vmatmul.mubr.f32.gmra.mxu0 %v12229
        %v12444 = vpop.f32.mrf.mxu0
        %v12445 = vadd.f32 0.0, %v12444
        %v12446 = vpop.f32.mrf.mxu0
        %12447 = vmatprep.mubr.f32.mxu0 0.0
        %12448 = vmatmul.mubr.f32.gmra.mxu0 %v12232
        %v12449 = vpop.f32.mrf.mxu0
        %v12450 = vadd.f32 0.0, %v12449
        %v12451 = vpop.f32.mrf.mxu0
        %12452 = vmatprep.mubr.f32.mxu0 0.0
        %12453 = vmatmul.mubr.f32.gmra.mxu0 %v12235
        %v12454 = vpop.f32.mrf.mxu0
        %v12455 = vadd.f32 0.0, %v12454
        %v12456 = vpop.f32.mrf.mxu0
        %12457 = vmatprep.mubr.f32.mxu0 0.0
        %12458 = vmatmul.mubr.f32.gmra.mxu0 %v12238
        %v12459 = vpop.f32.mrf.mxu0
        %v12460 = vadd.f32 0.0, %v12459
        %v12461 = vpop.f32.mrf.mxu0
        %12462 = vmatprep.mubr.f32.mxu0 0.0
        %12463 = vmatmul.mubr.f32.gmra.mxu0 %v12241
        %v12464 = vpop.f32.mrf.mxu0
        %v12465 = vadd.f32 0.0, %v12464
        %v12466 = vpop.f32.mrf.mxu0
        %12467 = vdwg.mxu0
        %v12468 = vadd.f32 %v12113, %v12310
        %v12469 = vadd.f32 %v12114, %v12315
        %v12470 = vadd.f32 %v12115, %v12320
        %v12471 = vadd.f32 %v12116, %v12325
        %v12472 = vadd.f32 %v12117, %v12330
        %v12473 = vadd.f32 %v12118, %v12335
        %v12474 = vadd.f32 %v12119, %v12340
        %v12475 = vadd.f32 %v12120, %v12345
        %v12476 = vadd.f32 %v12121, %v12350
        %v12477 = vadd.f32 %v12122, %v12355
        %v12478 = vadd.f32 %v12123, %v12360
        %v12479 = vadd.f32 %v12124, %v12365
        %v12480 = vadd.f32 %v12125, %v12370
        %v12481 = vadd.f32 %v12126, %v12375
        %v12482 = vadd.f32 %v12127, %v12380
        %v12483 = vadd.f32 %v12128, %v12385
        %v12484 = vadd.f32 %v12129, %v12390
        %v12485 = vadd.f32 %v12130, %v12395
        %v12486 = vadd.f32 %v12131, %v12400
        %v12487 = vadd.f32 %v12132, %v12405
        %v12488 = vadd.f32 %v12133, %v12410
        %v12489 = vadd.f32 %v12134, %v12415
        %v12490 = vadd.f32 %v12135, %v12420
        %v12491 = vadd.f32 %v12136, %v12425
        %v12492 = vadd.f32 %v12137, %v12430
        %v12493 = vadd.f32 %v12138, %v12435
        %v12494 = vadd.f32 %v12139, %v12440
        %v12495 = vadd.f32 %v12140, %v12445
        %v12496 = vadd.f32 %v12141, %v12450
        %v12497 = vadd.f32 %v12142, %v12455
        %v12498 = vadd.f32 %v12143, %v12460
        %v12499 = vadd.f32 %v12144, %v12465
        %12500 = vst [vmem:[#allocation2] sm:$0xff] %v12468
        %12501 = vst [vmem:[#allocation2 + $0x8] sm:$0xff] %v12469
        %12502 = vst [vmem:[#allocation2 + $0x10] sm:$0xff] %v12470
        %12503 = vst [vmem:[#allocation2 + $0x18] sm:$0xff] %v12471
        %12504 = vst [vmem:[#allocation2 + $0x20] sm:$0xff] %v12472
        %12505 = vst [vmem:[#allocation2 + $0x28] sm:$0xff] %v12473
        %12506 = vst [vmem:[#allocation2 + $0x30] sm:$0xff] %v12474
        %12507 = vst [vmem:[#allocation2 + $0x38] sm:$0xff] %v12475
        %12508 = vst [vmem:[#allocation2 + $0x40] sm:$0xff] %v12476
        %12509 = vst [vmem:[#allocation2 + $0x48] sm:$0xff] %v12477
        %12510 = vst [vmem:[#allocation2 + $0x50] sm:$0xff] %v12478
        %12511 = vst [vmem:[#allocation2 + $0x58] sm:$0xff] %v12479
        %12512 = vst [vmem:[#allocation2 + $0x60] sm:$0xff] %v12480
        %12513 = vst [vmem:[#allocation2 + $0x68] sm:$0xff] %v12481
        %12514 = vst [vmem:[#allocation2 + $0x70] sm:$0xff] %v12482
        %12515 = vst [vmem:[#allocation2 + $0x78] sm:$0xff] %v12483
        %12516 = vst [vmem:[#allocation2 + $0x80] sm:$0xff] %v12484
        %12517 = vst [vmem:[#allocation2 + $0x88] sm:$0xff] %v12485
        %12518 = vst [vmem:[#allocation2 + $0x90] sm:$0xff] %v12486
        %12519 = vst [vmem:[#allocation2 + $0x98] sm:$0xff] %v12487
        %12520 = vst [vmem:[#allocation2 + $0xa0] sm:$0xff] %v12488
        %12521 = vst [vmem:[#allocation2 + $0xa8] sm:$0xff] %v12489
        %12522 = vst [vmem:[#allocation2 + $0xb0] sm:$0xff] %v12490
        %12523 = vst [vmem:[#allocation2 + $0xb8] sm:$0xff] %v12491
        %12524 = vst [vmem:[#allocation2 + $0xc0] sm:$0xff] %v12492
        %12525 = vst [vmem:[#allocation2 + $0xc8] sm:$0xff] %v12493
        %12526 = vst [vmem:[#allocation2 + $0xd0] sm:$0xff] %v12494
        %12527 = vst [vmem:[#allocation2 + $0xd8] sm:$0xff] %v12495
        %12528 = vst [vmem:[#allocation2 + $0xe0] sm:$0xff] %v12496
        %12529 = vst [vmem:[#allocation2 + $0xe8] sm:$0xff] %v12497
        %12530 = vst [vmem:[#allocation2 + $0xf0] sm:$0xff] %v12498
        %12531 = vst [vmem:[#allocation2 + $0xf8] sm:$0xff] %v12499
        %p12532 = scmp.eq.s32.totalorder %s28, 7
        // Predicated region
        $region61: #{tpu_custom_call.1} parent=55 // pred_check
          %p12533 = pneg %p12532
        $region62: #{tpu_custom_call.1} parent=55 // pred_check_branch
          %12535 = sbr.rel (%p12533) target = $region64
        $region63: #{tpu_custom_call.1} parent=55 // pred_region
          %v12536 = vld [vmem:[#allocation2] sm:$0xff]
          %v12537 = vld [vmem:[#allocation2 + $0x8] sm:$0xff]
          %v12538 = vld [vmem:[#allocation2 + $0x10] sm:$0xff]
          %v12539 = vld [vmem:[#allocation2 + $0x18] sm:$0xff]
          %v12540 = vld [vmem:[#allocation2 + $0x20] sm:$0xff]
          %v12541 = vld [vmem:[#allocation2 + $0x28] sm:$0xff]
          %v12542 = vld [vmem:[#allocation2 + $0x30] sm:$0xff]
          %v12543 = vld [vmem:[#allocation2 + $0x38] sm:$0xff]
          %v12544 = vld [vmem:[#allocation2 + $0x40] sm:$0xff]
          %v12545 = vld [vmem:[#allocation2 + $0x48] sm:$0xff]
          %v12546 = vld [vmem:[#allocation2 + $0x50] sm:$0xff]
          %v12547 = vld [vmem:[#allocation2 + $0x58] sm:$0xff]
          %v12548 = vld [vmem:[#allocation2 + $0x60] sm:$0xff]
          %v12549 = vld [vmem:[#allocation2 + $0x68] sm:$0xff]
          %v12550 = vld [vmem:[#allocation2 + $0x70] sm:$0xff]
          %v12551 = vld [vmem:[#allocation2 + $0x78] sm:$0xff]
          %v12552 = vld [vmem:[#allocation2 + $0x80] sm:$0xff]
          %v12553 = vld [vmem:[#allocation2 + $0x88] sm:$0xff]
          %v12554 = vld [vmem:[#allocation2 + $0x90] sm:$0xff]
          %v12555 = vld [vmem:[#allocation2 + $0x98] sm:$0xff]
          %v12556 = vld [vmem:[#allocation2 + $0xa0] sm:$0xff]
          %v12557 = vld [vmem:[#allocation2 + $0xa8] sm:$0xff]
          %v12558 = vld [vmem:[#allocation2 + $0xb0] sm:$0xff]
          %v12559 = vld [vmem:[#allocation2 + $0xb8] sm:$0xff]
          %v12560 = vld [vmem:[#allocation2 + $0xc0] sm:$0xff]
          %v12561 = vld [vmem:[#allocation2 + $0xc8] sm:$0xff]
          %v12562 = vld [vmem:[#allocation2 + $0xd0] sm:$0xff]
          %v12563 = vld [vmem:[#allocation2 + $0xd8] sm:$0xff]
          %v12564 = vld [vmem:[#allocation2 + $0xe0] sm:$0xff]
          %v12565 = vld [vmem:[#allocation2 + $0xe8] sm:$0xff]
          %v12566 = vld [vmem:[#allocation2 + $0xf0] sm:$0xff]
          %v12567 = vld [vmem:[#allocation2 + $0xf8] sm:$0xff]
          %v12568 = vld [vmem:[%s8] sm:$0x1]
          %v12570 = vlaneseq
          %v12571 = vshrl.u32 %v12570, 7
          %v12572 = vsub.s32 0, %v12571
          %v12573 = vrot.slane %v12568, %v12572
          %v12575 = vadd.f32 %v12536, %v12573
          %v12576 = vadd.f32 %v12537, %v12573
          %v12577 = vadd.f32 %v12538, %v12573
          %v12578 = vadd.f32 %v12539, %v12573
          %v12579 = vadd.f32 %v12540, %v12573
          %v12580 = vadd.f32 %v12541, %v12573
          %v12581 = vadd.f32 %v12542, %v12573
          %v12582 = vadd.f32 %v12543, %v12573
          %v12583 = vadd.f32 %v12544, %v12573
          %v12584 = vadd.f32 %v12545, %v12573
          %v12585 = vadd.f32 %v12546, %v12573
          %v12586 = vadd.f32 %v12547, %v12573
          %v12587 = vadd.f32 %v12548, %v12573
          %v12588 = vadd.f32 %v12549, %v12573
          %v12589 = vadd.f32 %v12550, %v12573
          %v12590 = vadd.f32 %v12551, %v12573
          %v12591 = vadd.f32 %v12552, %v12573
          %v12592 = vadd.f32 %v12553, %v12573
          %v12593 = vadd.f32 %v12554, %v12573
          %v12594 = vadd.f32 %v12555, %v12573
          %v12595 = vadd.f32 %v12556, %v12573
          %v12596 = vadd.f32 %v12557, %v12573
          %v12597 = vadd.f32 %v12558, %v12573
          %v12598 = vadd.f32 %v12559, %v12573
          %v12599 = vadd.f32 %v12560, %v12573
          %v12600 = vadd.f32 %v12561, %v12573
          %v12601 = vadd.f32 %v12562, %v12573
          %v12602 = vadd.f32 %v12563, %v12573
          %v12603 = vadd.f32 %v12564, %v12573
          %v12604 = vadd.f32 %v12565, %v12573
          %v12605 = vadd.f32 %v12566, %v12573
          %v12606 = vadd.f32 %v12567, %v12573
          %12607 = vst [vmem:[%s378] sm:$0xff] %v12575
          %12608 = vst [vmem:[%s378 + $0x8] sm:$0xff] %v12576
          %12609 = vst [vmem:[%s378 + $0x10] sm:$0xff] %v12577
          %12610 = vst [vmem:[%s378 + $0x18] sm:$0xff] %v12578
          %12611 = vst [vmem:[%s378 + $0x20] sm:$0xff] %v12579
          %12612 = vst [vmem:[%s378 + $0x28] sm:$0xff] %v12580
          %12613 = vst [vmem:[%s378 + $0x30] sm:$0xff] %v12581
          %12614 = vst [vmem:[%s378 + $0x38] sm:$0xff] %v12582
          %12615 = vst [vmem:[%s378 + $0x40] sm:$0xff] %v12583
          %12616 = vst [vmem:[%s378 + $0x48] sm:$0xff] %v12584
          %12617 = vst [vmem:[%s378 + $0x50] sm:$0xff] %v12585
          %12618 = vst [vmem:[%s378 + $0x58] sm:$0xff] %v12586
          %12619 = vst [vmem:[%s378 + $0x60] sm:$0xff] %v12587
          %12620 = vst [vmem:[%s378 + $0x68] sm:$0xff] %v12588
          %12621 = vst [vmem:[%s378 + $0x70] sm:$0xff] %v12589
          %12622 = vst [vmem:[%s378 + $0x78] sm:$0xff] %v12590
          %12623 = vst [vmem:[%s378 + $0x80] sm:$0xff] %v12591
          %12624 = vst [vmem:[%s378 + $0x88] sm:$0xff] %v12592
          %12625 = vst [vmem:[%s378 + $0x90] sm:$0xff] %v12593
          %12626 = vst [vmem:[%s378 + $0x98] sm:$0xff] %v12594
          %12627 = vst [vmem:[%s378 + $0xa0] sm:$0xff] %v12595
          %12628 = vst [vmem:[%s378 + $0xa8] sm:$0xff] %v12596
          %12629 = vst [vmem:[%s378 + $0xb0] sm:$0xff] %v12597
          %12630 = vst [vmem:[%s378 + $0xb8] sm:$0xff] %v12598
          %12631 = vst [vmem:[%s378 + $0xc0] sm:$0xff] %v12599
          %12632 = vst [vmem:[%s378 + $0xc8] sm:$0xff] %v12600
          %12633 = vst [vmem:[%s378 + $0xd0] sm:$0xff] %v12601
          %12634 = vst [vmem:[%s378 + $0xd8] sm:$0xff] %v12602
          %12635 = vst [vmem:[%s378 + $0xe0] sm:$0xff] %v12603
          %12636 = vst [vmem:[%s378 + $0xe8] sm:$0xff] %v12604
          %12637 = vst [vmem:[%s378 + $0xf0] sm:$0xff] %v12605
          %12638 = vst [vmem:[%s378 + $0xf8] sm:$0xff] %v12606
        $region64: #{tpu_custom_call.1} parent=55 // pred_fallthru
          _
        %s12639 = sand.u32 %s252, 1
        %s12640 = scalar_lea.sflag [#allocation4], %s12639
        %s12641 = sand.u32 %s252, 1
        %s12642 = smul.addr %s12641, 256
        %s12643 = scalar_lea.vmem [#allocation3], %s12642
        // Predicated region
        $region65: #{tpu_custom_call.1} parent=55 // pred_check
          %p12644 = pneg %p262
        $region66: #{tpu_custom_call.1} parent=55 // pred_check_branch
          %12646 = sbr.rel (%p12644) target = $region68
        $region67: #{tpu_custom_call.1} parent=55 // pred_region
          %s12648 = ssub.s32 4096, 4096
          %12649 = vsyncadd %s12640, %s12648
          %s12650 = smul.addr %s27, 32
          %s12651 = smul.addr %s12650, 128
          %s12652 = scalar_lea.hbm %s9, %s12651
          %s12653 = sshll.u32 %s12643, 4
          %s12654 = int_to_ptr.vmem [resolvable:$true] %s12653
          %12659 = dma.vmem_to_hbm [thread:$0]  %s12654, 4096, %s12652, %s12640, 128, 128, 8
        $region68: #{tpu_custom_call.1} parent=55 // pred_fallthru
          _
      $region56: #{tpu_custom_call.1} parent=5 // pred_fallthru
        _
      %p12660 = scmp.le.s32.totalorder 2, %s18
      // Predicated region
      $region69: #{tpu_custom_call.1} parent=5 // pred_check
        %p12661 = pneg %p12660
      $region70: #{tpu_custom_call.1} parent=5 // pred_check_branch
        %12663 = sbr.rel (%p12661) target = $region72
      $region71: #{tpu_custom_call.1} parent=5 // pred_region
        %s12664 = ssub.s32 %s18, 2
        // Predicated region
        $region73: #{tpu_custom_call.1} parent=71 // pred_check
          %p12665 = pneg %p268
        $region74: #{tpu_custom_call.1} parent=71 // pred_check_branch
          %12667 = sbr.rel (%p12665) target = $region76
        $region75: #{tpu_custom_call.1} parent=71 // pred_region
          %s12668 = sand.u32 %s253, 1
          %s12669 = scalar_lea.sflag [#allocation4], %s12668
          %s12670 = sand.u32 %s253, 1
          %s12671 = smul.addr %s12670, 256
          %s12672 = scalar_lea.vmem [#allocation3], %s12671
          %12673 = dma.done %s12669, 4096
        $region76: #{tpu_custom_call.1} parent=71 // pred_fallthru
          _
      $region72: #{tpu_custom_call.1} parent=5 // pred_fallthru
        _
    $region6: #{tpu_custom_call.1} parent=1 // loop_footer
      %s22 = sadd.s32 1, %s18
    $region7: #{tpu_custom_call.1} parent=1 // loop_footer_branch
      %17 = sbr.rel target = $region3
    $region8: #{tpu_custom_call.1} parent=1 // loop_exit
      _
    %12674 = vsyncpa [#allocation4], 1
    %s12675 = scalar_lea.sflag [#allocation4], 1
    %12676 = vsyncpa %s12675, 1

</llo_original>
